<compile_context>
chip_gen: v7x
topology: tpu7x:2x2x1
jax: 0.10.0
libtpu: 0.0.40
codegen_flags: <defaults>
</compile_context>

<pallas_src>
import jax
import jax.numpy as jnp
from jax.experimental import pallas as pl
from jax.experimental.pallas import tpu as pltpu


def _mish_kernel(x_ref, o_ref):
    x = x_ref[...].astype(jnp.float32)
    # mish(x) = x * tanh(softplus(x)).  With e = exp(x):
    #   tanh(softplus(x)) = e*(e+2) / (e*(e+2) + 2)
    # Cancellation-free for negative x (unlike (t^2-1)/(t^2+1)); exp arg is
    # clamped and the y ~= x fast path handles x > 20 (torch softplus threshold).
    e = jnp.exp(jnp.minimum(x, 20.0))
    num = e * (e + 2.0)
    tanh_sp = num / (num + 2.0)  # exact divide (pl.reciprocal(approx) too lossy)
    y = jnp.where(x > 20.0, x, x * tanh_sp)
    o_ref[...] = y.astype(o_ref.dtype)


def _mish_plain(x):
    xf = x.astype(jnp.float32)
    return (xf * jnp.tanh(jax.nn.softplus(xf))).astype(x.dtype)


def _tpu_tuning():
    """(target_block_bytes, vmem_limit_bytes) per TPU generation (safe defaults)."""
    try:
        kind = jax.devices()[0].device_kind.lower()
    except Exception:
        kind = ""
    if "7x" in kind or "v7" in kind:
        # v7x: 64 MiB VMEM/TC, ~3.2 TB/s HBM -> bigger steps + explicit scoped-VMEM raise.
        # NOTE: "parallel" dim semantics should megacore-shard the row grid on v7x;
        # if profiling shows it doesn't, switch to pltpu.CORE_PARALLEL.
        return 8 * 1024 * 1024, 48 * 1024 * 1024
    if "v6" in kind:
        # v6e: 32 MiB scoped-VMEM default; 4 MiB blocks (4 buffers = 16 MiB) need no flag.
        return 4 * 1024 * 1024, None
    # v5e (16 MiB scoped default) / unknown: conservative 3 MiB blocks (12 MiB buffered).
    return 3 * 1024 * 1024, None


def _choose_width(n, min_rows):
    """Widest lane width (multiple of 128) dividing n that still leaves >= min_rows
    rows (so the grid can split across >=2 steps / TensorCores); else the widest
    divisor; else 512 (ragged -> small pad)."""
    widths = (8192, 4096, 2048, 1024, 512, 256, 128)
    divisors = [w for w in widths if n % w == 0]
    for w in divisors:
        if n // w >= min_rows:
            return w
    if divisors:
        return divisors[0]
    return 512


def _round_up(a, m):
    return (a + m - 1) // m * m


def mish_pallas(x, *, min_pallas_elems=16384):
    """Elementwise Mish via a Pallas TPU kernel. Works for any input shape/dtype."""
    orig_shape = x.shape
    orig_dtype = x.dtype
    n = x.size

    if n == 0:
        return x
    if n < min_pallas_elems:
        # Tiny-input fast path: kernel launch overhead would dominate.
        return _mish_plain(x)

    itemsize = jnp.dtype(orig_dtype).itemsize
    sub = max(8, 32 // max(itemsize, 1))  # sublane multiple: 8 f32 / 16 bf16 / 32 int8
    target_block_bytes, vmem_limit = _tpu_tuning()

    flat = x.reshape(-1)
    w = _choose_width(n, 2 * sub)
    pad = (-n) % w  # 0 in the aligned (common) case
    if pad:
        # TODO(synk): ragged tail still pays a pad + slice round trip (extra HBM
        # traffic); a masked partial final block would remove it.
        flat = jnp.pad(flat, (0, pad))
    rows = flat.shape[0] // w
    x2d = flat.reshape(rows, w)

    # Tile sizing in BYTES so bf16 tiles amortize per-step overhead as well as f32.
    block_rows = max(sub, (target_block_bytes // (w * itemsize)) // sub * sub)

    # Never let the grid collapse to one step when a split is possible: keeps the
    # pipeline overlapped and gives v7x's second TensorCore work on medium sizes.
    if rows > sub:
        half = _round_up((rows + 1) // 2, sub)
        block_rows = min(block_rows, half)
    if block_rows >= rows:
        block_rows = rows  # full-extent block: always a legal block shape
    grid_rows = pl.cdiv(rows, block_rows)

    # Prefer an even step count (dual-TC load balance on v7x) when it is cheap.
    if 1 < grid_rows < 64 and grid_rows % 2 == 1:
        cand = max(sub, _round_up(pl.cdiv(rows, grid_rows + 1), sub))
        if cand < block_rows and pl.cdiv(rows, cand) % 2 == 0:
            block_rows = cand
            grid_rows = pl.cdiv(rows, cand)

    cp_kwargs = dict(dimension_semantics=("parallel",))  # v7x: shard rows over 2 TCs
    if vmem_limit is not None:
        cp_kwargs["vmem_limit_bytes"] = vmem_limit

    out2d = pl.pallas_call(
        _mish_kernel,
        out_shape=jax.ShapeDtypeStruct((rows, w), orig_dtype),
        grid_spec=pltpu.PrefetchScalarGridSpec(
            num_scalar_prefetch=0,
            grid=(grid_rows,),
            in_specs=[pl.BlockSpec((block_rows, w), lambda i: (i, 0))],
            out_specs=pl.BlockSpec((block_rows, w), lambda i: (i, 0)),
        ),
        compiler_params=pltpu.CompilerParams(**cp_kwargs),
        cost_estimate=pl.CostEstimate(
            flops=8 * rows * w,
            transcendentals=rows * w,
            bytes_accessed=2 * rows * w * itemsize,
        ),
    )(x2d)

    out = out2d.reshape(-1)
    if pad:
        out = out[:n]
    return out.reshape(orig_shape)


class Mish:
    """Drop-in functional equivalent of the PyTorch Mish module's forward."""

    def __call__(self, x):
        return mish_pallas(x)


def mish_reference(x):
    xf = x.astype(jnp.float32)
    return (xf * jnp.tanh(jax.nn.softplus(xf))).astype(x.dtype)


def _check(y, y_ref, atol, rtol, name):
    y = jnp.asarray(y, jnp.float32)
    y_ref = jnp.asarray(y_ref, jnp.float32)
    assert jnp.allclose(y, y_ref, atol=atol, rtol=rtol), f"mismatch vs reference ({name})"


if __name__ == "__main__":
    key = jax.random.PRNGKey(0)
    k1, k2, k3, k4 = jax.random.split(key, 4)
    act = Mish()

    # 1) Small NCL-style activation tensor consistent with the 1D-CNN VAE
    #    (batch=2, channels=4, length=16) -> tiny-input fast path.
    x_small = jax.random.normal(k1, (2, 4, 16), dtype=jnp.float32) * 3.0
    y_small = jax.block_until_ready(act(x_small))
    assert y_small.shape == x_small.shape and y_small.dtype == x_small.dtype
    _check(y_small, mish_reference(x_small), 1e-5, 1e-5, "small f32")

    # 2) Larger f32 tensor -> Pallas path, multi-block grid (exercises pipelining
    #    and partial last row-block masking).
    x_large = jax.random.normal(k2, (8, 32, 8192), dtype=jnp.float32) * 3.0
    y_large = jax.block_until_ready(act(x_large))
    assert y_large.shape == x_large.shape and y_large.dtype == x_large.dtype
    _check(y_large, mish_reference(x_large), 1e-5, 1e-5, "large f32")

    # 3) bf16 activations stay bf16 on the wire (f32 math only inside the kernel);
    #    medium size exercises the no-grid-collapse split.
    x_bf16 = (jax.random.normal(k3, (4, 16, 2048), dtype=jnp.float32) * 3.0).astype(jnp.bfloat16)
    y_bf16 = jax.block_until_ready(act(x_bf16))
    assert y_bf16.shape == x_bf16.shape and y_bf16.dtype == x_bf16.dtype
    _check(y_bf16, mish_reference(x_bf16), 1e-2, 1e-2, "bf16")

    # 4) Ragged size (not a multiple of 128) -> minimal-pad fallback path,
    #    including moderately negative inputs (cancellation regression check).
    x_ragged = jax.random.normal(k4, (7, 13, 997), dtype=jnp.float32) * 8.0 - 4.0
    y_ragged = jax.block_until_ready(act(x_ragged))
    assert y_ragged.shape == x_ragged.shape and y_ragged.dtype == x_ragged.dtype
    _check(y_ragged, mish_reference(x_ragged), 1e-5, 1e-4, "ragged f32")

    print("KERNEL_OK")
</pallas_src>

<mosaic_0001>
module attributes {stable_mosaic.version = 11 : i64} {
  func.func @_mish_kernel(%arg0: i32, %arg1: memref<64x8192xf32, #tpu.memory_space<vmem>>, %arg2: memref<64x8192xf32, #tpu.memory_space<vmem>>) attributes {dimension_semantics = [#tpu.dimension_semantics<parallel>], iteration_bounds = array<i64: 4>, scalar_prefetch = 0 : i64, scratch_operands = 0 : i64, tpu.core_type = #tpu.core_type<tc>, window_params = [{transform_indices = @transform_0, window_bounds = array<i64: 64, 8192>}, {transform_indices = @transform_1, window_bounds = array<i64: 64, 8192>}]} {
    %c0 = arith.constant 0 : index
    %c0_0 = arith.constant 0 : index
    %0 = vector.load %arg1[%c0, %c0_0] : memref<64x8192xf32, #tpu.memory_space<vmem>>, vector<64x8192xf32>
    %cst = arith.constant 2.000000e+01 : f32
    %1 = vector.broadcast %cst : f32 to vector<64x8192xf32>
    %2 = arith.minimumf %0, %1 : vector<64x8192xf32>
    %3 = math.exp %2 : vector<64x8192xf32>
    %cst_1 = arith.constant 2.000000e+00 : f32
    %4 = vector.broadcast %cst_1 : f32 to vector<64x8192xf32>
    %5 = arith.addf %3, %4 : vector<64x8192xf32>
    %6 = arith.mulf %3, %5 : vector<64x8192xf32>
    %cst_2 = arith.constant 2.000000e+00 : f32
    %7 = vector.broadcast %cst_2 : f32 to vector<64x8192xf32>
    %8 = arith.addf %6, %7 : vector<64x8192xf32>
    %9 = arith.divf %6, %8 : vector<64x8192xf32>
    %cst_3 = arith.constant 2.000000e+01 : f32
    %10 = vector.broadcast %cst_3 : f32 to vector<64x8192xf32>
    %11 = arith.cmpf ogt, %0, %10 : vector<64x8192xf32>
    %12 = arith.mulf %0, %9 : vector<64x8192xf32>
    %13 = arith.select %11, %0, %12 : vector<64x8192xi1>, vector<64x8192xf32>
    %c0_4 = arith.constant 0 : index
    %c0_5 = arith.constant 0 : index
    %14 = vector.load %arg2[%c0_4, %c0_5] : memref<64x8192xf32, #tpu.memory_space<vmem>>, vector<64x8192xf32>
    tpu.vector_store %arg2[%c0_4, %c0_5], %13 {strides = array<i32>} : memref<64x8192xf32, #tpu.memory_space<vmem>>, vector<64x8192xf32>,
    return
  }
  func.func @transform_0(%arg0: i32) -> (i32, i32) {
    %c0_i32 = arith.constant 0 : i32
    %c0_i32_0 = arith.constant 0 : i32
    return %arg0, %c0_i32 : i32, i32
  }
  func.func @transform_1(%arg0: i32) -> (i32, i32) {
    %c0_i32 = arith.constant 0 : i32
    %c0_i32_0 = arith.constant 0 : i32
    return %arg0, %c0_i32 : i32, i32
  }
}

</mosaic_0001>

<llo_original>
// kernel: tpu_custom_call.1
$region0: #{tpu_custom_call.1}
  #allocation0 [shape = 'u32[]', space=smem, size = 0x4, offset = 0x4, fixed_abs, tag = 'smem constant byte address 0x4 - core index']
  #allocation1 [shape = 'u32[144,128]{1,0:T(1,128)}', space=vmem, size = 0x12000, scoped, tag = 'internal scratch']
  %s0 = inlined_call_operand.hbm [shape: f32[256,8192], index: 0, kind: input, shape index: {}]
  %s1 = inlined_call_operand.hbm [shape: f32[256,8192], index: 1, kind: output, shape index: {}]
  %s2 = sld [smem:[#allocation0]]
  $region41: #{tpu_custom_call.1} parent=0
    _
  %s4 = ssub.s32 1, %s2
  %s5 = scalar_select 0, %s4, %s2
  $region1: #{tpu_custom_call.1} parent=0
    #allocation2 [shape = 'u8[4194304]{0}', space=vmem, size = 0x400000, scoped, tag = 'input window, operand 0']
    #allocation3 [shape = 's32[2]{0}', space=sflag, size = 0x8, scoped, tag = 'scoped memory for tpu_custom_call.1']
    #allocation4 [shape = 's32[2]{0}', space=sflag, size = 0x8, scoped, tag = 'scoped memory for tpu_custom_call.1']
    #allocation5 [shape = 'u8[4194304]{0}', space=vmem, size = 0x400000, scoped, tag = 'output window, operand 0']
    %6 = vsyncpa [#allocation3], 0
    %s7 = scalar_lea.sflag [#allocation3], 1
    %8 = vsyncpa %s7, 0
    %9 = vsyncpa [#allocation4], 0
    %s10 = scalar_lea.sflag [#allocation4], 1
    %11 = vsyncpa %s10, 0
    loop: start=0, step=1, limit=6
    $region2: #{tpu_custom_call.1} parent=1 // loop_pre_header
      _
    $region3: #{tpu_custom_call.1} parent=1 // loop_header
      %s13 = sphi 0, %s17
      %p14 = scmp.ge.s32.totalorder %s13, 6
      %s23 = sphi 0, %s25
      %s26 = sphi 0, %s23
      %s27 = sphi 0, %s26
      %s43 = sphi 0, %s27
      %s49 = sphi 0, %s51
      %s52 = sphi 0, %s49
      %s53 = sphi 0, %s52
      %s69 = sphi 0, %s53
    $region4: #{tpu_custom_call.1} parent=1 // loop_header_branch
      %16 = sbr.rel (%p14) target = $region8
    $region5: #{tpu_custom_call.1} parent=1 // loop_body
      %s18 = ssub.s32 %s13, 1
      %s19 = ssub.s32 %s13, 2
      %s20 = sadd.s32 %s13, 1
      %s21 = ssub.s32 %s13, %s20
      %p22 = scmp.eq.s32.totalorder %s21, 0
      %s24 = sadd.s32 %s23, 1
      %s25 = scalar_select %p22, %s23, %s24
      %p28 = pneg %p22
      %p29 = scmp.eq.s32.totalorder %s13, 3
      %p30 = por %p28, %p29
      %p31 = scmp.ne.s32.totalorder %s23, %s26
      %p32 = scmp.eq.s32.totalorder %s13, 0
      %p33 = por %p31, %p32
      %p34 = scmp.ne.s32.totalorder %s23, %s26
      %p35 = scmp.eq.s32.totalorder %s18, 3
      %p36 = por %p34, %p35
      %p37 = scmp.ne.s32.totalorder %s26, %s27
      %p38 = scmp.eq.s32.totalorder %s18, 0
      %p39 = por %p37, %p38
      %p40 = scmp.ne.s32.totalorder %s26, %s27
      %p41 = scmp.eq.s32.totalorder %s19, 3
      %p42 = por %p40, %p41
      %p44 = scmp.ne.s32.totalorder %s27, %s43
      %p45 = scmp.eq.s32.totalorder %s19, 0
      %p46 = por %p44, %p45
      %s47 = ssub.s32 %s13, %s20
      %p48 = scmp.eq.s32.totalorder %s47, 0
      %s50 = sadd.s32 %s49, 1
      %s51 = scalar_select %p48, %s49, %s50
      %p54 = pneg %p48
      %p55 = scmp.eq.s32.totalorder %s13, 3
      %p56 = por %p54, %p55
      %p57 = scmp.ne.s32.totalorder %s49, %s52
      %p58 = scmp.eq.s32.totalorder %s13, 0
      %p59 = por %p57, %p58
      %p60 = scmp.ne.s32.totalorder %s49, %s52
      %p61 = scmp.eq.s32.totalorder %s18, 3
      %p62 = por %p60, %p61
      %p63 = scmp.ne.s32.totalorder %s52, %s53
      %p64 = scmp.eq.s32.totalorder %s18, 0
      %p65 = por %p63, %p64
      %p66 = scmp.ne.s32.totalorder %s52, %s53
      %p67 = scmp.eq.s32.totalorder %s19, 3
      %p68 = por %p66, %p67
      %p70 = scmp.ne.s32.totalorder %s53, %s69
      %p71 = scmp.eq.s32.totalorder %s19, 0
      %p72 = por %p70, %p71
      %p73 = scmp.le.s32.totalorder 1, %s13
      %p74 = scmp.lt.s32.totalorder %s13, 5
      %p75 = pnand %p73, %p74
      %p76 = pneg %p75
      // Predicated region
      $region9: #{tpu_custom_call.1} parent=5 // pred_check
        _
      $region10: #{tpu_custom_call.1} parent=5 // pred_check_branch
        %78 = sbr.rel (%p75) target = $region12
      $region11: #{tpu_custom_call.1} parent=5 // pred_region
        %s79 = ssub.s32 %s13, 1
      $region12: #{tpu_custom_call.1} parent=5 // pred_fallthru
        _
      %p80 = scmp.lt.s32.totalorder %s13, 4
      // Predicated region
      $region13: #{tpu_custom_call.1} parent=5 // pred_check
        %p81 = pneg %p80
      $region14: #{tpu_custom_call.1} parent=5 // pred_check_branch
        %83 = sbr.rel (%p81) target = $region16
      $region15: #{tpu_custom_call.1} parent=5 // pred_region
        // Predicated region
        $region17: #{tpu_custom_call.1} parent=15 // pred_check
          %p84 = pneg %p33
        $region18: #{tpu_custom_call.1} parent=15 // pred_check_branch
          %86 = sbr.rel (%p84) target = $region20
        $region19: #{tpu_custom_call.1} parent=15 // pred_region
          %s87 = sand.u32 %s23, 1
          %s88 = scalar_lea.sflag [#allocation3], %s87
          %s89 = sand.u32 %s23, 1
          %s90 = smul.addr %s89, 4096
          %s91 = scalar_lea.vmem [#allocation2], %s90
          %s92 = smul.u32 8, %s13
          %s94 = ssub.s32 65536, 65536
          %95 = vsyncadd %s88, %s94
          %s96 = smul.addr %s92, 64
          %s97 = smul.addr %s96, 128
          %s98 = scalar_lea.hbm %s0, %s97
          %s99 = sshll.u32 %s91, 4
          %s100 = int_to_ptr.vmem [resolvable:$true] %s99
          %105 = dma.hbm_to_vmem [thread:$0]  %s98, 65536, %s100, %s88, 8192, 8192, 512
        $region20: #{tpu_custom_call.1} parent=15 // pred_fallthru
          _
      $region16: #{tpu_custom_call.1} parent=5 // pred_fallthru
        _
      %p106 = scmp.le.s32.totalorder 1, %s13
      %p107 = scmp.lt.s32.totalorder %s13, 5
      %p108 = pnand %p106, %p107
      %p109 = pneg %p108
      // Predicated region
      $region21: #{tpu_custom_call.1} parent=5 // pred_check
        _
      $region22: #{tpu_custom_call.1} parent=5 // pred_check_branch
        %111 = sbr.rel (%p108) target = $region24
      $region23: #{tpu_custom_call.1} parent=5 // pred_region
        %s112 = ssub.s32 %s13, 1
        %s113 = sand.u32 %s26, 1
        %s114 = scalar_lea.sflag [#allocation3], %s113
        %s115 = sand.u32 %s26, 1
        %s116 = smul.addr %s115, 4096
        %s117 = scalar_lea.vmem [#allocation2], %s116
        // Predicated region
        $region25: #{tpu_custom_call.1} parent=23 // pred_check
          %p118 = pneg %p39
        $region26: #{tpu_custom_call.1} parent=23 // pred_check_branch
          %120 = sbr.rel (%p118) target = $region28
        $region27: #{tpu_custom_call.1} parent=23 // pred_region
          %121 = dma.done %s114, 65536
        $region28: #{tpu_custom_call.1} parent=23 // pred_fallthru
          _
        %s122 = sand.u32 %s26, 1
        %s123 = scalar_lea.sflag [#allocation3], %s122
        %s124 = sand.u32 %s26, 1
        %s125 = smul.addr %s124, 4096
        %s126 = scalar_lea.vmem [#allocation2], %s125
        %p127 = pneg %p39
        %p128 = pneg %p36
        %p129 = pneg %p65
        %p130 = pneg %p62
        %s131 = sand.u32 %s52, 1
        %s132 = scalar_lea.sflag [#allocation4], %s131
        %s133 = sand.u32 %s52, 1
        %s134 = smul.addr %s133, 4096
        %s135 = scalar_lea.vmem [#allocation5], %s134
        %s136 = smul.u32 8, %s18
        %s137 = smul.u32 8, %s18
        %v138 = vld [vmem:[%s117] sm:$0xff]
        %v139 = vld [vmem:[%s117 + $0x8] sm:$0xff]
        %v140 = vld [vmem:[%s117 + $0x10] sm:$0xff]
        %v141 = vld [vmem:[%s117 + $0x18] sm:$0xff]
        %v142 = vld [vmem:[%s117 + $0x20] sm:$0xff]
        %v143 = vld [vmem:[%s117 + $0x28] sm:$0xff]
        %v144 = vld [vmem:[%s117 + $0x30] sm:$0xff]
        %v145 = vld [vmem:[%s117 + $0x38] sm:$0xff]
        %v146 = vld [vmem:[%s117 + $0x40] sm:$0xff]
        %v147 = vld [vmem:[%s117 + $0x48] sm:$0xff]
        %v148 = vld [vmem:[%s117 + $0x50] sm:$0xff]
        %v149 = vld [vmem:[%s117 + $0x58] sm:$0xff]
        %v150 = vld [vmem:[%s117 + $0x60] sm:$0xff]
        %v151 = vld [vmem:[%s117 + $0x68] sm:$0xff]
        %v152 = vld [vmem:[%s117 + $0x70] sm:$0xff]
        %v153 = vld [vmem:[%s117 + $0x78] sm:$0xff]
        %v154 = vld [vmem:[%s117 + $0x80] sm:$0xff]
        %v155 = vld [vmem:[%s117 + $0x88] sm:$0xff]
        %v156 = vld [vmem:[%s117 + $0x90] sm:$0xff]
        %v157 = vld [vmem:[%s117 + $0x98] sm:$0xff]
        %v158 = vld [vmem:[%s117 + $0xa0] sm:$0xff]
        %v159 = vld [vmem:[%s117 + $0xa8] sm:$0xff]
        %v160 = vld [vmem:[%s117 + $0xb0] sm:$0xff]
        %v161 = vld [vmem:[%s117 + $0xb8] sm:$0xff]
        %v162 = vld [vmem:[%s117 + $0xc0] sm:$0xff]
        %v163 = vld [vmem:[%s117 + $0xc8] sm:$0xff]
        %v164 = vld [vmem:[%s117 + $0xd0] sm:$0xff]
        %v165 = vld [vmem:[%s117 + $0xd8] sm:$0xff]
        %v166 = vld [vmem:[%s117 + $0xe0] sm:$0xff]
        %v167 = vld [vmem:[%s117 + $0xe8] sm:$0xff]
        %v168 = vld [vmem:[%s117 + $0xf0] sm:$0xff]
        %v169 = vld [vmem:[%s117 + $0xf8] sm:$0xff]
        %v170 = vld [vmem:[%s117 + $0x100] sm:$0xff]
        %v171 = vld [vmem:[%s117 + $0x108] sm:$0xff]
        %v172 = vld [vmem:[%s117 + $0x110] sm:$0xff]
        %v173 = vld [vmem:[%s117 + $0x118] sm:$0xff]
        %v174 = vld [vmem:[%s117 + $0x120] sm:$0xff]
        %v175 = vld [vmem:[%s117 + $0x128] sm:$0xff]
        %v176 = vld [vmem:[%s117 + $0x130] sm:$0xff]
        %v177 = vld [vmem:[%s117 + $0x138] sm:$0xff]
        %v178 = vld [vmem:[%s117 + $0x140] sm:$0xff]
        %v179 = vld [vmem:[%s117 + $0x148] sm:$0xff]
        %v180 = vld [vmem:[%s117 + $0x150] sm:$0xff]
        %v181 = vld [vmem:[%s117 + $0x158] sm:$0xff]
        %v182 = vld [vmem:[%s117 + $0x160] sm:$0xff]
        %v183 = vld [vmem:[%s117 + $0x168] sm:$0xff]
        %v184 = vld [vmem:[%s117 + $0x170] sm:$0xff]
        %v185 = vld [vmem:[%s117 + $0x178] sm:$0xff]
        %v186 = vld [vmem:[%s117 + $0x180] sm:$0xff]
        %v187 = vld [vmem:[%s117 + $0x188] sm:$0xff]
        %v188 = vld [vmem:[%s117 + $0x190] sm:$0xff]
        %v189 = vld [vmem:[%s117 + $0x198] sm:$0xff]
        %v190 = vld [vmem:[%s117 + $0x1a0] sm:$0xff]
        %v191 = vld [vmem:[%s117 + $0x1a8] sm:$0xff]
        %v192 = vld [vmem:[%s117 + $0x1b0] sm:$0xff]
        %v193 = vld [vmem:[%s117 + $0x1b8] sm:$0xff]
        %v194 = vld [vmem:[%s117 + $0x1c0] sm:$0xff]
        %v195 = vld [vmem:[%s117 + $0x1c8] sm:$0xff]
        %v196 = vld [vmem:[%s117 + $0x1d0] sm:$0xff]
        %v197 = vld [vmem:[%s117 + $0x1d8] sm:$0xff]
        %v198 = vld [vmem:[%s117 + $0x1e0] sm:$0xff]
        %v199 = vld [vmem:[%s117 + $0x1e8] sm:$0xff]
        %v200 = vld [vmem:[%s117 + $0x1f0] sm:$0xff]
        %v201 = vld [vmem:[%s117 + $0x1f8] sm:$0xff]
        %v202 = vld [vmem:[%s117 + $0x200] sm:$0xff]
        %v203 = vld [vmem:[%s117 + $0x208] sm:$0xff]
        %v204 = vld [vmem:[%s117 + $0x210] sm:$0xff]
        %v205 = vld [vmem:[%s117 + $0x218] sm:$0xff]
        %v206 = vld [vmem:[%s117 + $0x220] sm:$0xff]
        %v207 = vld [vmem:[%s117 + $0x228] sm:$0xff]
        %v208 = vld [vmem:[%s117 + $0x230] sm:$0xff]
        %v209 = vld [vmem:[%s117 + $0x238] sm:$0xff]
        %v210 = vld [vmem:[%s117 + $0x240] sm:$0xff]
        %v211 = vld [vmem:[%s117 + $0x248] sm:$0xff]
        %v212 = vld [vmem:[%s117 + $0x250] sm:$0xff]
        %v213 = vld [vmem:[%s117 + $0x258] sm:$0xff]
        %v214 = vld [vmem:[%s117 + $0x260] sm:$0xff]
        %v215 = vld [vmem:[%s117 + $0x268] sm:$0xff]
        %v216 = vld [vmem:[%s117 + $0x270] sm:$0xff]
        %v217 = vld [vmem:[%s117 + $0x278] sm:$0xff]
        %v218 = vld [vmem:[%s117 + $0x280] sm:$0xff]
        %v219 = vld [vmem:[%s117 + $0x288] sm:$0xff]
        %v220 = vld [vmem:[%s117 + $0x290] sm:$0xff]
        %v221 = vld [vmem:[%s117 + $0x298] sm:$0xff]
        %v222 = vld [vmem:[%s117 + $0x2a0] sm:$0xff]
        %v223 = vld [vmem:[%s117 + $0x2a8] sm:$0xff]
        %v224 = vld [vmem:[%s117 + $0x2b0] sm:$0xff]
        %v225 = vld [vmem:[%s117 + $0x2b8] sm:$0xff]
        %v226 = vld [vmem:[%s117 + $0x2c0] sm:$0xff]
        %v227 = vld [vmem:[%s117 + $0x2c8] sm:$0xff]
        %v228 = vld [vmem:[%s117 + $0x2d0] sm:$0xff]
        %v229 = vld [vmem:[%s117 + $0x2d8] sm:$0xff]
        %v230 = vld [vmem:[%s117 + $0x2e0] sm:$0xff]
        %v231 = vld [vmem:[%s117 + $0x2e8] sm:$0xff]
        %v232 = vld [vmem:[%s117 + $0x2f0] sm:$0xff]
        %v233 = vld [vmem:[%s117 + $0x2f8] sm:$0xff]
        %v234 = vld [vmem:[%s117 + $0x300] sm:$0xff]
        %v235 = vld [vmem:[%s117 + $0x308] sm:$0xff]
        %v236 = vld [vmem:[%s117 + $0x310] sm:$0xff]
        %v237 = vld [vmem:[%s117 + $0x318] sm:$0xff]
        %v238 = vld [vmem:[%s117 + $0x320] sm:$0xff]
        %v239 = vld [vmem:[%s117 + $0x328] sm:$0xff]
        %v240 = vld [vmem:[%s117 + $0x330] sm:$0xff]
        %v241 = vld [vmem:[%s117 + $0x338] sm:$0xff]
        %v242 = vld [vmem:[%s117 + $0x340] sm:$0xff]
        %v243 = vld [vmem:[%s117 + $0x348] sm:$0xff]
        %v244 = vld [vmem:[%s117 + $0x350] sm:$0xff]
        %v245 = vld [vmem:[%s117 + $0x358] sm:$0xff]
        %v246 = vld [vmem:[%s117 + $0x360] sm:$0xff]
        %v247 = vld [vmem:[%s117 + $0x368] sm:$0xff]
        %v248 = vld [vmem:[%s117 + $0x370] sm:$0xff]
        %v249 = vld [vmem:[%s117 + $0x378] sm:$0xff]
        %v250 = vld [vmem:[%s117 + $0x380] sm:$0xff]
        %v251 = vld [vmem:[%s117 + $0x388] sm:$0xff]
        %v252 = vld [vmem:[%s117 + $0x390] sm:$0xff]
        %v253 = vld [vmem:[%s117 + $0x398] sm:$0xff]
        %v254 = vld [vmem:[%s117 + $0x3a0] sm:$0xff]
        %v255 = vld [vmem:[%s117 + $0x3a8] sm:$0xff]
        %v256 = vld [vmem:[%s117 + $0x3b0] sm:$0xff]
        %v257 = vld [vmem:[%s117 + $0x3b8] sm:$0xff]
        %v258 = vld [vmem:[%s117 + $0x3c0] sm:$0xff]
        %v259 = vld [vmem:[%s117 + $0x3c8] sm:$0xff]
        %v260 = vld [vmem:[%s117 + $0x3d0] sm:$0xff]
        %v261 = vld [vmem:[%s117 + $0x3d8] sm:$0xff]
        %v262 = vld [vmem:[%s117 + $0x3e0] sm:$0xff]
        %v263 = vld [vmem:[%s117 + $0x3e8] sm:$0xff]
        %v264 = vld [vmem:[%s117 + $0x3f0] sm:$0xff]
        %v265 = vld [vmem:[%s117 + $0x3f8] sm:$0xff]
        %v266 = vld [vmem:[%s117 + $0x400] sm:$0xff]
        %v267 = vld [vmem:[%s117 + $0x408] sm:$0xff]
        %v268 = vld [vmem:[%s117 + $0x410] sm:$0xff]
        %v269 = vld [vmem:[%s117 + $0x418] sm:$0xff]
        %v270 = vld [vmem:[%s117 + $0x420] sm:$0xff]
        %v271 = vld [vmem:[%s117 + $0x428] sm:$0xff]
        %v272 = vld [vmem:[%s117 + $0x430] sm:$0xff]
        %v273 = vld [vmem:[%s117 + $0x438] sm:$0xff]
        %v274 = vld [vmem:[%s117 + $0x440] sm:$0xff]
        %v275 = vld [vmem:[%s117 + $0x448] sm:$0xff]
        %v276 = vld [vmem:[%s117 + $0x450] sm:$0xff]
        %v277 = vld [vmem:[%s117 + $0x458] sm:$0xff]
        %v278 = vld [vmem:[%s117 + $0x460] sm:$0xff]
        %v279 = vld [vmem:[%s117 + $0x468] sm:$0xff]
        %v280 = vld [vmem:[%s117 + $0x470] sm:$0xff]
        %v281 = vld [vmem:[%s117 + $0x478] sm:$0xff]
        %v282 = vld [vmem:[%s117 + $0x480] sm:$0xff]
        %v283 = vld [vmem:[%s117 + $0x488] sm:$0xff]
        %v284 = vld [vmem:[%s117 + $0x490] sm:$0xff]
        %v285 = vld [vmem:[%s117 + $0x498] sm:$0xff]
        %v286 = vld [vmem:[%s117 + $0x4a0] sm:$0xff]
        %v287 = vld [vmem:[%s117 + $0x4a8] sm:$0xff]
        %v288 = vld [vmem:[%s117 + $0x4b0] sm:$0xff]
        %v289 = vld [vmem:[%s117 + $0x4b8] sm:$0xff]
        %v290 = vld [vmem:[%s117 + $0x4c0] sm:$0xff]
        %v291 = vld [vmem:[%s117 + $0x4c8] sm:$0xff]
        %v292 = vld [vmem:[%s117 + $0x4d0] sm:$0xff]
        %v293 = vld [vmem:[%s117 + $0x4d8] sm:$0xff]
        %v294 = vld [vmem:[%s117 + $0x4e0] sm:$0xff]
        %v295 = vld [vmem:[%s117 + $0x4e8] sm:$0xff]
        %v296 = vld [vmem:[%s117 + $0x4f0] sm:$0xff]
        %v297 = vld [vmem:[%s117 + $0x4f8] sm:$0xff]
        %v298 = vld [vmem:[%s117 + $0x500] sm:$0xff]
        %v299 = vld [vmem:[%s117 + $0x508] sm:$0xff]
        %v300 = vld [vmem:[%s117 + $0x510] sm:$0xff]
        %v301 = vld [vmem:[%s117 + $0x518] sm:$0xff]
        %v302 = vld [vmem:[%s117 + $0x520] sm:$0xff]
        %v303 = vld [vmem:[%s117 + $0x528] sm:$0xff]
        %v304 = vld [vmem:[%s117 + $0x530] sm:$0xff]
        %v305 = vld [vmem:[%s117 + $0x538] sm:$0xff]
        %v306 = vld [vmem:[%s117 + $0x540] sm:$0xff]
        %v307 = vld [vmem:[%s117 + $0x548] sm:$0xff]
        %v308 = vld [vmem:[%s117 + $0x550] sm:$0xff]
        %v309 = vld [vmem:[%s117 + $0x558] sm:$0xff]
        %v310 = vld [vmem:[%s117 + $0x560] sm:$0xff]
        %v311 = vld [vmem:[%s117 + $0x568] sm:$0xff]
        %v312 = vld [vmem:[%s117 + $0x570] sm:$0xff]
        %v313 = vld [vmem:[%s117 + $0x578] sm:$0xff]
        %v314 = vld [vmem:[%s117 + $0x580] sm:$0xff]
        %v315 = vld [vmem:[%s117 + $0x588] sm:$0xff]
        %v316 = vld [vmem:[%s117 + $0x590] sm:$0xff]
        %v317 = vld [vmem:[%s117 + $0x598] sm:$0xff]
        %v318 = vld [vmem:[%s117 + $0x5a0] sm:$0xff]
        %v319 = vld [vmem:[%s117 + $0x5a8] sm:$0xff]
        %v320 = vld [vmem:[%s117 + $0x5b0] sm:$0xff]
        %v321 = vld [vmem:[%s117 + $0x5b8] sm:$0xff]
        %v322 = vld [vmem:[%s117 + $0x5c0] sm:$0xff]
        %v323 = vld [vmem:[%s117 + $0x5c8] sm:$0xff]
        %v324 = vld [vmem:[%s117 + $0x5d0] sm:$0xff]
        %v325 = vld [vmem:[%s117 + $0x5d8] sm:$0xff]
        %v326 = vld [vmem:[%s117 + $0x5e0] sm:$0xff]
        %v327 = vld [vmem:[%s117 + $0x5e8] sm:$0xff]
        %v328 = vld [vmem:[%s117 + $0x5f0] sm:$0xff]
        %v329 = vld [vmem:[%s117 + $0x5f8] sm:$0xff]
        %v330 = vld [vmem:[%s117 + $0x600] sm:$0xff]
        %v331 = vld [vmem:[%s117 + $0x608] sm:$0xff]
        %v332 = vld [vmem:[%s117 + $0x610] sm:$0xff]
        %v333 = vld [vmem:[%s117 + $0x618] sm:$0xff]
        %v334 = vld [vmem:[%s117 + $0x620] sm:$0xff]
        %v335 = vld [vmem:[%s117 + $0x628] sm:$0xff]
        %v336 = vld [vmem:[%s117 + $0x630] sm:$0xff]
        %v337 = vld [vmem:[%s117 + $0x638] sm:$0xff]
        %v338 = vld [vmem:[%s117 + $0x640] sm:$0xff]
        %v339 = vld [vmem:[%s117 + $0x648] sm:$0xff]
        %v340 = vld [vmem:[%s117 + $0x650] sm:$0xff]
        %v341 = vld [vmem:[%s117 + $0x658] sm:$0xff]
        %v342 = vld [vmem:[%s117 + $0x660] sm:$0xff]
        %v343 = vld [vmem:[%s117 + $0x668] sm:$0xff]
        %v344 = vld [vmem:[%s117 + $0x670] sm:$0xff]
        %v345 = vld [vmem:[%s117 + $0x678] sm:$0xff]
        %v346 = vld [vmem:[%s117 + $0x680] sm:$0xff]
        %v347 = vld [vmem:[%s117 + $0x688] sm:$0xff]
        %v348 = vld [vmem:[%s117 + $0x690] sm:$0xff]
        %v349 = vld [vmem:[%s117 + $0x698] sm:$0xff]
        %v350 = vld [vmem:[%s117 + $0x6a0] sm:$0xff]
        %v351 = vld [vmem:[%s117 + $0x6a8] sm:$0xff]
        %v352 = vld [vmem:[%s117 + $0x6b0] sm:$0xff]
        %v353 = vld [vmem:[%s117 + $0x6b8] sm:$0xff]
        %v354 = vld [vmem:[%s117 + $0x6c0] sm:$0xff]
        %v355 = vld [vmem:[%s117 + $0x6c8] sm:$0xff]
        %v356 = vld [vmem:[%s117 + $0x6d0] sm:$0xff]
        %v357 = vld [vmem:[%s117 + $0x6d8] sm:$0xff]
        %v358 = vld [vmem:[%s117 + $0x6e0] sm:$0xff]
        %v359 = vld [vmem:[%s117 + $0x6e8] sm:$0xff]
        %v360 = vld [vmem:[%s117 + $0x6f0] sm:$0xff]
        %v361 = vld [vmem:[%s117 + $0x6f8] sm:$0xff]
        %v362 = vld [vmem:[%s117 + $0x700] sm:$0xff]
        %v363 = vld [vmem:[%s117 + $0x708] sm:$0xff]
        %v364 = vld [vmem:[%s117 + $0x710] sm:$0xff]
        %v365 = vld [vmem:[%s117 + $0x718] sm:$0xff]
        %v366 = vld [vmem:[%s117 + $0x720] sm:$0xff]
        %v367 = vld [vmem:[%s117 + $0x728] sm:$0xff]
        %v368 = vld [vmem:[%s117 + $0x730] sm:$0xff]
        %v369 = vld [vmem:[%s117 + $0x738] sm:$0xff]
        %v370 = vld [vmem:[%s117 + $0x740] sm:$0xff]
        %v371 = vld [vmem:[%s117 + $0x748] sm:$0xff]
        %v372 = vld [vmem:[%s117 + $0x750] sm:$0xff]
        %v373 = vld [vmem:[%s117 + $0x758] sm:$0xff]
        %v374 = vld [vmem:[%s117 + $0x760] sm:$0xff]
        %v375 = vld [vmem:[%s117 + $0x768] sm:$0xff]
        %v376 = vld [vmem:[%s117 + $0x770] sm:$0xff]
        %v377 = vld [vmem:[%s117 + $0x778] sm:$0xff]
        %v378 = vld [vmem:[%s117 + $0x780] sm:$0xff]
        %v379 = vld [vmem:[%s117 + $0x788] sm:$0xff]
        %v380 = vld [vmem:[%s117 + $0x790] sm:$0xff]
        %v381 = vld [vmem:[%s117 + $0x798] sm:$0xff]
        %v382 = vld [vmem:[%s117 + $0x7a0] sm:$0xff]
        %v383 = vld [vmem:[%s117 + $0x7a8] sm:$0xff]
        %v384 = vld [vmem:[%s117 + $0x7b0] sm:$0xff]
        %v385 = vld [vmem:[%s117 + $0x7b8] sm:$0xff]
        %v386 = vld [vmem:[%s117 + $0x7c0] sm:$0xff]
        %v387 = vld [vmem:[%s117 + $0x7c8] sm:$0xff]
        %v388 = vld [vmem:[%s117 + $0x7d0] sm:$0xff]
        %v389 = vld [vmem:[%s117 + $0x7d8] sm:$0xff]
        %v390 = vld [vmem:[%s117 + $0x7e0] sm:$0xff]
        %v391 = vld [vmem:[%s117 + $0x7e8] sm:$0xff]
        %v392 = vld [vmem:[%s117 + $0x7f0] sm:$0xff]
        %v393 = vld [vmem:[%s117 + $0x7f8] sm:$0xff]
        %v394 = vld [vmem:[%s117 + $0x800] sm:$0xff]
        %v395 = vld [vmem:[%s117 + $0x808] sm:$0xff]
        %v396 = vld [vmem:[%s117 + $0x810] sm:$0xff]
        %v397 = vld [vmem:[%s117 + $0x818] sm:$0xff]
        %v398 = vld [vmem:[%s117 + $0x820] sm:$0xff]
        %v399 = vld [vmem:[%s117 + $0x828] sm:$0xff]
        %v400 = vld [vmem:[%s117 + $0x830] sm:$0xff]
        %v401 = vld [vmem:[%s117 + $0x838] sm:$0xff]
        %v402 = vld [vmem:[%s117 + $0x840] sm:$0xff]
        %v403 = vld [vmem:[%s117 + $0x848] sm:$0xff]
        %v404 = vld [vmem:[%s117 + $0x850] sm:$0xff]
        %v405 = vld [vmem:[%s117 + $0x858] sm:$0xff]
        %v406 = vld [vmem:[%s117 + $0x860] sm:$0xff]
        %v407 = vld [vmem:[%s117 + $0x868] sm:$0xff]
        %v408 = vld [vmem:[%s117 + $0x870] sm:$0xff]
        %v409 = vld [vmem:[%s117 + $0x878] sm:$0xff]
        %v410 = vld [vmem:[%s117 + $0x880] sm:$0xff]
        %v411 = vld [vmem:[%s117 + $0x888] sm:$0xff]
        %v412 = vld [vmem:[%s117 + $0x890] sm:$0xff]
        %v413 = vld [vmem:[%s117 + $0x898] sm:$0xff]
        %v414 = vld [vmem:[%s117 + $0x8a0] sm:$0xff]
        %v415 = vld [vmem:[%s117 + $0x8a8] sm:$0xff]
        %v416 = vld [vmem:[%s117 + $0x8b0] sm:$0xff]
        %v417 = vld [vmem:[%s117 + $0x8b8] sm:$0xff]
        %v418 = vld [vmem:[%s117 + $0x8c0] sm:$0xff]
        %v419 = vld [vmem:[%s117 + $0x8c8] sm:$0xff]
        %v420 = vld [vmem:[%s117 + $0x8d0] sm:$0xff]
        %v421 = vld [vmem:[%s117 + $0x8d8] sm:$0xff]
        %v422 = vld [vmem:[%s117 + $0x8e0] sm:$0xff]
        %v423 = vld [vmem:[%s117 + $0x8e8] sm:$0xff]
        %v424 = vld [vmem:[%s117 + $0x8f0] sm:$0xff]
        %v425 = vld [vmem:[%s117 + $0x8f8] sm:$0xff]
        %v426 = vld [vmem:[%s117 + $0x900] sm:$0xff]
        %v427 = vld [vmem:[%s117 + $0x908] sm:$0xff]
        %v428 = vld [vmem:[%s117 + $0x910] sm:$0xff]
        %v429 = vld [vmem:[%s117 + $0x918] sm:$0xff]
        %v430 = vld [vmem:[%s117 + $0x920] sm:$0xff]
        %v431 = vld [vmem:[%s117 + $0x928] sm:$0xff]
        %v432 = vld [vmem:[%s117 + $0x930] sm:$0xff]
        %v433 = vld [vmem:[%s117 + $0x938] sm:$0xff]
        %v434 = vld [vmem:[%s117 + $0x940] sm:$0xff]
        %v435 = vld [vmem:[%s117 + $0x948] sm:$0xff]
        %v436 = vld [vmem:[%s117 + $0x950] sm:$0xff]
        %v437 = vld [vmem:[%s117 + $0x958] sm:$0xff]
        %v438 = vld [vmem:[%s117 + $0x960] sm:$0xff]
        %v439 = vld [vmem:[%s117 + $0x968] sm:$0xff]
        %v440 = vld [vmem:[%s117 + $0x970] sm:$0xff]
        %v441 = vld [vmem:[%s117 + $0x978] sm:$0xff]
        %v442 = vld [vmem:[%s117 + $0x980] sm:$0xff]
        %v443 = vld [vmem:[%s117 + $0x988] sm:$0xff]
        %v444 = vld [vmem:[%s117 + $0x990] sm:$0xff]
        %v445 = vld [vmem:[%s117 + $0x998] sm:$0xff]
        %v446 = vld [vmem:[%s117 + $0x9a0] sm:$0xff]
        %v447 = vld [vmem:[%s117 + $0x9a8] sm:$0xff]
        %v448 = vld [vmem:[%s117 + $0x9b0] sm:$0xff]
        %v449 = vld [vmem:[%s117 + $0x9b8] sm:$0xff]
        %v450 = vld [vmem:[%s117 + $0x9c0] sm:$0xff]
        %v451 = vld [vmem:[%s117 + $0x9c8] sm:$0xff]
        %v452 = vld [vmem:[%s117 + $0x9d0] sm:$0xff]
        %v453 = vld [vmem:[%s117 + $0x9d8] sm:$0xff]
        %v454 = vld [vmem:[%s117 + $0x9e0] sm:$0xff]
        %v455 = vld [vmem:[%s117 + $0x9e8] sm:$0xff]
        %v456 = vld [vmem:[%s117 + $0x9f0] sm:$0xff]
        %v457 = vld [vmem:[%s117 + $0x9f8] sm:$0xff]
        %v458 = vld [vmem:[%s117 + $0xa00] sm:$0xff]
        %v459 = vld [vmem:[%s117 + $0xa08] sm:$0xff]
        %v460 = vld [vmem:[%s117 + $0xa10] sm:$0xff]
        %v461 = vld [vmem:[%s117 + $0xa18] sm:$0xff]
        %v462 = vld [vmem:[%s117 + $0xa20] sm:$0xff]
        %v463 = vld [vmem:[%s117 + $0xa28] sm:$0xff]
        %v464 = vld [vmem:[%s117 + $0xa30] sm:$0xff]
        %v465 = vld [vmem:[%s117 + $0xa38] sm:$0xff]
        %v466 = vld [vmem:[%s117 + $0xa40] sm:$0xff]
        %v467 = vld [vmem:[%s117 + $0xa48] sm:$0xff]
        %v468 = vld [vmem:[%s117 + $0xa50] sm:$0xff]
        %v469 = vld [vmem:[%s117 + $0xa58] sm:$0xff]
        %v470 = vld [vmem:[%s117 + $0xa60] sm:$0xff]
        %v471 = vld [vmem:[%s117 + $0xa68] sm:$0xff]
        %v472 = vld [vmem:[%s117 + $0xa70] sm:$0xff]
        %v473 = vld [vmem:[%s117 + $0xa78] sm:$0xff]
        %v474 = vld [vmem:[%s117 + $0xa80] sm:$0xff]
        %v475 = vld [vmem:[%s117 + $0xa88] sm:$0xff]
        %v476 = vld [vmem:[%s117 + $0xa90] sm:$0xff]
        %v477 = vld [vmem:[%s117 + $0xa98] sm:$0xff]
        %v478 = vld [vmem:[%s117 + $0xaa0] sm:$0xff]
        %v479 = vld [vmem:[%s117 + $0xaa8] sm:$0xff]
        %v480 = vld [vmem:[%s117 + $0xab0] sm:$0xff]
        %v481 = vld [vmem:[%s117 + $0xab8] sm:$0xff]
        %v482 = vld [vmem:[%s117 + $0xac0] sm:$0xff]
        %v483 = vld [vmem:[%s117 + $0xac8] sm:$0xff]
        %v484 = vld [vmem:[%s117 + $0xad0] sm:$0xff]
        %v485 = vld [vmem:[%s117 + $0xad8] sm:$0xff]
        %v486 = vld [vmem:[%s117 + $0xae0] sm:$0xff]
        %v487 = vld [vmem:[%s117 + $0xae8] sm:$0xff]
        %v488 = vld [vmem:[%s117 + $0xaf0] sm:$0xff]
        %v489 = vld [vmem:[%s117 + $0xaf8] sm:$0xff]
        %v490 = vld [vmem:[%s117 + $0xb00] sm:$0xff]
        %v491 = vld [vmem:[%s117 + $0xb08] sm:$0xff]
        %v492 = vld [vmem:[%s117 + $0xb10] sm:$0xff]
        %v493 = vld [vmem:[%s117 + $0xb18] sm:$0xff]
        %v494 = vld [vmem:[%s117 + $0xb20] sm:$0xff]
        %v495 = vld [vmem:[%s117 + $0xb28] sm:$0xff]
        %v496 = vld [vmem:[%s117 + $0xb30] sm:$0xff]
        %v497 = vld [vmem:[%s117 + $0xb38] sm:$0xff]
        %v498 = vld [vmem:[%s117 + $0xb40] sm:$0xff]
        %v499 = vld [vmem:[%s117 + $0xb48] sm:$0xff]
        %v500 = vld [vmem:[%s117 + $0xb50] sm:$0xff]
        %v501 = vld [vmem:[%s117 + $0xb58] sm:$0xff]
        %v502 = vld [vmem:[%s117 + $0xb60] sm:$0xff]
        %v503 = vld [vmem:[%s117 + $0xb68] sm:$0xff]
        %v504 = vld [vmem:[%s117 + $0xb70] sm:$0xff]
        %v505 = vld [vmem:[%s117 + $0xb78] sm:$0xff]
        %v506 = vld [vmem:[%s117 + $0xb80] sm:$0xff]
        %v507 = vld [vmem:[%s117 + $0xb88] sm:$0xff]
        %v508 = vld [vmem:[%s117 + $0xb90] sm:$0xff]
        %v509 = vld [vmem:[%s117 + $0xb98] sm:$0xff]
        %v510 = vld [vmem:[%s117 + $0xba0] sm:$0xff]
        %v511 = vld [vmem:[%s117 + $0xba8] sm:$0xff]
        %v512 = vld [vmem:[%s117 + $0xbb0] sm:$0xff]
        %v513 = vld [vmem:[%s117 + $0xbb8] sm:$0xff]
        %v514 = vld [vmem:[%s117 + $0xbc0] sm:$0xff]
        %v515 = vld [vmem:[%s117 + $0xbc8] sm:$0xff]
        %v516 = vld [vmem:[%s117 + $0xbd0] sm:$0xff]
        %v517 = vld [vmem:[%s117 + $0xbd8] sm:$0xff]
        %v518 = vld [vmem:[%s117 + $0xbe0] sm:$0xff]
        %v519 = vld [vmem:[%s117 + $0xbe8] sm:$0xff]
        %v520 = vld [vmem:[%s117 + $0xbf0] sm:$0xff]
        %v521 = vld [vmem:[%s117 + $0xbf8] sm:$0xff]
        %v522 = vld [vmem:[%s117 + $0xc00] sm:$0xff]
        %v523 = vld [vmem:[%s117 + $0xc08] sm:$0xff]
        %v524 = vld [vmem:[%s117 + $0xc10] sm:$0xff]
        %v525 = vld [vmem:[%s117 + $0xc18] sm:$0xff]
        %v526 = vld [vmem:[%s117 + $0xc20] sm:$0xff]
        %v527 = vld [vmem:[%s117 + $0xc28] sm:$0xff]
        %v528 = vld [vmem:[%s117 + $0xc30] sm:$0xff]
        %v529 = vld [vmem:[%s117 + $0xc38] sm:$0xff]
        %v530 = vld [vmem:[%s117 + $0xc40] sm:$0xff]
        %v531 = vld [vmem:[%s117 + $0xc48] sm:$0xff]
        %v532 = vld [vmem:[%s117 + $0xc50] sm:$0xff]
        %v533 = vld [vmem:[%s117 + $0xc58] sm:$0xff]
        %v534 = vld [vmem:[%s117 + $0xc60] sm:$0xff]
        %v535 = vld [vmem:[%s117 + $0xc68] sm:$0xff]
        %v536 = vld [vmem:[%s117 + $0xc70] sm:$0xff]
        %v537 = vld [vmem:[%s117 + $0xc78] sm:$0xff]
        %v538 = vld [vmem:[%s117 + $0xc80] sm:$0xff]
        %v539 = vld [vmem:[%s117 + $0xc88] sm:$0xff]
        %v540 = vld [vmem:[%s117 + $0xc90] sm:$0xff]
        %v541 = vld [vmem:[%s117 + $0xc98] sm:$0xff]
        %v542 = vld [vmem:[%s117 + $0xca0] sm:$0xff]
        %v543 = vld [vmem:[%s117 + $0xca8] sm:$0xff]
        %v544 = vld [vmem:[%s117 + $0xcb0] sm:$0xff]
        %v545 = vld [vmem:[%s117 + $0xcb8] sm:$0xff]
        %v546 = vld [vmem:[%s117 + $0xcc0] sm:$0xff]
        %v547 = vld [vmem:[%s117 + $0xcc8] sm:$0xff]
        %v548 = vld [vmem:[%s117 + $0xcd0] sm:$0xff]
        %v549 = vld [vmem:[%s117 + $0xcd8] sm:$0xff]
        %v550 = vld [vmem:[%s117 + $0xce0] sm:$0xff]
        %v551 = vld [vmem:[%s117 + $0xce8] sm:$0xff]
        %v552 = vld [vmem:[%s117 + $0xcf0] sm:$0xff]
        %v553 = vld [vmem:[%s117 + $0xcf8] sm:$0xff]
        %v554 = vld [vmem:[%s117 + $0xd00] sm:$0xff]
        %v555 = vld [vmem:[%s117 + $0xd08] sm:$0xff]
        %v556 = vld [vmem:[%s117 + $0xd10] sm:$0xff]
        %v557 = vld [vmem:[%s117 + $0xd18] sm:$0xff]
        %v558 = vld [vmem:[%s117 + $0xd20] sm:$0xff]
        %v559 = vld [vmem:[%s117 + $0xd28] sm:$0xff]
        %v560 = vld [vmem:[%s117 + $0xd30] sm:$0xff]
        %v561 = vld [vmem:[%s117 + $0xd38] sm:$0xff]
        %v562 = vld [vmem:[%s117 + $0xd40] sm:$0xff]
        %v563 = vld [vmem:[%s117 + $0xd48] sm:$0xff]
        %v564 = vld [vmem:[%s117 + $0xd50] sm:$0xff]
        %v565 = vld [vmem:[%s117 + $0xd58] sm:$0xff]
        %v566 = vld [vmem:[%s117 + $0xd60] sm:$0xff]
        %v567 = vld [vmem:[%s117 + $0xd68] sm:$0xff]
        %v568 = vld [vmem:[%s117 + $0xd70] sm:$0xff]
        %v569 = vld [vmem:[%s117 + $0xd78] sm:$0xff]
        %v570 = vld [vmem:[%s117 + $0xd80] sm:$0xff]
        %v571 = vld [vmem:[%s117 + $0xd88] sm:$0xff]
        %v572 = vld [vmem:[%s117 + $0xd90] sm:$0xff]
        %v573 = vld [vmem:[%s117 + $0xd98] sm:$0xff]
        %v574 = vld [vmem:[%s117 + $0xda0] sm:$0xff]
        %v575 = vld [vmem:[%s117 + $0xda8] sm:$0xff]
        %v576 = vld [vmem:[%s117 + $0xdb0] sm:$0xff]
        %v577 = vld [vmem:[%s117 + $0xdb8] sm:$0xff]
        %v578 = vld [vmem:[%s117 + $0xdc0] sm:$0xff]
        %v579 = vld [vmem:[%s117 + $0xdc8] sm:$0xff]
        %v580 = vld [vmem:[%s117 + $0xdd0] sm:$0xff]
        %v581 = vld [vmem:[%s117 + $0xdd8] sm:$0xff]
        %v582 = vld [vmem:[%s117 + $0xde0] sm:$0xff]
        %v583 = vld [vmem:[%s117 + $0xde8] sm:$0xff]
        %v584 = vld [vmem:[%s117 + $0xdf0] sm:$0xff]
        %v585 = vld [vmem:[%s117 + $0xdf8] sm:$0xff]
        %v586 = vld [vmem:[%s117 + $0xe00] sm:$0xff]
        %v587 = vld [vmem:[%s117 + $0xe08] sm:$0xff]
        %v588 = vld [vmem:[%s117 + $0xe10] sm:$0xff]
        %v589 = vld [vmem:[%s117 + $0xe18] sm:$0xff]
        %v590 = vld [vmem:[%s117 + $0xe20] sm:$0xff]
        %v591 = vld [vmem:[%s117 + $0xe28] sm:$0xff]
        %v592 = vld [vmem:[%s117 + $0xe30] sm:$0xff]
        %v593 = vld [vmem:[%s117 + $0xe38] sm:$0xff]
        %v594 = vld [vmem:[%s117 + $0xe40] sm:$0xff]
        %v595 = vld [vmem:[%s117 + $0xe48] sm:$0xff]
        %v596 = vld [vmem:[%s117 + $0xe50] sm:$0xff]
        %v597 = vld [vmem:[%s117 + $0xe58] sm:$0xff]
        %v598 = vld [vmem:[%s117 + $0xe60] sm:$0xff]
        %v599 = vld [vmem:[%s117 + $0xe68] sm:$0xff]
        %v600 = vld [vmem:[%s117 + $0xe70] sm:$0xff]
        %v601 = vld [vmem:[%s117 + $0xe78] sm:$0xff]
        %v602 = vld [vmem:[%s117 + $0xe80] sm:$0xff]
        %v603 = vld [vmem:[%s117 + $0xe88] sm:$0xff]
        %v604 = vld [vmem:[%s117 + $0xe90] sm:$0xff]
        %v605 = vld [vmem:[%s117 + $0xe98] sm:$0xff]
        %v606 = vld [vmem:[%s117 + $0xea0] sm:$0xff]
        %v607 = vld [vmem:[%s117 + $0xea8] sm:$0xff]
        %v608 = vld [vmem:[%s117 + $0xeb0] sm:$0xff]
        %v609 = vld [vmem:[%s117 + $0xeb8] sm:$0xff]
        %v610 = vld [vmem:[%s117 + $0xec0] sm:$0xff]
        %v611 = vld [vmem:[%s117 + $0xec8] sm:$0xff]
        %v612 = vld [vmem:[%s117 + $0xed0] sm:$0xff]
        %v613 = vld [vmem:[%s117 + $0xed8] sm:$0xff]
        %v614 = vld [vmem:[%s117 + $0xee0] sm:$0xff]
        %v615 = vld [vmem:[%s117 + $0xee8] sm:$0xff]
        %v616 = vld [vmem:[%s117 + $0xef0] sm:$0xff]
        %v617 = vld [vmem:[%s117 + $0xef8] sm:$0xff]
        %v618 = vld [vmem:[%s117 + $0xf00] sm:$0xff]
        %v619 = vld [vmem:[%s117 + $0xf08] sm:$0xff]
        %v620 = vld [vmem:[%s117 + $0xf10] sm:$0xff]
        %v621 = vld [vmem:[%s117 + $0xf18] sm:$0xff]
        %v622 = vld [vmem:[%s117 + $0xf20] sm:$0xff]
        %v623 = vld [vmem:[%s117 + $0xf28] sm:$0xff]
        %v624 = vld [vmem:[%s117 + $0xf30] sm:$0xff]
        %v625 = vld [vmem:[%s117 + $0xf38] sm:$0xff]
        %v626 = vld [vmem:[%s117 + $0xf40] sm:$0xff]
        %v627 = vld [vmem:[%s117 + $0xf48] sm:$0xff]
        %v628 = vld [vmem:[%s117 + $0xf50] sm:$0xff]
        %v629 = vld [vmem:[%s117 + $0xf58] sm:$0xff]
        %v630 = vld [vmem:[%s117 + $0xf60] sm:$0xff]
        %v631 = vld [vmem:[%s117 + $0xf68] sm:$0xff]
        %v632 = vld [vmem:[%s117 + $0xf70] sm:$0xff]
        %v633 = vld [vmem:[%s117 + $0xf78] sm:$0xff]
        %v634 = vld [vmem:[%s117 + $0xf80] sm:$0xff]
        %v635 = vld [vmem:[%s117 + $0xf88] sm:$0xff]
        %v636 = vld [vmem:[%s117 + $0xf90] sm:$0xff]
        %v637 = vld [vmem:[%s117 + $0xf98] sm:$0xff]
        %v638 = vld [vmem:[%s117 + $0xfa0] sm:$0xff]
        %v639 = vld [vmem:[%s117 + $0xfa8] sm:$0xff]
        %v640 = vld [vmem:[%s117 + $0xfb0] sm:$0xff]
        %v641 = vld [vmem:[%s117 + $0xfb8] sm:$0xff]
        %v642 = vld [vmem:[%s117 + $0xfc0] sm:$0xff]
        %v643 = vld [vmem:[%s117 + $0xfc8] sm:$0xff]
        %v644 = vld [vmem:[%s117 + $0xfd0] sm:$0xff]
        %v645 = vld [vmem:[%s117 + $0xfd8] sm:$0xff]
        %v646 = vld [vmem:[%s117 + $0xfe0] sm:$0xff]
        %v647 = vld [vmem:[%s117 + $0xfe8] sm:$0xff]
        %v648 = vld [vmem:[%s117 + $0xff0] sm:$0xff]
        %v649 = vld [vmem:[%s117 + $0xff8] sm:$0xff]
        %v650 = vmin.f32 %v138, 20.0
        %v651 = vmin.f32 %v139, 20.0
        %v652 = vmin.f32 %v140, 20.0
        %v653 = vmin.f32 %v141, 20.0
        %v654 = vmin.f32 %v142, 20.0
        %v655 = vmin.f32 %v143, 20.0
        %v656 = vmin.f32 %v144, 20.0
        %v657 = vmin.f32 %v145, 20.0
        %v658 = vmin.f32 %v146, 20.0
        %v659 = vmin.f32 %v147, 20.0
        %v660 = vmin.f32 %v148, 20.0
        %v661 = vmin.f32 %v149, 20.0
        %v662 = vmin.f32 %v150, 20.0
        %v663 = vmin.f32 %v151, 20.0
        %v664 = vmin.f32 %v152, 20.0
        %v665 = vmin.f32 %v153, 20.0
        %v666 = vmin.f32 %v154, 20.0
        %v667 = vmin.f32 %v155, 20.0
        %v668 = vmin.f32 %v156, 20.0
        %v669 = vmin.f32 %v157, 20.0
        %v670 = vmin.f32 %v158, 20.0
        %v671 = vmin.f32 %v159, 20.0
        %v672 = vmin.f32 %v160, 20.0
        %v673 = vmin.f32 %v161, 20.0
        %v674 = vmin.f32 %v162, 20.0
        %v675 = vmin.f32 %v163, 20.0
        %v676 = vmin.f32 %v164, 20.0
        %v677 = vmin.f32 %v165, 20.0
        %v678 = vmin.f32 %v166, 20.0
        %v679 = vmin.f32 %v167, 20.0
        %v680 = vmin.f32 %v168, 20.0
        %v681 = vmin.f32 %v169, 20.0
        %v682 = vmin.f32 %v170, 20.0
        %v683 = vmin.f32 %v171, 20.0
        %v684 = vmin.f32 %v172, 20.0
        %v685 = vmin.f32 %v173, 20.0
        %v686 = vmin.f32 %v174, 20.0
        %v687 = vmin.f32 %v175, 20.0
        %v688 = vmin.f32 %v176, 20.0
        %v689 = vmin.f32 %v177, 20.0
        %v690 = vmin.f32 %v178, 20.0
        %v691 = vmin.f32 %v179, 20.0
        %v692 = vmin.f32 %v180, 20.0
        %v693 = vmin.f32 %v181, 20.0
        %v694 = vmin.f32 %v182, 20.0
        %v695 = vmin.f32 %v183, 20.0
        %v696 = vmin.f32 %v184, 20.0
        %v697 = vmin.f32 %v185, 20.0
        %v698 = vmin.f32 %v186, 20.0
        %v699 = vmin.f32 %v187, 20.0
        %v700 = vmin.f32 %v188, 20.0
        %v701 = vmin.f32 %v189, 20.0
        %v702 = vmin.f32 %v190, 20.0
        %v703 = vmin.f32 %v191, 20.0
        %v704 = vmin.f32 %v192, 20.0
        %v705 = vmin.f32 %v193, 20.0
        %v706 = vmin.f32 %v194, 20.0
        %v707 = vmin.f32 %v195, 20.0
        %v708 = vmin.f32 %v196, 20.0
        %v709 = vmin.f32 %v197, 20.0
        %v710 = vmin.f32 %v198, 20.0
        %v711 = vmin.f32 %v199, 20.0
        %v712 = vmin.f32 %v200, 20.0
        %v713 = vmin.f32 %v201, 20.0
        %v714 = vmin.f32 %v202, 20.0
        %v715 = vmin.f32 %v203, 20.0
        %v716 = vmin.f32 %v204, 20.0
        %v717 = vmin.f32 %v205, 20.0
        %v718 = vmin.f32 %v206, 20.0
        %v719 = vmin.f32 %v207, 20.0
        %v720 = vmin.f32 %v208, 20.0
        %v721 = vmin.f32 %v209, 20.0
        %v722 = vmin.f32 %v210, 20.0
        %v723 = vmin.f32 %v211, 20.0
        %v724 = vmin.f32 %v212, 20.0
        %v725 = vmin.f32 %v213, 20.0
        %v726 = vmin.f32 %v214, 20.0
        %v727 = vmin.f32 %v215, 20.0
        %v728 = vmin.f32 %v216, 20.0
        %v729 = vmin.f32 %v217, 20.0
        %v730 = vmin.f32 %v218, 20.0
        %v731 = vmin.f32 %v219, 20.0
        %v732 = vmin.f32 %v220, 20.0
        %v733 = vmin.f32 %v221, 20.0
        %v734 = vmin.f32 %v222, 20.0
        %v735 = vmin.f32 %v223, 20.0
        %v736 = vmin.f32 %v224, 20.0
        %v737 = vmin.f32 %v225, 20.0
        %v738 = vmin.f32 %v226, 20.0
        %v739 = vmin.f32 %v227, 20.0
        %v740 = vmin.f32 %v228, 20.0
        %v741 = vmin.f32 %v229, 20.0
        %v742 = vmin.f32 %v230, 20.0
        %v743 = vmin.f32 %v231, 20.0
        %v744 = vmin.f32 %v232, 20.0
        %v745 = vmin.f32 %v233, 20.0
        %v746 = vmin.f32 %v234, 20.0
        %v747 = vmin.f32 %v235, 20.0
        %v748 = vmin.f32 %v236, 20.0
        %v749 = vmin.f32 %v237, 20.0
        %v750 = vmin.f32 %v238, 20.0
        %v751 = vmin.f32 %v239, 20.0
        %v752 = vmin.f32 %v240, 20.0
        %v753 = vmin.f32 %v241, 20.0
        %v754 = vmin.f32 %v242, 20.0
        %v755 = vmin.f32 %v243, 20.0
        %v756 = vmin.f32 %v244, 20.0
        %v757 = vmin.f32 %v245, 20.0
        %v758 = vmin.f32 %v246, 20.0
        %v759 = vmin.f32 %v247, 20.0
        %v760 = vmin.f32 %v248, 20.0
        %v761 = vmin.f32 %v249, 20.0
        %v762 = vmin.f32 %v250, 20.0
        %v763 = vmin.f32 %v251, 20.0
        %v764 = vmin.f32 %v252, 20.0
        %v765 = vmin.f32 %v253, 20.0
        %v766 = vmin.f32 %v254, 20.0
        %v767 = vmin.f32 %v255, 20.0
        %v768 = vmin.f32 %v256, 20.0
        %v769 = vmin.f32 %v257, 20.0
        %v770 = vmin.f32 %v258, 20.0
        %v771 = vmin.f32 %v259, 20.0
        %v772 = vmin.f32 %v260, 20.0
        %v773 = vmin.f32 %v261, 20.0
        %v774 = vmin.f32 %v262, 20.0
        %v775 = vmin.f32 %v263, 20.0
        %v776 = vmin.f32 %v264, 20.0
        %v777 = vmin.f32 %v265, 20.0
        %v778 = vmin.f32 %v266, 20.0
        %v779 = vmin.f32 %v267, 20.0
        %v780 = vmin.f32 %v268, 20.0
        %v781 = vmin.f32 %v269, 20.0
        %v782 = vmin.f32 %v270, 20.0
        %v783 = vmin.f32 %v271, 20.0
        %v784 = vmin.f32 %v272, 20.0
        %v785 = vmin.f32 %v273, 20.0
        %v786 = vmin.f32 %v274, 20.0
        %v787 = vmin.f32 %v275, 20.0
        %v788 = vmin.f32 %v276, 20.0
        %v789 = vmin.f32 %v277, 20.0
        %v790 = vmin.f32 %v278, 20.0
        %v791 = vmin.f32 %v279, 20.0
        %v792 = vmin.f32 %v280, 20.0
        %v793 = vmin.f32 %v281, 20.0
        %v794 = vmin.f32 %v282, 20.0
        %v795 = vmin.f32 %v283, 20.0
        %v796 = vmin.f32 %v284, 20.0
        %v797 = vmin.f32 %v285, 20.0
        %v798 = vmin.f32 %v286, 20.0
        %v799 = vmin.f32 %v287, 20.0
        %v800 = vmin.f32 %v288, 20.0
        %v801 = vmin.f32 %v289, 20.0
        %v802 = vmin.f32 %v290, 20.0
        %v803 = vmin.f32 %v291, 20.0
        %v804 = vmin.f32 %v292, 20.0
        %v805 = vmin.f32 %v293, 20.0
        %v806 = vmin.f32 %v294, 20.0
        %v807 = vmin.f32 %v295, 20.0
        %v808 = vmin.f32 %v296, 20.0
        %v809 = vmin.f32 %v297, 20.0
        %v810 = vmin.f32 %v298, 20.0
        %v811 = vmin.f32 %v299, 20.0
        %v812 = vmin.f32 %v300, 20.0
        %v813 = vmin.f32 %v301, 20.0
        %v814 = vmin.f32 %v302, 20.0
        %v815 = vmin.f32 %v303, 20.0
        %v816 = vmin.f32 %v304, 20.0
        %v817 = vmin.f32 %v305, 20.0
        %v818 = vmin.f32 %v306, 20.0
        %v819 = vmin.f32 %v307, 20.0
        %v820 = vmin.f32 %v308, 20.0
        %v821 = vmin.f32 %v309, 20.0
        %v822 = vmin.f32 %v310, 20.0
        %v823 = vmin.f32 %v311, 20.0
        %v824 = vmin.f32 %v312, 20.0
        %v825 = vmin.f32 %v313, 20.0
        %v826 = vmin.f32 %v314, 20.0
        %v827 = vmin.f32 %v315, 20.0
        %v828 = vmin.f32 %v316, 20.0
        %v829 = vmin.f32 %v317, 20.0
        %v830 = vmin.f32 %v318, 20.0
        %v831 = vmin.f32 %v319, 20.0
        %v832 = vmin.f32 %v320, 20.0
        %v833 = vmin.f32 %v321, 20.0
        %v834 = vmin.f32 %v322, 20.0
        %v835 = vmin.f32 %v323, 20.0
        %v836 = vmin.f32 %v324, 20.0
        %v837 = vmin.f32 %v325, 20.0
        %v838 = vmin.f32 %v326, 20.0
        %v839 = vmin.f32 %v327, 20.0
        %v840 = vmin.f32 %v328, 20.0
        %v841 = vmin.f32 %v329, 20.0
        %v842 = vmin.f32 %v330, 20.0
        %v843 = vmin.f32 %v331, 20.0
        %v844 = vmin.f32 %v332, 20.0
        %v845 = vmin.f32 %v333, 20.0
        %v846 = vmin.f32 %v334, 20.0
        %v847 = vmin.f32 %v335, 20.0
        %v848 = vmin.f32 %v336, 20.0
        %v849 = vmin.f32 %v337, 20.0
        %v850 = vmin.f32 %v338, 20.0
        %v851 = vmin.f32 %v339, 20.0
        %v852 = vmin.f32 %v340, 20.0
        %v853 = vmin.f32 %v341, 20.0
        %v854 = vmin.f32 %v342, 20.0
        %v855 = vmin.f32 %v343, 20.0
        %v856 = vmin.f32 %v344, 20.0
        %v857 = vmin.f32 %v345, 20.0
        %v858 = vmin.f32 %v346, 20.0
        %v859 = vmin.f32 %v347, 20.0
        %v860 = vmin.f32 %v348, 20.0
        %v861 = vmin.f32 %v349, 20.0
        %v862 = vmin.f32 %v350, 20.0
        %v863 = vmin.f32 %v351, 20.0
        %v864 = vmin.f32 %v352, 20.0
        %v865 = vmin.f32 %v353, 20.0
        %v866 = vmin.f32 %v354, 20.0
        %v867 = vmin.f32 %v355, 20.0
        %v868 = vmin.f32 %v356, 20.0
        %v869 = vmin.f32 %v357, 20.0
        %v870 = vmin.f32 %v358, 20.0
        %v871 = vmin.f32 %v359, 20.0
        %v872 = vmin.f32 %v360, 20.0
        %v873 = vmin.f32 %v361, 20.0
        %v874 = vmin.f32 %v362, 20.0
        %v875 = vmin.f32 %v363, 20.0
        %v876 = vmin.f32 %v364, 20.0
        %v877 = vmin.f32 %v365, 20.0
        %v878 = vmin.f32 %v366, 20.0
        %v879 = vmin.f32 %v367, 20.0
        %v880 = vmin.f32 %v368, 20.0
        %v881 = vmin.f32 %v369, 20.0
        %v882 = vmin.f32 %v370, 20.0
        %v883 = vmin.f32 %v371, 20.0
        %v884 = vmin.f32 %v372, 20.0
        %v885 = vmin.f32 %v373, 20.0
        %v886 = vmin.f32 %v374, 20.0
        %v887 = vmin.f32 %v375, 20.0
        %v888 = vmin.f32 %v376, 20.0
        %v889 = vmin.f32 %v377, 20.0
        %v890 = vmin.f32 %v378, 20.0
        %v891 = vmin.f32 %v379, 20.0
        %v892 = vmin.f32 %v380, 20.0
        %v893 = vmin.f32 %v381, 20.0
        %v894 = vmin.f32 %v382, 20.0
        %v895 = vmin.f32 %v383, 20.0
        %v896 = vmin.f32 %v384, 20.0
        %v897 = vmin.f32 %v385, 20.0
        %v898 = vmin.f32 %v386, 20.0
        %v899 = vmin.f32 %v387, 20.0
        %v900 = vmin.f32 %v388, 20.0
        %v901 = vmin.f32 %v389, 20.0
        %v902 = vmin.f32 %v390, 20.0
        %v903 = vmin.f32 %v391, 20.0
        %v904 = vmin.f32 %v392, 20.0
        %v905 = vmin.f32 %v393, 20.0
        %v906 = vmin.f32 %v394, 20.0
        %v907 = vmin.f32 %v395, 20.0
        %v908 = vmin.f32 %v396, 20.0
        %v909 = vmin.f32 %v397, 20.0
        %v910 = vmin.f32 %v398, 20.0
        %v911 = vmin.f32 %v399, 20.0
        %v912 = vmin.f32 %v400, 20.0
        %v913 = vmin.f32 %v401, 20.0
        %v914 = vmin.f32 %v402, 20.0
        %v915 = vmin.f32 %v403, 20.0
        %v916 = vmin.f32 %v404, 20.0
        %v917 = vmin.f32 %v405, 20.0
        %v918 = vmin.f32 %v406, 20.0
        %v919 = vmin.f32 %v407, 20.0
        %v920 = vmin.f32 %v408, 20.0
        %v921 = vmin.f32 %v409, 20.0
        %v922 = vmin.f32 %v410, 20.0
        %v923 = vmin.f32 %v411, 20.0
        %v924 = vmin.f32 %v412, 20.0
        %v925 = vmin.f32 %v413, 20.0
        %v926 = vmin.f32 %v414, 20.0
        %v927 = vmin.f32 %v415, 20.0
        %v928 = vmin.f32 %v416, 20.0
        %v929 = vmin.f32 %v417, 20.0
        %v930 = vmin.f32 %v418, 20.0
        %v931 = vmin.f32 %v419, 20.0
        %v932 = vmin.f32 %v420, 20.0
        %v933 = vmin.f32 %v421, 20.0
        %v934 = vmin.f32 %v422, 20.0
        %v935 = vmin.f32 %v423, 20.0
        %v936 = vmin.f32 %v424, 20.0
        %v937 = vmin.f32 %v425, 20.0
        %v938 = vmin.f32 %v426, 20.0
        %v939 = vmin.f32 %v427, 20.0
        %v940 = vmin.f32 %v428, 20.0
        %v941 = vmin.f32 %v429, 20.0
        %v942 = vmin.f32 %v430, 20.0
        %v943 = vmin.f32 %v431, 20.0
        %v944 = vmin.f32 %v432, 20.0
        %v945 = vmin.f32 %v433, 20.0
        %v946 = vmin.f32 %v434, 20.0
        %v947 = vmin.f32 %v435, 20.0
        %v948 = vmin.f32 %v436, 20.0
        %v949 = vmin.f32 %v437, 20.0
        %v950 = vmin.f32 %v438, 20.0
        %v951 = vmin.f32 %v439, 20.0
        %v952 = vmin.f32 %v440, 20.0
        %v953 = vmin.f32 %v441, 20.0
        %v954 = vmin.f32 %v442, 20.0
        %v955 = vmin.f32 %v443, 20.0
        %v956 = vmin.f32 %v444, 20.0
        %v957 = vmin.f32 %v445, 20.0
        %v958 = vmin.f32 %v446, 20.0
        %v959 = vmin.f32 %v447, 20.0
        %v960 = vmin.f32 %v448, 20.0
        %v961 = vmin.f32 %v449, 20.0
        %v962 = vmin.f32 %v450, 20.0
        %v963 = vmin.f32 %v451, 20.0
        %v964 = vmin.f32 %v452, 20.0
        %v965 = vmin.f32 %v453, 20.0
        %v966 = vmin.f32 %v454, 20.0
        %v967 = vmin.f32 %v455, 20.0
        %v968 = vmin.f32 %v456, 20.0
        %v969 = vmin.f32 %v457, 20.0
        %v970 = vmin.f32 %v458, 20.0
        %v971 = vmin.f32 %v459, 20.0
        %v972 = vmin.f32 %v460, 20.0
        %v973 = vmin.f32 %v461, 20.0
        %v974 = vmin.f32 %v462, 20.0
        %v975 = vmin.f32 %v463, 20.0
        %v976 = vmin.f32 %v464, 20.0
        %v977 = vmin.f32 %v465, 20.0
        %v978 = vmin.f32 %v466, 20.0
        %v979 = vmin.f32 %v467, 20.0
        %v980 = vmin.f32 %v468, 20.0
        %v981 = vmin.f32 %v469, 20.0
        %v982 = vmin.f32 %v470, 20.0
        %v983 = vmin.f32 %v471, 20.0
        %v984 = vmin.f32 %v472, 20.0
        %v985 = vmin.f32 %v473, 20.0
        %v986 = vmin.f32 %v474, 20.0
        %v987 = vmin.f32 %v475, 20.0
        %v988 = vmin.f32 %v476, 20.0
        %v989 = vmin.f32 %v477, 20.0
        %v990 = vmin.f32 %v478, 20.0
        %v991 = vmin.f32 %v479, 20.0
        %v992 = vmin.f32 %v480, 20.0
        %v993 = vmin.f32 %v481, 20.0
        %v994 = vmin.f32 %v482, 20.0
        %v995 = vmin.f32 %v483, 20.0
        %v996 = vmin.f32 %v484, 20.0
        %v997 = vmin.f32 %v485, 20.0
        %v998 = vmin.f32 %v486, 20.0
        %v999 = vmin.f32 %v487, 20.0
        %v1000 = vmin.f32 %v488, 20.0
        %v1001 = vmin.f32 %v489, 20.0
        %v1002 = vmin.f32 %v490, 20.0
        %v1003 = vmin.f32 %v491, 20.0
        %v1004 = vmin.f32 %v492, 20.0
        %v1005 = vmin.f32 %v493, 20.0
        %v1006 = vmin.f32 %v494, 20.0
        %v1007 = vmin.f32 %v495, 20.0
        %v1008 = vmin.f32 %v496, 20.0
        %v1009 = vmin.f32 %v497, 20.0
        %v1010 = vmin.f32 %v498, 20.0
        %v1011 = vmin.f32 %v499, 20.0
        %v1012 = vmin.f32 %v500, 20.0
        %v1013 = vmin.f32 %v501, 20.0
        %v1014 = vmin.f32 %v502, 20.0
        %v1015 = vmin.f32 %v503, 20.0
        %v1016 = vmin.f32 %v504, 20.0
        %v1017 = vmin.f32 %v505, 20.0
        %v1018 = vmin.f32 %v506, 20.0
        %v1019 = vmin.f32 %v507, 20.0
        %v1020 = vmin.f32 %v508, 20.0
        %v1021 = vmin.f32 %v509, 20.0
        %v1022 = vmin.f32 %v510, 20.0
        %v1023 = vmin.f32 %v511, 20.0
        %v1024 = vmin.f32 %v512, 20.0
        %v1025 = vmin.f32 %v513, 20.0
        %v1026 = vmin.f32 %v514, 20.0
        %v1027 = vmin.f32 %v515, 20.0
        %v1028 = vmin.f32 %v516, 20.0
        %v1029 = vmin.f32 %v517, 20.0
        %v1030 = vmin.f32 %v518, 20.0
        %v1031 = vmin.f32 %v519, 20.0
        %v1032 = vmin.f32 %v520, 20.0
        %v1033 = vmin.f32 %v521, 20.0
        %v1034 = vmin.f32 %v522, 20.0
        %v1035 = vmin.f32 %v523, 20.0
        %v1036 = vmin.f32 %v524, 20.0
        %v1037 = vmin.f32 %v525, 20.0
        %v1038 = vmin.f32 %v526, 20.0
        %v1039 = vmin.f32 %v527, 20.0
        %v1040 = vmin.f32 %v528, 20.0
        %v1041 = vmin.f32 %v529, 20.0
        %v1042 = vmin.f32 %v530, 20.0
        %v1043 = vmin.f32 %v531, 20.0
        %v1044 = vmin.f32 %v532, 20.0
        %v1045 = vmin.f32 %v533, 20.0
        %v1046 = vmin.f32 %v534, 20.0
        %v1047 = vmin.f32 %v535, 20.0
        %v1048 = vmin.f32 %v536, 20.0
        %v1049 = vmin.f32 %v537, 20.0
        %v1050 = vmin.f32 %v538, 20.0
        %v1051 = vmin.f32 %v539, 20.0
        %v1052 = vmin.f32 %v540, 20.0
        %v1053 = vmin.f32 %v541, 20.0
        %v1054 = vmin.f32 %v542, 20.0
        %v1055 = vmin.f32 %v543, 20.0
        %v1056 = vmin.f32 %v544, 20.0
        %v1057 = vmin.f32 %v545, 20.0
        %v1058 = vmin.f32 %v546, 20.0
        %v1059 = vmin.f32 %v547, 20.0
        %v1060 = vmin.f32 %v548, 20.0
        %v1061 = vmin.f32 %v549, 20.0
        %v1062 = vmin.f32 %v550, 20.0
        %v1063 = vmin.f32 %v551, 20.0
        %v1064 = vmin.f32 %v552, 20.0
        %v1065 = vmin.f32 %v553, 20.0
        %v1066 = vmin.f32 %v554, 20.0
        %v1067 = vmin.f32 %v555, 20.0
        %v1068 = vmin.f32 %v556, 20.0
        %v1069 = vmin.f32 %v557, 20.0
        %v1070 = vmin.f32 %v558, 20.0
        %v1071 = vmin.f32 %v559, 20.0
        %v1072 = vmin.f32 %v560, 20.0
        %v1073 = vmin.f32 %v561, 20.0
        %v1074 = vmin.f32 %v562, 20.0
        %v1075 = vmin.f32 %v563, 20.0
        %v1076 = vmin.f32 %v564, 20.0
        %v1077 = vmin.f32 %v565, 20.0
        %v1078 = vmin.f32 %v566, 20.0
        %v1079 = vmin.f32 %v567, 20.0
        %v1080 = vmin.f32 %v568, 20.0
        %v1081 = vmin.f32 %v569, 20.0
        %v1082 = vmin.f32 %v570, 20.0
        %v1083 = vmin.f32 %v571, 20.0
        %v1084 = vmin.f32 %v572, 20.0
        %v1085 = vmin.f32 %v573, 20.0
        %v1086 = vmin.f32 %v574, 20.0
        %v1087 = vmin.f32 %v575, 20.0
        %v1088 = vmin.f32 %v576, 20.0
        %v1089 = vmin.f32 %v577, 20.0
        %v1090 = vmin.f32 %v578, 20.0
        %v1091 = vmin.f32 %v579, 20.0
        %v1092 = vmin.f32 %v580, 20.0
        %v1093 = vmin.f32 %v581, 20.0
        %v1094 = vmin.f32 %v582, 20.0
        %v1095 = vmin.f32 %v583, 20.0
        %v1096 = vmin.f32 %v584, 20.0
        %v1097 = vmin.f32 %v585, 20.0
        %v1098 = vmin.f32 %v586, 20.0
        %v1099 = vmin.f32 %v587, 20.0
        %v1100 = vmin.f32 %v588, 20.0
        %v1101 = vmin.f32 %v589, 20.0
        %v1102 = vmin.f32 %v590, 20.0
        %v1103 = vmin.f32 %v591, 20.0
        %v1104 = vmin.f32 %v592, 20.0
        %v1105 = vmin.f32 %v593, 20.0
        %v1106 = vmin.f32 %v594, 20.0
        %v1107 = vmin.f32 %v595, 20.0
        %v1108 = vmin.f32 %v596, 20.0
        %v1109 = vmin.f32 %v597, 20.0
        %v1110 = vmin.f32 %v598, 20.0
        %v1111 = vmin.f32 %v599, 20.0
        %v1112 = vmin.f32 %v600, 20.0
        %v1113 = vmin.f32 %v601, 20.0
        %v1114 = vmin.f32 %v602, 20.0
        %v1115 = vmin.f32 %v603, 20.0
        %v1116 = vmin.f32 %v604, 20.0
        %v1117 = vmin.f32 %v605, 20.0
        %v1118 = vmin.f32 %v606, 20.0
        %v1119 = vmin.f32 %v607, 20.0
        %v1120 = vmin.f32 %v608, 20.0
        %v1121 = vmin.f32 %v609, 20.0
        %v1122 = vmin.f32 %v610, 20.0
        %v1123 = vmin.f32 %v611, 20.0
        %v1124 = vmin.f32 %v612, 20.0
        %v1125 = vmin.f32 %v613, 20.0
        %v1126 = vmin.f32 %v614, 20.0
        %v1127 = vmin.f32 %v615, 20.0
        %v1128 = vmin.f32 %v616, 20.0
        %v1129 = vmin.f32 %v617, 20.0
        %v1130 = vmin.f32 %v618, 20.0
        %v1131 = vmin.f32 %v619, 20.0
        %v1132 = vmin.f32 %v620, 20.0
        %v1133 = vmin.f32 %v621, 20.0
        %v1134 = vmin.f32 %v622, 20.0
        %v1135 = vmin.f32 %v623, 20.0
        %v1136 = vmin.f32 %v624, 20.0
        %v1137 = vmin.f32 %v625, 20.0
        %v1138 = vmin.f32 %v626, 20.0
        %v1139 = vmin.f32 %v627, 20.0
        %v1140 = vmin.f32 %v628, 20.0
        %v1141 = vmin.f32 %v629, 20.0
        %v1142 = vmin.f32 %v630, 20.0
        %v1143 = vmin.f32 %v631, 20.0
        %v1144 = vmin.f32 %v632, 20.0
        %v1145 = vmin.f32 %v633, 20.0
        %v1146 = vmin.f32 %v634, 20.0
        %v1147 = vmin.f32 %v635, 20.0
        %v1148 = vmin.f32 %v636, 20.0
        %v1149 = vmin.f32 %v637, 20.0
        %v1150 = vmin.f32 %v638, 20.0
        %v1151 = vmin.f32 %v639, 20.0
        %v1152 = vmin.f32 %v640, 20.0
        %v1153 = vmin.f32 %v641, 20.0
        %v1154 = vmin.f32 %v642, 20.0
        %v1155 = vmin.f32 %v643, 20.0
        %v1156 = vmin.f32 %v644, 20.0
        %v1157 = vmin.f32 %v645, 20.0
        %v1158 = vmin.f32 %v646, 20.0
        %v1159 = vmin.f32 %v647, 20.0
        %v1160 = vmin.f32 %v648, 20.0
        %v1161 = vmin.f32 %v649, 20.0
        %v1162 = vmul.f32 %v650, 1.442695
        %v1163 = vpow.pop %v1162
        %v1164 = vmul.f32 %v651, 1.442695
        %v1165 = vpow.pop %v1164
        %v1166 = vmul.f32 %v652, 1.442695
        %v1167 = vpow.pop %v1166
        %v1168 = vmul.f32 %v653, 1.442695
        %v1169 = vpow.pop %v1168
        %v1170 = vmul.f32 %v654, 1.442695
        %v1171 = vpow.pop %v1170
        %v1172 = vmul.f32 %v655, 1.442695
        %v1173 = vpow.pop %v1172
        %v1174 = vmul.f32 %v656, 1.442695
        %v1175 = vpow.pop %v1174
        %v1176 = vmul.f32 %v657, 1.442695
        %v1177 = vpow.pop %v1176
        %v1178 = vmul.f32 %v658, 1.442695
        %v1179 = vpow.pop %v1178
        %v1180 = vmul.f32 %v659, 1.442695
        %v1181 = vpow.pop %v1180
        %v1182 = vmul.f32 %v660, 1.442695
        %v1183 = vpow.pop %v1182
        %v1184 = vmul.f32 %v661, 1.442695
        %v1185 = vpow.pop %v1184
        %v1186 = vmul.f32 %v662, 1.442695
        %v1187 = vpow.pop %v1186
        %v1188 = vmul.f32 %v663, 1.442695
        %v1189 = vpow.pop %v1188
        %v1190 = vmul.f32 %v664, 1.442695
        %v1191 = vpow.pop %v1190
        %v1192 = vmul.f32 %v665, 1.442695
        %v1193 = vpow.pop %v1192
        %v1194 = vmul.f32 %v666, 1.442695
        %v1195 = vpow.pop %v1194
        %v1196 = vmul.f32 %v667, 1.442695
        %v1197 = vpow.pop %v1196
        %v1198 = vmul.f32 %v668, 1.442695
        %v1199 = vpow.pop %v1198
        %v1200 = vmul.f32 %v669, 1.442695
        %v1201 = vpow.pop %v1200
        %v1202 = vmul.f32 %v670, 1.442695
        %v1203 = vpow.pop %v1202
        %v1204 = vmul.f32 %v671, 1.442695
        %v1205 = vpow.pop %v1204
        %v1206 = vmul.f32 %v672, 1.442695
        %v1207 = vpow.pop %v1206
        %v1208 = vmul.f32 %v673, 1.442695
        %v1209 = vpow.pop %v1208
        %v1210 = vmul.f32 %v674, 1.442695
        %v1211 = vpow.pop %v1210
        %v1212 = vmul.f32 %v675, 1.442695
        %v1213 = vpow.pop %v1212
        %v1214 = vmul.f32 %v676, 1.442695
        %v1215 = vpow.pop %v1214
        %v1216 = vmul.f32 %v677, 1.442695
        %v1217 = vpow.pop %v1216
        %v1218 = vmul.f32 %v678, 1.442695
        %v1219 = vpow.pop %v1218
        %v1220 = vmul.f32 %v679, 1.442695
        %v1221 = vpow.pop %v1220
        %v1222 = vmul.f32 %v680, 1.442695
        %v1223 = vpow.pop %v1222
        %v1224 = vmul.f32 %v681, 1.442695
        %v1225 = vpow.pop %v1224
        %v1226 = vmul.f32 %v682, 1.442695
        %v1227 = vpow.pop %v1226
        %v1228 = vmul.f32 %v683, 1.442695
        %v1229 = vpow.pop %v1228
        %v1230 = vmul.f32 %v684, 1.442695
        %v1231 = vpow.pop %v1230
        %v1232 = vmul.f32 %v685, 1.442695
        %v1233 = vpow.pop %v1232
        %v1234 = vmul.f32 %v686, 1.442695
        %v1235 = vpow.pop %v1234
        %v1236 = vmul.f32 %v687, 1.442695
        %v1237 = vpow.pop %v1236
        %v1238 = vmul.f32 %v688, 1.442695
        %v1239 = vpow.pop %v1238
        %v1240 = vmul.f32 %v689, 1.442695
        %v1241 = vpow.pop %v1240
        %v1242 = vmul.f32 %v690, 1.442695
        %v1243 = vpow.pop %v1242
        %v1244 = vmul.f32 %v691, 1.442695
        %v1245 = vpow.pop %v1244
        %v1246 = vmul.f32 %v692, 1.442695
        %v1247 = vpow.pop %v1246
        %v1248 = vmul.f32 %v693, 1.442695
        %v1249 = vpow.pop %v1248
        %v1250 = vmul.f32 %v694, 1.442695
        %v1251 = vpow.pop %v1250
        %v1252 = vmul.f32 %v695, 1.442695
        %v1253 = vpow.pop %v1252
        %v1254 = vmul.f32 %v696, 1.442695
        %v1255 = vpow.pop %v1254
        %v1256 = vmul.f32 %v697, 1.442695
        %v1257 = vpow.pop %v1256
        %v1258 = vmul.f32 %v698, 1.442695
        %v1259 = vpow.pop %v1258
        %v1260 = vmul.f32 %v699, 1.442695
        %v1261 = vpow.pop %v1260
        %v1262 = vmul.f32 %v700, 1.442695
        %v1263 = vpow.pop %v1262
        %v1264 = vmul.f32 %v701, 1.442695
        %v1265 = vpow.pop %v1264
        %v1266 = vmul.f32 %v702, 1.442695
        %v1267 = vpow.pop %v1266
        %v1268 = vmul.f32 %v703, 1.442695
        %v1269 = vpow.pop %v1268
        %v1270 = vmul.f32 %v704, 1.442695
        %v1271 = vpow.pop %v1270
        %v1272 = vmul.f32 %v705, 1.442695
        %v1273 = vpow.pop %v1272
        %v1274 = vmul.f32 %v706, 1.442695
        %v1275 = vpow.pop %v1274
        %v1276 = vmul.f32 %v707, 1.442695
        %v1277 = vpow.pop %v1276
        %v1278 = vmul.f32 %v708, 1.442695
        %v1279 = vpow.pop %v1278
        %v1280 = vmul.f32 %v709, 1.442695
        %v1281 = vpow.pop %v1280
        %v1282 = vmul.f32 %v710, 1.442695
        %v1283 = vpow.pop %v1282
        %v1284 = vmul.f32 %v711, 1.442695
        %v1285 = vpow.pop %v1284
        %v1286 = vmul.f32 %v712, 1.442695
        %v1287 = vpow.pop %v1286
        %v1288 = vmul.f32 %v713, 1.442695
        %v1289 = vpow.pop %v1288
        %v1290 = vmul.f32 %v714, 1.442695
        %v1291 = vpow.pop %v1290
        %v1292 = vmul.f32 %v715, 1.442695
        %v1293 = vpow.pop %v1292
        %v1294 = vmul.f32 %v716, 1.442695
        %v1295 = vpow.pop %v1294
        %v1296 = vmul.f32 %v717, 1.442695
        %v1297 = vpow.pop %v1296
        %v1298 = vmul.f32 %v718, 1.442695
        %v1299 = vpow.pop %v1298
        %v1300 = vmul.f32 %v719, 1.442695
        %v1301 = vpow.pop %v1300
        %v1302 = vmul.f32 %v720, 1.442695
        %v1303 = vpow.pop %v1302
        %v1304 = vmul.f32 %v721, 1.442695
        %v1305 = vpow.pop %v1304
        %v1306 = vmul.f32 %v722, 1.442695
        %v1307 = vpow.pop %v1306
        %v1308 = vmul.f32 %v723, 1.442695
        %v1309 = vpow.pop %v1308
        %v1310 = vmul.f32 %v724, 1.442695
        %v1311 = vpow.pop %v1310
        %v1312 = vmul.f32 %v725, 1.442695
        %v1313 = vpow.pop %v1312
        %v1314 = vmul.f32 %v726, 1.442695
        %v1315 = vpow.pop %v1314
        %v1316 = vmul.f32 %v727, 1.442695
        %v1317 = vpow.pop %v1316
        %v1318 = vmul.f32 %v728, 1.442695
        %v1319 = vpow.pop %v1318
        %v1320 = vmul.f32 %v729, 1.442695
        %v1321 = vpow.pop %v1320
        %v1322 = vmul.f32 %v730, 1.442695
        %v1323 = vpow.pop %v1322
        %v1324 = vmul.f32 %v731, 1.442695
        %v1325 = vpow.pop %v1324
        %v1326 = vmul.f32 %v732, 1.442695
        %v1327 = vpow.pop %v1326
        %v1328 = vmul.f32 %v733, 1.442695
        %v1329 = vpow.pop %v1328
        %v1330 = vmul.f32 %v734, 1.442695
        %v1331 = vpow.pop %v1330
        %v1332 = vmul.f32 %v735, 1.442695
        %v1333 = vpow.pop %v1332
        %v1334 = vmul.f32 %v736, 1.442695
        %v1335 = vpow.pop %v1334
        %v1336 = vmul.f32 %v737, 1.442695
        %v1337 = vpow.pop %v1336
        %v1338 = vmul.f32 %v738, 1.442695
        %v1339 = vpow.pop %v1338
        %v1340 = vmul.f32 %v739, 1.442695
        %v1341 = vpow.pop %v1340
        %v1342 = vmul.f32 %v740, 1.442695
        %v1343 = vpow.pop %v1342
        %v1344 = vmul.f32 %v741, 1.442695
        %v1345 = vpow.pop %v1344
        %v1346 = vmul.f32 %v742, 1.442695
        %v1347 = vpow.pop %v1346
        %v1348 = vmul.f32 %v743, 1.442695
        %v1349 = vpow.pop %v1348
        %v1350 = vmul.f32 %v744, 1.442695
        %v1351 = vpow.pop %v1350
        %v1352 = vmul.f32 %v745, 1.442695
        %v1353 = vpow.pop %v1352
        %v1354 = vmul.f32 %v746, 1.442695
        %v1355 = vpow.pop %v1354
        %v1356 = vmul.f32 %v747, 1.442695
        %v1357 = vpow.pop %v1356
        %v1358 = vmul.f32 %v748, 1.442695
        %v1359 = vpow.pop %v1358
        %v1360 = vmul.f32 %v749, 1.442695
        %v1361 = vpow.pop %v1360
        %v1362 = vmul.f32 %v750, 1.442695
        %v1363 = vpow.pop %v1362
        %v1364 = vmul.f32 %v751, 1.442695
        %v1365 = vpow.pop %v1364
        %v1366 = vmul.f32 %v752, 1.442695
        %v1367 = vpow.pop %v1366
        %v1368 = vmul.f32 %v753, 1.442695
        %v1369 = vpow.pop %v1368
        %v1370 = vmul.f32 %v754, 1.442695
        %v1371 = vpow.pop %v1370
        %v1372 = vmul.f32 %v755, 1.442695
        %v1373 = vpow.pop %v1372
        %v1374 = vmul.f32 %v756, 1.442695
        %v1375 = vpow.pop %v1374
        %v1376 = vmul.f32 %v757, 1.442695
        %v1377 = vpow.pop %v1376
        %v1378 = vmul.f32 %v758, 1.442695
        %v1379 = vpow.pop %v1378
        %v1380 = vmul.f32 %v759, 1.442695
        %v1381 = vpow.pop %v1380
        %v1382 = vmul.f32 %v760, 1.442695
        %v1383 = vpow.pop %v1382
        %v1384 = vmul.f32 %v761, 1.442695
        %v1385 = vpow.pop %v1384
        %v1386 = vmul.f32 %v762, 1.442695
        %v1387 = vpow.pop %v1386
        %v1388 = vmul.f32 %v763, 1.442695
        %v1389 = vpow.pop %v1388
        %v1390 = vmul.f32 %v764, 1.442695
        %v1391 = vpow.pop %v1390
        %v1392 = vmul.f32 %v765, 1.442695
        %v1393 = vpow.pop %v1392
        %v1394 = vmul.f32 %v766, 1.442695
        %v1395 = vpow.pop %v1394
        %v1396 = vmul.f32 %v767, 1.442695
        %v1397 = vpow.pop %v1396
        %v1398 = vmul.f32 %v768, 1.442695
        %v1399 = vpow.pop %v1398
        %v1400 = vmul.f32 %v769, 1.442695
        %v1401 = vpow.pop %v1400
        %v1402 = vmul.f32 %v770, 1.442695
        %v1403 = vpow.pop %v1402
        %v1404 = vmul.f32 %v771, 1.442695
        %v1405 = vpow.pop %v1404
        %v1406 = vmul.f32 %v772, 1.442695
        %v1407 = vpow.pop %v1406
        %v1408 = vmul.f32 %v773, 1.442695
        %v1409 = vpow.pop %v1408
        %v1410 = vmul.f32 %v774, 1.442695
        %v1411 = vpow.pop %v1410
        %v1412 = vmul.f32 %v775, 1.442695
        %v1413 = vpow.pop %v1412
        %v1414 = vmul.f32 %v776, 1.442695
        %v1415 = vpow.pop %v1414
        %v1416 = vmul.f32 %v777, 1.442695
        %v1417 = vpow.pop %v1416
        %v1418 = vmul.f32 %v778, 1.442695
        %v1419 = vpow.pop %v1418
        %v1420 = vmul.f32 %v779, 1.442695
        %v1421 = vpow.pop %v1420
        %v1422 = vmul.f32 %v780, 1.442695
        %v1423 = vpow.pop %v1422
        %v1424 = vmul.f32 %v781, 1.442695
        %v1425 = vpow.pop %v1424
        %v1426 = vmul.f32 %v782, 1.442695
        %v1427 = vpow.pop %v1426
        %v1428 = vmul.f32 %v783, 1.442695
        %v1429 = vpow.pop %v1428
        %v1430 = vmul.f32 %v784, 1.442695
        %v1431 = vpow.pop %v1430
        %v1432 = vmul.f32 %v785, 1.442695
        %v1433 = vpow.pop %v1432
        %v1434 = vmul.f32 %v786, 1.442695
        %v1435 = vpow.pop %v1434
        %v1436 = vmul.f32 %v787, 1.442695
        %v1437 = vpow.pop %v1436
        %v1438 = vmul.f32 %v788, 1.442695
        %v1439 = vpow.pop %v1438
        %v1440 = vmul.f32 %v789, 1.442695
        %v1441 = vpow.pop %v1440
        %v1442 = vmul.f32 %v790, 1.442695
        %v1443 = vpow.pop %v1442
        %v1444 = vmul.f32 %v791, 1.442695
        %v1445 = vpow.pop %v1444
        %v1446 = vmul.f32 %v792, 1.442695
        %v1447 = vpow.pop %v1446
        %v1448 = vmul.f32 %v793, 1.442695
        %v1449 = vpow.pop %v1448
        %v1450 = vmul.f32 %v794, 1.442695
        %v1451 = vpow.pop %v1450
        %v1452 = vmul.f32 %v795, 1.442695
        %v1453 = vpow.pop %v1452
        %v1454 = vmul.f32 %v796, 1.442695
        %v1455 = vpow.pop %v1454
        %v1456 = vmul.f32 %v797, 1.442695
        %v1457 = vpow.pop %v1456
        %v1458 = vmul.f32 %v798, 1.442695
        %v1459 = vpow.pop %v1458
        %v1460 = vmul.f32 %v799, 1.442695
        %v1461 = vpow.pop %v1460
        %v1462 = vmul.f32 %v800, 1.442695
        %v1463 = vpow.pop %v1462
        %v1464 = vmul.f32 %v801, 1.442695
        %v1465 = vpow.pop %v1464
        %v1466 = vmul.f32 %v802, 1.442695
        %v1467 = vpow.pop %v1466
        %v1468 = vmul.f32 %v803, 1.442695
        %v1469 = vpow.pop %v1468
        %v1470 = vmul.f32 %v804, 1.442695
        %v1471 = vpow.pop %v1470
        %v1472 = vmul.f32 %v805, 1.442695
        %v1473 = vpow.pop %v1472
        %v1474 = vmul.f32 %v806, 1.442695
        %v1475 = vpow.pop %v1474
        %v1476 = vmul.f32 %v807, 1.442695
        %v1477 = vpow.pop %v1476
        %v1478 = vmul.f32 %v808, 1.442695
        %v1479 = vpow.pop %v1478
        %v1480 = vmul.f32 %v809, 1.442695
        %v1481 = vpow.pop %v1480
        %v1482 = vmul.f32 %v810, 1.442695
        %v1483 = vpow.pop %v1482
        %v1484 = vmul.f32 %v811, 1.442695
        %v1485 = vpow.pop %v1484
        %v1486 = vmul.f32 %v812, 1.442695
        %v1487 = vpow.pop %v1486
        %v1488 = vmul.f32 %v813, 1.442695
        %v1489 = vpow.pop %v1488
        %v1490 = vmul.f32 %v814, 1.442695
        %v1491 = vpow.pop %v1490
        %v1492 = vmul.f32 %v815, 1.442695
        %v1493 = vpow.pop %v1492
        %v1494 = vmul.f32 %v816, 1.442695
        %v1495 = vpow.pop %v1494
        %v1496 = vmul.f32 %v817, 1.442695
        %v1497 = vpow.pop %v1496
        %v1498 = vmul.f32 %v818, 1.442695
        %v1499 = vpow.pop %v1498
        %v1500 = vmul.f32 %v819, 1.442695
        %v1501 = vpow.pop %v1500
        %v1502 = vmul.f32 %v820, 1.442695
        %v1503 = vpow.pop %v1502
        %v1504 = vmul.f32 %v821, 1.442695
        %v1505 = vpow.pop %v1504
        %v1506 = vmul.f32 %v822, 1.442695
        %v1507 = vpow.pop %v1506
        %v1508 = vmul.f32 %v823, 1.442695
        %v1509 = vpow.pop %v1508
        %v1510 = vmul.f32 %v824, 1.442695
        %v1511 = vpow.pop %v1510
        %v1512 = vmul.f32 %v825, 1.442695
        %v1513 = vpow.pop %v1512
        %v1514 = vmul.f32 %v826, 1.442695
        %v1515 = vpow.pop %v1514
        %v1516 = vmul.f32 %v827, 1.442695
        %v1517 = vpow.pop %v1516
        %v1518 = vmul.f32 %v828, 1.442695
        %v1519 = vpow.pop %v1518
        %v1520 = vmul.f32 %v829, 1.442695
        %v1521 = vpow.pop %v1520
        %v1522 = vmul.f32 %v830, 1.442695
        %v1523 = vpow.pop %v1522
        %v1524 = vmul.f32 %v831, 1.442695
        %v1525 = vpow.pop %v1524
        %v1526 = vmul.f32 %v832, 1.442695
        %v1527 = vpow.pop %v1526
        %v1528 = vmul.f32 %v833, 1.442695
        %v1529 = vpow.pop %v1528
        %v1530 = vmul.f32 %v834, 1.442695
        %v1531 = vpow.pop %v1530
        %v1532 = vmul.f32 %v835, 1.442695
        %v1533 = vpow.pop %v1532
        %v1534 = vmul.f32 %v836, 1.442695
        %v1535 = vpow.pop %v1534
        %v1536 = vmul.f32 %v837, 1.442695
        %v1537 = vpow.pop %v1536
        %v1538 = vmul.f32 %v838, 1.442695
        %v1539 = vpow.pop %v1538
        %v1540 = vmul.f32 %v839, 1.442695
        %v1541 = vpow.pop %v1540
        %v1542 = vmul.f32 %v840, 1.442695
        %v1543 = vpow.pop %v1542
        %v1544 = vmul.f32 %v841, 1.442695
        %v1545 = vpow.pop %v1544
        %v1546 = vmul.f32 %v842, 1.442695
        %v1547 = vpow.pop %v1546
        %v1548 = vmul.f32 %v843, 1.442695
        %v1549 = vpow.pop %v1548
        %v1550 = vmul.f32 %v844, 1.442695
        %v1551 = vpow.pop %v1550
        %v1552 = vmul.f32 %v845, 1.442695
        %v1553 = vpow.pop %v1552
        %v1554 = vmul.f32 %v846, 1.442695
        %v1555 = vpow.pop %v1554
        %v1556 = vmul.f32 %v847, 1.442695
        %v1557 = vpow.pop %v1556
        %v1558 = vmul.f32 %v848, 1.442695
        %v1559 = vpow.pop %v1558
        %v1560 = vmul.f32 %v849, 1.442695
        %v1561 = vpow.pop %v1560
        %v1562 = vmul.f32 %v850, 1.442695
        %v1563 = vpow.pop %v1562
        %v1564 = vmul.f32 %v851, 1.442695
        %v1565 = vpow.pop %v1564
        %v1566 = vmul.f32 %v852, 1.442695
        %v1567 = vpow.pop %v1566
        %v1568 = vmul.f32 %v853, 1.442695
        %v1569 = vpow.pop %v1568
        %v1570 = vmul.f32 %v854, 1.442695
        %v1571 = vpow.pop %v1570
        %v1572 = vmul.f32 %v855, 1.442695
        %v1573 = vpow.pop %v1572
        %v1574 = vmul.f32 %v856, 1.442695
        %v1575 = vpow.pop %v1574
        %v1576 = vmul.f32 %v857, 1.442695
        %v1577 = vpow.pop %v1576
        %v1578 = vmul.f32 %v858, 1.442695
        %v1579 = vpow.pop %v1578
        %v1580 = vmul.f32 %v859, 1.442695
        %v1581 = vpow.pop %v1580
        %v1582 = vmul.f32 %v860, 1.442695
        %v1583 = vpow.pop %v1582
        %v1584 = vmul.f32 %v861, 1.442695
        %v1585 = vpow.pop %v1584
        %v1586 = vmul.f32 %v862, 1.442695
        %v1587 = vpow.pop %v1586
        %v1588 = vmul.f32 %v863, 1.442695
        %v1589 = vpow.pop %v1588
        %v1590 = vmul.f32 %v864, 1.442695
        %v1591 = vpow.pop %v1590
        %v1592 = vmul.f32 %v865, 1.442695
        %v1593 = vpow.pop %v1592
        %v1594 = vmul.f32 %v866, 1.442695
        %v1595 = vpow.pop %v1594
        %v1596 = vmul.f32 %v867, 1.442695
        %v1597 = vpow.pop %v1596
        %v1598 = vmul.f32 %v868, 1.442695
        %v1599 = vpow.pop %v1598
        %v1600 = vmul.f32 %v869, 1.442695
        %v1601 = vpow.pop %v1600
        %v1602 = vmul.f32 %v870, 1.442695
        %v1603 = vpow.pop %v1602
        %v1604 = vmul.f32 %v871, 1.442695
        %v1605 = vpow.pop %v1604
        %v1606 = vmul.f32 %v872, 1.442695
        %v1607 = vpow.pop %v1606
        %v1608 = vmul.f32 %v873, 1.442695
        %v1609 = vpow.pop %v1608
        %v1610 = vmul.f32 %v874, 1.442695
        %v1611 = vpow.pop %v1610
        %v1612 = vmul.f32 %v875, 1.442695
        %v1613 = vpow.pop %v1612
        %v1614 = vmul.f32 %v876, 1.442695
        %v1615 = vpow.pop %v1614
        %v1616 = vmul.f32 %v877, 1.442695
        %v1617 = vpow.pop %v1616
        %v1618 = vmul.f32 %v878, 1.442695
        %v1619 = vpow.pop %v1618
        %v1620 = vmul.f32 %v879, 1.442695
        %v1621 = vpow.pop %v1620
        %v1622 = vmul.f32 %v880, 1.442695
        %v1623 = vpow.pop %v1622
        %v1624 = vmul.f32 %v881, 1.442695
        %v1625 = vpow.pop %v1624
        %v1626 = vmul.f32 %v882, 1.442695
        %v1627 = vpow.pop %v1626
        %v1628 = vmul.f32 %v883, 1.442695
        %v1629 = vpow.pop %v1628
        %v1630 = vmul.f32 %v884, 1.442695
        %v1631 = vpow.pop %v1630
        %v1632 = vmul.f32 %v885, 1.442695
        %v1633 = vpow.pop %v1632
        %v1634 = vmul.f32 %v886, 1.442695
        %v1635 = vpow.pop %v1634
        %v1636 = vmul.f32 %v887, 1.442695
        %v1637 = vpow.pop %v1636
        %v1638 = vmul.f32 %v888, 1.442695
        %v1639 = vpow.pop %v1638
        %v1640 = vmul.f32 %v889, 1.442695
        %v1641 = vpow.pop %v1640
        %v1642 = vmul.f32 %v890, 1.442695
        %v1643 = vpow.pop %v1642
        %v1644 = vmul.f32 %v891, 1.442695
        %v1645 = vpow.pop %v1644
        %v1646 = vmul.f32 %v892, 1.442695
        %v1647 = vpow.pop %v1646
        %v1648 = vmul.f32 %v893, 1.442695
        %v1649 = vpow.pop %v1648
        %v1650 = vmul.f32 %v894, 1.442695
        %v1651 = vpow.pop %v1650
        %v1652 = vmul.f32 %v895, 1.442695
        %v1653 = vpow.pop %v1652
        %v1654 = vmul.f32 %v896, 1.442695
        %v1655 = vpow.pop %v1654
        %v1656 = vmul.f32 %v897, 1.442695
        %v1657 = vpow.pop %v1656
        %v1658 = vmul.f32 %v898, 1.442695
        %v1659 = vpow.pop %v1658
        %v1660 = vmul.f32 %v899, 1.442695
        %v1661 = vpow.pop %v1660
        %v1662 = vmul.f32 %v900, 1.442695
        %v1663 = vpow.pop %v1662
        %v1664 = vmul.f32 %v901, 1.442695
        %v1665 = vpow.pop %v1664
        %v1666 = vmul.f32 %v902, 1.442695
        %v1667 = vpow.pop %v1666
        %v1668 = vmul.f32 %v903, 1.442695
        %v1669 = vpow.pop %v1668
        %v1670 = vmul.f32 %v904, 1.442695
        %v1671 = vpow.pop %v1670
        %v1672 = vmul.f32 %v905, 1.442695
        %v1673 = vpow.pop %v1672
        %v1674 = vmul.f32 %v906, 1.442695
        %v1675 = vpow.pop %v1674
        %v1676 = vmul.f32 %v907, 1.442695
        %v1677 = vpow.pop %v1676
        %v1678 = vmul.f32 %v908, 1.442695
        %v1679 = vpow.pop %v1678
        %v1680 = vmul.f32 %v909, 1.442695
        %v1681 = vpow.pop %v1680
        %v1682 = vmul.f32 %v910, 1.442695
        %v1683 = vpow.pop %v1682
        %v1684 = vmul.f32 %v911, 1.442695
        %v1685 = vpow.pop %v1684
        %v1686 = vmul.f32 %v912, 1.442695
        %v1687 = vpow.pop %v1686
        %v1688 = vmul.f32 %v913, 1.442695
        %v1689 = vpow.pop %v1688
        %v1690 = vmul.f32 %v914, 1.442695
        %v1691 = vpow.pop %v1690
        %v1692 = vmul.f32 %v915, 1.442695
        %v1693 = vpow.pop %v1692
        %v1694 = vmul.f32 %v916, 1.442695
        %v1695 = vpow.pop %v1694
        %v1696 = vmul.f32 %v917, 1.442695
        %v1697 = vpow.pop %v1696
        %v1698 = vmul.f32 %v918, 1.442695
        %v1699 = vpow.pop %v1698
        %v1700 = vmul.f32 %v919, 1.442695
        %v1701 = vpow.pop %v1700
        %v1702 = vmul.f32 %v920, 1.442695
        %v1703 = vpow.pop %v1702
        %v1704 = vmul.f32 %v921, 1.442695
        %v1705 = vpow.pop %v1704
        %v1706 = vmul.f32 %v922, 1.442695
        %v1707 = vpow.pop %v1706
        %v1708 = vmul.f32 %v923, 1.442695
        %v1709 = vpow.pop %v1708
        %v1710 = vmul.f32 %v924, 1.442695
        %v1711 = vpow.pop %v1710
        %v1712 = vmul.f32 %v925, 1.442695
        %v1713 = vpow.pop %v1712
        %v1714 = vmul.f32 %v926, 1.442695
        %v1715 = vpow.pop %v1714
        %v1716 = vmul.f32 %v927, 1.442695
        %v1717 = vpow.pop %v1716
        %v1718 = vmul.f32 %v928, 1.442695
        %v1719 = vpow.pop %v1718
        %v1720 = vmul.f32 %v929, 1.442695
        %v1721 = vpow.pop %v1720
        %v1722 = vmul.f32 %v930, 1.442695
        %v1723 = vpow.pop %v1722
        %v1724 = vmul.f32 %v931, 1.442695
        %v1725 = vpow.pop %v1724
        %v1726 = vmul.f32 %v932, 1.442695
        %v1727 = vpow.pop %v1726
        %v1728 = vmul.f32 %v933, 1.442695
        %v1729 = vpow.pop %v1728
        %v1730 = vmul.f32 %v934, 1.442695
        %v1731 = vpow.pop %v1730
        %v1732 = vmul.f32 %v935, 1.442695
        %v1733 = vpow.pop %v1732
        %v1734 = vmul.f32 %v936, 1.442695
        %v1735 = vpow.pop %v1734
        %v1736 = vmul.f32 %v937, 1.442695
        %v1737 = vpow.pop %v1736
        %v1738 = vmul.f32 %v938, 1.442695
        %v1739 = vpow.pop %v1738
        %v1740 = vmul.f32 %v939, 1.442695
        %v1741 = vpow.pop %v1740
        %v1742 = vmul.f32 %v940, 1.442695
        %v1743 = vpow.pop %v1742
        %v1744 = vmul.f32 %v941, 1.442695
        %v1745 = vpow.pop %v1744
        %v1746 = vmul.f32 %v942, 1.442695
        %v1747 = vpow.pop %v1746
        %v1748 = vmul.f32 %v943, 1.442695
        %v1749 = vpow.pop %v1748
        %v1750 = vmul.f32 %v944, 1.442695
        %v1751 = vpow.pop %v1750
        %v1752 = vmul.f32 %v945, 1.442695
        %v1753 = vpow.pop %v1752
        %v1754 = vmul.f32 %v946, 1.442695
        %v1755 = vpow.pop %v1754
        %v1756 = vmul.f32 %v947, 1.442695
        %v1757 = vpow.pop %v1756
        %v1758 = vmul.f32 %v948, 1.442695
        %v1759 = vpow.pop %v1758
        %v1760 = vmul.f32 %v949, 1.442695
        %v1761 = vpow.pop %v1760
        %v1762 = vmul.f32 %v950, 1.442695
        %v1763 = vpow.pop %v1762
        %v1764 = vmul.f32 %v951, 1.442695
        %v1765 = vpow.pop %v1764
        %v1766 = vmul.f32 %v952, 1.442695
        %v1767 = vpow.pop %v1766
        %v1768 = vmul.f32 %v953, 1.442695
        %v1769 = vpow.pop %v1768
        %v1770 = vmul.f32 %v954, 1.442695
        %v1771 = vpow.pop %v1770
        %v1772 = vmul.f32 %v955, 1.442695
        %v1773 = vpow.pop %v1772
        %v1774 = vmul.f32 %v956, 1.442695
        %v1775 = vpow.pop %v1774
        %v1776 = vmul.f32 %v957, 1.442695
        %v1777 = vpow.pop %v1776
        %v1778 = vmul.f32 %v958, 1.442695
        %v1779 = vpow.pop %v1778
        %v1780 = vmul.f32 %v959, 1.442695
        %v1781 = vpow.pop %v1780
        %v1782 = vmul.f32 %v960, 1.442695
        %v1783 = vpow.pop %v1782
        %v1784 = vmul.f32 %v961, 1.442695
        %v1785 = vpow.pop %v1784
        %v1786 = vmul.f32 %v962, 1.442695
        %v1787 = vpow.pop %v1786
        %v1788 = vmul.f32 %v963, 1.442695
        %v1789 = vpow.pop %v1788
        %v1790 = vmul.f32 %v964, 1.442695
        %v1791 = vpow.pop %v1790
        %v1792 = vmul.f32 %v965, 1.442695
        %v1793 = vpow.pop %v1792
        %v1794 = vmul.f32 %v966, 1.442695
        %v1795 = vpow.pop %v1794
        %v1796 = vmul.f32 %v967, 1.442695
        %v1797 = vpow.pop %v1796
        %v1798 = vmul.f32 %v968, 1.442695
        %v1799 = vpow.pop %v1798
        %v1800 = vmul.f32 %v969, 1.442695
        %v1801 = vpow.pop %v1800
        %v1802 = vmul.f32 %v970, 1.442695
        %v1803 = vpow.pop %v1802
        %v1804 = vmul.f32 %v971, 1.442695
        %v1805 = vpow.pop %v1804
        %v1806 = vmul.f32 %v972, 1.442695
        %v1807 = vpow.pop %v1806
        %v1808 = vmul.f32 %v973, 1.442695
        %v1809 = vpow.pop %v1808
        %v1810 = vmul.f32 %v974, 1.442695
        %v1811 = vpow.pop %v1810
        %v1812 = vmul.f32 %v975, 1.442695
        %v1813 = vpow.pop %v1812
        %v1814 = vmul.f32 %v976, 1.442695
        %v1815 = vpow.pop %v1814
        %v1816 = vmul.f32 %v977, 1.442695
        %v1817 = vpow.pop %v1816
        %v1818 = vmul.f32 %v978, 1.442695
        %v1819 = vpow.pop %v1818
        %v1820 = vmul.f32 %v979, 1.442695
        %v1821 = vpow.pop %v1820
        %v1822 = vmul.f32 %v980, 1.442695
        %v1823 = vpow.pop %v1822
        %v1824 = vmul.f32 %v981, 1.442695
        %v1825 = vpow.pop %v1824
        %v1826 = vmul.f32 %v982, 1.442695
        %v1827 = vpow.pop %v1826
        %v1828 = vmul.f32 %v983, 1.442695
        %v1829 = vpow.pop %v1828
        %v1830 = vmul.f32 %v984, 1.442695
        %v1831 = vpow.pop %v1830
        %v1832 = vmul.f32 %v985, 1.442695
        %v1833 = vpow.pop %v1832
        %v1834 = vmul.f32 %v986, 1.442695
        %v1835 = vpow.pop %v1834
        %v1836 = vmul.f32 %v987, 1.442695
        %v1837 = vpow.pop %v1836
        %v1838 = vmul.f32 %v988, 1.442695
        %v1839 = vpow.pop %v1838
        %v1840 = vmul.f32 %v989, 1.442695
        %v1841 = vpow.pop %v1840
        %v1842 = vmul.f32 %v990, 1.442695
        %v1843 = vpow.pop %v1842
        %v1844 = vmul.f32 %v991, 1.442695
        %v1845 = vpow.pop %v1844
        %v1846 = vmul.f32 %v992, 1.442695
        %v1847 = vpow.pop %v1846
        %v1848 = vmul.f32 %v993, 1.442695
        %v1849 = vpow.pop %v1848
        %v1850 = vmul.f32 %v994, 1.442695
        %v1851 = vpow.pop %v1850
        %v1852 = vmul.f32 %v995, 1.442695
        %v1853 = vpow.pop %v1852
        %v1854 = vmul.f32 %v996, 1.442695
        %v1855 = vpow.pop %v1854
        %v1856 = vmul.f32 %v997, 1.442695
        %v1857 = vpow.pop %v1856
        %v1858 = vmul.f32 %v998, 1.442695
        %v1859 = vpow.pop %v1858
        %v1860 = vmul.f32 %v999, 1.442695
        %v1861 = vpow.pop %v1860
        %v1862 = vmul.f32 %v1000, 1.442695
        %v1863 = vpow.pop %v1862
        %v1864 = vmul.f32 %v1001, 1.442695
        %v1865 = vpow.pop %v1864
        %v1866 = vmul.f32 %v1002, 1.442695
        %v1867 = vpow.pop %v1866
        %v1868 = vmul.f32 %v1003, 1.442695
        %v1869 = vpow.pop %v1868
        %v1870 = vmul.f32 %v1004, 1.442695
        %v1871 = vpow.pop %v1870
        %v1872 = vmul.f32 %v1005, 1.442695
        %v1873 = vpow.pop %v1872
        %v1874 = vmul.f32 %v1006, 1.442695
        %v1875 = vpow.pop %v1874
        %v1876 = vmul.f32 %v1007, 1.442695
        %v1877 = vpow.pop %v1876
        %v1878 = vmul.f32 %v1008, 1.442695
        %v1879 = vpow.pop %v1878
        %v1880 = vmul.f32 %v1009, 1.442695
        %v1881 = vpow.pop %v1880
        %v1882 = vmul.f32 %v1010, 1.442695
        %v1883 = vpow.pop %v1882
        %v1884 = vmul.f32 %v1011, 1.442695
        %v1885 = vpow.pop %v1884
        %v1886 = vmul.f32 %v1012, 1.442695
        %v1887 = vpow.pop %v1886
        %v1888 = vmul.f32 %v1013, 1.442695
        %v1889 = vpow.pop %v1888
        %v1890 = vmul.f32 %v1014, 1.442695
        %v1891 = vpow.pop %v1890
        %v1892 = vmul.f32 %v1015, 1.442695
        %v1893 = vpow.pop %v1892
        %v1894 = vmul.f32 %v1016, 1.442695
        %v1895 = vpow.pop %v1894
        %v1896 = vmul.f32 %v1017, 1.442695
        %v1897 = vpow.pop %v1896
        %v1898 = vmul.f32 %v1018, 1.442695
        %v1899 = vpow.pop %v1898
        %v1900 = vmul.f32 %v1019, 1.442695
        %v1901 = vpow.pop %v1900
        %v1902 = vmul.f32 %v1020, 1.442695
        %v1903 = vpow.pop %v1902
        %v1904 = vmul.f32 %v1021, 1.442695
        %v1905 = vpow.pop %v1904
        %v1906 = vmul.f32 %v1022, 1.442695
        %v1907 = vpow.pop %v1906
        %v1908 = vmul.f32 %v1023, 1.442695
        %v1909 = vpow.pop %v1908
        %v1910 = vmul.f32 %v1024, 1.442695
        %v1911 = vpow.pop %v1910
        %v1912 = vmul.f32 %v1025, 1.442695
        %v1913 = vpow.pop %v1912
        %v1914 = vmul.f32 %v1026, 1.442695
        %v1915 = vpow.pop %v1914
        %v1916 = vmul.f32 %v1027, 1.442695
        %v1917 = vpow.pop %v1916
        %v1918 = vmul.f32 %v1028, 1.442695
        %v1919 = vpow.pop %v1918
        %v1920 = vmul.f32 %v1029, 1.442695
        %v1921 = vpow.pop %v1920
        %v1922 = vmul.f32 %v1030, 1.442695
        %v1923 = vpow.pop %v1922
        %v1924 = vmul.f32 %v1031, 1.442695
        %v1925 = vpow.pop %v1924
        %v1926 = vmul.f32 %v1032, 1.442695
        %v1927 = vpow.pop %v1926
        %v1928 = vmul.f32 %v1033, 1.442695
        %v1929 = vpow.pop %v1928
        %v1930 = vmul.f32 %v1034, 1.442695
        %v1931 = vpow.pop %v1930
        %v1932 = vmul.f32 %v1035, 1.442695
        %v1933 = vpow.pop %v1932
        %v1934 = vmul.f32 %v1036, 1.442695
        %v1935 = vpow.pop %v1934
        %v1936 = vmul.f32 %v1037, 1.442695
        %v1937 = vpow.pop %v1936
        %v1938 = vmul.f32 %v1038, 1.442695
        %v1939 = vpow.pop %v1938
        %v1940 = vmul.f32 %v1039, 1.442695
        %v1941 = vpow.pop %v1940
        %v1942 = vmul.f32 %v1040, 1.442695
        %v1943 = vpow.pop %v1942
        %v1944 = vmul.f32 %v1041, 1.442695
        %v1945 = vpow.pop %v1944
        %v1946 = vmul.f32 %v1042, 1.442695
        %v1947 = vpow.pop %v1946
        %v1948 = vmul.f32 %v1043, 1.442695
        %v1949 = vpow.pop %v1948
        %v1950 = vmul.f32 %v1044, 1.442695
        %v1951 = vpow.pop %v1950
        %v1952 = vmul.f32 %v1045, 1.442695
        %v1953 = vpow.pop %v1952
        %v1954 = vmul.f32 %v1046, 1.442695
        %v1955 = vpow.pop %v1954
        %v1956 = vmul.f32 %v1047, 1.442695
        %v1957 = vpow.pop %v1956
        %v1958 = vmul.f32 %v1048, 1.442695
        %v1959 = vpow.pop %v1958
        %v1960 = vmul.f32 %v1049, 1.442695
        %v1961 = vpow.pop %v1960
        %v1962 = vmul.f32 %v1050, 1.442695
        %v1963 = vpow.pop %v1962
        %v1964 = vmul.f32 %v1051, 1.442695
        %v1965 = vpow.pop %v1964
        %v1966 = vmul.f32 %v1052, 1.442695
        %v1967 = vpow.pop %v1966
        %v1968 = vmul.f32 %v1053, 1.442695
        %v1969 = vpow.pop %v1968
        %v1970 = vmul.f32 %v1054, 1.442695
        %v1971 = vpow.pop %v1970
        %v1972 = vmul.f32 %v1055, 1.442695
        %v1973 = vpow.pop %v1972
        %v1974 = vmul.f32 %v1056, 1.442695
        %v1975 = vpow.pop %v1974
        %v1976 = vmul.f32 %v1057, 1.442695
        %v1977 = vpow.pop %v1976
        %v1978 = vmul.f32 %v1058, 1.442695
        %v1979 = vpow.pop %v1978
        %v1980 = vmul.f32 %v1059, 1.442695
        %v1981 = vpow.pop %v1980
        %v1982 = vmul.f32 %v1060, 1.442695
        %v1983 = vpow.pop %v1982
        %v1984 = vmul.f32 %v1061, 1.442695
        %v1985 = vpow.pop %v1984
        %v1986 = vmul.f32 %v1062, 1.442695
        %v1987 = vpow.pop %v1986
        %v1988 = vmul.f32 %v1063, 1.442695
        %v1989 = vpow.pop %v1988
        %v1990 = vmul.f32 %v1064, 1.442695
        %v1991 = vpow.pop %v1990
        %v1992 = vmul.f32 %v1065, 1.442695
        %v1993 = vpow.pop %v1992
        %v1994 = vmul.f32 %v1066, 1.442695
        %v1995 = vpow.pop %v1994
        %v1996 = vmul.f32 %v1067, 1.442695
        %v1997 = vpow.pop %v1996
        %v1998 = vmul.f32 %v1068, 1.442695
        %v1999 = vpow.pop %v1998
        %v2000 = vmul.f32 %v1069, 1.442695
        %v2001 = vpow.pop %v2000
        %v2002 = vmul.f32 %v1070, 1.442695
        %v2003 = vpow.pop %v2002
        %v2004 = vmul.f32 %v1071, 1.442695
        %v2005 = vpow.pop %v2004
        %v2006 = vmul.f32 %v1072, 1.442695
        %v2007 = vpow.pop %v2006
        %v2008 = vmul.f32 %v1073, 1.442695
        %v2009 = vpow.pop %v2008
        %v2010 = vmul.f32 %v1074, 1.442695
        %v2011 = vpow.pop %v2010
        %v2012 = vmul.f32 %v1075, 1.442695
        %v2013 = vpow.pop %v2012
        %v2014 = vmul.f32 %v1076, 1.442695
        %v2015 = vpow.pop %v2014
        %v2016 = vmul.f32 %v1077, 1.442695
        %v2017 = vpow.pop %v2016
        %v2018 = vmul.f32 %v1078, 1.442695
        %v2019 = vpow.pop %v2018
        %v2020 = vmul.f32 %v1079, 1.442695
        %v2021 = vpow.pop %v2020
        %v2022 = vmul.f32 %v1080, 1.442695
        %v2023 = vpow.pop %v2022
        %v2024 = vmul.f32 %v1081, 1.442695
        %v2025 = vpow.pop %v2024
        %v2026 = vmul.f32 %v1082, 1.442695
        %v2027 = vpow.pop %v2026
        %v2028 = vmul.f32 %v1083, 1.442695
        %v2029 = vpow.pop %v2028
        %v2030 = vmul.f32 %v1084, 1.442695
        %v2031 = vpow.pop %v2030
        %v2032 = vmul.f32 %v1085, 1.442695
        %v2033 = vpow.pop %v2032
        %v2034 = vmul.f32 %v1086, 1.442695
        %v2035 = vpow.pop %v2034
        %v2036 = vmul.f32 %v1087, 1.442695
        %v2037 = vpow.pop %v2036
        %v2038 = vmul.f32 %v1088, 1.442695
        %v2039 = vpow.pop %v2038
        %v2040 = vmul.f32 %v1089, 1.442695
        %v2041 = vpow.pop %v2040
        %v2042 = vmul.f32 %v1090, 1.442695
        %v2043 = vpow.pop %v2042
        %v2044 = vmul.f32 %v1091, 1.442695
        %v2045 = vpow.pop %v2044
        %v2046 = vmul.f32 %v1092, 1.442695
        %v2047 = vpow.pop %v2046
        %v2048 = vmul.f32 %v1093, 1.442695
        %v2049 = vpow.pop %v2048
        %v2050 = vmul.f32 %v1094, 1.442695
        %v2051 = vpow.pop %v2050
        %v2052 = vmul.f32 %v1095, 1.442695
        %v2053 = vpow.pop %v2052
        %v2054 = vmul.f32 %v1096, 1.442695
        %v2055 = vpow.pop %v2054
        %v2056 = vmul.f32 %v1097, 1.442695
        %v2057 = vpow.pop %v2056
        %v2058 = vmul.f32 %v1098, 1.442695
        %v2059 = vpow.pop %v2058
        %v2060 = vmul.f32 %v1099, 1.442695
        %v2061 = vpow.pop %v2060
        %v2062 = vmul.f32 %v1100, 1.442695
        %v2063 = vpow.pop %v2062
        %v2064 = vmul.f32 %v1101, 1.442695
        %v2065 = vpow.pop %v2064
        %v2066 = vmul.f32 %v1102, 1.442695
        %v2067 = vpow.pop %v2066
        %v2068 = vmul.f32 %v1103, 1.442695
        %v2069 = vpow.pop %v2068
        %v2070 = vmul.f32 %v1104, 1.442695
        %v2071 = vpow.pop %v2070
        %v2072 = vmul.f32 %v1105, 1.442695
        %v2073 = vpow.pop %v2072
        %v2074 = vmul.f32 %v1106, 1.442695
        %v2075 = vpow.pop %v2074
        %v2076 = vmul.f32 %v1107, 1.442695
        %v2077 = vpow.pop %v2076
        %v2078 = vmul.f32 %v1108, 1.442695
        %v2079 = vpow.pop %v2078
        %v2080 = vmul.f32 %v1109, 1.442695
        %v2081 = vpow.pop %v2080
        %v2082 = vmul.f32 %v1110, 1.442695
        %v2083 = vpow.pop %v2082
        %v2084 = vmul.f32 %v1111, 1.442695
        %v2085 = vpow.pop %v2084
        %v2086 = vmul.f32 %v1112, 1.442695
        %v2087 = vpow.pop %v2086
        %v2088 = vmul.f32 %v1113, 1.442695
        %v2089 = vpow.pop %v2088
        %v2090 = vmul.f32 %v1114, 1.442695
        %v2091 = vpow.pop %v2090
        %v2092 = vmul.f32 %v1115, 1.442695
        %v2093 = vpow.pop %v2092
        %v2094 = vmul.f32 %v1116, 1.442695
        %v2095 = vpow.pop %v2094
        %v2096 = vmul.f32 %v1117, 1.442695
        %v2097 = vpow.pop %v2096
        %v2098 = vmul.f32 %v1118, 1.442695
        %v2099 = vpow.pop %v2098
        %v2100 = vmul.f32 %v1119, 1.442695
        %v2101 = vpow.pop %v2100
        %v2102 = vmul.f32 %v1120, 1.442695
        %v2103 = vpow.pop %v2102
        %v2104 = vmul.f32 %v1121, 1.442695
        %v2105 = vpow.pop %v2104
        %v2106 = vmul.f32 %v1122, 1.442695
        %v2107 = vpow.pop %v2106
        %v2108 = vmul.f32 %v1123, 1.442695
        %v2109 = vpow.pop %v2108
        %v2110 = vmul.f32 %v1124, 1.442695
        %v2111 = vpow.pop %v2110
        %v2112 = vmul.f32 %v1125, 1.442695
        %v2113 = vpow.pop %v2112
        %v2114 = vmul.f32 %v1126, 1.442695
        %v2115 = vpow.pop %v2114
        %v2116 = vmul.f32 %v1127, 1.442695
        %v2117 = vpow.pop %v2116
        %v2118 = vmul.f32 %v1128, 1.442695
        %v2119 = vpow.pop %v2118
        %v2120 = vmul.f32 %v1129, 1.442695
        %v2121 = vpow.pop %v2120
        %v2122 = vmul.f32 %v1130, 1.442695
        %v2123 = vpow.pop %v2122
        %v2124 = vmul.f32 %v1131, 1.442695
        %v2125 = vpow.pop %v2124
        %v2126 = vmul.f32 %v1132, 1.442695
        %v2127 = vpow.pop %v2126
        %v2128 = vmul.f32 %v1133, 1.442695
        %v2129 = vpow.pop %v2128
        %v2130 = vmul.f32 %v1134, 1.442695
        %v2131 = vpow.pop %v2130
        %v2132 = vmul.f32 %v1135, 1.442695
        %v2133 = vpow.pop %v2132
        %v2134 = vmul.f32 %v1136, 1.442695
        %v2135 = vpow.pop %v2134
        %v2136 = vmul.f32 %v1137, 1.442695
        %v2137 = vpow.pop %v2136
        %v2138 = vmul.f32 %v1138, 1.442695
        %v2139 = vpow.pop %v2138
        %v2140 = vmul.f32 %v1139, 1.442695
        %v2141 = vpow.pop %v2140
        %v2142 = vmul.f32 %v1140, 1.442695
        %v2143 = vpow.pop %v2142
        %v2144 = vmul.f32 %v1141, 1.442695
        %v2145 = vpow.pop %v2144
        %v2146 = vmul.f32 %v1142, 1.442695
        %v2147 = vpow.pop %v2146
        %v2148 = vmul.f32 %v1143, 1.442695
        %v2149 = vpow.pop %v2148
        %v2150 = vmul.f32 %v1144, 1.442695
        %v2151 = vpow.pop %v2150
        %v2152 = vmul.f32 %v1145, 1.442695
        %v2153 = vpow.pop %v2152
        %v2154 = vmul.f32 %v1146, 1.442695
        %v2155 = vpow.pop %v2154
        %v2156 = vmul.f32 %v1147, 1.442695
        %v2157 = vpow.pop %v2156
        %v2158 = vmul.f32 %v1148, 1.442695
        %v2159 = vpow.pop %v2158
        %v2160 = vmul.f32 %v1149, 1.442695
        %v2161 = vpow.pop %v2160
        %v2162 = vmul.f32 %v1150, 1.442695
        %v2163 = vpow.pop %v2162
        %v2164 = vmul.f32 %v1151, 1.442695
        %v2165 = vpow.pop %v2164
        %v2166 = vmul.f32 %v1152, 1.442695
        %v2167 = vpow.pop %v2166
        %v2168 = vmul.f32 %v1153, 1.442695
        %v2169 = vpow.pop %v2168
        %v2170 = vmul.f32 %v1154, 1.442695
        %v2171 = vpow.pop %v2170
        %v2172 = vmul.f32 %v1155, 1.442695
        %v2173 = vpow.pop %v2172
        %v2174 = vmul.f32 %v1156, 1.442695
        %v2175 = vpow.pop %v2174
        %v2176 = vmul.f32 %v1157, 1.442695
        %v2177 = vpow.pop %v2176
        %v2178 = vmul.f32 %v1158, 1.442695
        %v2179 = vpow.pop %v2178
        %v2180 = vmul.f32 %v1159, 1.442695
        %v2181 = vpow.pop %v2180
        %v2182 = vmul.f32 %v1160, 1.442695
        %v2183 = vpow.pop %v2182
        %v2184 = vmul.f32 %v1161, 1.442695
        %v2185 = vpow.pop %v2184
        %v2186 = vadd.f32 %v1163, 2.0
        %v2187 = vadd.f32 %v1165, 2.0
        %v2188 = vadd.f32 %v1167, 2.0
        %v2189 = vadd.f32 %v1169, 2.0
        %v2190 = vadd.f32 %v1171, 2.0
        %v2191 = vadd.f32 %v1173, 2.0
        %v2192 = vadd.f32 %v1175, 2.0
        %v2193 = vadd.f32 %v1177, 2.0
        %v2194 = vadd.f32 %v1179, 2.0
        %v2195 = vadd.f32 %v1181, 2.0
        %v2196 = vadd.f32 %v1183, 2.0
        %v2197 = vadd.f32 %v1185, 2.0
        %v2198 = vadd.f32 %v1187, 2.0
        %v2199 = vadd.f32 %v1189, 2.0
        %v2200 = vadd.f32 %v1191, 2.0
        %v2201 = vadd.f32 %v1193, 2.0
        %v2202 = vadd.f32 %v1195, 2.0
        %v2203 = vadd.f32 %v1197, 2.0
        %v2204 = vadd.f32 %v1199, 2.0
        %v2205 = vadd.f32 %v1201, 2.0
        %v2206 = vadd.f32 %v1203, 2.0
        %v2207 = vadd.f32 %v1205, 2.0
        %v2208 = vadd.f32 %v1207, 2.0
        %v2209 = vadd.f32 %v1209, 2.0
        %v2210 = vadd.f32 %v1211, 2.0
        %v2211 = vadd.f32 %v1213, 2.0
        %v2212 = vadd.f32 %v1215, 2.0
        %v2213 = vadd.f32 %v1217, 2.0
        %v2214 = vadd.f32 %v1219, 2.0
        %v2215 = vadd.f32 %v1221, 2.0
        %v2216 = vadd.f32 %v1223, 2.0
        %v2217 = vadd.f32 %v1225, 2.0
        %v2218 = vadd.f32 %v1227, 2.0
        %v2219 = vadd.f32 %v1229, 2.0
        %v2220 = vadd.f32 %v1231, 2.0
        %v2221 = vadd.f32 %v1233, 2.0
        %v2222 = vadd.f32 %v1235, 2.0
        %v2223 = vadd.f32 %v1237, 2.0
        %v2224 = vadd.f32 %v1239, 2.0
        %v2225 = vadd.f32 %v1241, 2.0
        %v2226 = vadd.f32 %v1243, 2.0
        %v2227 = vadd.f32 %v1245, 2.0
        %v2228 = vadd.f32 %v1247, 2.0
        %v2229 = vadd.f32 %v1249, 2.0
        %v2230 = vadd.f32 %v1251, 2.0
        %v2231 = vadd.f32 %v1253, 2.0
        %v2232 = vadd.f32 %v1255, 2.0
        %v2233 = vadd.f32 %v1257, 2.0
        %v2234 = vadd.f32 %v1259, 2.0
        %v2235 = vadd.f32 %v1261, 2.0
        %v2236 = vadd.f32 %v1263, 2.0
        %v2237 = vadd.f32 %v1265, 2.0
        %v2238 = vadd.f32 %v1267, 2.0
        %v2239 = vadd.f32 %v1269, 2.0
        %v2240 = vadd.f32 %v1271, 2.0
        %v2241 = vadd.f32 %v1273, 2.0
        %v2242 = vadd.f32 %v1275, 2.0
        %v2243 = vadd.f32 %v1277, 2.0
        %v2244 = vadd.f32 %v1279, 2.0
        %v2245 = vadd.f32 %v1281, 2.0
        %v2246 = vadd.f32 %v1283, 2.0
        %v2247 = vadd.f32 %v1285, 2.0
        %v2248 = vadd.f32 %v1287, 2.0
        %v2249 = vadd.f32 %v1289, 2.0
        %v2250 = vadd.f32 %v1291, 2.0
        %v2251 = vadd.f32 %v1293, 2.0
        %v2252 = vadd.f32 %v1295, 2.0
        %v2253 = vadd.f32 %v1297, 2.0
        %v2254 = vadd.f32 %v1299, 2.0
        %v2255 = vadd.f32 %v1301, 2.0
        %v2256 = vadd.f32 %v1303, 2.0
        %v2257 = vadd.f32 %v1305, 2.0
        %v2258 = vadd.f32 %v1307, 2.0
        %v2259 = vadd.f32 %v1309, 2.0
        %v2260 = vadd.f32 %v1311, 2.0
        %v2261 = vadd.f32 %v1313, 2.0
        %v2262 = vadd.f32 %v1315, 2.0
        %v2263 = vadd.f32 %v1317, 2.0
        %v2264 = vadd.f32 %v1319, 2.0
        %v2265 = vadd.f32 %v1321, 2.0
        %v2266 = vadd.f32 %v1323, 2.0
        %v2267 = vadd.f32 %v1325, 2.0
        %v2268 = vadd.f32 %v1327, 2.0
        %v2269 = vadd.f32 %v1329, 2.0
        %v2270 = vadd.f32 %v1331, 2.0
        %v2271 = vadd.f32 %v1333, 2.0
        %v2272 = vadd.f32 %v1335, 2.0
        %v2273 = vadd.f32 %v1337, 2.0
        %v2274 = vadd.f32 %v1339, 2.0
        %v2275 = vadd.f32 %v1341, 2.0
        %v2276 = vadd.f32 %v1343, 2.0
        %v2277 = vadd.f32 %v1345, 2.0
        %v2278 = vadd.f32 %v1347, 2.0
        %v2279 = vadd.f32 %v1349, 2.0
        %v2280 = vadd.f32 %v1351, 2.0
        %v2281 = vadd.f32 %v1353, 2.0
        %v2282 = vadd.f32 %v1355, 2.0
        %v2283 = vadd.f32 %v1357, 2.0
        %v2284 = vadd.f32 %v1359, 2.0
        %v2285 = vadd.f32 %v1361, 2.0
        %v2286 = vadd.f32 %v1363, 2.0
        %v2287 = vadd.f32 %v1365, 2.0
        %v2288 = vadd.f32 %v1367, 2.0
        %v2289 = vadd.f32 %v1369, 2.0
        %v2290 = vadd.f32 %v1371, 2.0
        %v2291 = vadd.f32 %v1373, 2.0
        %v2292 = vadd.f32 %v1375, 2.0
        %v2293 = vadd.f32 %v1377, 2.0
        %v2294 = vadd.f32 %v1379, 2.0
        %v2295 = vadd.f32 %v1381, 2.0
        %v2296 = vadd.f32 %v1383, 2.0
        %v2297 = vadd.f32 %v1385, 2.0
        %v2298 = vadd.f32 %v1387, 2.0
        %v2299 = vadd.f32 %v1389, 2.0
        %v2300 = vadd.f32 %v1391, 2.0
        %v2301 = vadd.f32 %v1393, 2.0
        %v2302 = vadd.f32 %v1395, 2.0
        %v2303 = vadd.f32 %v1397, 2.0
        %v2304 = vadd.f32 %v1399, 2.0
        %v2305 = vadd.f32 %v1401, 2.0
        %v2306 = vadd.f32 %v1403, 2.0
        %v2307 = vadd.f32 %v1405, 2.0
        %v2308 = vadd.f32 %v1407, 2.0
        %v2309 = vadd.f32 %v1409, 2.0
        %v2310 = vadd.f32 %v1411, 2.0
        %v2311 = vadd.f32 %v1413, 2.0
        %v2312 = vadd.f32 %v1415, 2.0
        %v2313 = vadd.f32 %v1417, 2.0
        %v2314 = vadd.f32 %v1419, 2.0
        %v2315 = vadd.f32 %v1421, 2.0
        %v2316 = vadd.f32 %v1423, 2.0
        %v2317 = vadd.f32 %v1425, 2.0
        %v2318 = vadd.f32 %v1427, 2.0
        %v2319 = vadd.f32 %v1429, 2.0
        %v2320 = vadd.f32 %v1431, 2.0
        %v2321 = vadd.f32 %v1433, 2.0
        %v2322 = vadd.f32 %v1435, 2.0
        %v2323 = vadd.f32 %v1437, 2.0
        %v2324 = vadd.f32 %v1439, 2.0
        %v2325 = vadd.f32 %v1441, 2.0
        %v2326 = vadd.f32 %v1443, 2.0
        %v2327 = vadd.f32 %v1445, 2.0
        %v2328 = vadd.f32 %v1447, 2.0
        %v2329 = vadd.f32 %v1449, 2.0
        %v2330 = vadd.f32 %v1451, 2.0
        %v2331 = vadd.f32 %v1453, 2.0
        %v2332 = vadd.f32 %v1455, 2.0
        %v2333 = vadd.f32 %v1457, 2.0
        %v2334 = vadd.f32 %v1459, 2.0
        %v2335 = vadd.f32 %v1461, 2.0
        %v2336 = vadd.f32 %v1463, 2.0
        %v2337 = vadd.f32 %v1465, 2.0
        %v2338 = vadd.f32 %v1467, 2.0
        %v2339 = vadd.f32 %v1469, 2.0
        %v2340 = vadd.f32 %v1471, 2.0
        %v2341 = vadd.f32 %v1473, 2.0
        %v2342 = vadd.f32 %v1475, 2.0
        %v2343 = vadd.f32 %v1477, 2.0
        %v2344 = vadd.f32 %v1479, 2.0
        %v2345 = vadd.f32 %v1481, 2.0
        %v2346 = vadd.f32 %v1483, 2.0
        %v2347 = vadd.f32 %v1485, 2.0
        %v2348 = vadd.f32 %v1487, 2.0
        %v2349 = vadd.f32 %v1489, 2.0
        %v2350 = vadd.f32 %v1491, 2.0
        %v2351 = vadd.f32 %v1493, 2.0
        %v2352 = vadd.f32 %v1495, 2.0
        %v2353 = vadd.f32 %v1497, 2.0
        %v2354 = vadd.f32 %v1499, 2.0
        %v2355 = vadd.f32 %v1501, 2.0
        %v2356 = vadd.f32 %v1503, 2.0
        %v2357 = vadd.f32 %v1505, 2.0
        %v2358 = vadd.f32 %v1507, 2.0
        %v2359 = vadd.f32 %v1509, 2.0
        %v2360 = vadd.f32 %v1511, 2.0
        %v2361 = vadd.f32 %v1513, 2.0
        %v2362 = vadd.f32 %v1515, 2.0
        %v2363 = vadd.f32 %v1517, 2.0
        %v2364 = vadd.f32 %v1519, 2.0
        %v2365 = vadd.f32 %v1521, 2.0
        %v2366 = vadd.f32 %v1523, 2.0
        %v2367 = vadd.f32 %v1525, 2.0
        %v2368 = vadd.f32 %v1527, 2.0
        %v2369 = vadd.f32 %v1529, 2.0
        %v2370 = vadd.f32 %v1531, 2.0
        %v2371 = vadd.f32 %v1533, 2.0
        %v2372 = vadd.f32 %v1535, 2.0
        %v2373 = vadd.f32 %v1537, 2.0
        %v2374 = vadd.f32 %v1539, 2.0
        %v2375 = vadd.f32 %v1541, 2.0
        %v2376 = vadd.f32 %v1543, 2.0
        %v2377 = vadd.f32 %v1545, 2.0
        %v2378 = vadd.f32 %v1547, 2.0
        %v2379 = vadd.f32 %v1549, 2.0
        %v2380 = vadd.f32 %v1551, 2.0
        %v2381 = vadd.f32 %v1553, 2.0
        %v2382 = vadd.f32 %v1555, 2.0
        %v2383 = vadd.f32 %v1557, 2.0
        %v2384 = vadd.f32 %v1559, 2.0
        %v2385 = vadd.f32 %v1561, 2.0
        %v2386 = vadd.f32 %v1563, 2.0
        %v2387 = vadd.f32 %v1565, 2.0
        %v2388 = vadd.f32 %v1567, 2.0
        %v2389 = vadd.f32 %v1569, 2.0
        %v2390 = vadd.f32 %v1571, 2.0
        %v2391 = vadd.f32 %v1573, 2.0
        %v2392 = vadd.f32 %v1575, 2.0
        %v2393 = vadd.f32 %v1577, 2.0
        %v2394 = vadd.f32 %v1579, 2.0
        %v2395 = vadd.f32 %v1581, 2.0
        %v2396 = vadd.f32 %v1583, 2.0
        %v2397 = vadd.f32 %v1585, 2.0
        %v2398 = vadd.f32 %v1587, 2.0
        %v2399 = vadd.f32 %v1589, 2.0
        %v2400 = vadd.f32 %v1591, 2.0
        %v2401 = vadd.f32 %v1593, 2.0
        %v2402 = vadd.f32 %v1595, 2.0
        %v2403 = vadd.f32 %v1597, 2.0
        %v2404 = vadd.f32 %v1599, 2.0
        %v2405 = vadd.f32 %v1601, 2.0
        %v2406 = vadd.f32 %v1603, 2.0
        %v2407 = vadd.f32 %v1605, 2.0
        %v2408 = vadd.f32 %v1607, 2.0
        %v2409 = vadd.f32 %v1609, 2.0
        %v2410 = vadd.f32 %v1611, 2.0
        %v2411 = vadd.f32 %v1613, 2.0
        %v2412 = vadd.f32 %v1615, 2.0
        %v2413 = vadd.f32 %v1617, 2.0
        %v2414 = vadd.f32 %v1619, 2.0
        %v2415 = vadd.f32 %v1621, 2.0
        %v2416 = vadd.f32 %v1623, 2.0
        %v2417 = vadd.f32 %v1625, 2.0
        %v2418 = vadd.f32 %v1627, 2.0
        %v2419 = vadd.f32 %v1629, 2.0
        %v2420 = vadd.f32 %v1631, 2.0
        %v2421 = vadd.f32 %v1633, 2.0
        %v2422 = vadd.f32 %v1635, 2.0
        %v2423 = vadd.f32 %v1637, 2.0
        %v2424 = vadd.f32 %v1639, 2.0
        %v2425 = vadd.f32 %v1641, 2.0
        %v2426 = vadd.f32 %v1643, 2.0
        %v2427 = vadd.f32 %v1645, 2.0
        %v2428 = vadd.f32 %v1647, 2.0
        %v2429 = vadd.f32 %v1649, 2.0
        %v2430 = vadd.f32 %v1651, 2.0
        %v2431 = vadd.f32 %v1653, 2.0
        %v2432 = vadd.f32 %v1655, 2.0
        %v2433 = vadd.f32 %v1657, 2.0
        %v2434 = vadd.f32 %v1659, 2.0
        %v2435 = vadd.f32 %v1661, 2.0
        %v2436 = vadd.f32 %v1663, 2.0
        %v2437 = vadd.f32 %v1665, 2.0
        %v2438 = vadd.f32 %v1667, 2.0
        %v2439 = vadd.f32 %v1669, 2.0
        %v2440 = vadd.f32 %v1671, 2.0
        %v2441 = vadd.f32 %v1673, 2.0
        %v2442 = vadd.f32 %v1675, 2.0
        %v2443 = vadd.f32 %v1677, 2.0
        %v2444 = vadd.f32 %v1679, 2.0
        %v2445 = vadd.f32 %v1681, 2.0
        %v2446 = vadd.f32 %v1683, 2.0
        %v2447 = vadd.f32 %v1685, 2.0
        %v2448 = vadd.f32 %v1687, 2.0
        %v2449 = vadd.f32 %v1689, 2.0
        %v2450 = vadd.f32 %v1691, 2.0
        %v2451 = vadd.f32 %v1693, 2.0
        %v2452 = vadd.f32 %v1695, 2.0
        %v2453 = vadd.f32 %v1697, 2.0
        %v2454 = vadd.f32 %v1699, 2.0
        %v2455 = vadd.f32 %v1701, 2.0
        %v2456 = vadd.f32 %v1703, 2.0
        %v2457 = vadd.f32 %v1705, 2.0
        %v2458 = vadd.f32 %v1707, 2.0
        %v2459 = vadd.f32 %v1709, 2.0
        %v2460 = vadd.f32 %v1711, 2.0
        %v2461 = vadd.f32 %v1713, 2.0
        %v2462 = vadd.f32 %v1715, 2.0
        %v2463 = vadd.f32 %v1717, 2.0
        %v2464 = vadd.f32 %v1719, 2.0
        %v2465 = vadd.f32 %v1721, 2.0
        %v2466 = vadd.f32 %v1723, 2.0
        %v2467 = vadd.f32 %v1725, 2.0
        %v2468 = vadd.f32 %v1727, 2.0
        %v2469 = vadd.f32 %v1729, 2.0
        %v2470 = vadd.f32 %v1731, 2.0
        %v2471 = vadd.f32 %v1733, 2.0
        %v2472 = vadd.f32 %v1735, 2.0
        %v2473 = vadd.f32 %v1737, 2.0
        %v2474 = vadd.f32 %v1739, 2.0
        %v2475 = vadd.f32 %v1741, 2.0
        %v2476 = vadd.f32 %v1743, 2.0
        %v2477 = vadd.f32 %v1745, 2.0
        %v2478 = vadd.f32 %v1747, 2.0
        %v2479 = vadd.f32 %v1749, 2.0
        %v2480 = vadd.f32 %v1751, 2.0
        %v2481 = vadd.f32 %v1753, 2.0
        %v2482 = vadd.f32 %v1755, 2.0
        %v2483 = vadd.f32 %v1757, 2.0
        %v2484 = vadd.f32 %v1759, 2.0
        %v2485 = vadd.f32 %v1761, 2.0
        %v2486 = vadd.f32 %v1763, 2.0
        %v2487 = vadd.f32 %v1765, 2.0
        %v2488 = vadd.f32 %v1767, 2.0
        %v2489 = vadd.f32 %v1769, 2.0
        %v2490 = vadd.f32 %v1771, 2.0
        %v2491 = vadd.f32 %v1773, 2.0
        %v2492 = vadd.f32 %v1775, 2.0
        %v2493 = vadd.f32 %v1777, 2.0
        %v2494 = vadd.f32 %v1779, 2.0
        %v2495 = vadd.f32 %v1781, 2.0
        %v2496 = vadd.f32 %v1783, 2.0
        %v2497 = vadd.f32 %v1785, 2.0
        %v2498 = vadd.f32 %v1787, 2.0
        %v2499 = vadd.f32 %v1789, 2.0
        %v2500 = vadd.f32 %v1791, 2.0
        %v2501 = vadd.f32 %v1793, 2.0
        %v2502 = vadd.f32 %v1795, 2.0
        %v2503 = vadd.f32 %v1797, 2.0
        %v2504 = vadd.f32 %v1799, 2.0
        %v2505 = vadd.f32 %v1801, 2.0
        %v2506 = vadd.f32 %v1803, 2.0
        %v2507 = vadd.f32 %v1805, 2.0
        %v2508 = vadd.f32 %v1807, 2.0
        %v2509 = vadd.f32 %v1809, 2.0
        %v2510 = vadd.f32 %v1811, 2.0
        %v2511 = vadd.f32 %v1813, 2.0
        %v2512 = vadd.f32 %v1815, 2.0
        %v2513 = vadd.f32 %v1817, 2.0
        %v2514 = vadd.f32 %v1819, 2.0
        %v2515 = vadd.f32 %v1821, 2.0
        %v2516 = vadd.f32 %v1823, 2.0
        %v2517 = vadd.f32 %v1825, 2.0
        %v2518 = vadd.f32 %v1827, 2.0
        %v2519 = vadd.f32 %v1829, 2.0
        %v2520 = vadd.f32 %v1831, 2.0
        %v2521 = vadd.f32 %v1833, 2.0
        %v2522 = vadd.f32 %v1835, 2.0
        %v2523 = vadd.f32 %v1837, 2.0
        %v2524 = vadd.f32 %v1839, 2.0
        %v2525 = vadd.f32 %v1841, 2.0
        %v2526 = vadd.f32 %v1843, 2.0
        %v2527 = vadd.f32 %v1845, 2.0
        %v2528 = vadd.f32 %v1847, 2.0
        %v2529 = vadd.f32 %v1849, 2.0
        %v2530 = vadd.f32 %v1851, 2.0
        %v2531 = vadd.f32 %v1853, 2.0
        %v2532 = vadd.f32 %v1855, 2.0
        %v2533 = vadd.f32 %v1857, 2.0
        %v2534 = vadd.f32 %v1859, 2.0
        %v2535 = vadd.f32 %v1861, 2.0
        %v2536 = vadd.f32 %v1863, 2.0
        %v2537 = vadd.f32 %v1865, 2.0
        %v2538 = vadd.f32 %v1867, 2.0
        %v2539 = vadd.f32 %v1869, 2.0
        %v2540 = vadd.f32 %v1871, 2.0
        %v2541 = vadd.f32 %v1873, 2.0
        %v2542 = vadd.f32 %v1875, 2.0
        %v2543 = vadd.f32 %v1877, 2.0
        %v2544 = vadd.f32 %v1879, 2.0
        %v2545 = vadd.f32 %v1881, 2.0
        %v2546 = vadd.f32 %v1883, 2.0
        %v2547 = vadd.f32 %v1885, 2.0
        %v2548 = vadd.f32 %v1887, 2.0
        %v2549 = vadd.f32 %v1889, 2.0
        %v2550 = vadd.f32 %v1891, 2.0
        %v2551 = vadd.f32 %v1893, 2.0
        %v2552 = vadd.f32 %v1895, 2.0
        %v2553 = vadd.f32 %v1897, 2.0
        %v2554 = vadd.f32 %v1899, 2.0
        %v2555 = vadd.f32 %v1901, 2.0
        %v2556 = vadd.f32 %v1903, 2.0
        %v2557 = vadd.f32 %v1905, 2.0
        %v2558 = vadd.f32 %v1907, 2.0
        %v2559 = vadd.f32 %v1909, 2.0
        %v2560 = vadd.f32 %v1911, 2.0
        %v2561 = vadd.f32 %v1913, 2.0
        %v2562 = vadd.f32 %v1915, 2.0
        %v2563 = vadd.f32 %v1917, 2.0
        %v2564 = vadd.f32 %v1919, 2.0
        %v2565 = vadd.f32 %v1921, 2.0
        %v2566 = vadd.f32 %v1923, 2.0
        %v2567 = vadd.f32 %v1925, 2.0
        %v2568 = vadd.f32 %v1927, 2.0
        %v2569 = vadd.f32 %v1929, 2.0
        %v2570 = vadd.f32 %v1931, 2.0
        %v2571 = vadd.f32 %v1933, 2.0
        %v2572 = vadd.f32 %v1935, 2.0
        %v2573 = vadd.f32 %v1937, 2.0
        %v2574 = vadd.f32 %v1939, 2.0
        %v2575 = vadd.f32 %v1941, 2.0
        %v2576 = vadd.f32 %v1943, 2.0
        %v2577 = vadd.f32 %v1945, 2.0
        %v2578 = vadd.f32 %v1947, 2.0
        %v2579 = vadd.f32 %v1949, 2.0
        %v2580 = vadd.f32 %v1951, 2.0
        %v2581 = vadd.f32 %v1953, 2.0
        %v2582 = vadd.f32 %v1955, 2.0
        %v2583 = vadd.f32 %v1957, 2.0
        %v2584 = vadd.f32 %v1959, 2.0
        %v2585 = vadd.f32 %v1961, 2.0
        %v2586 = vadd.f32 %v1963, 2.0
        %v2587 = vadd.f32 %v1965, 2.0
        %v2588 = vadd.f32 %v1967, 2.0
        %v2589 = vadd.f32 %v1969, 2.0
        %v2590 = vadd.f32 %v1971, 2.0
        %v2591 = vadd.f32 %v1973, 2.0
        %v2592 = vadd.f32 %v1975, 2.0
        %v2593 = vadd.f32 %v1977, 2.0
        %v2594 = vadd.f32 %v1979, 2.0
        %v2595 = vadd.f32 %v1981, 2.0
        %v2596 = vadd.f32 %v1983, 2.0
        %v2597 = vadd.f32 %v1985, 2.0
        %v2598 = vadd.f32 %v1987, 2.0
        %v2599 = vadd.f32 %v1989, 2.0
        %v2600 = vadd.f32 %v1991, 2.0
        %v2601 = vadd.f32 %v1993, 2.0
        %v2602 = vadd.f32 %v1995, 2.0
        %v2603 = vadd.f32 %v1997, 2.0
        %v2604 = vadd.f32 %v1999, 2.0
        %v2605 = vadd.f32 %v2001, 2.0
        %v2606 = vadd.f32 %v2003, 2.0
        %v2607 = vadd.f32 %v2005, 2.0
        %v2608 = vadd.f32 %v2007, 2.0
        %v2609 = vadd.f32 %v2009, 2.0
        %v2610 = vadd.f32 %v2011, 2.0
        %v2611 = vadd.f32 %v2013, 2.0
        %v2612 = vadd.f32 %v2015, 2.0
        %v2613 = vadd.f32 %v2017, 2.0
        %v2614 = vadd.f32 %v2019, 2.0
        %v2615 = vadd.f32 %v2021, 2.0
        %v2616 = vadd.f32 %v2023, 2.0
        %v2617 = vadd.f32 %v2025, 2.0
        %v2618 = vadd.f32 %v2027, 2.0
        %v2619 = vadd.f32 %v2029, 2.0
        %v2620 = vadd.f32 %v2031, 2.0
        %v2621 = vadd.f32 %v2033, 2.0
        %v2622 = vadd.f32 %v2035, 2.0
        %v2623 = vadd.f32 %v2037, 2.0
        %v2624 = vadd.f32 %v2039, 2.0
        %v2625 = vadd.f32 %v2041, 2.0
        %v2626 = vadd.f32 %v2043, 2.0
        %v2627 = vadd.f32 %v2045, 2.0
        %v2628 = vadd.f32 %v2047, 2.0
        %v2629 = vadd.f32 %v2049, 2.0
        %v2630 = vadd.f32 %v2051, 2.0
        %v2631 = vadd.f32 %v2053, 2.0
        %v2632 = vadd.f32 %v2055, 2.0
        %v2633 = vadd.f32 %v2057, 2.0
        %v2634 = vadd.f32 %v2059, 2.0
        %v2635 = vadd.f32 %v2061, 2.0
        %v2636 = vadd.f32 %v2063, 2.0
        %v2637 = vadd.f32 %v2065, 2.0
        %v2638 = vadd.f32 %v2067, 2.0
        %v2639 = vadd.f32 %v2069, 2.0
        %v2640 = vadd.f32 %v2071, 2.0
        %v2641 = vadd.f32 %v2073, 2.0
        %v2642 = vadd.f32 %v2075, 2.0
        %v2643 = vadd.f32 %v2077, 2.0
        %v2644 = vadd.f32 %v2079, 2.0
        %v2645 = vadd.f32 %v2081, 2.0
        %v2646 = vadd.f32 %v2083, 2.0
        %v2647 = vadd.f32 %v2085, 2.0
        %v2648 = vadd.f32 %v2087, 2.0
        %v2649 = vadd.f32 %v2089, 2.0
        %v2650 = vadd.f32 %v2091, 2.0
        %v2651 = vadd.f32 %v2093, 2.0
        %v2652 = vadd.f32 %v2095, 2.0
        %v2653 = vadd.f32 %v2097, 2.0
        %v2654 = vadd.f32 %v2099, 2.0
        %v2655 = vadd.f32 %v2101, 2.0
        %v2656 = vadd.f32 %v2103, 2.0
        %v2657 = vadd.f32 %v2105, 2.0
        %v2658 = vadd.f32 %v2107, 2.0
        %v2659 = vadd.f32 %v2109, 2.0
        %v2660 = vadd.f32 %v2111, 2.0
        %v2661 = vadd.f32 %v2113, 2.0
        %v2662 = vadd.f32 %v2115, 2.0
        %v2663 = vadd.f32 %v2117, 2.0
        %v2664 = vadd.f32 %v2119, 2.0
        %v2665 = vadd.f32 %v2121, 2.0
        %v2666 = vadd.f32 %v2123, 2.0
        %v2667 = vadd.f32 %v2125, 2.0
        %v2668 = vadd.f32 %v2127, 2.0
        %v2669 = vadd.f32 %v2129, 2.0
        %v2670 = vadd.f32 %v2131, 2.0
        %v2671 = vadd.f32 %v2133, 2.0
        %v2672 = vadd.f32 %v2135, 2.0
        %v2673 = vadd.f32 %v2137, 2.0
        %v2674 = vadd.f32 %v2139, 2.0
        %v2675 = vadd.f32 %v2141, 2.0
        %v2676 = vadd.f32 %v2143, 2.0
        %v2677 = vadd.f32 %v2145, 2.0
        %v2678 = vadd.f32 %v2147, 2.0
        %v2679 = vadd.f32 %v2149, 2.0
        %v2680 = vadd.f32 %v2151, 2.0
        %v2681 = vadd.f32 %v2153, 2.0
        %v2682 = vadd.f32 %v2155, 2.0
        %v2683 = vadd.f32 %v2157, 2.0
        %v2684 = vadd.f32 %v2159, 2.0
        %v2685 = vadd.f32 %v2161, 2.0
        %v2686 = vadd.f32 %v2163, 2.0
        %v2687 = vadd.f32 %v2165, 2.0
        %v2688 = vadd.f32 %v2167, 2.0
        %v2689 = vadd.f32 %v2169, 2.0
        %v2690 = vadd.f32 %v2171, 2.0
        %v2691 = vadd.f32 %v2173, 2.0
        %v2692 = vadd.f32 %v2175, 2.0
        %v2693 = vadd.f32 %v2177, 2.0
        %v2694 = vadd.f32 %v2179, 2.0
        %v2695 = vadd.f32 %v2181, 2.0
        %v2696 = vadd.f32 %v2183, 2.0
        %v2697 = vadd.f32 %v2185, 2.0
        %v2698 = vmul.f32 %v1163, %v2186
        %v2699 = vmul.f32 %v1165, %v2187
        %v2700 = vmul.f32 %v1167, %v2188
        %v2701 = vmul.f32 %v1169, %v2189
        %v2702 = vmul.f32 %v1171, %v2190
        %v2703 = vmul.f32 %v1173, %v2191
        %v2704 = vmul.f32 %v1175, %v2192
        %v2705 = vmul.f32 %v1177, %v2193
        %v2706 = vmul.f32 %v1179, %v2194
        %v2707 = vmul.f32 %v1181, %v2195
        %v2708 = vmul.f32 %v1183, %v2196
        %v2709 = vmul.f32 %v1185, %v2197
        %v2710 = vmul.f32 %v1187, %v2198
        %v2711 = vmul.f32 %v1189, %v2199
        %v2712 = vmul.f32 %v1191, %v2200
        %v2713 = vmul.f32 %v1193, %v2201
        %v2714 = vmul.f32 %v1195, %v2202
        %v2715 = vmul.f32 %v1197, %v2203
        %v2716 = vmul.f32 %v1199, %v2204
        %v2717 = vmul.f32 %v1201, %v2205
        %v2718 = vmul.f32 %v1203, %v2206
        %v2719 = vmul.f32 %v1205, %v2207
        %v2720 = vmul.f32 %v1207, %v2208
        %v2721 = vmul.f32 %v1209, %v2209
        %v2722 = vmul.f32 %v1211, %v2210
        %v2723 = vmul.f32 %v1213, %v2211
        %v2724 = vmul.f32 %v1215, %v2212
        %v2725 = vmul.f32 %v1217, %v2213
        %v2726 = vmul.f32 %v1219, %v2214
        %v2727 = vmul.f32 %v1221, %v2215
        %v2728 = vmul.f32 %v1223, %v2216
        %v2729 = vmul.f32 %v1225, %v2217
        %v2730 = vmul.f32 %v1227, %v2218
        %v2731 = vmul.f32 %v1229, %v2219
        %v2732 = vmul.f32 %v1231, %v2220
        %v2733 = vmul.f32 %v1233, %v2221
        %v2734 = vmul.f32 %v1235, %v2222
        %v2735 = vmul.f32 %v1237, %v2223
        %v2736 = vmul.f32 %v1239, %v2224
        %v2737 = vmul.f32 %v1241, %v2225
        %v2738 = vmul.f32 %v1243, %v2226
        %v2739 = vmul.f32 %v1245, %v2227
        %v2740 = vmul.f32 %v1247, %v2228
        %v2741 = vmul.f32 %v1249, %v2229
        %v2742 = vmul.f32 %v1251, %v2230
        %v2743 = vmul.f32 %v1253, %v2231
        %v2744 = vmul.f32 %v1255, %v2232
        %v2745 = vmul.f32 %v1257, %v2233
        %v2746 = vmul.f32 %v1259, %v2234
        %v2747 = vmul.f32 %v1261, %v2235
        %v2748 = vmul.f32 %v1263, %v2236
        %v2749 = vmul.f32 %v1265, %v2237
        %v2750 = vmul.f32 %v1267, %v2238
        %v2751 = vmul.f32 %v1269, %v2239
        %v2752 = vmul.f32 %v1271, %v2240
        %v2753 = vmul.f32 %v1273, %v2241
        %v2754 = vmul.f32 %v1275, %v2242
        %v2755 = vmul.f32 %v1277, %v2243
        %v2756 = vmul.f32 %v1279, %v2244
        %v2757 = vmul.f32 %v1281, %v2245
        %v2758 = vmul.f32 %v1283, %v2246
        %v2759 = vmul.f32 %v1285, %v2247
        %v2760 = vmul.f32 %v1287, %v2248
        %v2761 = vmul.f32 %v1289, %v2249
        %v2762 = vmul.f32 %v1291, %v2250
        %v2763 = vmul.f32 %v1293, %v2251
        %v2764 = vmul.f32 %v1295, %v2252
        %v2765 = vmul.f32 %v1297, %v2253
        %v2766 = vmul.f32 %v1299, %v2254
        %v2767 = vmul.f32 %v1301, %v2255
        %v2768 = vmul.f32 %v1303, %v2256
        %v2769 = vmul.f32 %v1305, %v2257
        %v2770 = vmul.f32 %v1307, %v2258
        %v2771 = vmul.f32 %v1309, %v2259
        %v2772 = vmul.f32 %v1311, %v2260
        %v2773 = vmul.f32 %v1313, %v2261
        %v2774 = vmul.f32 %v1315, %v2262
        %v2775 = vmul.f32 %v1317, %v2263
        %v2776 = vmul.f32 %v1319, %v2264
        %v2777 = vmul.f32 %v1321, %v2265
        %v2778 = vmul.f32 %v1323, %v2266
        %v2779 = vmul.f32 %v1325, %v2267
        %v2780 = vmul.f32 %v1327, %v2268
        %v2781 = vmul.f32 %v1329, %v2269
        %v2782 = vmul.f32 %v1331, %v2270
        %v2783 = vmul.f32 %v1333, %v2271
        %v2784 = vmul.f32 %v1335, %v2272
        %v2785 = vmul.f32 %v1337, %v2273
        %v2786 = vmul.f32 %v1339, %v2274
        %v2787 = vmul.f32 %v1341, %v2275
        %v2788 = vmul.f32 %v1343, %v2276
        %v2789 = vmul.f32 %v1345, %v2277
        %v2790 = vmul.f32 %v1347, %v2278
        %v2791 = vmul.f32 %v1349, %v2279
        %v2792 = vmul.f32 %v1351, %v2280
        %v2793 = vmul.f32 %v1353, %v2281
        %v2794 = vmul.f32 %v1355, %v2282
        %v2795 = vmul.f32 %v1357, %v2283
        %v2796 = vmul.f32 %v1359, %v2284
        %v2797 = vmul.f32 %v1361, %v2285
        %v2798 = vmul.f32 %v1363, %v2286
        %v2799 = vmul.f32 %v1365, %v2287
        %v2800 = vmul.f32 %v1367, %v2288
        %v2801 = vmul.f32 %v1369, %v2289
        %v2802 = vmul.f32 %v1371, %v2290
        %v2803 = vmul.f32 %v1373, %v2291
        %v2804 = vmul.f32 %v1375, %v2292
        %v2805 = vmul.f32 %v1377, %v2293
        %v2806 = vmul.f32 %v1379, %v2294
        %v2807 = vmul.f32 %v1381, %v2295
        %v2808 = vmul.f32 %v1383, %v2296
        %v2809 = vmul.f32 %v1385, %v2297
        %v2810 = vmul.f32 %v1387, %v2298
        %v2811 = vmul.f32 %v1389, %v2299
        %v2812 = vmul.f32 %v1391, %v2300
        %v2813 = vmul.f32 %v1393, %v2301
        %v2814 = vmul.f32 %v1395, %v2302
        %v2815 = vmul.f32 %v1397, %v2303
        %v2816 = vmul.f32 %v1399, %v2304
        %v2817 = vmul.f32 %v1401, %v2305
        %v2818 = vmul.f32 %v1403, %v2306
        %v2819 = vmul.f32 %v1405, %v2307
        %v2820 = vmul.f32 %v1407, %v2308
        %v2821 = vmul.f32 %v1409, %v2309
        %v2822 = vmul.f32 %v1411, %v2310
        %v2823 = vmul.f32 %v1413, %v2311
        %v2824 = vmul.f32 %v1415, %v2312
        %v2825 = vmul.f32 %v1417, %v2313
        %v2826 = vmul.f32 %v1419, %v2314
        %v2827 = vmul.f32 %v1421, %v2315
        %v2828 = vmul.f32 %v1423, %v2316
        %v2829 = vmul.f32 %v1425, %v2317
        %v2830 = vmul.f32 %v1427, %v2318
        %v2831 = vmul.f32 %v1429, %v2319
        %v2832 = vmul.f32 %v1431, %v2320
        %v2833 = vmul.f32 %v1433, %v2321
        %v2834 = vmul.f32 %v1435, %v2322
        %v2835 = vmul.f32 %v1437, %v2323
        %v2836 = vmul.f32 %v1439, %v2324
        %v2837 = vmul.f32 %v1441, %v2325
        %v2838 = vmul.f32 %v1443, %v2326
        %v2839 = vmul.f32 %v1445, %v2327
        %v2840 = vmul.f32 %v1447, %v2328
        %v2841 = vmul.f32 %v1449, %v2329
        %v2842 = vmul.f32 %v1451, %v2330
        %v2843 = vmul.f32 %v1453, %v2331
        %v2844 = vmul.f32 %v1455, %v2332
        %v2845 = vmul.f32 %v1457, %v2333
        %v2846 = vmul.f32 %v1459, %v2334
        %v2847 = vmul.f32 %v1461, %v2335
        %v2848 = vmul.f32 %v1463, %v2336
        %v2849 = vmul.f32 %v1465, %v2337
        %v2850 = vmul.f32 %v1467, %v2338
        %v2851 = vmul.f32 %v1469, %v2339
        %v2852 = vmul.f32 %v1471, %v2340
        %v2853 = vmul.f32 %v1473, %v2341
        %v2854 = vmul.f32 %v1475, %v2342
        %v2855 = vmul.f32 %v1477, %v2343
        %v2856 = vmul.f32 %v1479, %v2344
        %v2857 = vmul.f32 %v1481, %v2345
        %v2858 = vmul.f32 %v1483, %v2346
        %v2859 = vmul.f32 %v1485, %v2347
        %v2860 = vmul.f32 %v1487, %v2348
        %v2861 = vmul.f32 %v1489, %v2349
        %v2862 = vmul.f32 %v1491, %v2350
        %v2863 = vmul.f32 %v1493, %v2351
        %v2864 = vmul.f32 %v1495, %v2352
        %v2865 = vmul.f32 %v1497, %v2353
        %v2866 = vmul.f32 %v1499, %v2354
        %v2867 = vmul.f32 %v1501, %v2355
        %v2868 = vmul.f32 %v1503, %v2356
        %v2869 = vmul.f32 %v1505, %v2357
        %v2870 = vmul.f32 %v1507, %v2358
        %v2871 = vmul.f32 %v1509, %v2359
        %v2872 = vmul.f32 %v1511, %v2360
        %v2873 = vmul.f32 %v1513, %v2361
        %v2874 = vmul.f32 %v1515, %v2362
        %v2875 = vmul.f32 %v1517, %v2363
        %v2876 = vmul.f32 %v1519, %v2364
        %v2877 = vmul.f32 %v1521, %v2365
        %v2878 = vmul.f32 %v1523, %v2366
        %v2879 = vmul.f32 %v1525, %v2367
        %v2880 = vmul.f32 %v1527, %v2368
        %v2881 = vmul.f32 %v1529, %v2369
        %v2882 = vmul.f32 %v1531, %v2370
        %v2883 = vmul.f32 %v1533, %v2371
        %v2884 = vmul.f32 %v1535, %v2372
        %v2885 = vmul.f32 %v1537, %v2373
        %v2886 = vmul.f32 %v1539, %v2374
        %v2887 = vmul.f32 %v1541, %v2375
        %v2888 = vmul.f32 %v1543, %v2376
        %v2889 = vmul.f32 %v1545, %v2377
        %v2890 = vmul.f32 %v1547, %v2378
        %v2891 = vmul.f32 %v1549, %v2379
        %v2892 = vmul.f32 %v1551, %v2380
        %v2893 = vmul.f32 %v1553, %v2381
        %v2894 = vmul.f32 %v1555, %v2382
        %v2895 = vmul.f32 %v1557, %v2383
        %v2896 = vmul.f32 %v1559, %v2384
        %v2897 = vmul.f32 %v1561, %v2385
        %v2898 = vmul.f32 %v1563, %v2386
        %v2899 = vmul.f32 %v1565, %v2387
        %v2900 = vmul.f32 %v1567, %v2388
        %v2901 = vmul.f32 %v1569, %v2389
        %v2902 = vmul.f32 %v1571, %v2390
        %v2903 = vmul.f32 %v1573, %v2391
        %v2904 = vmul.f32 %v1575, %v2392
        %v2905 = vmul.f32 %v1577, %v2393
        %v2906 = vmul.f32 %v1579, %v2394
        %v2907 = vmul.f32 %v1581, %v2395
        %v2908 = vmul.f32 %v1583, %v2396
        %v2909 = vmul.f32 %v1585, %v2397
        %v2910 = vmul.f32 %v1587, %v2398
        %v2911 = vmul.f32 %v1589, %v2399
        %v2912 = vmul.f32 %v1591, %v2400
        %v2913 = vmul.f32 %v1593, %v2401
        %v2914 = vmul.f32 %v1595, %v2402
        %v2915 = vmul.f32 %v1597, %v2403
        %v2916 = vmul.f32 %v1599, %v2404
        %v2917 = vmul.f32 %v1601, %v2405
        %v2918 = vmul.f32 %v1603, %v2406
        %v2919 = vmul.f32 %v1605, %v2407
        %v2920 = vmul.f32 %v1607, %v2408
        %v2921 = vmul.f32 %v1609, %v2409
        %v2922 = vmul.f32 %v1611, %v2410
        %v2923 = vmul.f32 %v1613, %v2411
        %v2924 = vmul.f32 %v1615, %v2412
        %v2925 = vmul.f32 %v1617, %v2413
        %v2926 = vmul.f32 %v1619, %v2414
        %v2927 = vmul.f32 %v1621, %v2415
        %v2928 = vmul.f32 %v1623, %v2416
        %v2929 = vmul.f32 %v1625, %v2417
        %v2930 = vmul.f32 %v1627, %v2418
        %v2931 = vmul.f32 %v1629, %v2419
        %v2932 = vmul.f32 %v1631, %v2420
        %v2933 = vmul.f32 %v1633, %v2421
        %v2934 = vmul.f32 %v1635, %v2422
        %v2935 = vmul.f32 %v1637, %v2423
        %v2936 = vmul.f32 %v1639, %v2424
        %v2937 = vmul.f32 %v1641, %v2425
        %v2938 = vmul.f32 %v1643, %v2426
        %v2939 = vmul.f32 %v1645, %v2427
        %v2940 = vmul.f32 %v1647, %v2428
        %v2941 = vmul.f32 %v1649, %v2429
        %v2942 = vmul.f32 %v1651, %v2430
        %v2943 = vmul.f32 %v1653, %v2431
        %v2944 = vmul.f32 %v1655, %v2432
        %v2945 = vmul.f32 %v1657, %v2433
        %v2946 = vmul.f32 %v1659, %v2434
        %v2947 = vmul.f32 %v1661, %v2435
        %v2948 = vmul.f32 %v1663, %v2436
        %v2949 = vmul.f32 %v1665, %v2437
        %v2950 = vmul.f32 %v1667, %v2438
        %v2951 = vmul.f32 %v1669, %v2439
        %v2952 = vmul.f32 %v1671, %v2440
        %v2953 = vmul.f32 %v1673, %v2441
        %v2954 = vmul.f32 %v1675, %v2442
        %v2955 = vmul.f32 %v1677, %v2443
        %v2956 = vmul.f32 %v1679, %v2444
        %v2957 = vmul.f32 %v1681, %v2445
        %v2958 = vmul.f32 %v1683, %v2446
        %v2959 = vmul.f32 %v1685, %v2447
        %v2960 = vmul.f32 %v1687, %v2448
        %v2961 = vmul.f32 %v1689, %v2449
        %v2962 = vmul.f32 %v1691, %v2450
        %v2963 = vmul.f32 %v1693, %v2451
        %v2964 = vmul.f32 %v1695, %v2452
        %v2965 = vmul.f32 %v1697, %v2453
        %v2966 = vmul.f32 %v1699, %v2454
        %v2967 = vmul.f32 %v1701, %v2455
        %v2968 = vmul.f32 %v1703, %v2456
        %v2969 = vmul.f32 %v1705, %v2457
        %v2970 = vmul.f32 %v1707, %v2458
        %v2971 = vmul.f32 %v1709, %v2459
        %v2972 = vmul.f32 %v1711, %v2460
        %v2973 = vmul.f32 %v1713, %v2461
        %v2974 = vmul.f32 %v1715, %v2462
        %v2975 = vmul.f32 %v1717, %v2463
        %v2976 = vmul.f32 %v1719, %v2464
        %v2977 = vmul.f32 %v1721, %v2465
        %v2978 = vmul.f32 %v1723, %v2466
        %v2979 = vmul.f32 %v1725, %v2467
        %v2980 = vmul.f32 %v1727, %v2468
        %v2981 = vmul.f32 %v1729, %v2469
        %v2982 = vmul.f32 %v1731, %v2470
        %v2983 = vmul.f32 %v1733, %v2471
        %v2984 = vmul.f32 %v1735, %v2472
        %v2985 = vmul.f32 %v1737, %v2473
        %v2986 = vmul.f32 %v1739, %v2474
        %v2987 = vmul.f32 %v1741, %v2475
        %v2988 = vmul.f32 %v1743, %v2476
        %v2989 = vmul.f32 %v1745, %v2477
        %v2990 = vmul.f32 %v1747, %v2478
        %v2991 = vmul.f32 %v1749, %v2479
        %v2992 = vmul.f32 %v1751, %v2480
        %v2993 = vmul.f32 %v1753, %v2481
        %v2994 = vmul.f32 %v1755, %v2482
        %v2995 = vmul.f32 %v1757, %v2483
        %v2996 = vmul.f32 %v1759, %v2484
        %v2997 = vmul.f32 %v1761, %v2485
        %v2998 = vmul.f32 %v1763, %v2486
        %v2999 = vmul.f32 %v1765, %v2487
        %v3000 = vmul.f32 %v1767, %v2488
        %v3001 = vmul.f32 %v1769, %v2489
        %v3002 = vmul.f32 %v1771, %v2490
        %v3003 = vmul.f32 %v1773, %v2491
        %v3004 = vmul.f32 %v1775, %v2492
        %v3005 = vmul.f32 %v1777, %v2493
        %v3006 = vmul.f32 %v1779, %v2494
        %v3007 = vmul.f32 %v1781, %v2495
        %v3008 = vmul.f32 %v1783, %v2496
        %v3009 = vmul.f32 %v1785, %v2497
        %v3010 = vmul.f32 %v1787, %v2498
        %v3011 = vmul.f32 %v1789, %v2499
        %v3012 = vmul.f32 %v1791, %v2500
        %v3013 = vmul.f32 %v1793, %v2501
        %v3014 = vmul.f32 %v1795, %v2502
        %v3015 = vmul.f32 %v1797, %v2503
        %v3016 = vmul.f32 %v1799, %v2504
        %v3017 = vmul.f32 %v1801, %v2505
        %v3018 = vmul.f32 %v1803, %v2506
        %v3019 = vmul.f32 %v1805, %v2507
        %v3020 = vmul.f32 %v1807, %v2508
        %v3021 = vmul.f32 %v1809, %v2509
        %v3022 = vmul.f32 %v1811, %v2510
        %v3023 = vmul.f32 %v1813, %v2511
        %v3024 = vmul.f32 %v1815, %v2512
        %v3025 = vmul.f32 %v1817, %v2513
        %v3026 = vmul.f32 %v1819, %v2514
        %v3027 = vmul.f32 %v1821, %v2515
        %v3028 = vmul.f32 %v1823, %v2516
        %v3029 = vmul.f32 %v1825, %v2517
        %v3030 = vmul.f32 %v1827, %v2518
        %v3031 = vmul.f32 %v1829, %v2519
        %v3032 = vmul.f32 %v1831, %v2520
        %v3033 = vmul.f32 %v1833, %v2521
        %v3034 = vmul.f32 %v1835, %v2522
        %v3035 = vmul.f32 %v1837, %v2523
        %v3036 = vmul.f32 %v1839, %v2524
        %v3037 = vmul.f32 %v1841, %v2525
        %v3038 = vmul.f32 %v1843, %v2526
        %v3039 = vmul.f32 %v1845, %v2527
        %v3040 = vmul.f32 %v1847, %v2528
        %v3041 = vmul.f32 %v1849, %v2529
        %v3042 = vmul.f32 %v1851, %v2530
        %v3043 = vmul.f32 %v1853, %v2531
        %v3044 = vmul.f32 %v1855, %v2532
        %v3045 = vmul.f32 %v1857, %v2533
        %v3046 = vmul.f32 %v1859, %v2534
        %v3047 = vmul.f32 %v1861, %v2535
        %v3048 = vmul.f32 %v1863, %v2536
        %v3049 = vmul.f32 %v1865, %v2537
        %v3050 = vmul.f32 %v1867, %v2538
        %v3051 = vmul.f32 %v1869, %v2539
        %v3052 = vmul.f32 %v1871, %v2540
        %v3053 = vmul.f32 %v1873, %v2541
        %v3054 = vmul.f32 %v1875, %v2542
        %v3055 = vmul.f32 %v1877, %v2543
        %v3056 = vmul.f32 %v1879, %v2544
        %v3057 = vmul.f32 %v1881, %v2545
        %v3058 = vmul.f32 %v1883, %v2546
        %v3059 = vmul.f32 %v1885, %v2547
        %v3060 = vmul.f32 %v1887, %v2548
        %v3061 = vmul.f32 %v1889, %v2549
        %v3062 = vmul.f32 %v1891, %v2550
        %v3063 = vmul.f32 %v1893, %v2551
        %v3064 = vmul.f32 %v1895, %v2552
        %v3065 = vmul.f32 %v1897, %v2553
        %v3066 = vmul.f32 %v1899, %v2554
        %v3067 = vmul.f32 %v1901, %v2555
        %v3068 = vmul.f32 %v1903, %v2556
        %v3069 = vmul.f32 %v1905, %v2557
        %v3070 = vmul.f32 %v1907, %v2558
        %v3071 = vmul.f32 %v1909, %v2559
        %v3072 = vmul.f32 %v1911, %v2560
        %v3073 = vmul.f32 %v1913, %v2561
        %v3074 = vmul.f32 %v1915, %v2562
        %v3075 = vmul.f32 %v1917, %v2563
        %v3076 = vmul.f32 %v1919, %v2564
        %v3077 = vmul.f32 %v1921, %v2565
        %v3078 = vmul.f32 %v1923, %v2566
        %v3079 = vmul.f32 %v1925, %v2567
        %v3080 = vmul.f32 %v1927, %v2568
        %v3081 = vmul.f32 %v1929, %v2569
        %v3082 = vmul.f32 %v1931, %v2570
        %v3083 = vmul.f32 %v1933, %v2571
        %v3084 = vmul.f32 %v1935, %v2572
        %v3085 = vmul.f32 %v1937, %v2573
        %v3086 = vmul.f32 %v1939, %v2574
        %v3087 = vmul.f32 %v1941, %v2575
        %v3088 = vmul.f32 %v1943, %v2576
        %v3089 = vmul.f32 %v1945, %v2577
        %v3090 = vmul.f32 %v1947, %v2578
        %v3091 = vmul.f32 %v1949, %v2579
        %v3092 = vmul.f32 %v1951, %v2580
        %v3093 = vmul.f32 %v1953, %v2581
        %v3094 = vmul.f32 %v1955, %v2582
        %v3095 = vmul.f32 %v1957, %v2583
        %v3096 = vmul.f32 %v1959, %v2584
        %v3097 = vmul.f32 %v1961, %v2585
        %v3098 = vmul.f32 %v1963, %v2586
        %v3099 = vmul.f32 %v1965, %v2587
        %v3100 = vmul.f32 %v1967, %v2588
        %v3101 = vmul.f32 %v1969, %v2589
        %v3102 = vmul.f32 %v1971, %v2590
        %v3103 = vmul.f32 %v1973, %v2591
        %v3104 = vmul.f32 %v1975, %v2592
        %v3105 = vmul.f32 %v1977, %v2593
        %v3106 = vmul.f32 %v1979, %v2594
        %v3107 = vmul.f32 %v1981, %v2595
        %v3108 = vmul.f32 %v1983, %v2596
        %v3109 = vmul.f32 %v1985, %v2597
        %v3110 = vmul.f32 %v1987, %v2598
        %v3111 = vmul.f32 %v1989, %v2599
        %v3112 = vmul.f32 %v1991, %v2600
        %v3113 = vmul.f32 %v1993, %v2601
        %v3114 = vmul.f32 %v1995, %v2602
        %v3115 = vmul.f32 %v1997, %v2603
        %v3116 = vmul.f32 %v1999, %v2604
        %v3117 = vmul.f32 %v2001, %v2605
        %v3118 = vmul.f32 %v2003, %v2606
        %v3119 = vmul.f32 %v2005, %v2607
        %v3120 = vmul.f32 %v2007, %v2608
        %v3121 = vmul.f32 %v2009, %v2609
        %v3122 = vmul.f32 %v2011, %v2610
        %v3123 = vmul.f32 %v2013, %v2611
        %v3124 = vmul.f32 %v2015, %v2612
        %v3125 = vmul.f32 %v2017, %v2613
        %v3126 = vmul.f32 %v2019, %v2614
        %v3127 = vmul.f32 %v2021, %v2615
        %v3128 = vmul.f32 %v2023, %v2616
        %v3129 = vmul.f32 %v2025, %v2617
        %v3130 = vmul.f32 %v2027, %v2618
        %v3131 = vmul.f32 %v2029, %v2619
        %v3132 = vmul.f32 %v2031, %v2620
        %v3133 = vmul.f32 %v2033, %v2621
        %v3134 = vmul.f32 %v2035, %v2622
        %v3135 = vmul.f32 %v2037, %v2623
        %v3136 = vmul.f32 %v2039, %v2624
        %v3137 = vmul.f32 %v2041, %v2625
        %v3138 = vmul.f32 %v2043, %v2626
        %v3139 = vmul.f32 %v2045, %v2627
        %v3140 = vmul.f32 %v2047, %v2628
        %v3141 = vmul.f32 %v2049, %v2629
        %v3142 = vmul.f32 %v2051, %v2630
        %v3143 = vmul.f32 %v2053, %v2631
        %v3144 = vmul.f32 %v2055, %v2632
        %v3145 = vmul.f32 %v2057, %v2633
        %v3146 = vmul.f32 %v2059, %v2634
        %v3147 = vmul.f32 %v2061, %v2635
        %v3148 = vmul.f32 %v2063, %v2636
        %v3149 = vmul.f32 %v2065, %v2637
        %v3150 = vmul.f32 %v2067, %v2638
        %v3151 = vmul.f32 %v2069, %v2639
        %v3152 = vmul.f32 %v2071, %v2640
        %v3153 = vmul.f32 %v2073, %v2641
        %v3154 = vmul.f32 %v2075, %v2642
        %v3155 = vmul.f32 %v2077, %v2643
        %v3156 = vmul.f32 %v2079, %v2644
        %v3157 = vmul.f32 %v2081, %v2645
        %v3158 = vmul.f32 %v2083, %v2646
        %v3159 = vmul.f32 %v2085, %v2647
        %v3160 = vmul.f32 %v2087, %v2648
        %v3161 = vmul.f32 %v2089, %v2649
        %v3162 = vmul.f32 %v2091, %v2650
        %v3163 = vmul.f32 %v2093, %v2651
        %v3164 = vmul.f32 %v2095, %v2652
        %v3165 = vmul.f32 %v2097, %v2653
        %v3166 = vmul.f32 %v2099, %v2654
        %v3167 = vmul.f32 %v2101, %v2655
        %v3168 = vmul.f32 %v2103, %v2656
        %v3169 = vmul.f32 %v2105, %v2657
        %v3170 = vmul.f32 %v2107, %v2658
        %v3171 = vmul.f32 %v2109, %v2659
        %v3172 = vmul.f32 %v2111, %v2660
        %v3173 = vmul.f32 %v2113, %v2661
        %v3174 = vmul.f32 %v2115, %v2662
        %v3175 = vmul.f32 %v2117, %v2663
        %v3176 = vmul.f32 %v2119, %v2664
        %v3177 = vmul.f32 %v2121, %v2665
        %v3178 = vmul.f32 %v2123, %v2666
        %v3179 = vmul.f32 %v2125, %v2667
        %v3180 = vmul.f32 %v2127, %v2668
        %v3181 = vmul.f32 %v2129, %v2669
        %v3182 = vmul.f32 %v2131, %v2670
        %v3183 = vmul.f32 %v2133, %v2671
        %v3184 = vmul.f32 %v2135, %v2672
        %v3185 = vmul.f32 %v2137, %v2673
        %v3186 = vmul.f32 %v2139, %v2674
        %v3187 = vmul.f32 %v2141, %v2675
        %v3188 = vmul.f32 %v2143, %v2676
        %v3189 = vmul.f32 %v2145, %v2677
        %v3190 = vmul.f32 %v2147, %v2678
        %v3191 = vmul.f32 %v2149, %v2679
        %v3192 = vmul.f32 %v2151, %v2680
        %v3193 = vmul.f32 %v2153, %v2681
        %v3194 = vmul.f32 %v2155, %v2682
        %v3195 = vmul.f32 %v2157, %v2683
        %v3196 = vmul.f32 %v2159, %v2684
        %v3197 = vmul.f32 %v2161, %v2685
        %v3198 = vmul.f32 %v2163, %v2686
        %v3199 = vmul.f32 %v2165, %v2687
        %v3200 = vmul.f32 %v2167, %v2688
        %v3201 = vmul.f32 %v2169, %v2689
        %v3202 = vmul.f32 %v2171, %v2690
        %v3203 = vmul.f32 %v2173, %v2691
        %v3204 = vmul.f32 %v2175, %v2692
        %v3205 = vmul.f32 %v2177, %v2693
        %v3206 = vmul.f32 %v2179, %v2694
        %v3207 = vmul.f32 %v2181, %v2695
        %v3208 = vmul.f32 %v2183, %v2696
        %v3209 = vmul.f32 %v2185, %v2697
        %v3210 = vadd.f32 %v2698, 2.0
        %v3211 = vadd.f32 %v2699, 2.0
        %v3212 = vadd.f32 %v2700, 2.0
        %v3213 = vadd.f32 %v2701, 2.0
        %v3214 = vadd.f32 %v2702, 2.0
        %v3215 = vadd.f32 %v2703, 2.0
        %v3216 = vadd.f32 %v2704, 2.0
        %v3217 = vadd.f32 %v2705, 2.0
        %v3218 = vadd.f32 %v2706, 2.0
        %v3219 = vadd.f32 %v2707, 2.0
        %v3220 = vadd.f32 %v2708, 2.0
        %v3221 = vadd.f32 %v2709, 2.0
        %v3222 = vadd.f32 %v2710, 2.0
        %v3223 = vadd.f32 %v2711, 2.0
        %v3224 = vadd.f32 %v2712, 2.0
        %v3225 = vadd.f32 %v2713, 2.0
        %v3226 = vadd.f32 %v2714, 2.0
        %v3227 = vadd.f32 %v2715, 2.0
        %v3228 = vadd.f32 %v2716, 2.0
        %v3229 = vadd.f32 %v2717, 2.0
        %v3230 = vadd.f32 %v2718, 2.0
        %v3231 = vadd.f32 %v2719, 2.0
        %v3232 = vadd.f32 %v2720, 2.0
        %v3233 = vadd.f32 %v2721, 2.0
        %v3234 = vadd.f32 %v2722, 2.0
        %v3235 = vadd.f32 %v2723, 2.0
        %v3236 = vadd.f32 %v2724, 2.0
        %v3237 = vadd.f32 %v2725, 2.0
        %v3238 = vadd.f32 %v2726, 2.0
        %v3239 = vadd.f32 %v2727, 2.0
        %v3240 = vadd.f32 %v2728, 2.0
        %v3241 = vadd.f32 %v2729, 2.0
        %v3242 = vadd.f32 %v2730, 2.0
        %v3243 = vadd.f32 %v2731, 2.0
        %v3244 = vadd.f32 %v2732, 2.0
        %v3245 = vadd.f32 %v2733, 2.0
        %v3246 = vadd.f32 %v2734, 2.0
        %v3247 = vadd.f32 %v2735, 2.0
        %v3248 = vadd.f32 %v2736, 2.0
        %v3249 = vadd.f32 %v2737, 2.0
        %v3250 = vadd.f32 %v2738, 2.0
        %v3251 = vadd.f32 %v2739, 2.0
        %v3252 = vadd.f32 %v2740, 2.0
        %v3253 = vadd.f32 %v2741, 2.0
        %v3254 = vadd.f32 %v2742, 2.0
        %v3255 = vadd.f32 %v2743, 2.0
        %v3256 = vadd.f32 %v2744, 2.0
        %v3257 = vadd.f32 %v2745, 2.0
        %v3258 = vadd.f32 %v2746, 2.0
        %v3259 = vadd.f32 %v2747, 2.0
        %v3260 = vadd.f32 %v2748, 2.0
        %v3261 = vadd.f32 %v2749, 2.0
        %v3262 = vadd.f32 %v2750, 2.0
        %v3263 = vadd.f32 %v2751, 2.0
        %v3264 = vadd.f32 %v2752, 2.0
        %v3265 = vadd.f32 %v2753, 2.0
        %v3266 = vadd.f32 %v2754, 2.0
        %v3267 = vadd.f32 %v2755, 2.0
        %v3268 = vadd.f32 %v2756, 2.0
        %v3269 = vadd.f32 %v2757, 2.0
        %v3270 = vadd.f32 %v2758, 2.0
        %v3271 = vadd.f32 %v2759, 2.0
        %v3272 = vadd.f32 %v2760, 2.0
        %v3273 = vadd.f32 %v2761, 2.0
        %v3274 = vadd.f32 %v2762, 2.0
        %v3275 = vadd.f32 %v2763, 2.0
        %v3276 = vadd.f32 %v2764, 2.0
        %v3277 = vadd.f32 %v2765, 2.0
        %v3278 = vadd.f32 %v2766, 2.0
        %v3279 = vadd.f32 %v2767, 2.0
        %v3280 = vadd.f32 %v2768, 2.0
        %v3281 = vadd.f32 %v2769, 2.0
        %v3282 = vadd.f32 %v2770, 2.0
        %v3283 = vadd.f32 %v2771, 2.0
        %v3284 = vadd.f32 %v2772, 2.0
        %v3285 = vadd.f32 %v2773, 2.0
        %v3286 = vadd.f32 %v2774, 2.0
        %v3287 = vadd.f32 %v2775, 2.0
        %v3288 = vadd.f32 %v2776, 2.0
        %v3289 = vadd.f32 %v2777, 2.0
        %v3290 = vadd.f32 %v2778, 2.0
        %v3291 = vadd.f32 %v2779, 2.0
        %v3292 = vadd.f32 %v2780, 2.0
        %v3293 = vadd.f32 %v2781, 2.0
        %v3294 = vadd.f32 %v2782, 2.0
        %v3295 = vadd.f32 %v2783, 2.0
        %v3296 = vadd.f32 %v2784, 2.0
        %v3297 = vadd.f32 %v2785, 2.0
        %v3298 = vadd.f32 %v2786, 2.0
        %v3299 = vadd.f32 %v2787, 2.0
        %v3300 = vadd.f32 %v2788, 2.0
        %v3301 = vadd.f32 %v2789, 2.0
        %v3302 = vadd.f32 %v2790, 2.0
        %v3303 = vadd.f32 %v2791, 2.0
        %v3304 = vadd.f32 %v2792, 2.0
        %v3305 = vadd.f32 %v2793, 2.0
        %v3306 = vadd.f32 %v2794, 2.0
        %v3307 = vadd.f32 %v2795, 2.0
        %v3308 = vadd.f32 %v2796, 2.0
        %v3309 = vadd.f32 %v2797, 2.0
        %v3310 = vadd.f32 %v2798, 2.0
        %v3311 = vadd.f32 %v2799, 2.0
        %v3312 = vadd.f32 %v2800, 2.0
        %v3313 = vadd.f32 %v2801, 2.0
        %v3314 = vadd.f32 %v2802, 2.0
        %v3315 = vadd.f32 %v2803, 2.0
        %v3316 = vadd.f32 %v2804, 2.0
        %v3317 = vadd.f32 %v2805, 2.0
        %v3318 = vadd.f32 %v2806, 2.0
        %v3319 = vadd.f32 %v2807, 2.0
        %v3320 = vadd.f32 %v2808, 2.0
        %v3321 = vadd.f32 %v2809, 2.0
        %v3322 = vadd.f32 %v2810, 2.0
        %v3323 = vadd.f32 %v2811, 2.0
        %v3324 = vadd.f32 %v2812, 2.0
        %v3325 = vadd.f32 %v2813, 2.0
        %v3326 = vadd.f32 %v2814, 2.0
        %v3327 = vadd.f32 %v2815, 2.0
        %v3328 = vadd.f32 %v2816, 2.0
        %v3329 = vadd.f32 %v2817, 2.0
        %v3330 = vadd.f32 %v2818, 2.0
        %v3331 = vadd.f32 %v2819, 2.0
        %v3332 = vadd.f32 %v2820, 2.0
        %v3333 = vadd.f32 %v2821, 2.0
        %v3334 = vadd.f32 %v2822, 2.0
        %v3335 = vadd.f32 %v2823, 2.0
        %v3336 = vadd.f32 %v2824, 2.0
        %v3337 = vadd.f32 %v2825, 2.0
        %v3338 = vadd.f32 %v2826, 2.0
        %v3339 = vadd.f32 %v2827, 2.0
        %v3340 = vadd.f32 %v2828, 2.0
        %v3341 = vadd.f32 %v2829, 2.0
        %v3342 = vadd.f32 %v2830, 2.0
        %v3343 = vadd.f32 %v2831, 2.0
        %v3344 = vadd.f32 %v2832, 2.0
        %v3345 = vadd.f32 %v2833, 2.0
        %v3346 = vadd.f32 %v2834, 2.0
        %v3347 = vadd.f32 %v2835, 2.0
        %v3348 = vadd.f32 %v2836, 2.0
        %v3349 = vadd.f32 %v2837, 2.0
        %v3350 = vadd.f32 %v2838, 2.0
        %v3351 = vadd.f32 %v2839, 2.0
        %v3352 = vadd.f32 %v2840, 2.0
        %v3353 = vadd.f32 %v2841, 2.0
        %v3354 = vadd.f32 %v2842, 2.0
        %v3355 = vadd.f32 %v2843, 2.0
        %v3356 = vadd.f32 %v2844, 2.0
        %v3357 = vadd.f32 %v2845, 2.0
        %v3358 = vadd.f32 %v2846, 2.0
        %v3359 = vadd.f32 %v2847, 2.0
        %v3360 = vadd.f32 %v2848, 2.0
        %v3361 = vadd.f32 %v2849, 2.0
        %v3362 = vadd.f32 %v2850, 2.0
        %v3363 = vadd.f32 %v2851, 2.0
        %v3364 = vadd.f32 %v2852, 2.0
        %v3365 = vadd.f32 %v2853, 2.0
        %v3366 = vadd.f32 %v2854, 2.0
        %v3367 = vadd.f32 %v2855, 2.0
        %v3368 = vadd.f32 %v2856, 2.0
        %v3369 = vadd.f32 %v2857, 2.0
        %v3370 = vadd.f32 %v2858, 2.0
        %v3371 = vadd.f32 %v2859, 2.0
        %v3372 = vadd.f32 %v2860, 2.0
        %v3373 = vadd.f32 %v2861, 2.0
        %v3374 = vadd.f32 %v2862, 2.0
        %v3375 = vadd.f32 %v2863, 2.0
        %v3376 = vadd.f32 %v2864, 2.0
        %v3377 = vadd.f32 %v2865, 2.0
        %v3378 = vadd.f32 %v2866, 2.0
        %v3379 = vadd.f32 %v2867, 2.0
        %v3380 = vadd.f32 %v2868, 2.0
        %v3381 = vadd.f32 %v2869, 2.0
        %v3382 = vadd.f32 %v2870, 2.0
        %v3383 = vadd.f32 %v2871, 2.0
        %v3384 = vadd.f32 %v2872, 2.0
        %v3385 = vadd.f32 %v2873, 2.0
        %v3386 = vadd.f32 %v2874, 2.0
        %v3387 = vadd.f32 %v2875, 2.0
        %v3388 = vadd.f32 %v2876, 2.0
        %v3389 = vadd.f32 %v2877, 2.0
        %v3390 = vadd.f32 %v2878, 2.0
        %v3391 = vadd.f32 %v2879, 2.0
        %v3392 = vadd.f32 %v2880, 2.0
        %v3393 = vadd.f32 %v2881, 2.0
        %v3394 = vadd.f32 %v2882, 2.0
        %v3395 = vadd.f32 %v2883, 2.0
        %v3396 = vadd.f32 %v2884, 2.0
        %v3397 = vadd.f32 %v2885, 2.0
        %v3398 = vadd.f32 %v2886, 2.0
        %v3399 = vadd.f32 %v2887, 2.0
        %v3400 = vadd.f32 %v2888, 2.0
        %v3401 = vadd.f32 %v2889, 2.0
        %v3402 = vadd.f32 %v2890, 2.0
        %v3403 = vadd.f32 %v2891, 2.0
        %v3404 = vadd.f32 %v2892, 2.0
        %v3405 = vadd.f32 %v2893, 2.0
        %v3406 = vadd.f32 %v2894, 2.0
        %v3407 = vadd.f32 %v2895, 2.0
        %v3408 = vadd.f32 %v2896, 2.0
        %v3409 = vadd.f32 %v2897, 2.0
        %v3410 = vadd.f32 %v2898, 2.0
        %v3411 = vadd.f32 %v2899, 2.0
        %v3412 = vadd.f32 %v2900, 2.0
        %v3413 = vadd.f32 %v2901, 2.0
        %v3414 = vadd.f32 %v2902, 2.0
        %v3415 = vadd.f32 %v2903, 2.0
        %v3416 = vadd.f32 %v2904, 2.0
        %v3417 = vadd.f32 %v2905, 2.0
        %v3418 = vadd.f32 %v2906, 2.0
        %v3419 = vadd.f32 %v2907, 2.0
        %v3420 = vadd.f32 %v2908, 2.0
        %v3421 = vadd.f32 %v2909, 2.0
        %v3422 = vadd.f32 %v2910, 2.0
        %v3423 = vadd.f32 %v2911, 2.0
        %v3424 = vadd.f32 %v2912, 2.0
        %v3425 = vadd.f32 %v2913, 2.0
        %v3426 = vadd.f32 %v2914, 2.0
        %v3427 = vadd.f32 %v2915, 2.0
        %v3428 = vadd.f32 %v2916, 2.0
        %v3429 = vadd.f32 %v2917, 2.0
        %v3430 = vadd.f32 %v2918, 2.0
        %v3431 = vadd.f32 %v2919, 2.0
        %v3432 = vadd.f32 %v2920, 2.0
        %v3433 = vadd.f32 %v2921, 2.0
        %v3434 = vadd.f32 %v2922, 2.0
        %v3435 = vadd.f32 %v2923, 2.0
        %v3436 = vadd.f32 %v2924, 2.0
        %v3437 = vadd.f32 %v2925, 2.0
        %v3438 = vadd.f32 %v2926, 2.0
        %v3439 = vadd.f32 %v2927, 2.0
        %v3440 = vadd.f32 %v2928, 2.0
        %v3441 = vadd.f32 %v2929, 2.0
        %v3442 = vadd.f32 %v2930, 2.0
        %v3443 = vadd.f32 %v2931, 2.0
        %v3444 = vadd.f32 %v2932, 2.0
        %v3445 = vadd.f32 %v2933, 2.0
        %v3446 = vadd.f32 %v2934, 2.0
        %v3447 = vadd.f32 %v2935, 2.0
        %v3448 = vadd.f32 %v2936, 2.0
        %v3449 = vadd.f32 %v2937, 2.0
        %v3450 = vadd.f32 %v2938, 2.0
        %v3451 = vadd.f32 %v2939, 2.0
        %v3452 = vadd.f32 %v2940, 2.0
        %v3453 = vadd.f32 %v2941, 2.0
        %v3454 = vadd.f32 %v2942, 2.0
        %v3455 = vadd.f32 %v2943, 2.0
        %v3456 = vadd.f32 %v2944, 2.0
        %v3457 = vadd.f32 %v2945, 2.0
        %v3458 = vadd.f32 %v2946, 2.0
        %v3459 = vadd.f32 %v2947, 2.0
        %v3460 = vadd.f32 %v2948, 2.0
        %v3461 = vadd.f32 %v2949, 2.0
        %v3462 = vadd.f32 %v2950, 2.0
        %v3463 = vadd.f32 %v2951, 2.0
        %v3464 = vadd.f32 %v2952, 2.0
        %v3465 = vadd.f32 %v2953, 2.0
        %v3466 = vadd.f32 %v2954, 2.0
        %v3467 = vadd.f32 %v2955, 2.0
        %v3468 = vadd.f32 %v2956, 2.0
        %v3469 = vadd.f32 %v2957, 2.0
        %v3470 = vadd.f32 %v2958, 2.0
        %v3471 = vadd.f32 %v2959, 2.0
        %v3472 = vadd.f32 %v2960, 2.0
        %v3473 = vadd.f32 %v2961, 2.0
        %v3474 = vadd.f32 %v2962, 2.0
        %v3475 = vadd.f32 %v2963, 2.0
        %v3476 = vadd.f32 %v2964, 2.0
        %v3477 = vadd.f32 %v2965, 2.0
        %v3478 = vadd.f32 %v2966, 2.0
        %v3479 = vadd.f32 %v2967, 2.0
        %v3480 = vadd.f32 %v2968, 2.0
        %v3481 = vadd.f32 %v2969, 2.0
        %v3482 = vadd.f32 %v2970, 2.0
        %v3483 = vadd.f32 %v2971, 2.0
        %v3484 = vadd.f32 %v2972, 2.0
        %v3485 = vadd.f32 %v2973, 2.0
        %v3486 = vadd.f32 %v2974, 2.0
        %v3487 = vadd.f32 %v2975, 2.0
        %v3488 = vadd.f32 %v2976, 2.0
        %v3489 = vadd.f32 %v2977, 2.0
        %v3490 = vadd.f32 %v2978, 2.0
        %v3491 = vadd.f32 %v2979, 2.0
        %v3492 = vadd.f32 %v2980, 2.0
        %v3493 = vadd.f32 %v2981, 2.0
        %v3494 = vadd.f32 %v2982, 2.0
        %v3495 = vadd.f32 %v2983, 2.0
        %v3496 = vadd.f32 %v2984, 2.0
        %v3497 = vadd.f32 %v2985, 2.0
        %v3498 = vadd.f32 %v2986, 2.0
        %v3499 = vadd.f32 %v2987, 2.0
        %v3500 = vadd.f32 %v2988, 2.0
        %v3501 = vadd.f32 %v2989, 2.0
        %v3502 = vadd.f32 %v2990, 2.0
        %v3503 = vadd.f32 %v2991, 2.0
        %v3504 = vadd.f32 %v2992, 2.0
        %v3505 = vadd.f32 %v2993, 2.0
        %v3506 = vadd.f32 %v2994, 2.0
        %v3507 = vadd.f32 %v2995, 2.0
        %v3508 = vadd.f32 %v2996, 2.0
        %v3509 = vadd.f32 %v2997, 2.0
        %v3510 = vadd.f32 %v2998, 2.0
        %v3511 = vadd.f32 %v2999, 2.0
        %v3512 = vadd.f32 %v3000, 2.0
        %v3513 = vadd.f32 %v3001, 2.0
        %v3514 = vadd.f32 %v3002, 2.0
        %v3515 = vadd.f32 %v3003, 2.0
        %v3516 = vadd.f32 %v3004, 2.0
        %v3517 = vadd.f32 %v3005, 2.0
        %v3518 = vadd.f32 %v3006, 2.0
        %v3519 = vadd.f32 %v3007, 2.0
        %v3520 = vadd.f32 %v3008, 2.0
        %v3521 = vadd.f32 %v3009, 2.0
        %v3522 = vadd.f32 %v3010, 2.0
        %v3523 = vadd.f32 %v3011, 2.0
        %v3524 = vadd.f32 %v3012, 2.0
        %v3525 = vadd.f32 %v3013, 2.0
        %v3526 = vadd.f32 %v3014, 2.0
        %v3527 = vadd.f32 %v3015, 2.0
        %v3528 = vadd.f32 %v3016, 2.0
        %v3529 = vadd.f32 %v3017, 2.0
        %v3530 = vadd.f32 %v3018, 2.0
        %v3531 = vadd.f32 %v3019, 2.0
        %v3532 = vadd.f32 %v3020, 2.0
        %v3533 = vadd.f32 %v3021, 2.0
        %v3534 = vadd.f32 %v3022, 2.0
        %v3535 = vadd.f32 %v3023, 2.0
        %v3536 = vadd.f32 %v3024, 2.0
        %v3537 = vadd.f32 %v3025, 2.0
        %v3538 = vadd.f32 %v3026, 2.0
        %v3539 = vadd.f32 %v3027, 2.0
        %v3540 = vadd.f32 %v3028, 2.0
        %v3541 = vadd.f32 %v3029, 2.0
        %v3542 = vadd.f32 %v3030, 2.0
        %v3543 = vadd.f32 %v3031, 2.0
        %v3544 = vadd.f32 %v3032, 2.0
        %v3545 = vadd.f32 %v3033, 2.0
        %v3546 = vadd.f32 %v3034, 2.0
        %v3547 = vadd.f32 %v3035, 2.0
        %v3548 = vadd.f32 %v3036, 2.0
        %v3549 = vadd.f32 %v3037, 2.0
        %v3550 = vadd.f32 %v3038, 2.0
        %v3551 = vadd.f32 %v3039, 2.0
        %v3552 = vadd.f32 %v3040, 2.0
        %v3553 = vadd.f32 %v3041, 2.0
        %v3554 = vadd.f32 %v3042, 2.0
        %v3555 = vadd.f32 %v3043, 2.0
        %v3556 = vadd.f32 %v3044, 2.0
        %v3557 = vadd.f32 %v3045, 2.0
        %v3558 = vadd.f32 %v3046, 2.0
        %v3559 = vadd.f32 %v3047, 2.0
        %v3560 = vadd.f32 %v3048, 2.0
        %v3561 = vadd.f32 %v3049, 2.0
        %v3562 = vadd.f32 %v3050, 2.0
        %v3563 = vadd.f32 %v3051, 2.0
        %v3564 = vadd.f32 %v3052, 2.0
        %v3565 = vadd.f32 %v3053, 2.0
        %v3566 = vadd.f32 %v3054, 2.0
        %v3567 = vadd.f32 %v3055, 2.0
        %v3568 = vadd.f32 %v3056, 2.0
        %v3569 = vadd.f32 %v3057, 2.0
        %v3570 = vadd.f32 %v3058, 2.0
        %v3571 = vadd.f32 %v3059, 2.0
        %v3572 = vadd.f32 %v3060, 2.0
        %v3573 = vadd.f32 %v3061, 2.0
        %v3574 = vadd.f32 %v3062, 2.0
        %v3575 = vadd.f32 %v3063, 2.0
        %v3576 = vadd.f32 %v3064, 2.0
        %v3577 = vadd.f32 %v3065, 2.0
        %v3578 = vadd.f32 %v3066, 2.0
        %v3579 = vadd.f32 %v3067, 2.0
        %v3580 = vadd.f32 %v3068, 2.0
        %v3581 = vadd.f32 %v3069, 2.0
        %v3582 = vadd.f32 %v3070, 2.0
        %v3583 = vadd.f32 %v3071, 2.0
        %v3584 = vadd.f32 %v3072, 2.0
        %v3585 = vadd.f32 %v3073, 2.0
        %v3586 = vadd.f32 %v3074, 2.0
        %v3587 = vadd.f32 %v3075, 2.0
        %v3588 = vadd.f32 %v3076, 2.0
        %v3589 = vadd.f32 %v3077, 2.0
        %v3590 = vadd.f32 %v3078, 2.0
        %v3591 = vadd.f32 %v3079, 2.0
        %v3592 = vadd.f32 %v3080, 2.0
        %v3593 = vadd.f32 %v3081, 2.0
        %v3594 = vadd.f32 %v3082, 2.0
        %v3595 = vadd.f32 %v3083, 2.0
        %v3596 = vadd.f32 %v3084, 2.0
        %v3597 = vadd.f32 %v3085, 2.0
        %v3598 = vadd.f32 %v3086, 2.0
        %v3599 = vadd.f32 %v3087, 2.0
        %v3600 = vadd.f32 %v3088, 2.0
        %v3601 = vadd.f32 %v3089, 2.0
        %v3602 = vadd.f32 %v3090, 2.0
        %v3603 = vadd.f32 %v3091, 2.0
        %v3604 = vadd.f32 %v3092, 2.0
        %v3605 = vadd.f32 %v3093, 2.0
        %v3606 = vadd.f32 %v3094, 2.0
        %v3607 = vadd.f32 %v3095, 2.0
        %v3608 = vadd.f32 %v3096, 2.0
        %v3609 = vadd.f32 %v3097, 2.0
        %v3610 = vadd.f32 %v3098, 2.0
        %v3611 = vadd.f32 %v3099, 2.0
        %v3612 = vadd.f32 %v3100, 2.0
        %v3613 = vadd.f32 %v3101, 2.0
        %v3614 = vadd.f32 %v3102, 2.0
        %v3615 = vadd.f32 %v3103, 2.0
        %v3616 = vadd.f32 %v3104, 2.0
        %v3617 = vadd.f32 %v3105, 2.0
        %v3618 = vadd.f32 %v3106, 2.0
        %v3619 = vadd.f32 %v3107, 2.0
        %v3620 = vadd.f32 %v3108, 2.0
        %v3621 = vadd.f32 %v3109, 2.0
        %v3622 = vadd.f32 %v3110, 2.0
        %v3623 = vadd.f32 %v3111, 2.0
        %v3624 = vadd.f32 %v3112, 2.0
        %v3625 = vadd.f32 %v3113, 2.0
        %v3626 = vadd.f32 %v3114, 2.0
        %v3627 = vadd.f32 %v3115, 2.0
        %v3628 = vadd.f32 %v3116, 2.0
        %v3629 = vadd.f32 %v3117, 2.0
        %v3630 = vadd.f32 %v3118, 2.0
        %v3631 = vadd.f32 %v3119, 2.0
        %v3632 = vadd.f32 %v3120, 2.0
        %v3633 = vadd.f32 %v3121, 2.0
        %v3634 = vadd.f32 %v3122, 2.0
        %v3635 = vadd.f32 %v3123, 2.0
        %v3636 = vadd.f32 %v3124, 2.0
        %v3637 = vadd.f32 %v3125, 2.0
        %v3638 = vadd.f32 %v3126, 2.0
        %v3639 = vadd.f32 %v3127, 2.0
        %v3640 = vadd.f32 %v3128, 2.0
        %v3641 = vadd.f32 %v3129, 2.0
        %v3642 = vadd.f32 %v3130, 2.0
        %v3643 = vadd.f32 %v3131, 2.0
        %v3644 = vadd.f32 %v3132, 2.0
        %v3645 = vadd.f32 %v3133, 2.0
        %v3646 = vadd.f32 %v3134, 2.0
        %v3647 = vadd.f32 %v3135, 2.0
        %v3648 = vadd.f32 %v3136, 2.0
        %v3649 = vadd.f32 %v3137, 2.0
        %v3650 = vadd.f32 %v3138, 2.0
        %v3651 = vadd.f32 %v3139, 2.0
        %v3652 = vadd.f32 %v3140, 2.0
        %v3653 = vadd.f32 %v3141, 2.0
        %v3654 = vadd.f32 %v3142, 2.0
        %v3655 = vadd.f32 %v3143, 2.0
        %v3656 = vadd.f32 %v3144, 2.0
        %v3657 = vadd.f32 %v3145, 2.0
        %v3658 = vadd.f32 %v3146, 2.0
        %v3659 = vadd.f32 %v3147, 2.0
        %v3660 = vadd.f32 %v3148, 2.0
        %v3661 = vadd.f32 %v3149, 2.0
        %v3662 = vadd.f32 %v3150, 2.0
        %v3663 = vadd.f32 %v3151, 2.0
        %v3664 = vadd.f32 %v3152, 2.0
        %v3665 = vadd.f32 %v3153, 2.0
        %v3666 = vadd.f32 %v3154, 2.0
        %v3667 = vadd.f32 %v3155, 2.0
        %v3668 = vadd.f32 %v3156, 2.0
        %v3669 = vadd.f32 %v3157, 2.0
        %v3670 = vadd.f32 %v3158, 2.0
        %v3671 = vadd.f32 %v3159, 2.0
        %v3672 = vadd.f32 %v3160, 2.0
        %v3673 = vadd.f32 %v3161, 2.0
        %v3674 = vadd.f32 %v3162, 2.0
        %v3675 = vadd.f32 %v3163, 2.0
        %v3676 = vadd.f32 %v3164, 2.0
        %v3677 = vadd.f32 %v3165, 2.0
        %v3678 = vadd.f32 %v3166, 2.0
        %v3679 = vadd.f32 %v3167, 2.0
        %v3680 = vadd.f32 %v3168, 2.0
        %v3681 = vadd.f32 %v3169, 2.0
        %v3682 = vadd.f32 %v3170, 2.0
        %v3683 = vadd.f32 %v3171, 2.0
        %v3684 = vadd.f32 %v3172, 2.0
        %v3685 = vadd.f32 %v3173, 2.0
        %v3686 = vadd.f32 %v3174, 2.0
        %v3687 = vadd.f32 %v3175, 2.0
        %v3688 = vadd.f32 %v3176, 2.0
        %v3689 = vadd.f32 %v3177, 2.0
        %v3690 = vadd.f32 %v3178, 2.0
        %v3691 = vadd.f32 %v3179, 2.0
        %v3692 = vadd.f32 %v3180, 2.0
        %v3693 = vadd.f32 %v3181, 2.0
        %v3694 = vadd.f32 %v3182, 2.0
        %v3695 = vadd.f32 %v3183, 2.0
        %v3696 = vadd.f32 %v3184, 2.0
        %v3697 = vadd.f32 %v3185, 2.0
        %v3698 = vadd.f32 %v3186, 2.0
        %v3699 = vadd.f32 %v3187, 2.0
        %v3700 = vadd.f32 %v3188, 2.0
        %v3701 = vadd.f32 %v3189, 2.0
        %v3702 = vadd.f32 %v3190, 2.0
        %v3703 = vadd.f32 %v3191, 2.0
        %v3704 = vadd.f32 %v3192, 2.0
        %v3705 = vadd.f32 %v3193, 2.0
        %v3706 = vadd.f32 %v3194, 2.0
        %v3707 = vadd.f32 %v3195, 2.0
        %v3708 = vadd.f32 %v3196, 2.0
        %v3709 = vadd.f32 %v3197, 2.0
        %v3710 = vadd.f32 %v3198, 2.0
        %v3711 = vadd.f32 %v3199, 2.0
        %v3712 = vadd.f32 %v3200, 2.0
        %v3713 = vadd.f32 %v3201, 2.0
        %v3714 = vadd.f32 %v3202, 2.0
        %v3715 = vadd.f32 %v3203, 2.0
        %v3716 = vadd.f32 %v3204, 2.0
        %v3717 = vadd.f32 %v3205, 2.0
        %v3718 = vadd.f32 %v3206, 2.0
        %v3719 = vadd.f32 %v3207, 2.0
        %v3720 = vadd.f32 %v3208, 2.0
        %v3721 = vadd.f32 %v3209, 2.0
        %v3722 = vrcp.pop %v3210
        %v3723 = vmul.f32 %v2698, %v3722
        %v3724 = vrcp.pop %v3211
        %v3725 = vmul.f32 %v2699, %v3724
        %v3726 = vrcp.pop %v3212
        %v3727 = vmul.f32 %v2700, %v3726
        %v3728 = vrcp.pop %v3213
        %v3729 = vmul.f32 %v2701, %v3728
        %v3730 = vrcp.pop %v3214
        %v3731 = vmul.f32 %v2702, %v3730
        %v3732 = vrcp.pop %v3215
        %v3733 = vmul.f32 %v2703, %v3732
        %v3734 = vrcp.pop %v3216
        %v3735 = vmul.f32 %v2704, %v3734
        %v3736 = vrcp.pop %v3217
        %v3737 = vmul.f32 %v2705, %v3736
        %v3738 = vrcp.pop %v3218
        %v3739 = vmul.f32 %v2706, %v3738
        %v3740 = vrcp.pop %v3219
        %v3741 = vmul.f32 %v2707, %v3740
        %v3742 = vrcp.pop %v3220
        %v3743 = vmul.f32 %v2708, %v3742
        %v3744 = vrcp.pop %v3221
        %v3745 = vmul.f32 %v2709, %v3744
        %v3746 = vrcp.pop %v3222
        %v3747 = vmul.f32 %v2710, %v3746
        %v3748 = vrcp.pop %v3223
        %v3749 = vmul.f32 %v2711, %v3748
        %v3750 = vrcp.pop %v3224
        %v3751 = vmul.f32 %v2712, %v3750
        %v3752 = vrcp.pop %v3225
        %v3753 = vmul.f32 %v2713, %v3752
        %v3754 = vrcp.pop %v3226
        %v3755 = vmul.f32 %v2714, %v3754
        %v3756 = vrcp.pop %v3227
        %v3757 = vmul.f32 %v2715, %v3756
        %v3758 = vrcp.pop %v3228
        %v3759 = vmul.f32 %v2716, %v3758
        %v3760 = vrcp.pop %v3229
        %v3761 = vmul.f32 %v2717, %v3760
        %v3762 = vrcp.pop %v3230
        %v3763 = vmul.f32 %v2718, %v3762
        %v3764 = vrcp.pop %v3231
        %v3765 = vmul.f32 %v2719, %v3764
        %v3766 = vrcp.pop %v3232
        %v3767 = vmul.f32 %v2720, %v3766
        %v3768 = vrcp.pop %v3233
        %v3769 = vmul.f32 %v2721, %v3768
        %v3770 = vrcp.pop %v3234
        %v3771 = vmul.f32 %v2722, %v3770
        %v3772 = vrcp.pop %v3235
        %v3773 = vmul.f32 %v2723, %v3772
        %v3774 = vrcp.pop %v3236
        %v3775 = vmul.f32 %v2724, %v3774
        %v3776 = vrcp.pop %v3237
        %v3777 = vmul.f32 %v2725, %v3776
        %v3778 = vrcp.pop %v3238
        %v3779 = vmul.f32 %v2726, %v3778
        %v3780 = vrcp.pop %v3239
        %v3781 = vmul.f32 %v2727, %v3780
        %v3782 = vrcp.pop %v3240
        %v3783 = vmul.f32 %v2728, %v3782
        %v3784 = vrcp.pop %v3241
        %v3785 = vmul.f32 %v2729, %v3784
        %v3786 = vrcp.pop %v3242
        %v3787 = vmul.f32 %v2730, %v3786
        %v3788 = vrcp.pop %v3243
        %v3789 = vmul.f32 %v2731, %v3788
        %v3790 = vrcp.pop %v3244
        %v3791 = vmul.f32 %v2732, %v3790
        %v3792 = vrcp.pop %v3245
        %v3793 = vmul.f32 %v2733, %v3792
        %v3794 = vrcp.pop %v3246
        %v3795 = vmul.f32 %v2734, %v3794
        %v3796 = vrcp.pop %v3247
        %v3797 = vmul.f32 %v2735, %v3796
        %v3798 = vrcp.pop %v3248
        %v3799 = vmul.f32 %v2736, %v3798
        %v3800 = vrcp.pop %v3249
        %v3801 = vmul.f32 %v2737, %v3800
        %v3802 = vrcp.pop %v3250
        %v3803 = vmul.f32 %v2738, %v3802
        %v3804 = vrcp.pop %v3251
        %v3805 = vmul.f32 %v2739, %v3804
        %v3806 = vrcp.pop %v3252
        %v3807 = vmul.f32 %v2740, %v3806
        %v3808 = vrcp.pop %v3253
        %v3809 = vmul.f32 %v2741, %v3808
        %v3810 = vrcp.pop %v3254
        %v3811 = vmul.f32 %v2742, %v3810
        %v3812 = vrcp.pop %v3255
        %v3813 = vmul.f32 %v2743, %v3812
        %v3814 = vrcp.pop %v3256
        %v3815 = vmul.f32 %v2744, %v3814
        %v3816 = vrcp.pop %v3257
        %v3817 = vmul.f32 %v2745, %v3816
        %v3818 = vrcp.pop %v3258
        %v3819 = vmul.f32 %v2746, %v3818
        %v3820 = vrcp.pop %v3259
        %v3821 = vmul.f32 %v2747, %v3820
        %v3822 = vrcp.pop %v3260
        %v3823 = vmul.f32 %v2748, %v3822
        %v3824 = vrcp.pop %v3261
        %v3825 = vmul.f32 %v2749, %v3824
        %v3826 = vrcp.pop %v3262
        %v3827 = vmul.f32 %v2750, %v3826
        %v3828 = vrcp.pop %v3263
        %v3829 = vmul.f32 %v2751, %v3828
        %v3830 = vrcp.pop %v3264
        %v3831 = vmul.f32 %v2752, %v3830
        %v3832 = vrcp.pop %v3265
        %v3833 = vmul.f32 %v2753, %v3832
        %v3834 = vrcp.pop %v3266
        %v3835 = vmul.f32 %v2754, %v3834
        %v3836 = vrcp.pop %v3267
        %v3837 = vmul.f32 %v2755, %v3836
        %v3838 = vrcp.pop %v3268
        %v3839 = vmul.f32 %v2756, %v3838
        %v3840 = vrcp.pop %v3269
        %v3841 = vmul.f32 %v2757, %v3840
        %v3842 = vrcp.pop %v3270
        %v3843 = vmul.f32 %v2758, %v3842
        %v3844 = vrcp.pop %v3271
        %v3845 = vmul.f32 %v2759, %v3844
        %v3846 = vrcp.pop %v3272
        %v3847 = vmul.f32 %v2760, %v3846
        %v3848 = vrcp.pop %v3273
        %v3849 = vmul.f32 %v2761, %v3848
        %v3850 = vrcp.pop %v3274
        %v3851 = vmul.f32 %v2762, %v3850
        %v3852 = vrcp.pop %v3275
        %v3853 = vmul.f32 %v2763, %v3852
        %v3854 = vrcp.pop %v3276
        %v3855 = vmul.f32 %v2764, %v3854
        %v3856 = vrcp.pop %v3277
        %v3857 = vmul.f32 %v2765, %v3856
        %v3858 = vrcp.pop %v3278
        %v3859 = vmul.f32 %v2766, %v3858
        %v3860 = vrcp.pop %v3279
        %v3861 = vmul.f32 %v2767, %v3860
        %v3862 = vrcp.pop %v3280
        %v3863 = vmul.f32 %v2768, %v3862
        %v3864 = vrcp.pop %v3281
        %v3865 = vmul.f32 %v2769, %v3864
        %v3866 = vrcp.pop %v3282
        %v3867 = vmul.f32 %v2770, %v3866
        %v3868 = vrcp.pop %v3283
        %v3869 = vmul.f32 %v2771, %v3868
        %v3870 = vrcp.pop %v3284
        %v3871 = vmul.f32 %v2772, %v3870
        %v3872 = vrcp.pop %v3285
        %v3873 = vmul.f32 %v2773, %v3872
        %v3874 = vrcp.pop %v3286
        %v3875 = vmul.f32 %v2774, %v3874
        %v3876 = vrcp.pop %v3287
        %v3877 = vmul.f32 %v2775, %v3876
        %v3878 = vrcp.pop %v3288
        %v3879 = vmul.f32 %v2776, %v3878
        %v3880 = vrcp.pop %v3289
        %v3881 = vmul.f32 %v2777, %v3880
        %v3882 = vrcp.pop %v3290
        %v3883 = vmul.f32 %v2778, %v3882
        %v3884 = vrcp.pop %v3291
        %v3885 = vmul.f32 %v2779, %v3884
        %v3886 = vrcp.pop %v3292
        %v3887 = vmul.f32 %v2780, %v3886
        %v3888 = vrcp.pop %v3293
        %v3889 = vmul.f32 %v2781, %v3888
        %v3890 = vrcp.pop %v3294
        %v3891 = vmul.f32 %v2782, %v3890
        %v3892 = vrcp.pop %v3295
        %v3893 = vmul.f32 %v2783, %v3892
        %v3894 = vrcp.pop %v3296
        %v3895 = vmul.f32 %v2784, %v3894
        %v3896 = vrcp.pop %v3297
        %v3897 = vmul.f32 %v2785, %v3896
        %v3898 = vrcp.pop %v3298
        %v3899 = vmul.f32 %v2786, %v3898
        %v3900 = vrcp.pop %v3299
        %v3901 = vmul.f32 %v2787, %v3900
        %v3902 = vrcp.pop %v3300
        %v3903 = vmul.f32 %v2788, %v3902
        %v3904 = vrcp.pop %v3301
        %v3905 = vmul.f32 %v2789, %v3904
        %v3906 = vrcp.pop %v3302
        %v3907 = vmul.f32 %v2790, %v3906
        %v3908 = vrcp.pop %v3303
        %v3909 = vmul.f32 %v2791, %v3908
        %v3910 = vrcp.pop %v3304
        %v3911 = vmul.f32 %v2792, %v3910
        %v3912 = vrcp.pop %v3305
        %v3913 = vmul.f32 %v2793, %v3912
        %v3914 = vrcp.pop %v3306
        %v3915 = vmul.f32 %v2794, %v3914
        %v3916 = vrcp.pop %v3307
        %v3917 = vmul.f32 %v2795, %v3916
        %v3918 = vrcp.pop %v3308
        %v3919 = vmul.f32 %v2796, %v3918
        %v3920 = vrcp.pop %v3309
        %v3921 = vmul.f32 %v2797, %v3920
        %v3922 = vrcp.pop %v3310
        %v3923 = vmul.f32 %v2798, %v3922
        %v3924 = vrcp.pop %v3311
        %v3925 = vmul.f32 %v2799, %v3924
        %v3926 = vrcp.pop %v3312
        %v3927 = vmul.f32 %v2800, %v3926
        %v3928 = vrcp.pop %v3313
        %v3929 = vmul.f32 %v2801, %v3928
        %v3930 = vrcp.pop %v3314
        %v3931 = vmul.f32 %v2802, %v3930
        %v3932 = vrcp.pop %v3315
        %v3933 = vmul.f32 %v2803, %v3932
        %v3934 = vrcp.pop %v3316
        %v3935 = vmul.f32 %v2804, %v3934
        %v3936 = vrcp.pop %v3317
        %v3937 = vmul.f32 %v2805, %v3936
        %v3938 = vrcp.pop %v3318
        %v3939 = vmul.f32 %v2806, %v3938
        %v3940 = vrcp.pop %v3319
        %v3941 = vmul.f32 %v2807, %v3940
        %v3942 = vrcp.pop %v3320
        %v3943 = vmul.f32 %v2808, %v3942
        %v3944 = vrcp.pop %v3321
        %v3945 = vmul.f32 %v2809, %v3944
        %v3946 = vrcp.pop %v3322
        %v3947 = vmul.f32 %v2810, %v3946
        %v3948 = vrcp.pop %v3323
        %v3949 = vmul.f32 %v2811, %v3948
        %v3950 = vrcp.pop %v3324
        %v3951 = vmul.f32 %v2812, %v3950
        %v3952 = vrcp.pop %v3325
        %v3953 = vmul.f32 %v2813, %v3952
        %v3954 = vrcp.pop %v3326
        %v3955 = vmul.f32 %v2814, %v3954
        %v3956 = vrcp.pop %v3327
        %v3957 = vmul.f32 %v2815, %v3956
        %v3958 = vrcp.pop %v3328
        %v3959 = vmul.f32 %v2816, %v3958
        %v3960 = vrcp.pop %v3329
        %v3961 = vmul.f32 %v2817, %v3960
        %v3962 = vrcp.pop %v3330
        %v3963 = vmul.f32 %v2818, %v3962
        %v3964 = vrcp.pop %v3331
        %v3965 = vmul.f32 %v2819, %v3964
        %v3966 = vrcp.pop %v3332
        %v3967 = vmul.f32 %v2820, %v3966
        %v3968 = vrcp.pop %v3333
        %v3969 = vmul.f32 %v2821, %v3968
        %v3970 = vrcp.pop %v3334
        %v3971 = vmul.f32 %v2822, %v3970
        %v3972 = vrcp.pop %v3335
        %v3973 = vmul.f32 %v2823, %v3972
        %v3974 = vrcp.pop %v3336
        %v3975 = vmul.f32 %v2824, %v3974
        %v3976 = vrcp.pop %v3337
        %v3977 = vmul.f32 %v2825, %v3976
        %v3978 = vrcp.pop %v3338
        %v3979 = vmul.f32 %v2826, %v3978
        %v3980 = vrcp.pop %v3339
        %v3981 = vmul.f32 %v2827, %v3980
        %v3982 = vrcp.pop %v3340
        %v3983 = vmul.f32 %v2828, %v3982
        %v3984 = vrcp.pop %v3341
        %v3985 = vmul.f32 %v2829, %v3984
        %v3986 = vrcp.pop %v3342
        %v3987 = vmul.f32 %v2830, %v3986
        %v3988 = vrcp.pop %v3343
        %v3989 = vmul.f32 %v2831, %v3988
        %v3990 = vrcp.pop %v3344
        %v3991 = vmul.f32 %v2832, %v3990
        %v3992 = vrcp.pop %v3345
        %v3993 = vmul.f32 %v2833, %v3992
        %v3994 = vrcp.pop %v3346
        %v3995 = vmul.f32 %v2834, %v3994
        %v3996 = vrcp.pop %v3347
        %v3997 = vmul.f32 %v2835, %v3996
        %v3998 = vrcp.pop %v3348
        %v3999 = vmul.f32 %v2836, %v3998
        %v4000 = vrcp.pop %v3349
        %v4001 = vmul.f32 %v2837, %v4000
        %v4002 = vrcp.pop %v3350
        %v4003 = vmul.f32 %v2838, %v4002
        %v4004 = vrcp.pop %v3351
        %v4005 = vmul.f32 %v2839, %v4004
        %v4006 = vrcp.pop %v3352
        %v4007 = vmul.f32 %v2840, %v4006
        %v4008 = vrcp.pop %v3353
        %v4009 = vmul.f32 %v2841, %v4008
        %v4010 = vrcp.pop %v3354
        %v4011 = vmul.f32 %v2842, %v4010
        %v4012 = vrcp.pop %v3355
        %v4013 = vmul.f32 %v2843, %v4012
        %v4014 = vrcp.pop %v3356
        %v4015 = vmul.f32 %v2844, %v4014
        %v4016 = vrcp.pop %v3357
        %v4017 = vmul.f32 %v2845, %v4016
        %v4018 = vrcp.pop %v3358
        %v4019 = vmul.f32 %v2846, %v4018
        %v4020 = vrcp.pop %v3359
        %v4021 = vmul.f32 %v2847, %v4020
        %v4022 = vrcp.pop %v3360
        %v4023 = vmul.f32 %v2848, %v4022
        %v4024 = vrcp.pop %v3361
        %v4025 = vmul.f32 %v2849, %v4024
        %v4026 = vrcp.pop %v3362
        %v4027 = vmul.f32 %v2850, %v4026
        %v4028 = vrcp.pop %v3363
        %v4029 = vmul.f32 %v2851, %v4028
        %v4030 = vrcp.pop %v3364
        %v4031 = vmul.f32 %v2852, %v4030
        %v4032 = vrcp.pop %v3365
        %v4033 = vmul.f32 %v2853, %v4032
        %v4034 = vrcp.pop %v3366
        %v4035 = vmul.f32 %v2854, %v4034
        %v4036 = vrcp.pop %v3367
        %v4037 = vmul.f32 %v2855, %v4036
        %v4038 = vrcp.pop %v3368
        %v4039 = vmul.f32 %v2856, %v4038
        %v4040 = vrcp.pop %v3369
        %v4041 = vmul.f32 %v2857, %v4040
        %v4042 = vrcp.pop %v3370
        %v4043 = vmul.f32 %v2858, %v4042
        %v4044 = vrcp.pop %v3371
        %v4045 = vmul.f32 %v2859, %v4044
        %v4046 = vrcp.pop %v3372
        %v4047 = vmul.f32 %v2860, %v4046
        %v4048 = vrcp.pop %v3373
        %v4049 = vmul.f32 %v2861, %v4048
        %v4050 = vrcp.pop %v3374
        %v4051 = vmul.f32 %v2862, %v4050
        %v4052 = vrcp.pop %v3375
        %v4053 = vmul.f32 %v2863, %v4052
        %v4054 = vrcp.pop %v3376
        %v4055 = vmul.f32 %v2864, %v4054
        %v4056 = vrcp.pop %v3377
        %v4057 = vmul.f32 %v2865, %v4056
        %v4058 = vrcp.pop %v3378
        %v4059 = vmul.f32 %v2866, %v4058
        %v4060 = vrcp.pop %v3379
        %v4061 = vmul.f32 %v2867, %v4060
        %v4062 = vrcp.pop %v3380
        %v4063 = vmul.f32 %v2868, %v4062
        %v4064 = vrcp.pop %v3381
        %v4065 = vmul.f32 %v2869, %v4064
        %v4066 = vrcp.pop %v3382
        %v4067 = vmul.f32 %v2870, %v4066
        %v4068 = vrcp.pop %v3383
        %v4069 = vmul.f32 %v2871, %v4068
        %v4070 = vrcp.pop %v3384
        %v4071 = vmul.f32 %v2872, %v4070
        %v4072 = vrcp.pop %v3385
        %v4073 = vmul.f32 %v2873, %v4072
        %v4074 = vrcp.pop %v3386
        %v4075 = vmul.f32 %v2874, %v4074
        %v4076 = vrcp.pop %v3387
        %v4077 = vmul.f32 %v2875, %v4076
        %v4078 = vrcp.pop %v3388
        %v4079 = vmul.f32 %v2876, %v4078
        %v4080 = vrcp.pop %v3389
        %v4081 = vmul.f32 %v2877, %v4080
        %v4082 = vrcp.pop %v3390
        %v4083 = vmul.f32 %v2878, %v4082
        %v4084 = vrcp.pop %v3391
        %v4085 = vmul.f32 %v2879, %v4084
        %v4086 = vrcp.pop %v3392
        %v4087 = vmul.f32 %v2880, %v4086
        %v4088 = vrcp.pop %v3393
        %v4089 = vmul.f32 %v2881, %v4088
        %v4090 = vrcp.pop %v3394
        %v4091 = vmul.f32 %v2882, %v4090
        %v4092 = vrcp.pop %v3395
        %v4093 = vmul.f32 %v2883, %v4092
        %v4094 = vrcp.pop %v3396
        %v4095 = vmul.f32 %v2884, %v4094
        %v4096 = vrcp.pop %v3397
        %v4097 = vmul.f32 %v2885, %v4096
        %v4098 = vrcp.pop %v3398
        %v4099 = vmul.f32 %v2886, %v4098
        %v4100 = vrcp.pop %v3399
        %v4101 = vmul.f32 %v2887, %v4100
        %v4102 = vrcp.pop %v3400
        %v4103 = vmul.f32 %v2888, %v4102
        %v4104 = vrcp.pop %v3401
        %v4105 = vmul.f32 %v2889, %v4104
        %v4106 = vrcp.pop %v3402
        %v4107 = vmul.f32 %v2890, %v4106
        %v4108 = vrcp.pop %v3403
        %v4109 = vmul.f32 %v2891, %v4108
        %v4110 = vrcp.pop %v3404
        %v4111 = vmul.f32 %v2892, %v4110
        %v4112 = vrcp.pop %v3405
        %v4113 = vmul.f32 %v2893, %v4112
        %v4114 = vrcp.pop %v3406
        %v4115 = vmul.f32 %v2894, %v4114
        %v4116 = vrcp.pop %v3407
        %v4117 = vmul.f32 %v2895, %v4116
        %v4118 = vrcp.pop %v3408
        %v4119 = vmul.f32 %v2896, %v4118
        %v4120 = vrcp.pop %v3409
        %v4121 = vmul.f32 %v2897, %v4120
        %v4122 = vrcp.pop %v3410
        %v4123 = vmul.f32 %v2898, %v4122
        %v4124 = vrcp.pop %v3411
        %v4125 = vmul.f32 %v2899, %v4124
        %v4126 = vrcp.pop %v3412
        %v4127 = vmul.f32 %v2900, %v4126
        %v4128 = vrcp.pop %v3413
        %v4129 = vmul.f32 %v2901, %v4128
        %v4130 = vrcp.pop %v3414
        %v4131 = vmul.f32 %v2902, %v4130
        %v4132 = vrcp.pop %v3415
        %v4133 = vmul.f32 %v2903, %v4132
        %v4134 = vrcp.pop %v3416
        %v4135 = vmul.f32 %v2904, %v4134
        %v4136 = vrcp.pop %v3417
        %v4137 = vmul.f32 %v2905, %v4136
        %v4138 = vrcp.pop %v3418
        %v4139 = vmul.f32 %v2906, %v4138
        %v4140 = vrcp.pop %v3419
        %v4141 = vmul.f32 %v2907, %v4140
        %v4142 = vrcp.pop %v3420
        %v4143 = vmul.f32 %v2908, %v4142
        %v4144 = vrcp.pop %v3421
        %v4145 = vmul.f32 %v2909, %v4144
        %v4146 = vrcp.pop %v3422
        %v4147 = vmul.f32 %v2910, %v4146
        %v4148 = vrcp.pop %v3423
        %v4149 = vmul.f32 %v2911, %v4148
        %v4150 = vrcp.pop %v3424
        %v4151 = vmul.f32 %v2912, %v4150
        %v4152 = vrcp.pop %v3425
        %v4153 = vmul.f32 %v2913, %v4152
        %v4154 = vrcp.pop %v3426
        %v4155 = vmul.f32 %v2914, %v4154
        %v4156 = vrcp.pop %v3427
        %v4157 = vmul.f32 %v2915, %v4156
        %v4158 = vrcp.pop %v3428
        %v4159 = vmul.f32 %v2916, %v4158
        %v4160 = vrcp.pop %v3429
        %v4161 = vmul.f32 %v2917, %v4160
        %v4162 = vrcp.pop %v3430
        %v4163 = vmul.f32 %v2918, %v4162
        %v4164 = vrcp.pop %v3431
        %v4165 = vmul.f32 %v2919, %v4164
        %v4166 = vrcp.pop %v3432
        %v4167 = vmul.f32 %v2920, %v4166
        %v4168 = vrcp.pop %v3433
        %v4169 = vmul.f32 %v2921, %v4168
        %v4170 = vrcp.pop %v3434
        %v4171 = vmul.f32 %v2922, %v4170
        %v4172 = vrcp.pop %v3435
        %v4173 = vmul.f32 %v2923, %v4172
        %v4174 = vrcp.pop %v3436
        %v4175 = vmul.f32 %v2924, %v4174
        %v4176 = vrcp.pop %v3437
        %v4177 = vmul.f32 %v2925, %v4176
        %v4178 = vrcp.pop %v3438
        %v4179 = vmul.f32 %v2926, %v4178
        %v4180 = vrcp.pop %v3439
        %v4181 = vmul.f32 %v2927, %v4180
        %v4182 = vrcp.pop %v3440
        %v4183 = vmul.f32 %v2928, %v4182
        %v4184 = vrcp.pop %v3441
        %v4185 = vmul.f32 %v2929, %v4184
        %v4186 = vrcp.pop %v3442
        %v4187 = vmul.f32 %v2930, %v4186
        %v4188 = vrcp.pop %v3443
        %v4189 = vmul.f32 %v2931, %v4188
        %v4190 = vrcp.pop %v3444
        %v4191 = vmul.f32 %v2932, %v4190
        %v4192 = vrcp.pop %v3445
        %v4193 = vmul.f32 %v2933, %v4192
        %v4194 = vrcp.pop %v3446
        %v4195 = vmul.f32 %v2934, %v4194
        %v4196 = vrcp.pop %v3447
        %v4197 = vmul.f32 %v2935, %v4196
        %v4198 = vrcp.pop %v3448
        %v4199 = vmul.f32 %v2936, %v4198
        %v4200 = vrcp.pop %v3449
        %v4201 = vmul.f32 %v2937, %v4200
        %v4202 = vrcp.pop %v3450
        %v4203 = vmul.f32 %v2938, %v4202
        %v4204 = vrcp.pop %v3451
        %v4205 = vmul.f32 %v2939, %v4204
        %v4206 = vrcp.pop %v3452
        %v4207 = vmul.f32 %v2940, %v4206
        %v4208 = vrcp.pop %v3453
        %v4209 = vmul.f32 %v2941, %v4208
        %v4210 = vrcp.pop %v3454
        %v4211 = vmul.f32 %v2942, %v4210
        %v4212 = vrcp.pop %v3455
        %v4213 = vmul.f32 %v2943, %v4212
        %v4214 = vrcp.pop %v3456
        %v4215 = vmul.f32 %v2944, %v4214
        %v4216 = vrcp.pop %v3457
        %v4217 = vmul.f32 %v2945, %v4216
        %v4218 = vrcp.pop %v3458
        %v4219 = vmul.f32 %v2946, %v4218
        %v4220 = vrcp.pop %v3459
        %v4221 = vmul.f32 %v2947, %v4220
        %v4222 = vrcp.pop %v3460
        %v4223 = vmul.f32 %v2948, %v4222
        %v4224 = vrcp.pop %v3461
        %v4225 = vmul.f32 %v2949, %v4224
        %v4226 = vrcp.pop %v3462
        %v4227 = vmul.f32 %v2950, %v4226
        %v4228 = vrcp.pop %v3463
        %v4229 = vmul.f32 %v2951, %v4228
        %v4230 = vrcp.pop %v3464
        %v4231 = vmul.f32 %v2952, %v4230
        %v4232 = vrcp.pop %v3465
        %v4233 = vmul.f32 %v2953, %v4232
        %v4234 = vrcp.pop %v3466
        %v4235 = vmul.f32 %v2954, %v4234
        %v4236 = vrcp.pop %v3467
        %v4237 = vmul.f32 %v2955, %v4236
        %v4238 = vrcp.pop %v3468
        %v4239 = vmul.f32 %v2956, %v4238
        %v4240 = vrcp.pop %v3469
        %v4241 = vmul.f32 %v2957, %v4240
        %v4242 = vrcp.pop %v3470
        %v4243 = vmul.f32 %v2958, %v4242
        %v4244 = vrcp.pop %v3471
        %v4245 = vmul.f32 %v2959, %v4244
        %v4246 = vrcp.pop %v3472
        %v4247 = vmul.f32 %v2960, %v4246
        %v4248 = vrcp.pop %v3473
        %v4249 = vmul.f32 %v2961, %v4248
        %v4250 = vrcp.pop %v3474
        %v4251 = vmul.f32 %v2962, %v4250
        %v4252 = vrcp.pop %v3475
        %v4253 = vmul.f32 %v2963, %v4252
        %v4254 = vrcp.pop %v3476
        %v4255 = vmul.f32 %v2964, %v4254
        %v4256 = vrcp.pop %v3477
        %v4257 = vmul.f32 %v2965, %v4256
        %v4258 = vrcp.pop %v3478
        %v4259 = vmul.f32 %v2966, %v4258
        %v4260 = vrcp.pop %v3479
        %v4261 = vmul.f32 %v2967, %v4260
        %v4262 = vrcp.pop %v3480
        %v4263 = vmul.f32 %v2968, %v4262
        %v4264 = vrcp.pop %v3481
        %v4265 = vmul.f32 %v2969, %v4264
        %v4266 = vrcp.pop %v3482
        %v4267 = vmul.f32 %v2970, %v4266
        %v4268 = vrcp.pop %v3483
        %v4269 = vmul.f32 %v2971, %v4268
        %v4270 = vrcp.pop %v3484
        %v4271 = vmul.f32 %v2972, %v4270
        %v4272 = vrcp.pop %v3485
        %v4273 = vmul.f32 %v2973, %v4272
        %v4274 = vrcp.pop %v3486
        %v4275 = vmul.f32 %v2974, %v4274
        %v4276 = vrcp.pop %v3487
        %v4277 = vmul.f32 %v2975, %v4276
        %v4278 = vrcp.pop %v3488
        %v4279 = vmul.f32 %v2976, %v4278
        %v4280 = vrcp.pop %v3489
        %v4281 = vmul.f32 %v2977, %v4280
        %v4282 = vrcp.pop %v3490
        %v4283 = vmul.f32 %v2978, %v4282
        %v4284 = vrcp.pop %v3491
        %v4285 = vmul.f32 %v2979, %v4284
        %v4286 = vrcp.pop %v3492
        %v4287 = vmul.f32 %v2980, %v4286
        %v4288 = vrcp.pop %v3493
        %v4289 = vmul.f32 %v2981, %v4288
        %v4290 = vrcp.pop %v3494
        %v4291 = vmul.f32 %v2982, %v4290
        %v4292 = vrcp.pop %v3495
        %v4293 = vmul.f32 %v2983, %v4292
        %v4294 = vrcp.pop %v3496
        %v4295 = vmul.f32 %v2984, %v4294
        %v4296 = vrcp.pop %v3497
        %v4297 = vmul.f32 %v2985, %v4296
        %v4298 = vrcp.pop %v3498
        %v4299 = vmul.f32 %v2986, %v4298
        %v4300 = vrcp.pop %v3499
        %v4301 = vmul.f32 %v2987, %v4300
        %v4302 = vrcp.pop %v3500
        %v4303 = vmul.f32 %v2988, %v4302
        %v4304 = vrcp.pop %v3501
        %v4305 = vmul.f32 %v2989, %v4304
        %v4306 = vrcp.pop %v3502
        %v4307 = vmul.f32 %v2990, %v4306
        %v4308 = vrcp.pop %v3503
        %v4309 = vmul.f32 %v2991, %v4308
        %v4310 = vrcp.pop %v3504
        %v4311 = vmul.f32 %v2992, %v4310
        %v4312 = vrcp.pop %v3505
        %v4313 = vmul.f32 %v2993, %v4312
        %v4314 = vrcp.pop %v3506
        %v4315 = vmul.f32 %v2994, %v4314
        %v4316 = vrcp.pop %v3507
        %v4317 = vmul.f32 %v2995, %v4316
        %v4318 = vrcp.pop %v3508
        %v4319 = vmul.f32 %v2996, %v4318
        %v4320 = vrcp.pop %v3509
        %v4321 = vmul.f32 %v2997, %v4320
        %v4322 = vrcp.pop %v3510
        %v4323 = vmul.f32 %v2998, %v4322
        %v4324 = vrcp.pop %v3511
        %v4325 = vmul.f32 %v2999, %v4324
        %v4326 = vrcp.pop %v3512
        %v4327 = vmul.f32 %v3000, %v4326
        %v4328 = vrcp.pop %v3513
        %v4329 = vmul.f32 %v3001, %v4328
        %v4330 = vrcp.pop %v3514
        %v4331 = vmul.f32 %v3002, %v4330
        %v4332 = vrcp.pop %v3515
        %v4333 = vmul.f32 %v3003, %v4332
        %v4334 = vrcp.pop %v3516
        %v4335 = vmul.f32 %v3004, %v4334
        %v4336 = vrcp.pop %v3517
        %v4337 = vmul.f32 %v3005, %v4336
        %v4338 = vrcp.pop %v3518
        %v4339 = vmul.f32 %v3006, %v4338
        %v4340 = vrcp.pop %v3519
        %v4341 = vmul.f32 %v3007, %v4340
        %v4342 = vrcp.pop %v3520
        %v4343 = vmul.f32 %v3008, %v4342
        %v4344 = vrcp.pop %v3521
        %v4345 = vmul.f32 %v3009, %v4344
        %v4346 = vrcp.pop %v3522
        %v4347 = vmul.f32 %v3010, %v4346
        %v4348 = vrcp.pop %v3523
        %v4349 = vmul.f32 %v3011, %v4348
        %v4350 = vrcp.pop %v3524
        %v4351 = vmul.f32 %v3012, %v4350
        %v4352 = vrcp.pop %v3525
        %v4353 = vmul.f32 %v3013, %v4352
        %v4354 = vrcp.pop %v3526
        %v4355 = vmul.f32 %v3014, %v4354
        %v4356 = vrcp.pop %v3527
        %v4357 = vmul.f32 %v3015, %v4356
        %v4358 = vrcp.pop %v3528
        %v4359 = vmul.f32 %v3016, %v4358
        %v4360 = vrcp.pop %v3529
        %v4361 = vmul.f32 %v3017, %v4360
        %v4362 = vrcp.pop %v3530
        %v4363 = vmul.f32 %v3018, %v4362
        %v4364 = vrcp.pop %v3531
        %v4365 = vmul.f32 %v3019, %v4364
        %v4366 = vrcp.pop %v3532
        %v4367 = vmul.f32 %v3020, %v4366
        %v4368 = vrcp.pop %v3533
        %v4369 = vmul.f32 %v3021, %v4368
        %v4370 = vrcp.pop %v3534
        %v4371 = vmul.f32 %v3022, %v4370
        %v4372 = vrcp.pop %v3535
        %v4373 = vmul.f32 %v3023, %v4372
        %v4374 = vrcp.pop %v3536
        %v4375 = vmul.f32 %v3024, %v4374
        %v4376 = vrcp.pop %v3537
        %v4377 = vmul.f32 %v3025, %v4376
        %v4378 = vrcp.pop %v3538
        %v4379 = vmul.f32 %v3026, %v4378
        %v4380 = vrcp.pop %v3539
        %v4381 = vmul.f32 %v3027, %v4380
        %v4382 = vrcp.pop %v3540
        %v4383 = vmul.f32 %v3028, %v4382
        %v4384 = vrcp.pop %v3541
        %v4385 = vmul.f32 %v3029, %v4384
        %v4386 = vrcp.pop %v3542
        %v4387 = vmul.f32 %v3030, %v4386
        %v4388 = vrcp.pop %v3543
        %v4389 = vmul.f32 %v3031, %v4388
        %v4390 = vrcp.pop %v3544
        %v4391 = vmul.f32 %v3032, %v4390
        %v4392 = vrcp.pop %v3545
        %v4393 = vmul.f32 %v3033, %v4392
        %v4394 = vrcp.pop %v3546
        %v4395 = vmul.f32 %v3034, %v4394
        %v4396 = vrcp.pop %v3547
        %v4397 = vmul.f32 %v3035, %v4396
        %v4398 = vrcp.pop %v3548
        %v4399 = vmul.f32 %v3036, %v4398
        %v4400 = vrcp.pop %v3549
        %v4401 = vmul.f32 %v3037, %v4400
        %v4402 = vrcp.pop %v3550
        %v4403 = vmul.f32 %v3038, %v4402
        %v4404 = vrcp.pop %v3551
        %v4405 = vmul.f32 %v3039, %v4404
        %v4406 = vrcp.pop %v3552
        %v4407 = vmul.f32 %v3040, %v4406
        %v4408 = vrcp.pop %v3553
        %v4409 = vmul.f32 %v3041, %v4408
        %v4410 = vrcp.pop %v3554
        %v4411 = vmul.f32 %v3042, %v4410
        %v4412 = vrcp.pop %v3555
        %v4413 = vmul.f32 %v3043, %v4412
        %v4414 = vrcp.pop %v3556
        %v4415 = vmul.f32 %v3044, %v4414
        %v4416 = vrcp.pop %v3557
        %v4417 = vmul.f32 %v3045, %v4416
        %v4418 = vrcp.pop %v3558
        %v4419 = vmul.f32 %v3046, %v4418
        %v4420 = vrcp.pop %v3559
        %v4421 = vmul.f32 %v3047, %v4420
        %v4422 = vrcp.pop %v3560
        %v4423 = vmul.f32 %v3048, %v4422
        %v4424 = vrcp.pop %v3561
        %v4425 = vmul.f32 %v3049, %v4424
        %v4426 = vrcp.pop %v3562
        %v4427 = vmul.f32 %v3050, %v4426
        %v4428 = vrcp.pop %v3563
        %v4429 = vmul.f32 %v3051, %v4428
        %v4430 = vrcp.pop %v3564
        %v4431 = vmul.f32 %v3052, %v4430
        %v4432 = vrcp.pop %v3565
        %v4433 = vmul.f32 %v3053, %v4432
        %v4434 = vrcp.pop %v3566
        %v4435 = vmul.f32 %v3054, %v4434
        %v4436 = vrcp.pop %v3567
        %v4437 = vmul.f32 %v3055, %v4436
        %v4438 = vrcp.pop %v3568
        %v4439 = vmul.f32 %v3056, %v4438
        %v4440 = vrcp.pop %v3569
        %v4441 = vmul.f32 %v3057, %v4440
        %v4442 = vrcp.pop %v3570
        %v4443 = vmul.f32 %v3058, %v4442
        %v4444 = vrcp.pop %v3571
        %v4445 = vmul.f32 %v3059, %v4444
        %v4446 = vrcp.pop %v3572
        %v4447 = vmul.f32 %v3060, %v4446
        %v4448 = vrcp.pop %v3573
        %v4449 = vmul.f32 %v3061, %v4448
        %v4450 = vrcp.pop %v3574
        %v4451 = vmul.f32 %v3062, %v4450
        %v4452 = vrcp.pop %v3575
        %v4453 = vmul.f32 %v3063, %v4452
        %v4454 = vrcp.pop %v3576
        %v4455 = vmul.f32 %v3064, %v4454
        %v4456 = vrcp.pop %v3577
        %v4457 = vmul.f32 %v3065, %v4456
        %v4458 = vrcp.pop %v3578
        %v4459 = vmul.f32 %v3066, %v4458
        %v4460 = vrcp.pop %v3579
        %v4461 = vmul.f32 %v3067, %v4460
        %v4462 = vrcp.pop %v3580
        %v4463 = vmul.f32 %v3068, %v4462
        %v4464 = vrcp.pop %v3581
        %v4465 = vmul.f32 %v3069, %v4464
        %v4466 = vrcp.pop %v3582
        %v4467 = vmul.f32 %v3070, %v4466
        %v4468 = vrcp.pop %v3583
        %v4469 = vmul.f32 %v3071, %v4468
        %v4470 = vrcp.pop %v3584
        %v4471 = vmul.f32 %v3072, %v4470
        %v4472 = vrcp.pop %v3585
        %v4473 = vmul.f32 %v3073, %v4472
        %v4474 = vrcp.pop %v3586
        %v4475 = vmul.f32 %v3074, %v4474
        %v4476 = vrcp.pop %v3587
        %v4477 = vmul.f32 %v3075, %v4476
        %v4478 = vrcp.pop %v3588
        %v4479 = vmul.f32 %v3076, %v4478
        %v4480 = vrcp.pop %v3589
        %v4481 = vmul.f32 %v3077, %v4480
        %v4482 = vrcp.pop %v3590
        %v4483 = vmul.f32 %v3078, %v4482
        %v4484 = vrcp.pop %v3591
        %v4485 = vmul.f32 %v3079, %v4484
        %v4486 = vrcp.pop %v3592
        %v4487 = vmul.f32 %v3080, %v4486
        %v4488 = vrcp.pop %v3593
        %v4489 = vmul.f32 %v3081, %v4488
        %v4490 = vrcp.pop %v3594
        %v4491 = vmul.f32 %v3082, %v4490
        %v4492 = vrcp.pop %v3595
        %v4493 = vmul.f32 %v3083, %v4492
        %v4494 = vrcp.pop %v3596
        %v4495 = vmul.f32 %v3084, %v4494
        %v4496 = vrcp.pop %v3597
        %v4497 = vmul.f32 %v3085, %v4496
        %v4498 = vrcp.pop %v3598
        %v4499 = vmul.f32 %v3086, %v4498
        %v4500 = vrcp.pop %v3599
        %v4501 = vmul.f32 %v3087, %v4500
        %v4502 = vrcp.pop %v3600
        %v4503 = vmul.f32 %v3088, %v4502
        %v4504 = vrcp.pop %v3601
        %v4505 = vmul.f32 %v3089, %v4504
        %v4506 = vrcp.pop %v3602
        %v4507 = vmul.f32 %v3090, %v4506
        %v4508 = vrcp.pop %v3603
        %v4509 = vmul.f32 %v3091, %v4508
        %v4510 = vrcp.pop %v3604
        %v4511 = vmul.f32 %v3092, %v4510
        %v4512 = vrcp.pop %v3605
        %v4513 = vmul.f32 %v3093, %v4512
        %v4514 = vrcp.pop %v3606
        %v4515 = vmul.f32 %v3094, %v4514
        %v4516 = vrcp.pop %v3607
        %v4517 = vmul.f32 %v3095, %v4516
        %v4518 = vrcp.pop %v3608
        %v4519 = vmul.f32 %v3096, %v4518
        %v4520 = vrcp.pop %v3609
        %v4521 = vmul.f32 %v3097, %v4520
        %v4522 = vrcp.pop %v3610
        %v4523 = vmul.f32 %v3098, %v4522
        %v4524 = vrcp.pop %v3611
        %v4525 = vmul.f32 %v3099, %v4524
        %v4526 = vrcp.pop %v3612
        %v4527 = vmul.f32 %v3100, %v4526
        %v4528 = vrcp.pop %v3613
        %v4529 = vmul.f32 %v3101, %v4528
        %v4530 = vrcp.pop %v3614
        %v4531 = vmul.f32 %v3102, %v4530
        %v4532 = vrcp.pop %v3615
        %v4533 = vmul.f32 %v3103, %v4532
        %v4534 = vrcp.pop %v3616
        %v4535 = vmul.f32 %v3104, %v4534
        %v4536 = vrcp.pop %v3617
        %v4537 = vmul.f32 %v3105, %v4536
        %v4538 = vrcp.pop %v3618
        %v4539 = vmul.f32 %v3106, %v4538
        %v4540 = vrcp.pop %v3619
        %v4541 = vmul.f32 %v3107, %v4540
        %v4542 = vrcp.pop %v3620
        %v4543 = vmul.f32 %v3108, %v4542
        %v4544 = vrcp.pop %v3621
        %v4545 = vmul.f32 %v3109, %v4544
        %v4546 = vrcp.pop %v3622
        %v4547 = vmul.f32 %v3110, %v4546
        %v4548 = vrcp.pop %v3623
        %v4549 = vmul.f32 %v3111, %v4548
        %v4550 = vrcp.pop %v3624
        %v4551 = vmul.f32 %v3112, %v4550
        %v4552 = vrcp.pop %v3625
        %v4553 = vmul.f32 %v3113, %v4552
        %v4554 = vrcp.pop %v3626
        %v4555 = vmul.f32 %v3114, %v4554
        %v4556 = vrcp.pop %v3627
        %v4557 = vmul.f32 %v3115, %v4556
        %v4558 = vrcp.pop %v3628
        %v4559 = vmul.f32 %v3116, %v4558
        %v4560 = vrcp.pop %v3629
        %v4561 = vmul.f32 %v3117, %v4560
        %v4562 = vrcp.pop %v3630
        %v4563 = vmul.f32 %v3118, %v4562
        %v4564 = vrcp.pop %v3631
        %v4565 = vmul.f32 %v3119, %v4564
        %v4566 = vrcp.pop %v3632
        %v4567 = vmul.f32 %v3120, %v4566
        %v4568 = vrcp.pop %v3633
        %v4569 = vmul.f32 %v3121, %v4568
        %v4570 = vrcp.pop %v3634
        %v4571 = vmul.f32 %v3122, %v4570
        %v4572 = vrcp.pop %v3635
        %v4573 = vmul.f32 %v3123, %v4572
        %v4574 = vrcp.pop %v3636
        %v4575 = vmul.f32 %v3124, %v4574
        %v4576 = vrcp.pop %v3637
        %v4577 = vmul.f32 %v3125, %v4576
        %v4578 = vrcp.pop %v3638
        %v4579 = vmul.f32 %v3126, %v4578
        %v4580 = vrcp.pop %v3639
        %v4581 = vmul.f32 %v3127, %v4580
        %v4582 = vrcp.pop %v3640
        %v4583 = vmul.f32 %v3128, %v4582
        %v4584 = vrcp.pop %v3641
        %v4585 = vmul.f32 %v3129, %v4584
        %v4586 = vrcp.pop %v3642
        %v4587 = vmul.f32 %v3130, %v4586
        %v4588 = vrcp.pop %v3643
        %v4589 = vmul.f32 %v3131, %v4588
        %v4590 = vrcp.pop %v3644
        %v4591 = vmul.f32 %v3132, %v4590
        %v4592 = vrcp.pop %v3645
        %v4593 = vmul.f32 %v3133, %v4592
        %v4594 = vrcp.pop %v3646
        %v4595 = vmul.f32 %v3134, %v4594
        %v4596 = vrcp.pop %v3647
        %v4597 = vmul.f32 %v3135, %v4596
        %v4598 = vrcp.pop %v3648
        %v4599 = vmul.f32 %v3136, %v4598
        %v4600 = vrcp.pop %v3649
        %v4601 = vmul.f32 %v3137, %v4600
        %v4602 = vrcp.pop %v3650
        %v4603 = vmul.f32 %v3138, %v4602
        %v4604 = vrcp.pop %v3651
        %v4605 = vmul.f32 %v3139, %v4604
        %v4606 = vrcp.pop %v3652
        %v4607 = vmul.f32 %v3140, %v4606
        %v4608 = vrcp.pop %v3653
        %v4609 = vmul.f32 %v3141, %v4608
        %v4610 = vrcp.pop %v3654
        %v4611 = vmul.f32 %v3142, %v4610
        %v4612 = vrcp.pop %v3655
        %v4613 = vmul.f32 %v3143, %v4612
        %v4614 = vrcp.pop %v3656
        %v4615 = vmul.f32 %v3144, %v4614
        %v4616 = vrcp.pop %v3657
        %v4617 = vmul.f32 %v3145, %v4616
        %v4618 = vrcp.pop %v3658
        %v4619 = vmul.f32 %v3146, %v4618
        %v4620 = vrcp.pop %v3659
        %v4621 = vmul.f32 %v3147, %v4620
        %v4622 = vrcp.pop %v3660
        %v4623 = vmul.f32 %v3148, %v4622
        %v4624 = vrcp.pop %v3661
        %v4625 = vmul.f32 %v3149, %v4624
        %v4626 = vrcp.pop %v3662
        %v4627 = vmul.f32 %v3150, %v4626
        %v4628 = vrcp.pop %v3663
        %v4629 = vmul.f32 %v3151, %v4628
        %v4630 = vrcp.pop %v3664
        %v4631 = vmul.f32 %v3152, %v4630
        %v4632 = vrcp.pop %v3665
        %v4633 = vmul.f32 %v3153, %v4632
        %v4634 = vrcp.pop %v3666
        %v4635 = vmul.f32 %v3154, %v4634
        %v4636 = vrcp.pop %v3667
        %v4637 = vmul.f32 %v3155, %v4636
        %v4638 = vrcp.pop %v3668
        %v4639 = vmul.f32 %v3156, %v4638
        %v4640 = vrcp.pop %v3669
        %v4641 = vmul.f32 %v3157, %v4640
        %v4642 = vrcp.pop %v3670
        %v4643 = vmul.f32 %v3158, %v4642
        %v4644 = vrcp.pop %v3671
        %v4645 = vmul.f32 %v3159, %v4644
        %v4646 = vrcp.pop %v3672
        %v4647 = vmul.f32 %v3160, %v4646
        %v4648 = vrcp.pop %v3673
        %v4649 = vmul.f32 %v3161, %v4648
        %v4650 = vrcp.pop %v3674
        %v4651 = vmul.f32 %v3162, %v4650
        %v4652 = vrcp.pop %v3675
        %v4653 = vmul.f32 %v3163, %v4652
        %v4654 = vrcp.pop %v3676
        %v4655 = vmul.f32 %v3164, %v4654
        %v4656 = vrcp.pop %v3677
        %v4657 = vmul.f32 %v3165, %v4656
        %v4658 = vrcp.pop %v3678
        %v4659 = vmul.f32 %v3166, %v4658
        %v4660 = vrcp.pop %v3679
        %v4661 = vmul.f32 %v3167, %v4660
        %v4662 = vrcp.pop %v3680
        %v4663 = vmul.f32 %v3168, %v4662
        %v4664 = vrcp.pop %v3681
        %v4665 = vmul.f32 %v3169, %v4664
        %v4666 = vrcp.pop %v3682
        %v4667 = vmul.f32 %v3170, %v4666
        %v4668 = vrcp.pop %v3683
        %v4669 = vmul.f32 %v3171, %v4668
        %v4670 = vrcp.pop %v3684
        %v4671 = vmul.f32 %v3172, %v4670
        %v4672 = vrcp.pop %v3685
        %v4673 = vmul.f32 %v3173, %v4672
        %v4674 = vrcp.pop %v3686
        %v4675 = vmul.f32 %v3174, %v4674
        %v4676 = vrcp.pop %v3687
        %v4677 = vmul.f32 %v3175, %v4676
        %v4678 = vrcp.pop %v3688
        %v4679 = vmul.f32 %v3176, %v4678
        %v4680 = vrcp.pop %v3689
        %v4681 = vmul.f32 %v3177, %v4680
        %v4682 = vrcp.pop %v3690
        %v4683 = vmul.f32 %v3178, %v4682
        %v4684 = vrcp.pop %v3691
        %v4685 = vmul.f32 %v3179, %v4684
        %v4686 = vrcp.pop %v3692
        %v4687 = vmul.f32 %v3180, %v4686
        %v4688 = vrcp.pop %v3693
        %v4689 = vmul.f32 %v3181, %v4688
        %v4690 = vrcp.pop %v3694
        %v4691 = vmul.f32 %v3182, %v4690
        %v4692 = vrcp.pop %v3695
        %v4693 = vmul.f32 %v3183, %v4692
        %v4694 = vrcp.pop %v3696
        %v4695 = vmul.f32 %v3184, %v4694
        %v4696 = vrcp.pop %v3697
        %v4697 = vmul.f32 %v3185, %v4696
        %v4698 = vrcp.pop %v3698
        %v4699 = vmul.f32 %v3186, %v4698
        %v4700 = vrcp.pop %v3699
        %v4701 = vmul.f32 %v3187, %v4700
        %v4702 = vrcp.pop %v3700
        %v4703 = vmul.f32 %v3188, %v4702
        %v4704 = vrcp.pop %v3701
        %v4705 = vmul.f32 %v3189, %v4704
        %v4706 = vrcp.pop %v3702
        %v4707 = vmul.f32 %v3190, %v4706
        %v4708 = vrcp.pop %v3703
        %v4709 = vmul.f32 %v3191, %v4708
        %v4710 = vrcp.pop %v3704
        %v4711 = vmul.f32 %v3192, %v4710
        %v4712 = vrcp.pop %v3705
        %v4713 = vmul.f32 %v3193, %v4712
        %v4714 = vrcp.pop %v3706
        %v4715 = vmul.f32 %v3194, %v4714
        %v4716 = vrcp.pop %v3707
        %v4717 = vmul.f32 %v3195, %v4716
        %v4718 = vrcp.pop %v3708
        %v4719 = vmul.f32 %v3196, %v4718
        %v4720 = vrcp.pop %v3709
        %v4721 = vmul.f32 %v3197, %v4720
        %v4722 = vrcp.pop %v3710
        %v4723 = vmul.f32 %v3198, %v4722
        %v4724 = vrcp.pop %v3711
        %v4725 = vmul.f32 %v3199, %v4724
        %v4726 = vrcp.pop %v3712
        %v4727 = vmul.f32 %v3200, %v4726
        %v4728 = vrcp.pop %v3713
        %v4729 = vmul.f32 %v3201, %v4728
        %v4730 = vrcp.pop %v3714
        %v4731 = vmul.f32 %v3202, %v4730
        %v4732 = vrcp.pop %v3715
        %v4733 = vmul.f32 %v3203, %v4732
        %v4734 = vrcp.pop %v3716
        %v4735 = vmul.f32 %v3204, %v4734
        %v4736 = vrcp.pop %v3717
        %v4737 = vmul.f32 %v3205, %v4736
        %v4738 = vrcp.pop %v3718
        %v4739 = vmul.f32 %v3206, %v4738
        %v4740 = vrcp.pop %v3719
        %v4741 = vmul.f32 %v3207, %v4740
        %v4742 = vrcp.pop %v3720
        %v4743 = vmul.f32 %v3208, %v4742
        %v4744 = vrcp.pop %v3721
        %v4745 = vmul.f32 %v3209, %v4744
        %vm4746 = vcmp.gt.f32.partialorder %v138, 20.0
        %vm4747 = vcmp.gt.f32.partialorder %v139, 20.0
        %vm4748 = vcmp.gt.f32.partialorder %v140, 20.0
        %vm4749 = vcmp.gt.f32.partialorder %v141, 20.0
        %vm4750 = vcmp.gt.f32.partialorder %v142, 20.0
        %vm4751 = vcmp.gt.f32.partialorder %v143, 20.0
        %vm4752 = vcmp.gt.f32.partialorder %v144, 20.0
        %vm4753 = vcmp.gt.f32.partialorder %v145, 20.0
        %vm4754 = vcmp.gt.f32.partialorder %v146, 20.0
        %vm4755 = vcmp.gt.f32.partialorder %v147, 20.0
        %vm4756 = vcmp.gt.f32.partialorder %v148, 20.0
        %vm4757 = vcmp.gt.f32.partialorder %v149, 20.0
        %vm4758 = vcmp.gt.f32.partialorder %v150, 20.0
        %vm4759 = vcmp.gt.f32.partialorder %v151, 20.0
        %vm4760 = vcmp.gt.f32.partialorder %v152, 20.0
        %vm4761 = vcmp.gt.f32.partialorder %v153, 20.0
        %vm4762 = vcmp.gt.f32.partialorder %v154, 20.0
        %vm4763 = vcmp.gt.f32.partialorder %v155, 20.0
        %vm4764 = vcmp.gt.f32.partialorder %v156, 20.0
        %vm4765 = vcmp.gt.f32.partialorder %v157, 20.0
        %vm4766 = vcmp.gt.f32.partialorder %v158, 20.0
        %vm4767 = vcmp.gt.f32.partialorder %v159, 20.0
        %vm4768 = vcmp.gt.f32.partialorder %v160, 20.0
        %vm4769 = vcmp.gt.f32.partialorder %v161, 20.0
        %vm4770 = vcmp.gt.f32.partialorder %v162, 20.0
        %vm4771 = vcmp.gt.f32.partialorder %v163, 20.0
        %vm4772 = vcmp.gt.f32.partialorder %v164, 20.0
        %vm4773 = vcmp.gt.f32.partialorder %v165, 20.0
        %vm4774 = vcmp.gt.f32.partialorder %v166, 20.0
        %vm4775 = vcmp.gt.f32.partialorder %v167, 20.0
        %vm4776 = vcmp.gt.f32.partialorder %v168, 20.0
        %vm4777 = vcmp.gt.f32.partialorder %v169, 20.0
        %vm4778 = vcmp.gt.f32.partialorder %v170, 20.0
        %vm4779 = vcmp.gt.f32.partialorder %v171, 20.0
        %vm4780 = vcmp.gt.f32.partialorder %v172, 20.0
        %vm4781 = vcmp.gt.f32.partialorder %v173, 20.0
        %vm4782 = vcmp.gt.f32.partialorder %v174, 20.0
        %vm4783 = vcmp.gt.f32.partialorder %v175, 20.0
        %vm4784 = vcmp.gt.f32.partialorder %v176, 20.0
        %vm4785 = vcmp.gt.f32.partialorder %v177, 20.0
        %vm4786 = vcmp.gt.f32.partialorder %v178, 20.0
        %vm4787 = vcmp.gt.f32.partialorder %v179, 20.0
        %vm4788 = vcmp.gt.f32.partialorder %v180, 20.0
        %vm4789 = vcmp.gt.f32.partialorder %v181, 20.0
        %vm4790 = vcmp.gt.f32.partialorder %v182, 20.0
        %vm4791 = vcmp.gt.f32.partialorder %v183, 20.0
        %vm4792 = vcmp.gt.f32.partialorder %v184, 20.0
        %vm4793 = vcmp.gt.f32.partialorder %v185, 20.0
        %vm4794 = vcmp.gt.f32.partialorder %v186, 20.0
        %vm4795 = vcmp.gt.f32.partialorder %v187, 20.0
        %vm4796 = vcmp.gt.f32.partialorder %v188, 20.0
        %vm4797 = vcmp.gt.f32.partialorder %v189, 20.0
        %vm4798 = vcmp.gt.f32.partialorder %v190, 20.0
        %vm4799 = vcmp.gt.f32.partialorder %v191, 20.0
        %vm4800 = vcmp.gt.f32.partialorder %v192, 20.0
        %vm4801 = vcmp.gt.f32.partialorder %v193, 20.0
        %vm4802 = vcmp.gt.f32.partialorder %v194, 20.0
        %vm4803 = vcmp.gt.f32.partialorder %v195, 20.0
        %vm4804 = vcmp.gt.f32.partialorder %v196, 20.0
        %vm4805 = vcmp.gt.f32.partialorder %v197, 20.0
        %vm4806 = vcmp.gt.f32.partialorder %v198, 20.0
        %vm4807 = vcmp.gt.f32.partialorder %v199, 20.0
        %vm4808 = vcmp.gt.f32.partialorder %v200, 20.0
        %vm4809 = vcmp.gt.f32.partialorder %v201, 20.0
        %vm4810 = vcmp.gt.f32.partialorder %v202, 20.0
        %vm4811 = vcmp.gt.f32.partialorder %v203, 20.0
        %vm4812 = vcmp.gt.f32.partialorder %v204, 20.0
        %vm4813 = vcmp.gt.f32.partialorder %v205, 20.0
        %vm4814 = vcmp.gt.f32.partialorder %v206, 20.0
        %vm4815 = vcmp.gt.f32.partialorder %v207, 20.0
        %vm4816 = vcmp.gt.f32.partialorder %v208, 20.0
        %vm4817 = vcmp.gt.f32.partialorder %v209, 20.0
        %vm4818 = vcmp.gt.f32.partialorder %v210, 20.0
        %vm4819 = vcmp.gt.f32.partialorder %v211, 20.0
        %vm4820 = vcmp.gt.f32.partialorder %v212, 20.0
        %vm4821 = vcmp.gt.f32.partialorder %v213, 20.0
        %vm4822 = vcmp.gt.f32.partialorder %v214, 20.0
        %vm4823 = vcmp.gt.f32.partialorder %v215, 20.0
        %vm4824 = vcmp.gt.f32.partialorder %v216, 20.0
        %vm4825 = vcmp.gt.f32.partialorder %v217, 20.0
        %vm4826 = vcmp.gt.f32.partialorder %v218, 20.0
        %vm4827 = vcmp.gt.f32.partialorder %v219, 20.0
        %vm4828 = vcmp.gt.f32.partialorder %v220, 20.0
        %vm4829 = vcmp.gt.f32.partialorder %v221, 20.0
        %vm4830 = vcmp.gt.f32.partialorder %v222, 20.0
        %vm4831 = vcmp.gt.f32.partialorder %v223, 20.0
        %vm4832 = vcmp.gt.f32.partialorder %v224, 20.0
        %vm4833 = vcmp.gt.f32.partialorder %v225, 20.0
        %vm4834 = vcmp.gt.f32.partialorder %v226, 20.0
        %vm4835 = vcmp.gt.f32.partialorder %v227, 20.0
        %vm4836 = vcmp.gt.f32.partialorder %v228, 20.0
        %vm4837 = vcmp.gt.f32.partialorder %v229, 20.0
        %vm4838 = vcmp.gt.f32.partialorder %v230, 20.0
        %vm4839 = vcmp.gt.f32.partialorder %v231, 20.0
        %vm4840 = vcmp.gt.f32.partialorder %v232, 20.0
        %vm4841 = vcmp.gt.f32.partialorder %v233, 20.0
        %vm4842 = vcmp.gt.f32.partialorder %v234, 20.0
        %vm4843 = vcmp.gt.f32.partialorder %v235, 20.0
        %vm4844 = vcmp.gt.f32.partialorder %v236, 20.0
        %vm4845 = vcmp.gt.f32.partialorder %v237, 20.0
        %vm4846 = vcmp.gt.f32.partialorder %v238, 20.0
        %vm4847 = vcmp.gt.f32.partialorder %v239, 20.0
        %vm4848 = vcmp.gt.f32.partialorder %v240, 20.0
        %vm4849 = vcmp.gt.f32.partialorder %v241, 20.0
        %vm4850 = vcmp.gt.f32.partialorder %v242, 20.0
        %vm4851 = vcmp.gt.f32.partialorder %v243, 20.0
        %vm4852 = vcmp.gt.f32.partialorder %v244, 20.0
        %vm4853 = vcmp.gt.f32.partialorder %v245, 20.0
        %vm4854 = vcmp.gt.f32.partialorder %v246, 20.0
        %vm4855 = vcmp.gt.f32.partialorder %v247, 20.0
        %vm4856 = vcmp.gt.f32.partialorder %v248, 20.0
        %vm4857 = vcmp.gt.f32.partialorder %v249, 20.0
        %vm4858 = vcmp.gt.f32.partialorder %v250, 20.0
        %vm4859 = vcmp.gt.f32.partialorder %v251, 20.0
        %vm4860 = vcmp.gt.f32.partialorder %v252, 20.0
        %vm4861 = vcmp.gt.f32.partialorder %v253, 20.0
        %vm4862 = vcmp.gt.f32.partialorder %v254, 20.0
        %vm4863 = vcmp.gt.f32.partialorder %v255, 20.0
        %vm4864 = vcmp.gt.f32.partialorder %v256, 20.0
        %vm4865 = vcmp.gt.f32.partialorder %v257, 20.0
        %vm4866 = vcmp.gt.f32.partialorder %v258, 20.0
        %vm4867 = vcmp.gt.f32.partialorder %v259, 20.0
        %vm4868 = vcmp.gt.f32.partialorder %v260, 20.0
        %vm4869 = vcmp.gt.f32.partialorder %v261, 20.0
        %vm4870 = vcmp.gt.f32.partialorder %v262, 20.0
        %vm4871 = vcmp.gt.f32.partialorder %v263, 20.0
        %vm4872 = vcmp.gt.f32.partialorder %v264, 20.0
        %vm4873 = vcmp.gt.f32.partialorder %v265, 20.0
        %vm4874 = vcmp.gt.f32.partialorder %v266, 20.0
        %vm4875 = vcmp.gt.f32.partialorder %v267, 20.0
        %vm4876 = vcmp.gt.f32.partialorder %v268, 20.0
        %vm4877 = vcmp.gt.f32.partialorder %v269, 20.0
        %vm4878 = vcmp.gt.f32.partialorder %v270, 20.0
        %vm4879 = vcmp.gt.f32.partialorder %v271, 20.0
        %vm4880 = vcmp.gt.f32.partialorder %v272, 20.0
        %vm4881 = vcmp.gt.f32.partialorder %v273, 20.0
        %vm4882 = vcmp.gt.f32.partialorder %v274, 20.0
        %vm4883 = vcmp.gt.f32.partialorder %v275, 20.0
        %vm4884 = vcmp.gt.f32.partialorder %v276, 20.0
        %vm4885 = vcmp.gt.f32.partialorder %v277, 20.0
        %vm4886 = vcmp.gt.f32.partialorder %v278, 20.0
        %vm4887 = vcmp.gt.f32.partialorder %v279, 20.0
        %vm4888 = vcmp.gt.f32.partialorder %v280, 20.0
        %vm4889 = vcmp.gt.f32.partialorder %v281, 20.0
        %vm4890 = vcmp.gt.f32.partialorder %v282, 20.0
        %vm4891 = vcmp.gt.f32.partialorder %v283, 20.0
        %vm4892 = vcmp.gt.f32.partialorder %v284, 20.0
        %vm4893 = vcmp.gt.f32.partialorder %v285, 20.0
        %vm4894 = vcmp.gt.f32.partialorder %v286, 20.0
        %vm4895 = vcmp.gt.f32.partialorder %v287, 20.0
        %vm4896 = vcmp.gt.f32.partialorder %v288, 20.0
        %vm4897 = vcmp.gt.f32.partialorder %v289, 20.0
        %vm4898 = vcmp.gt.f32.partialorder %v290, 20.0
        %vm4899 = vcmp.gt.f32.partialorder %v291, 20.0
        %vm4900 = vcmp.gt.f32.partialorder %v292, 20.0
        %vm4901 = vcmp.gt.f32.partialorder %v293, 20.0
        %vm4902 = vcmp.gt.f32.partialorder %v294, 20.0
        %vm4903 = vcmp.gt.f32.partialorder %v295, 20.0
        %vm4904 = vcmp.gt.f32.partialorder %v296, 20.0
        %vm4905 = vcmp.gt.f32.partialorder %v297, 20.0
        %vm4906 = vcmp.gt.f32.partialorder %v298, 20.0
        %vm4907 = vcmp.gt.f32.partialorder %v299, 20.0
        %vm4908 = vcmp.gt.f32.partialorder %v300, 20.0
        %vm4909 = vcmp.gt.f32.partialorder %v301, 20.0
        %vm4910 = vcmp.gt.f32.partialorder %v302, 20.0
        %vm4911 = vcmp.gt.f32.partialorder %v303, 20.0
        %vm4912 = vcmp.gt.f32.partialorder %v304, 20.0
        %vm4913 = vcmp.gt.f32.partialorder %v305, 20.0
        %vm4914 = vcmp.gt.f32.partialorder %v306, 20.0
        %vm4915 = vcmp.gt.f32.partialorder %v307, 20.0
        %vm4916 = vcmp.gt.f32.partialorder %v308, 20.0
        %vm4917 = vcmp.gt.f32.partialorder %v309, 20.0
        %vm4918 = vcmp.gt.f32.partialorder %v310, 20.0
        %vm4919 = vcmp.gt.f32.partialorder %v311, 20.0
        %vm4920 = vcmp.gt.f32.partialorder %v312, 20.0
        %vm4921 = vcmp.gt.f32.partialorder %v313, 20.0
        %vm4922 = vcmp.gt.f32.partialorder %v314, 20.0
        %vm4923 = vcmp.gt.f32.partialorder %v315, 20.0
        %vm4924 = vcmp.gt.f32.partialorder %v316, 20.0
        %vm4925 = vcmp.gt.f32.partialorder %v317, 20.0
        %vm4926 = vcmp.gt.f32.partialorder %v318, 20.0
        %vm4927 = vcmp.gt.f32.partialorder %v319, 20.0
        %vm4928 = vcmp.gt.f32.partialorder %v320, 20.0
        %vm4929 = vcmp.gt.f32.partialorder %v321, 20.0
        %vm4930 = vcmp.gt.f32.partialorder %v322, 20.0
        %vm4931 = vcmp.gt.f32.partialorder %v323, 20.0
        %vm4932 = vcmp.gt.f32.partialorder %v324, 20.0
        %vm4933 = vcmp.gt.f32.partialorder %v325, 20.0
        %vm4934 = vcmp.gt.f32.partialorder %v326, 20.0
        %vm4935 = vcmp.gt.f32.partialorder %v327, 20.0
        %vm4936 = vcmp.gt.f32.partialorder %v328, 20.0
        %vm4937 = vcmp.gt.f32.partialorder %v329, 20.0
        %vm4938 = vcmp.gt.f32.partialorder %v330, 20.0
        %vm4939 = vcmp.gt.f32.partialorder %v331, 20.0
        %vm4940 = vcmp.gt.f32.partialorder %v332, 20.0
        %vm4941 = vcmp.gt.f32.partialorder %v333, 20.0
        %vm4942 = vcmp.gt.f32.partialorder %v334, 20.0
        %vm4943 = vcmp.gt.f32.partialorder %v335, 20.0
        %vm4944 = vcmp.gt.f32.partialorder %v336, 20.0
        %vm4945 = vcmp.gt.f32.partialorder %v337, 20.0
        %vm4946 = vcmp.gt.f32.partialorder %v338, 20.0
        %vm4947 = vcmp.gt.f32.partialorder %v339, 20.0
        %vm4948 = vcmp.gt.f32.partialorder %v340, 20.0
        %vm4949 = vcmp.gt.f32.partialorder %v341, 20.0
        %vm4950 = vcmp.gt.f32.partialorder %v342, 20.0
        %vm4951 = vcmp.gt.f32.partialorder %v343, 20.0
        %vm4952 = vcmp.gt.f32.partialorder %v344, 20.0
        %vm4953 = vcmp.gt.f32.partialorder %v345, 20.0
        %vm4954 = vcmp.gt.f32.partialorder %v346, 20.0
        %vm4955 = vcmp.gt.f32.partialorder %v347, 20.0
        %vm4956 = vcmp.gt.f32.partialorder %v348, 20.0
        %vm4957 = vcmp.gt.f32.partialorder %v349, 20.0
        %vm4958 = vcmp.gt.f32.partialorder %v350, 20.0
        %vm4959 = vcmp.gt.f32.partialorder %v351, 20.0
        %vm4960 = vcmp.gt.f32.partialorder %v352, 20.0
        %vm4961 = vcmp.gt.f32.partialorder %v353, 20.0
        %vm4962 = vcmp.gt.f32.partialorder %v354, 20.0
        %vm4963 = vcmp.gt.f32.partialorder %v355, 20.0
        %vm4964 = vcmp.gt.f32.partialorder %v356, 20.0
        %vm4965 = vcmp.gt.f32.partialorder %v357, 20.0
        %vm4966 = vcmp.gt.f32.partialorder %v358, 20.0
        %vm4967 = vcmp.gt.f32.partialorder %v359, 20.0
        %vm4968 = vcmp.gt.f32.partialorder %v360, 20.0
        %vm4969 = vcmp.gt.f32.partialorder %v361, 20.0
        %vm4970 = vcmp.gt.f32.partialorder %v362, 20.0
        %vm4971 = vcmp.gt.f32.partialorder %v363, 20.0
        %vm4972 = vcmp.gt.f32.partialorder %v364, 20.0
        %vm4973 = vcmp.gt.f32.partialorder %v365, 20.0
        %vm4974 = vcmp.gt.f32.partialorder %v366, 20.0
        %vm4975 = vcmp.gt.f32.partialorder %v367, 20.0
        %vm4976 = vcmp.gt.f32.partialorder %v368, 20.0
        %vm4977 = vcmp.gt.f32.partialorder %v369, 20.0
        %vm4978 = vcmp.gt.f32.partialorder %v370, 20.0
        %vm4979 = vcmp.gt.f32.partialorder %v371, 20.0
        %vm4980 = vcmp.gt.f32.partialorder %v372, 20.0
        %vm4981 = vcmp.gt.f32.partialorder %v373, 20.0
        %vm4982 = vcmp.gt.f32.partialorder %v374, 20.0
        %vm4983 = vcmp.gt.f32.partialorder %v375, 20.0
        %vm4984 = vcmp.gt.f32.partialorder %v376, 20.0
        %vm4985 = vcmp.gt.f32.partialorder %v377, 20.0
        %vm4986 = vcmp.gt.f32.partialorder %v378, 20.0
        %vm4987 = vcmp.gt.f32.partialorder %v379, 20.0
        %vm4988 = vcmp.gt.f32.partialorder %v380, 20.0
        %vm4989 = vcmp.gt.f32.partialorder %v381, 20.0
        %vm4990 = vcmp.gt.f32.partialorder %v382, 20.0
        %vm4991 = vcmp.gt.f32.partialorder %v383, 20.0
        %vm4992 = vcmp.gt.f32.partialorder %v384, 20.0
        %vm4993 = vcmp.gt.f32.partialorder %v385, 20.0
        %vm4994 = vcmp.gt.f32.partialorder %v386, 20.0
        %vm4995 = vcmp.gt.f32.partialorder %v387, 20.0
        %vm4996 = vcmp.gt.f32.partialorder %v388, 20.0
        %vm4997 = vcmp.gt.f32.partialorder %v389, 20.0
        %vm4998 = vcmp.gt.f32.partialorder %v390, 20.0
        %vm4999 = vcmp.gt.f32.partialorder %v391, 20.0
        %vm5000 = vcmp.gt.f32.partialorder %v392, 20.0
        %vm5001 = vcmp.gt.f32.partialorder %v393, 20.0
        %vm5002 = vcmp.gt.f32.partialorder %v394, 20.0
        %vm5003 = vcmp.gt.f32.partialorder %v395, 20.0
        %vm5004 = vcmp.gt.f32.partialorder %v396, 20.0
        %vm5005 = vcmp.gt.f32.partialorder %v397, 20.0
        %vm5006 = vcmp.gt.f32.partialorder %v398, 20.0
        %vm5007 = vcmp.gt.f32.partialorder %v399, 20.0
        %vm5008 = vcmp.gt.f32.partialorder %v400, 20.0
        %vm5009 = vcmp.gt.f32.partialorder %v401, 20.0
        %vm5010 = vcmp.gt.f32.partialorder %v402, 20.0
        %vm5011 = vcmp.gt.f32.partialorder %v403, 20.0
        %vm5012 = vcmp.gt.f32.partialorder %v404, 20.0
        %vm5013 = vcmp.gt.f32.partialorder %v405, 20.0
        %vm5014 = vcmp.gt.f32.partialorder %v406, 20.0
        %vm5015 = vcmp.gt.f32.partialorder %v407, 20.0
        %vm5016 = vcmp.gt.f32.partialorder %v408, 20.0
        %vm5017 = vcmp.gt.f32.partialorder %v409, 20.0
        %vm5018 = vcmp.gt.f32.partialorder %v410, 20.0
        %vm5019 = vcmp.gt.f32.partialorder %v411, 20.0
        %vm5020 = vcmp.gt.f32.partialorder %v412, 20.0
        %vm5021 = vcmp.gt.f32.partialorder %v413, 20.0
        %vm5022 = vcmp.gt.f32.partialorder %v414, 20.0
        %vm5023 = vcmp.gt.f32.partialorder %v415, 20.0
        %vm5024 = vcmp.gt.f32.partialorder %v416, 20.0
        %vm5025 = vcmp.gt.f32.partialorder %v417, 20.0
        %vm5026 = vcmp.gt.f32.partialorder %v418, 20.0
        %vm5027 = vcmp.gt.f32.partialorder %v419, 20.0
        %vm5028 = vcmp.gt.f32.partialorder %v420, 20.0
        %vm5029 = vcmp.gt.f32.partialorder %v421, 20.0
        %vm5030 = vcmp.gt.f32.partialorder %v422, 20.0
        %vm5031 = vcmp.gt.f32.partialorder %v423, 20.0
        %vm5032 = vcmp.gt.f32.partialorder %v424, 20.0
        %vm5033 = vcmp.gt.f32.partialorder %v425, 20.0
        %vm5034 = vcmp.gt.f32.partialorder %v426, 20.0
        %vm5035 = vcmp.gt.f32.partialorder %v427, 20.0
        %vm5036 = vcmp.gt.f32.partialorder %v428, 20.0
        %vm5037 = vcmp.gt.f32.partialorder %v429, 20.0
        %vm5038 = vcmp.gt.f32.partialorder %v430, 20.0
        %vm5039 = vcmp.gt.f32.partialorder %v431, 20.0
        %vm5040 = vcmp.gt.f32.partialorder %v432, 20.0
        %vm5041 = vcmp.gt.f32.partialorder %v433, 20.0
        %vm5042 = vcmp.gt.f32.partialorder %v434, 20.0
        %vm5043 = vcmp.gt.f32.partialorder %v435, 20.0
        %vm5044 = vcmp.gt.f32.partialorder %v436, 20.0
        %vm5045 = vcmp.gt.f32.partialorder %v437, 20.0
        %vm5046 = vcmp.gt.f32.partialorder %v438, 20.0
        %vm5047 = vcmp.gt.f32.partialorder %v439, 20.0
        %vm5048 = vcmp.gt.f32.partialorder %v440, 20.0
        %vm5049 = vcmp.gt.f32.partialorder %v441, 20.0
        %vm5050 = vcmp.gt.f32.partialorder %v442, 20.0
        %vm5051 = vcmp.gt.f32.partialorder %v443, 20.0
        %vm5052 = vcmp.gt.f32.partialorder %v444, 20.0
        %vm5053 = vcmp.gt.f32.partialorder %v445, 20.0
        %vm5054 = vcmp.gt.f32.partialorder %v446, 20.0
        %vm5055 = vcmp.gt.f32.partialorder %v447, 20.0
        %vm5056 = vcmp.gt.f32.partialorder %v448, 20.0
        %vm5057 = vcmp.gt.f32.partialorder %v449, 20.0
        %vm5058 = vcmp.gt.f32.partialorder %v450, 20.0
        %vm5059 = vcmp.gt.f32.partialorder %v451, 20.0
        %vm5060 = vcmp.gt.f32.partialorder %v452, 20.0
        %vm5061 = vcmp.gt.f32.partialorder %v453, 20.0
        %vm5062 = vcmp.gt.f32.partialorder %v454, 20.0
        %vm5063 = vcmp.gt.f32.partialorder %v455, 20.0
        %vm5064 = vcmp.gt.f32.partialorder %v456, 20.0
        %vm5065 = vcmp.gt.f32.partialorder %v457, 20.0
        %vm5066 = vcmp.gt.f32.partialorder %v458, 20.0
        %vm5067 = vcmp.gt.f32.partialorder %v459, 20.0
        %vm5068 = vcmp.gt.f32.partialorder %v460, 20.0
        %vm5069 = vcmp.gt.f32.partialorder %v461, 20.0
        %vm5070 = vcmp.gt.f32.partialorder %v462, 20.0
        %vm5071 = vcmp.gt.f32.partialorder %v463, 20.0
        %vm5072 = vcmp.gt.f32.partialorder %v464, 20.0
        %vm5073 = vcmp.gt.f32.partialorder %v465, 20.0
        %vm5074 = vcmp.gt.f32.partialorder %v466, 20.0
        %vm5075 = vcmp.gt.f32.partialorder %v467, 20.0
        %vm5076 = vcmp.gt.f32.partialorder %v468, 20.0
        %vm5077 = vcmp.gt.f32.partialorder %v469, 20.0
        %vm5078 = vcmp.gt.f32.partialorder %v470, 20.0
        %vm5079 = vcmp.gt.f32.partialorder %v471, 20.0
        %vm5080 = vcmp.gt.f32.partialorder %v472, 20.0
        %vm5081 = vcmp.gt.f32.partialorder %v473, 20.0
        %vm5082 = vcmp.gt.f32.partialorder %v474, 20.0
        %vm5083 = vcmp.gt.f32.partialorder %v475, 20.0
        %vm5084 = vcmp.gt.f32.partialorder %v476, 20.0
        %vm5085 = vcmp.gt.f32.partialorder %v477, 20.0
        %vm5086 = vcmp.gt.f32.partialorder %v478, 20.0
        %vm5087 = vcmp.gt.f32.partialorder %v479, 20.0
        %vm5088 = vcmp.gt.f32.partialorder %v480, 20.0
        %vm5089 = vcmp.gt.f32.partialorder %v481, 20.0
        %vm5090 = vcmp.gt.f32.partialorder %v482, 20.0
        %vm5091 = vcmp.gt.f32.partialorder %v483, 20.0
        %vm5092 = vcmp.gt.f32.partialorder %v484, 20.0
        %vm5093 = vcmp.gt.f32.partialorder %v485, 20.0
        %vm5094 = vcmp.gt.f32.partialorder %v486, 20.0
        %vm5095 = vcmp.gt.f32.partialorder %v487, 20.0
        %vm5096 = vcmp.gt.f32.partialorder %v488, 20.0
        %vm5097 = vcmp.gt.f32.partialorder %v489, 20.0
        %vm5098 = vcmp.gt.f32.partialorder %v490, 20.0
        %vm5099 = vcmp.gt.f32.partialorder %v491, 20.0
        %vm5100 = vcmp.gt.f32.partialorder %v492, 20.0
        %vm5101 = vcmp.gt.f32.partialorder %v493, 20.0
        %vm5102 = vcmp.gt.f32.partialorder %v494, 20.0
        %vm5103 = vcmp.gt.f32.partialorder %v495, 20.0
        %vm5104 = vcmp.gt.f32.partialorder %v496, 20.0
        %vm5105 = vcmp.gt.f32.partialorder %v497, 20.0
        %vm5106 = vcmp.gt.f32.partialorder %v498, 20.0
        %vm5107 = vcmp.gt.f32.partialorder %v499, 20.0
        %vm5108 = vcmp.gt.f32.partialorder %v500, 20.0
        %vm5109 = vcmp.gt.f32.partialorder %v501, 20.0
        %vm5110 = vcmp.gt.f32.partialorder %v502, 20.0
        %vm5111 = vcmp.gt.f32.partialorder %v503, 20.0
        %vm5112 = vcmp.gt.f32.partialorder %v504, 20.0
        %vm5113 = vcmp.gt.f32.partialorder %v505, 20.0
        %vm5114 = vcmp.gt.f32.partialorder %v506, 20.0
        %vm5115 = vcmp.gt.f32.partialorder %v507, 20.0
        %vm5116 = vcmp.gt.f32.partialorder %v508, 20.0
        %vm5117 = vcmp.gt.f32.partialorder %v509, 20.0
        %vm5118 = vcmp.gt.f32.partialorder %v510, 20.0
        %vm5119 = vcmp.gt.f32.partialorder %v511, 20.0
        %vm5120 = vcmp.gt.f32.partialorder %v512, 20.0
        %vm5121 = vcmp.gt.f32.partialorder %v513, 20.0
        %vm5122 = vcmp.gt.f32.partialorder %v514, 20.0
        %vm5123 = vcmp.gt.f32.partialorder %v515, 20.0
        %vm5124 = vcmp.gt.f32.partialorder %v516, 20.0
        %vm5125 = vcmp.gt.f32.partialorder %v517, 20.0
        %vm5126 = vcmp.gt.f32.partialorder %v518, 20.0
        %vm5127 = vcmp.gt.f32.partialorder %v519, 20.0
        %vm5128 = vcmp.gt.f32.partialorder %v520, 20.0
        %vm5129 = vcmp.gt.f32.partialorder %v521, 20.0
        %vm5130 = vcmp.gt.f32.partialorder %v522, 20.0
        %vm5131 = vcmp.gt.f32.partialorder %v523, 20.0
        %vm5132 = vcmp.gt.f32.partialorder %v524, 20.0
        %vm5133 = vcmp.gt.f32.partialorder %v525, 20.0
        %vm5134 = vcmp.gt.f32.partialorder %v526, 20.0
        %vm5135 = vcmp.gt.f32.partialorder %v527, 20.0
        %vm5136 = vcmp.gt.f32.partialorder %v528, 20.0
        %vm5137 = vcmp.gt.f32.partialorder %v529, 20.0
        %vm5138 = vcmp.gt.f32.partialorder %v530, 20.0
        %vm5139 = vcmp.gt.f32.partialorder %v531, 20.0
        %vm5140 = vcmp.gt.f32.partialorder %v532, 20.0
        %vm5141 = vcmp.gt.f32.partialorder %v533, 20.0
        %vm5142 = vcmp.gt.f32.partialorder %v534, 20.0
        %vm5143 = vcmp.gt.f32.partialorder %v535, 20.0
        %vm5144 = vcmp.gt.f32.partialorder %v536, 20.0
        %vm5145 = vcmp.gt.f32.partialorder %v537, 20.0
        %vm5146 = vcmp.gt.f32.partialorder %v538, 20.0
        %vm5147 = vcmp.gt.f32.partialorder %v539, 20.0
        %vm5148 = vcmp.gt.f32.partialorder %v540, 20.0
        %vm5149 = vcmp.gt.f32.partialorder %v541, 20.0
        %vm5150 = vcmp.gt.f32.partialorder %v542, 20.0
        %vm5151 = vcmp.gt.f32.partialorder %v543, 20.0
        %vm5152 = vcmp.gt.f32.partialorder %v544, 20.0
        %vm5153 = vcmp.gt.f32.partialorder %v545, 20.0
        %vm5154 = vcmp.gt.f32.partialorder %v546, 20.0
        %vm5155 = vcmp.gt.f32.partialorder %v547, 20.0
        %vm5156 = vcmp.gt.f32.partialorder %v548, 20.0
        %vm5157 = vcmp.gt.f32.partialorder %v549, 20.0
        %vm5158 = vcmp.gt.f32.partialorder %v550, 20.0
        %vm5159 = vcmp.gt.f32.partialorder %v551, 20.0
        %vm5160 = vcmp.gt.f32.partialorder %v552, 20.0
        %vm5161 = vcmp.gt.f32.partialorder %v553, 20.0
        %vm5162 = vcmp.gt.f32.partialorder %v554, 20.0
        %vm5163 = vcmp.gt.f32.partialorder %v555, 20.0
        %vm5164 = vcmp.gt.f32.partialorder %v556, 20.0
        %vm5165 = vcmp.gt.f32.partialorder %v557, 20.0
        %vm5166 = vcmp.gt.f32.partialorder %v558, 20.0
        %vm5167 = vcmp.gt.f32.partialorder %v559, 20.0
        %vm5168 = vcmp.gt.f32.partialorder %v560, 20.0
        %vm5169 = vcmp.gt.f32.partialorder %v561, 20.0
        %vm5170 = vcmp.gt.f32.partialorder %v562, 20.0
        %vm5171 = vcmp.gt.f32.partialorder %v563, 20.0
        %vm5172 = vcmp.gt.f32.partialorder %v564, 20.0
        %vm5173 = vcmp.gt.f32.partialorder %v565, 20.0
        %vm5174 = vcmp.gt.f32.partialorder %v566, 20.0
        %vm5175 = vcmp.gt.f32.partialorder %v567, 20.0
        %vm5176 = vcmp.gt.f32.partialorder %v568, 20.0
        %vm5177 = vcmp.gt.f32.partialorder %v569, 20.0
        %vm5178 = vcmp.gt.f32.partialorder %v570, 20.0
        %vm5179 = vcmp.gt.f32.partialorder %v571, 20.0
        %vm5180 = vcmp.gt.f32.partialorder %v572, 20.0
        %vm5181 = vcmp.gt.f32.partialorder %v573, 20.0
        %vm5182 = vcmp.gt.f32.partialorder %v574, 20.0
        %vm5183 = vcmp.gt.f32.partialorder %v575, 20.0
        %vm5184 = vcmp.gt.f32.partialorder %v576, 20.0
        %vm5185 = vcmp.gt.f32.partialorder %v577, 20.0
        %vm5186 = vcmp.gt.f32.partialorder %v578, 20.0
        %vm5187 = vcmp.gt.f32.partialorder %v579, 20.0
        %vm5188 = vcmp.gt.f32.partialorder %v580, 20.0
        %vm5189 = vcmp.gt.f32.partialorder %v581, 20.0
        %vm5190 = vcmp.gt.f32.partialorder %v582, 20.0
        %vm5191 = vcmp.gt.f32.partialorder %v583, 20.0
        %vm5192 = vcmp.gt.f32.partialorder %v584, 20.0
        %vm5193 = vcmp.gt.f32.partialorder %v585, 20.0
        %vm5194 = vcmp.gt.f32.partialorder %v586, 20.0
        %vm5195 = vcmp.gt.f32.partialorder %v587, 20.0
        %vm5196 = vcmp.gt.f32.partialorder %v588, 20.0
        %vm5197 = vcmp.gt.f32.partialorder %v589, 20.0
        %vm5198 = vcmp.gt.f32.partialorder %v590, 20.0
        %vm5199 = vcmp.gt.f32.partialorder %v591, 20.0
        %vm5200 = vcmp.gt.f32.partialorder %v592, 20.0
        %vm5201 = vcmp.gt.f32.partialorder %v593, 20.0
        %vm5202 = vcmp.gt.f32.partialorder %v594, 20.0
        %vm5203 = vcmp.gt.f32.partialorder %v595, 20.0
        %vm5204 = vcmp.gt.f32.partialorder %v596, 20.0
        %vm5205 = vcmp.gt.f32.partialorder %v597, 20.0
        %vm5206 = vcmp.gt.f32.partialorder %v598, 20.0
        %vm5207 = vcmp.gt.f32.partialorder %v599, 20.0
        %vm5208 = vcmp.gt.f32.partialorder %v600, 20.0
        %vm5209 = vcmp.gt.f32.partialorder %v601, 20.0
        %vm5210 = vcmp.gt.f32.partialorder %v602, 20.0
        %vm5211 = vcmp.gt.f32.partialorder %v603, 20.0
        %vm5212 = vcmp.gt.f32.partialorder %v604, 20.0
        %vm5213 = vcmp.gt.f32.partialorder %v605, 20.0
        %vm5214 = vcmp.gt.f32.partialorder %v606, 20.0
        %vm5215 = vcmp.gt.f32.partialorder %v607, 20.0
        %vm5216 = vcmp.gt.f32.partialorder %v608, 20.0
        %vm5217 = vcmp.gt.f32.partialorder %v609, 20.0
        %vm5218 = vcmp.gt.f32.partialorder %v610, 20.0
        %vm5219 = vcmp.gt.f32.partialorder %v611, 20.0
        %vm5220 = vcmp.gt.f32.partialorder %v612, 20.0
        %vm5221 = vcmp.gt.f32.partialorder %v613, 20.0
        %vm5222 = vcmp.gt.f32.partialorder %v614, 20.0
        %vm5223 = vcmp.gt.f32.partialorder %v615, 20.0
        %vm5224 = vcmp.gt.f32.partialorder %v616, 20.0
        %vm5225 = vcmp.gt.f32.partialorder %v617, 20.0
        %vm5226 = vcmp.gt.f32.partialorder %v618, 20.0
        %vm5227 = vcmp.gt.f32.partialorder %v619, 20.0
        %vm5228 = vcmp.gt.f32.partialorder %v620, 20.0
        %vm5229 = vcmp.gt.f32.partialorder %v621, 20.0
        %vm5230 = vcmp.gt.f32.partialorder %v622, 20.0
        %vm5231 = vcmp.gt.f32.partialorder %v623, 20.0
        %vm5232 = vcmp.gt.f32.partialorder %v624, 20.0
        %vm5233 = vcmp.gt.f32.partialorder %v625, 20.0
        %vm5234 = vcmp.gt.f32.partialorder %v626, 20.0
        %vm5235 = vcmp.gt.f32.partialorder %v627, 20.0
        %vm5236 = vcmp.gt.f32.partialorder %v628, 20.0
        %vm5237 = vcmp.gt.f32.partialorder %v629, 20.0
        %vm5238 = vcmp.gt.f32.partialorder %v630, 20.0
        %vm5239 = vcmp.gt.f32.partialorder %v631, 20.0
        %vm5240 = vcmp.gt.f32.partialorder %v632, 20.0
        %vm5241 = vcmp.gt.f32.partialorder %v633, 20.0
        %vm5242 = vcmp.gt.f32.partialorder %v634, 20.0
        %vm5243 = vcmp.gt.f32.partialorder %v635, 20.0
        %vm5244 = vcmp.gt.f32.partialorder %v636, 20.0
        %vm5245 = vcmp.gt.f32.partialorder %v637, 20.0
        %vm5246 = vcmp.gt.f32.partialorder %v638, 20.0
        %vm5247 = vcmp.gt.f32.partialorder %v639, 20.0
        %vm5248 = vcmp.gt.f32.partialorder %v640, 20.0
        %vm5249 = vcmp.gt.f32.partialorder %v641, 20.0
        %vm5250 = vcmp.gt.f32.partialorder %v642, 20.0
        %vm5251 = vcmp.gt.f32.partialorder %v643, 20.0
        %vm5252 = vcmp.gt.f32.partialorder %v644, 20.0
        %vm5253 = vcmp.gt.f32.partialorder %v645, 20.0
        %vm5254 = vcmp.gt.f32.partialorder %v646, 20.0
        %vm5255 = vcmp.gt.f32.partialorder %v647, 20.0
        %vm5256 = vcmp.gt.f32.partialorder %v648, 20.0
        %vm5257 = vcmp.gt.f32.partialorder %v649, 20.0
        %v5258 = vmul.f32 %v138, %v3723
        %v5259 = vmul.f32 %v139, %v3725
        %v5260 = vmul.f32 %v140, %v3727
        %v5261 = vmul.f32 %v141, %v3729
        %v5262 = vmul.f32 %v142, %v3731
        %v5263 = vmul.f32 %v143, %v3733
        %v5264 = vmul.f32 %v144, %v3735
        %v5265 = vmul.f32 %v145, %v3737
        %v5266 = vmul.f32 %v146, %v3739
        %v5267 = vmul.f32 %v147, %v3741
        %v5268 = vmul.f32 %v148, %v3743
        %v5269 = vmul.f32 %v149, %v3745
        %v5270 = vmul.f32 %v150, %v3747
        %v5271 = vmul.f32 %v151, %v3749
        %v5272 = vmul.f32 %v152, %v3751
        %v5273 = vmul.f32 %v153, %v3753
        %v5274 = vmul.f32 %v154, %v3755
        %v5275 = vmul.f32 %v155, %v3757
        %v5276 = vmul.f32 %v156, %v3759
        %v5277 = vmul.f32 %v157, %v3761
        %v5278 = vmul.f32 %v158, %v3763
        %v5279 = vmul.f32 %v159, %v3765
        %v5280 = vmul.f32 %v160, %v3767
        %v5281 = vmul.f32 %v161, %v3769
        %v5282 = vmul.f32 %v162, %v3771
        %v5283 = vmul.f32 %v163, %v3773
        %v5284 = vmul.f32 %v164, %v3775
        %v5285 = vmul.f32 %v165, %v3777
        %v5286 = vmul.f32 %v166, %v3779
        %v5287 = vmul.f32 %v167, %v3781
        %v5288 = vmul.f32 %v168, %v3783
        %v5289 = vmul.f32 %v169, %v3785
        %v5290 = vmul.f32 %v170, %v3787
        %v5291 = vmul.f32 %v171, %v3789
        %v5292 = vmul.f32 %v172, %v3791
        %v5293 = vmul.f32 %v173, %v3793
        %v5294 = vmul.f32 %v174, %v3795
        %v5295 = vmul.f32 %v175, %v3797
        %v5296 = vmul.f32 %v176, %v3799
        %v5297 = vmul.f32 %v177, %v3801
        %v5298 = vmul.f32 %v178, %v3803
        %v5299 = vmul.f32 %v179, %v3805
        %v5300 = vmul.f32 %v180, %v3807
        %v5301 = vmul.f32 %v181, %v3809
        %v5302 = vmul.f32 %v182, %v3811
        %v5303 = vmul.f32 %v183, %v3813
        %v5304 = vmul.f32 %v184, %v3815
        %v5305 = vmul.f32 %v185, %v3817
        %v5306 = vmul.f32 %v186, %v3819
        %v5307 = vmul.f32 %v187, %v3821
        %v5308 = vmul.f32 %v188, %v3823
        %v5309 = vmul.f32 %v189, %v3825
        %v5310 = vmul.f32 %v190, %v3827
        %v5311 = vmul.f32 %v191, %v3829
        %v5312 = vmul.f32 %v192, %v3831
        %v5313 = vmul.f32 %v193, %v3833
        %v5314 = vmul.f32 %v194, %v3835
        %v5315 = vmul.f32 %v195, %v3837
        %v5316 = vmul.f32 %v196, %v3839
        %v5317 = vmul.f32 %v197, %v3841
        %v5318 = vmul.f32 %v198, %v3843
        %v5319 = vmul.f32 %v199, %v3845
        %v5320 = vmul.f32 %v200, %v3847
        %v5321 = vmul.f32 %v201, %v3849
        %v5322 = vmul.f32 %v202, %v3851
        %v5323 = vmul.f32 %v203, %v3853
        %v5324 = vmul.f32 %v204, %v3855
        %v5325 = vmul.f32 %v205, %v3857
        %v5326 = vmul.f32 %v206, %v3859
        %v5327 = vmul.f32 %v207, %v3861
        %v5328 = vmul.f32 %v208, %v3863
        %v5329 = vmul.f32 %v209, %v3865
        %v5330 = vmul.f32 %v210, %v3867
        %v5331 = vmul.f32 %v211, %v3869
        %v5332 = vmul.f32 %v212, %v3871
        %v5333 = vmul.f32 %v213, %v3873
        %v5334 = vmul.f32 %v214, %v3875
        %v5335 = vmul.f32 %v215, %v3877
        %v5336 = vmul.f32 %v216, %v3879
        %v5337 = vmul.f32 %v217, %v3881
        %v5338 = vmul.f32 %v218, %v3883
        %v5339 = vmul.f32 %v219, %v3885
        %v5340 = vmul.f32 %v220, %v3887
        %v5341 = vmul.f32 %v221, %v3889
        %v5342 = vmul.f32 %v222, %v3891
        %v5343 = vmul.f32 %v223, %v3893
        %v5344 = vmul.f32 %v224, %v3895
        %v5345 = vmul.f32 %v225, %v3897
        %v5346 = vmul.f32 %v226, %v3899
        %v5347 = vmul.f32 %v227, %v3901
        %v5348 = vmul.f32 %v228, %v3903
        %v5349 = vmul.f32 %v229, %v3905
        %v5350 = vmul.f32 %v230, %v3907
        %v5351 = vmul.f32 %v231, %v3909
        %v5352 = vmul.f32 %v232, %v3911
        %v5353 = vmul.f32 %v233, %v3913
        %v5354 = vmul.f32 %v234, %v3915
        %v5355 = vmul.f32 %v235, %v3917
        %v5356 = vmul.f32 %v236, %v3919
        %v5357 = vmul.f32 %v237, %v3921
        %v5358 = vmul.f32 %v238, %v3923
        %v5359 = vmul.f32 %v239, %v3925
        %v5360 = vmul.f32 %v240, %v3927
        %v5361 = vmul.f32 %v241, %v3929
        %v5362 = vmul.f32 %v242, %v3931
        %v5363 = vmul.f32 %v243, %v3933
        %v5364 = vmul.f32 %v244, %v3935
        %v5365 = vmul.f32 %v245, %v3937
        %v5366 = vmul.f32 %v246, %v3939
        %v5367 = vmul.f32 %v247, %v3941
        %v5368 = vmul.f32 %v248, %v3943
        %v5369 = vmul.f32 %v249, %v3945
        %v5370 = vmul.f32 %v250, %v3947
        %v5371 = vmul.f32 %v251, %v3949
        %v5372 = vmul.f32 %v252, %v3951
        %v5373 = vmul.f32 %v253, %v3953
        %v5374 = vmul.f32 %v254, %v3955
        %v5375 = vmul.f32 %v255, %v3957
        %v5376 = vmul.f32 %v256, %v3959
        %v5377 = vmul.f32 %v257, %v3961
        %v5378 = vmul.f32 %v258, %v3963
        %v5379 = vmul.f32 %v259, %v3965
        %v5380 = vmul.f32 %v260, %v3967
        %v5381 = vmul.f32 %v261, %v3969
        %v5382 = vmul.f32 %v262, %v3971
        %v5383 = vmul.f32 %v263, %v3973
        %v5384 = vmul.f32 %v264, %v3975
        %v5385 = vmul.f32 %v265, %v3977
        %v5386 = vmul.f32 %v266, %v3979
        %v5387 = vmul.f32 %v267, %v3981
        %v5388 = vmul.f32 %v268, %v3983
        %v5389 = vmul.f32 %v269, %v3985
        %v5390 = vmul.f32 %v270, %v3987
        %v5391 = vmul.f32 %v271, %v3989
        %v5392 = vmul.f32 %v272, %v3991
        %v5393 = vmul.f32 %v273, %v3993
        %v5394 = vmul.f32 %v274, %v3995
        %v5395 = vmul.f32 %v275, %v3997
        %v5396 = vmul.f32 %v276, %v3999
        %v5397 = vmul.f32 %v277, %v4001
        %v5398 = vmul.f32 %v278, %v4003
        %v5399 = vmul.f32 %v279, %v4005
        %v5400 = vmul.f32 %v280, %v4007
        %v5401 = vmul.f32 %v281, %v4009
        %v5402 = vmul.f32 %v282, %v4011
        %v5403 = vmul.f32 %v283, %v4013
        %v5404 = vmul.f32 %v284, %v4015
        %v5405 = vmul.f32 %v285, %v4017
        %v5406 = vmul.f32 %v286, %v4019
        %v5407 = vmul.f32 %v287, %v4021
        %v5408 = vmul.f32 %v288, %v4023
        %v5409 = vmul.f32 %v289, %v4025
        %v5410 = vmul.f32 %v290, %v4027
        %v5411 = vmul.f32 %v291, %v4029
        %v5412 = vmul.f32 %v292, %v4031
        %v5413 = vmul.f32 %v293, %v4033
        %v5414 = vmul.f32 %v294, %v4035
        %v5415 = vmul.f32 %v295, %v4037
        %v5416 = vmul.f32 %v296, %v4039
        %v5417 = vmul.f32 %v297, %v4041
        %v5418 = vmul.f32 %v298, %v4043
        %v5419 = vmul.f32 %v299, %v4045
        %v5420 = vmul.f32 %v300, %v4047
        %v5421 = vmul.f32 %v301, %v4049
        %v5422 = vmul.f32 %v302, %v4051
        %v5423 = vmul.f32 %v303, %v4053
        %v5424 = vmul.f32 %v304, %v4055
        %v5425 = vmul.f32 %v305, %v4057
        %v5426 = vmul.f32 %v306, %v4059
        %v5427 = vmul.f32 %v307, %v4061
        %v5428 = vmul.f32 %v308, %v4063
        %v5429 = vmul.f32 %v309, %v4065
        %v5430 = vmul.f32 %v310, %v4067
        %v5431 = vmul.f32 %v311, %v4069
        %v5432 = vmul.f32 %v312, %v4071
        %v5433 = vmul.f32 %v313, %v4073
        %v5434 = vmul.f32 %v314, %v4075
        %v5435 = vmul.f32 %v315, %v4077
        %v5436 = vmul.f32 %v316, %v4079
        %v5437 = vmul.f32 %v317, %v4081
        %v5438 = vmul.f32 %v318, %v4083
        %v5439 = vmul.f32 %v319, %v4085
        %v5440 = vmul.f32 %v320, %v4087
        %v5441 = vmul.f32 %v321, %v4089
        %v5442 = vmul.f32 %v322, %v4091
        %v5443 = vmul.f32 %v323, %v4093
        %v5444 = vmul.f32 %v324, %v4095
        %v5445 = vmul.f32 %v325, %v4097
        %v5446 = vmul.f32 %v326, %v4099
        %v5447 = vmul.f32 %v327, %v4101
        %v5448 = vmul.f32 %v328, %v4103
        %v5449 = vmul.f32 %v329, %v4105
        %v5450 = vmul.f32 %v330, %v4107
        %v5451 = vmul.f32 %v331, %v4109
        %v5452 = vmul.f32 %v332, %v4111
        %v5453 = vmul.f32 %v333, %v4113
        %v5454 = vmul.f32 %v334, %v4115
        %v5455 = vmul.f32 %v335, %v4117
        %v5456 = vmul.f32 %v336, %v4119
        %v5457 = vmul.f32 %v337, %v4121
        %v5458 = vmul.f32 %v338, %v4123
        %v5459 = vmul.f32 %v339, %v4125
        %v5460 = vmul.f32 %v340, %v4127
        %v5461 = vmul.f32 %v341, %v4129
        %v5462 = vmul.f32 %v342, %v4131
        %v5463 = vmul.f32 %v343, %v4133
        %v5464 = vmul.f32 %v344, %v4135
        %v5465 = vmul.f32 %v345, %v4137
        %v5466 = vmul.f32 %v346, %v4139
        %v5467 = vmul.f32 %v347, %v4141
        %v5468 = vmul.f32 %v348, %v4143
        %v5469 = vmul.f32 %v349, %v4145
        %v5470 = vmul.f32 %v350, %v4147
        %v5471 = vmul.f32 %v351, %v4149
        %v5472 = vmul.f32 %v352, %v4151
        %v5473 = vmul.f32 %v353, %v4153
        %v5474 = vmul.f32 %v354, %v4155
        %v5475 = vmul.f32 %v355, %v4157
        %v5476 = vmul.f32 %v356, %v4159
        %v5477 = vmul.f32 %v357, %v4161
        %v5478 = vmul.f32 %v358, %v4163
        %v5479 = vmul.f32 %v359, %v4165
        %v5480 = vmul.f32 %v360, %v4167
        %v5481 = vmul.f32 %v361, %v4169
        %v5482 = vmul.f32 %v362, %v4171
        %v5483 = vmul.f32 %v363, %v4173
        %v5484 = vmul.f32 %v364, %v4175
        %v5485 = vmul.f32 %v365, %v4177
        %v5486 = vmul.f32 %v366, %v4179
        %v5487 = vmul.f32 %v367, %v4181
        %v5488 = vmul.f32 %v368, %v4183
        %v5489 = vmul.f32 %v369, %v4185
        %v5490 = vmul.f32 %v370, %v4187
        %v5491 = vmul.f32 %v371, %v4189
        %v5492 = vmul.f32 %v372, %v4191
        %v5493 = vmul.f32 %v373, %v4193
        %v5494 = vmul.f32 %v374, %v4195
        %v5495 = vmul.f32 %v375, %v4197
        %v5496 = vmul.f32 %v376, %v4199
        %v5497 = vmul.f32 %v377, %v4201
        %v5498 = vmul.f32 %v378, %v4203
        %v5499 = vmul.f32 %v379, %v4205
        %v5500 = vmul.f32 %v380, %v4207
        %v5501 = vmul.f32 %v381, %v4209
        %v5502 = vmul.f32 %v382, %v4211
        %v5503 = vmul.f32 %v383, %v4213
        %v5504 = vmul.f32 %v384, %v4215
        %v5505 = vmul.f32 %v385, %v4217
        %v5506 = vmul.f32 %v386, %v4219
        %v5507 = vmul.f32 %v387, %v4221
        %v5508 = vmul.f32 %v388, %v4223
        %v5509 = vmul.f32 %v389, %v4225
        %v5510 = vmul.f32 %v390, %v4227
        %v5511 = vmul.f32 %v391, %v4229
        %v5512 = vmul.f32 %v392, %v4231
        %v5513 = vmul.f32 %v393, %v4233
        %v5514 = vmul.f32 %v394, %v4235
        %v5515 = vmul.f32 %v395, %v4237
        %v5516 = vmul.f32 %v396, %v4239
        %v5517 = vmul.f32 %v397, %v4241
        %v5518 = vmul.f32 %v398, %v4243
        %v5519 = vmul.f32 %v399, %v4245
        %v5520 = vmul.f32 %v400, %v4247
        %v5521 = vmul.f32 %v401, %v4249
        %v5522 = vmul.f32 %v402, %v4251
        %v5523 = vmul.f32 %v403, %v4253
        %v5524 = vmul.f32 %v404, %v4255
        %v5525 = vmul.f32 %v405, %v4257
        %v5526 = vmul.f32 %v406, %v4259
        %v5527 = vmul.f32 %v407, %v4261
        %v5528 = vmul.f32 %v408, %v4263
        %v5529 = vmul.f32 %v409, %v4265
        %v5530 = vmul.f32 %v410, %v4267
        %v5531 = vmul.f32 %v411, %v4269
        %v5532 = vmul.f32 %v412, %v4271
        %v5533 = vmul.f32 %v413, %v4273
        %v5534 = vmul.f32 %v414, %v4275
        %v5535 = vmul.f32 %v415, %v4277
        %v5536 = vmul.f32 %v416, %v4279
        %v5537 = vmul.f32 %v417, %v4281
        %v5538 = vmul.f32 %v418, %v4283
        %v5539 = vmul.f32 %v419, %v4285
        %v5540 = vmul.f32 %v420, %v4287
        %v5541 = vmul.f32 %v421, %v4289
        %v5542 = vmul.f32 %v422, %v4291
        %v5543 = vmul.f32 %v423, %v4293
        %v5544 = vmul.f32 %v424, %v4295
        %v5545 = vmul.f32 %v425, %v4297
        %v5546 = vmul.f32 %v426, %v4299
        %v5547 = vmul.f32 %v427, %v4301
        %v5548 = vmul.f32 %v428, %v4303
        %v5549 = vmul.f32 %v429, %v4305
        %v5550 = vmul.f32 %v430, %v4307
        %v5551 = vmul.f32 %v431, %v4309
        %v5552 = vmul.f32 %v432, %v4311
        %v5553 = vmul.f32 %v433, %v4313
        %v5554 = vmul.f32 %v434, %v4315
        %v5555 = vmul.f32 %v435, %v4317
        %v5556 = vmul.f32 %v436, %v4319
        %v5557 = vmul.f32 %v437, %v4321
        %v5558 = vmul.f32 %v438, %v4323
        %v5559 = vmul.f32 %v439, %v4325
        %v5560 = vmul.f32 %v440, %v4327
        %v5561 = vmul.f32 %v441, %v4329
        %v5562 = vmul.f32 %v442, %v4331
        %v5563 = vmul.f32 %v443, %v4333
        %v5564 = vmul.f32 %v444, %v4335
        %v5565 = vmul.f32 %v445, %v4337
        %v5566 = vmul.f32 %v446, %v4339
        %v5567 = vmul.f32 %v447, %v4341
        %v5568 = vmul.f32 %v448, %v4343
        %v5569 = vmul.f32 %v449, %v4345
        %v5570 = vmul.f32 %v450, %v4347
        %v5571 = vmul.f32 %v451, %v4349
        %v5572 = vmul.f32 %v452, %v4351
        %v5573 = vmul.f32 %v453, %v4353
        %v5574 = vmul.f32 %v454, %v4355
        %v5575 = vmul.f32 %v455, %v4357
        %v5576 = vmul.f32 %v456, %v4359
        %v5577 = vmul.f32 %v457, %v4361
        %v5578 = vmul.f32 %v458, %v4363
        %v5579 = vmul.f32 %v459, %v4365
        %v5580 = vmul.f32 %v460, %v4367
        %v5581 = vmul.f32 %v461, %v4369
        %v5582 = vmul.f32 %v462, %v4371
        %v5583 = vmul.f32 %v463, %v4373
        %v5584 = vmul.f32 %v464, %v4375
        %v5585 = vmul.f32 %v465, %v4377
        %v5586 = vmul.f32 %v466, %v4379
        %v5587 = vmul.f32 %v467, %v4381
        %v5588 = vmul.f32 %v468, %v4383
        %v5589 = vmul.f32 %v469, %v4385
        %v5590 = vmul.f32 %v470, %v4387
        %v5591 = vmul.f32 %v471, %v4389
        %v5592 = vmul.f32 %v472, %v4391
        %v5593 = vmul.f32 %v473, %v4393
        %v5594 = vmul.f32 %v474, %v4395
        %v5595 = vmul.f32 %v475, %v4397
        %v5596 = vmul.f32 %v476, %v4399
        %v5597 = vmul.f32 %v477, %v4401
        %v5598 = vmul.f32 %v478, %v4403
        %v5599 = vmul.f32 %v479, %v4405
        %v5600 = vmul.f32 %v480, %v4407
        %v5601 = vmul.f32 %v481, %v4409
        %v5602 = vmul.f32 %v482, %v4411
        %v5603 = vmul.f32 %v483, %v4413
        %v5604 = vmul.f32 %v484, %v4415
        %v5605 = vmul.f32 %v485, %v4417
        %v5606 = vmul.f32 %v486, %v4419
        %v5607 = vmul.f32 %v487, %v4421
        %v5608 = vmul.f32 %v488, %v4423
        %v5609 = vmul.f32 %v489, %v4425
        %v5610 = vmul.f32 %v490, %v4427
        %v5611 = vmul.f32 %v491, %v4429
        %v5612 = vmul.f32 %v492, %v4431
        %v5613 = vmul.f32 %v493, %v4433
        %v5614 = vmul.f32 %v494, %v4435
        %v5615 = vmul.f32 %v495, %v4437
        %v5616 = vmul.f32 %v496, %v4439
        %v5617 = vmul.f32 %v497, %v4441
        %v5618 = vmul.f32 %v498, %v4443
        %v5619 = vmul.f32 %v499, %v4445
        %v5620 = vmul.f32 %v500, %v4447
        %v5621 = vmul.f32 %v501, %v4449
        %v5622 = vmul.f32 %v502, %v4451
        %v5623 = vmul.f32 %v503, %v4453
        %v5624 = vmul.f32 %v504, %v4455
        %v5625 = vmul.f32 %v505, %v4457
        %v5626 = vmul.f32 %v506, %v4459
        %v5627 = vmul.f32 %v507, %v4461
        %v5628 = vmul.f32 %v508, %v4463
        %v5629 = vmul.f32 %v509, %v4465
        %v5630 = vmul.f32 %v510, %v4467
        %v5631 = vmul.f32 %v511, %v4469
        %v5632 = vmul.f32 %v512, %v4471
        %v5633 = vmul.f32 %v513, %v4473
        %v5634 = vmul.f32 %v514, %v4475
        %v5635 = vmul.f32 %v515, %v4477
        %v5636 = vmul.f32 %v516, %v4479
        %v5637 = vmul.f32 %v517, %v4481
        %v5638 = vmul.f32 %v518, %v4483
        %v5639 = vmul.f32 %v519, %v4485
        %v5640 = vmul.f32 %v520, %v4487
        %v5641 = vmul.f32 %v521, %v4489
        %v5642 = vmul.f32 %v522, %v4491
        %v5643 = vmul.f32 %v523, %v4493
        %v5644 = vmul.f32 %v524, %v4495
        %v5645 = vmul.f32 %v525, %v4497
        %v5646 = vmul.f32 %v526, %v4499
        %v5647 = vmul.f32 %v527, %v4501
        %v5648 = vmul.f32 %v528, %v4503
        %v5649 = vmul.f32 %v529, %v4505
        %v5650 = vmul.f32 %v530, %v4507
        %v5651 = vmul.f32 %v531, %v4509
        %v5652 = vmul.f32 %v532, %v4511
        %v5653 = vmul.f32 %v533, %v4513
        %v5654 = vmul.f32 %v534, %v4515
        %v5655 = vmul.f32 %v535, %v4517
        %v5656 = vmul.f32 %v536, %v4519
        %v5657 = vmul.f32 %v537, %v4521
        %v5658 = vmul.f32 %v538, %v4523
        %v5659 = vmul.f32 %v539, %v4525
        %v5660 = vmul.f32 %v540, %v4527
        %v5661 = vmul.f32 %v541, %v4529
        %v5662 = vmul.f32 %v542, %v4531
        %v5663 = vmul.f32 %v543, %v4533
        %v5664 = vmul.f32 %v544, %v4535
        %v5665 = vmul.f32 %v545, %v4537
        %v5666 = vmul.f32 %v546, %v4539
        %v5667 = vmul.f32 %v547, %v4541
        %v5668 = vmul.f32 %v548, %v4543
        %v5669 = vmul.f32 %v549, %v4545
        %v5670 = vmul.f32 %v550, %v4547
        %v5671 = vmul.f32 %v551, %v4549
        %v5672 = vmul.f32 %v552, %v4551
        %v5673 = vmul.f32 %v553, %v4553
        %v5674 = vmul.f32 %v554, %v4555
        %v5675 = vmul.f32 %v555, %v4557
        %v5676 = vmul.f32 %v556, %v4559
        %v5677 = vmul.f32 %v557, %v4561
        %v5678 = vmul.f32 %v558, %v4563
        %v5679 = vmul.f32 %v559, %v4565
        %v5680 = vmul.f32 %v560, %v4567
        %v5681 = vmul.f32 %v561, %v4569
        %v5682 = vmul.f32 %v562, %v4571
        %v5683 = vmul.f32 %v563, %v4573
        %v5684 = vmul.f32 %v564, %v4575
        %v5685 = vmul.f32 %v565, %v4577
        %v5686 = vmul.f32 %v566, %v4579
        %v5687 = vmul.f32 %v567, %v4581
        %v5688 = vmul.f32 %v568, %v4583
        %v5689 = vmul.f32 %v569, %v4585
        %v5690 = vmul.f32 %v570, %v4587
        %v5691 = vmul.f32 %v571, %v4589
        %v5692 = vmul.f32 %v572, %v4591
        %v5693 = vmul.f32 %v573, %v4593
        %v5694 = vmul.f32 %v574, %v4595
        %v5695 = vmul.f32 %v575, %v4597
        %v5696 = vmul.f32 %v576, %v4599
        %v5697 = vmul.f32 %v577, %v4601
        %v5698 = vmul.f32 %v578, %v4603
        %v5699 = vmul.f32 %v579, %v4605
        %v5700 = vmul.f32 %v580, %v4607
        %v5701 = vmul.f32 %v581, %v4609
        %v5702 = vmul.f32 %v582, %v4611
        %v5703 = vmul.f32 %v583, %v4613
        %v5704 = vmul.f32 %v584, %v4615
        %v5705 = vmul.f32 %v585, %v4617
        %v5706 = vmul.f32 %v586, %v4619
        %v5707 = vmul.f32 %v587, %v4621
        %v5708 = vmul.f32 %v588, %v4623
        %v5709 = vmul.f32 %v589, %v4625
        %v5710 = vmul.f32 %v590, %v4627
        %v5711 = vmul.f32 %v591, %v4629
        %v5712 = vmul.f32 %v592, %v4631
        %v5713 = vmul.f32 %v593, %v4633
        %v5714 = vmul.f32 %v594, %v4635
        %v5715 = vmul.f32 %v595, %v4637
        %v5716 = vmul.f32 %v596, %v4639
        %v5717 = vmul.f32 %v597, %v4641
        %v5718 = vmul.f32 %v598, %v4643
        %v5719 = vmul.f32 %v599, %v4645
        %v5720 = vmul.f32 %v600, %v4647
        %v5721 = vmul.f32 %v601, %v4649
        %v5722 = vmul.f32 %v602, %v4651
        %v5723 = vmul.f32 %v603, %v4653
        %v5724 = vmul.f32 %v604, %v4655
        %v5725 = vmul.f32 %v605, %v4657
        %v5726 = vmul.f32 %v606, %v4659
        %v5727 = vmul.f32 %v607, %v4661
        %v5728 = vmul.f32 %v608, %v4663
        %v5729 = vmul.f32 %v609, %v4665
        %v5730 = vmul.f32 %v610, %v4667
        %v5731 = vmul.f32 %v611, %v4669
        %v5732 = vmul.f32 %v612, %v4671
        %v5733 = vmul.f32 %v613, %v4673
        %v5734 = vmul.f32 %v614, %v4675
        %v5735 = vmul.f32 %v615, %v4677
        %v5736 = vmul.f32 %v616, %v4679
        %v5737 = vmul.f32 %v617, %v4681
        %v5738 = vmul.f32 %v618, %v4683
        %v5739 = vmul.f32 %v619, %v4685
        %v5740 = vmul.f32 %v620, %v4687
        %v5741 = vmul.f32 %v621, %v4689
        %v5742 = vmul.f32 %v622, %v4691
        %v5743 = vmul.f32 %v623, %v4693
        %v5744 = vmul.f32 %v624, %v4695
        %v5745 = vmul.f32 %v625, %v4697
        %v5746 = vmul.f32 %v626, %v4699
        %v5747 = vmul.f32 %v627, %v4701
        %v5748 = vmul.f32 %v628, %v4703
        %v5749 = vmul.f32 %v629, %v4705
        %v5750 = vmul.f32 %v630, %v4707
        %v5751 = vmul.f32 %v631, %v4709
        %v5752 = vmul.f32 %v632, %v4711
        %v5753 = vmul.f32 %v633, %v4713
        %v5754 = vmul.f32 %v634, %v4715
        %v5755 = vmul.f32 %v635, %v4717
        %v5756 = vmul.f32 %v636, %v4719
        %v5757 = vmul.f32 %v637, %v4721
        %v5758 = vmul.f32 %v638, %v4723
        %v5759 = vmul.f32 %v639, %v4725
        %v5760 = vmul.f32 %v640, %v4727
        %v5761 = vmul.f32 %v641, %v4729
        %v5762 = vmul.f32 %v642, %v4731
        %v5763 = vmul.f32 %v643, %v4733
        %v5764 = vmul.f32 %v644, %v4735
        %v5765 = vmul.f32 %v645, %v4737
        %v5766 = vmul.f32 %v646, %v4739
        %v5767 = vmul.f32 %v647, %v4741
        %v5768 = vmul.f32 %v648, %v4743
        %v5769 = vmul.f32 %v649, %v4745
        %v5770 = vsel %vm4746, %v138, %v5258
        %v5771 = vsel %vm4747, %v139, %v5259
        %v5772 = vsel %vm4748, %v140, %v5260
        %v5773 = vsel %vm4749, %v141, %v5261
        %v5774 = vsel %vm4750, %v142, %v5262
        %v5775 = vsel %vm4751, %v143, %v5263
        %v5776 = vsel %vm4752, %v144, %v5264
        %v5777 = vsel %vm4753, %v145, %v5265
        %v5778 = vsel %vm4754, %v146, %v5266
        %v5779 = vsel %vm4755, %v147, %v5267
        %v5780 = vsel %vm4756, %v148, %v5268
        %v5781 = vsel %vm4757, %v149, %v5269
        %v5782 = vsel %vm4758, %v150, %v5270
        %v5783 = vsel %vm4759, %v151, %v5271
        %v5784 = vsel %vm4760, %v152, %v5272
        %v5785 = vsel %vm4761, %v153, %v5273
        %v5786 = vsel %vm4762, %v154, %v5274
        %v5787 = vsel %vm4763, %v155, %v5275
        %v5788 = vsel %vm4764, %v156, %v5276
        %v5789 = vsel %vm4765, %v157, %v5277
        %v5790 = vsel %vm4766, %v158, %v5278
        %v5791 = vsel %vm4767, %v159, %v5279
        %v5792 = vsel %vm4768, %v160, %v5280
        %v5793 = vsel %vm4769, %v161, %v5281
        %v5794 = vsel %vm4770, %v162, %v5282
        %v5795 = vsel %vm4771, %v163, %v5283
        %v5796 = vsel %vm4772, %v164, %v5284
        %v5797 = vsel %vm4773, %v165, %v5285
        %v5798 = vsel %vm4774, %v166, %v5286
        %v5799 = vsel %vm4775, %v167, %v5287
        %v5800 = vsel %vm4776, %v168, %v5288
        %v5801 = vsel %vm4777, %v169, %v5289
        %v5802 = vsel %vm4778, %v170, %v5290
        %v5803 = vsel %vm4779, %v171, %v5291
        %v5804 = vsel %vm4780, %v172, %v5292
        %v5805 = vsel %vm4781, %v173, %v5293
        %v5806 = vsel %vm4782, %v174, %v5294
        %v5807 = vsel %vm4783, %v175, %v5295
        %v5808 = vsel %vm4784, %v176, %v5296
        %v5809 = vsel %vm4785, %v177, %v5297
        %v5810 = vsel %vm4786, %v178, %v5298
        %v5811 = vsel %vm4787, %v179, %v5299
        %v5812 = vsel %vm4788, %v180, %v5300
        %v5813 = vsel %vm4789, %v181, %v5301
        %v5814 = vsel %vm4790, %v182, %v5302
        %v5815 = vsel %vm4791, %v183, %v5303
        %v5816 = vsel %vm4792, %v184, %v5304
        %v5817 = vsel %vm4793, %v185, %v5305
        %v5818 = vsel %vm4794, %v186, %v5306
        %v5819 = vsel %vm4795, %v187, %v5307
        %v5820 = vsel %vm4796, %v188, %v5308
        %v5821 = vsel %vm4797, %v189, %v5309
        %v5822 = vsel %vm4798, %v190, %v5310
        %v5823 = vsel %vm4799, %v191, %v5311
        %v5824 = vsel %vm4800, %v192, %v5312
        %v5825 = vsel %vm4801, %v193, %v5313
        %v5826 = vsel %vm4802, %v194, %v5314
        %v5827 = vsel %vm4803, %v195, %v5315
        %v5828 = vsel %vm4804, %v196, %v5316
        %v5829 = vsel %vm4805, %v197, %v5317
        %v5830 = vsel %vm4806, %v198, %v5318
        %v5831 = vsel %vm4807, %v199, %v5319
        %v5832 = vsel %vm4808, %v200, %v5320
        %v5833 = vsel %vm4809, %v201, %v5321
        %v5834 = vsel %vm4810, %v202, %v5322
        %v5835 = vsel %vm4811, %v203, %v5323
        %v5836 = vsel %vm4812, %v204, %v5324
        %v5837 = vsel %vm4813, %v205, %v5325
        %v5838 = vsel %vm4814, %v206, %v5326
        %v5839 = vsel %vm4815, %v207, %v5327
        %v5840 = vsel %vm4816, %v208, %v5328
        %v5841 = vsel %vm4817, %v209, %v5329
        %v5842 = vsel %vm4818, %v210, %v5330
        %v5843 = vsel %vm4819, %v211, %v5331
        %v5844 = vsel %vm4820, %v212, %v5332
        %v5845 = vsel %vm4821, %v213, %v5333
        %v5846 = vsel %vm4822, %v214, %v5334
        %v5847 = vsel %vm4823, %v215, %v5335
        %v5848 = vsel %vm4824, %v216, %v5336
        %v5849 = vsel %vm4825, %v217, %v5337
        %v5850 = vsel %vm4826, %v218, %v5338
        %v5851 = vsel %vm4827, %v219, %v5339
        %v5852 = vsel %vm4828, %v220, %v5340
        %v5853 = vsel %vm4829, %v221, %v5341
        %v5854 = vsel %vm4830, %v222, %v5342
        %v5855 = vsel %vm4831, %v223, %v5343
        %v5856 = vsel %vm4832, %v224, %v5344
        %v5857 = vsel %vm4833, %v225, %v5345
        %v5858 = vsel %vm4834, %v226, %v5346
        %v5859 = vsel %vm4835, %v227, %v5347
        %v5860 = vsel %vm4836, %v228, %v5348
        %v5861 = vsel %vm4837, %v229, %v5349
        %v5862 = vsel %vm4838, %v230, %v5350
        %v5863 = vsel %vm4839, %v231, %v5351
        %v5864 = vsel %vm4840, %v232, %v5352
        %v5865 = vsel %vm4841, %v233, %v5353
        %v5866 = vsel %vm4842, %v234, %v5354
        %v5867 = vsel %vm4843, %v235, %v5355
        %v5868 = vsel %vm4844, %v236, %v5356
        %v5869 = vsel %vm4845, %v237, %v5357
        %v5870 = vsel %vm4846, %v238, %v5358
        %v5871 = vsel %vm4847, %v239, %v5359
        %v5872 = vsel %vm4848, %v240, %v5360
        %v5873 = vsel %vm4849, %v241, %v5361
        %v5874 = vsel %vm4850, %v242, %v5362
        %v5875 = vsel %vm4851, %v243, %v5363
        %v5876 = vsel %vm4852, %v244, %v5364
        %v5877 = vsel %vm4853, %v245, %v5365
        %v5878 = vsel %vm4854, %v246, %v5366
        %v5879 = vsel %vm4855, %v247, %v5367
        %v5880 = vsel %vm4856, %v248, %v5368
        %v5881 = vsel %vm4857, %v249, %v5369
        %v5882 = vsel %vm4858, %v250, %v5370
        %v5883 = vsel %vm4859, %v251, %v5371
        %v5884 = vsel %vm4860, %v252, %v5372
        %v5885 = vsel %vm4861, %v253, %v5373
        %v5886 = vsel %vm4862, %v254, %v5374
        %v5887 = vsel %vm4863, %v255, %v5375
        %v5888 = vsel %vm4864, %v256, %v5376
        %v5889 = vsel %vm4865, %v257, %v5377
        %v5890 = vsel %vm4866, %v258, %v5378
        %v5891 = vsel %vm4867, %v259, %v5379
        %v5892 = vsel %vm4868, %v260, %v5380
        %v5893 = vsel %vm4869, %v261, %v5381
        %v5894 = vsel %vm4870, %v262, %v5382
        %v5895 = vsel %vm4871, %v263, %v5383
        %v5896 = vsel %vm4872, %v264, %v5384
        %v5897 = vsel %vm4873, %v265, %v5385
        %v5898 = vsel %vm4874, %v266, %v5386
        %v5899 = vsel %vm4875, %v267, %v5387
        %v5900 = vsel %vm4876, %v268, %v5388
        %v5901 = vsel %vm4877, %v269, %v5389
        %v5902 = vsel %vm4878, %v270, %v5390
        %v5903 = vsel %vm4879, %v271, %v5391
        %v5904 = vsel %vm4880, %v272, %v5392
        %v5905 = vsel %vm4881, %v273, %v5393
        %v5906 = vsel %vm4882, %v274, %v5394
        %v5907 = vsel %vm4883, %v275, %v5395
        %v5908 = vsel %vm4884, %v276, %v5396
        %v5909 = vsel %vm4885, %v277, %v5397
        %v5910 = vsel %vm4886, %v278, %v5398
        %v5911 = vsel %vm4887, %v279, %v5399
        %v5912 = vsel %vm4888, %v280, %v5400
        %v5913 = vsel %vm4889, %v281, %v5401
        %v5914 = vsel %vm4890, %v282, %v5402
        %v5915 = vsel %vm4891, %v283, %v5403
        %v5916 = vsel %vm4892, %v284, %v5404
        %v5917 = vsel %vm4893, %v285, %v5405
        %v5918 = vsel %vm4894, %v286, %v5406
        %v5919 = vsel %vm4895, %v287, %v5407
        %v5920 = vsel %vm4896, %v288, %v5408
        %v5921 = vsel %vm4897, %v289, %v5409
        %v5922 = vsel %vm4898, %v290, %v5410
        %v5923 = vsel %vm4899, %v291, %v5411
        %v5924 = vsel %vm4900, %v292, %v5412
        %v5925 = vsel %vm4901, %v293, %v5413
        %v5926 = vsel %vm4902, %v294, %v5414
        %v5927 = vsel %vm4903, %v295, %v5415
        %v5928 = vsel %vm4904, %v296, %v5416
        %v5929 = vsel %vm4905, %v297, %v5417
        %v5930 = vsel %vm4906, %v298, %v5418
        %v5931 = vsel %vm4907, %v299, %v5419
        %v5932 = vsel %vm4908, %v300, %v5420
        %v5933 = vsel %vm4909, %v301, %v5421
        %v5934 = vsel %vm4910, %v302, %v5422
        %v5935 = vsel %vm4911, %v303, %v5423
        %v5936 = vsel %vm4912, %v304, %v5424
        %v5937 = vsel %vm4913, %v305, %v5425
        %v5938 = vsel %vm4914, %v306, %v5426
        %v5939 = vsel %vm4915, %v307, %v5427
        %v5940 = vsel %vm4916, %v308, %v5428
        %v5941 = vsel %vm4917, %v309, %v5429
        %v5942 = vsel %vm4918, %v310, %v5430
        %v5943 = vsel %vm4919, %v311, %v5431
        %v5944 = vsel %vm4920, %v312, %v5432
        %v5945 = vsel %vm4921, %v313, %v5433
        %v5946 = vsel %vm4922, %v314, %v5434
        %v5947 = vsel %vm4923, %v315, %v5435
        %v5948 = vsel %vm4924, %v316, %v5436
        %v5949 = vsel %vm4925, %v317, %v5437
        %v5950 = vsel %vm4926, %v318, %v5438
        %v5951 = vsel %vm4927, %v319, %v5439
        %v5952 = vsel %vm4928, %v320, %v5440
        %v5953 = vsel %vm4929, %v321, %v5441
        %v5954 = vsel %vm4930, %v322, %v5442
        %v5955 = vsel %vm4931, %v323, %v5443
        %v5956 = vsel %vm4932, %v324, %v5444
        %v5957 = vsel %vm4933, %v325, %v5445
        %v5958 = vsel %vm4934, %v326, %v5446
        %v5959 = vsel %vm4935, %v327, %v5447
        %v5960 = vsel %vm4936, %v328, %v5448
        %v5961 = vsel %vm4937, %v329, %v5449
        %v5962 = vsel %vm4938, %v330, %v5450
        %v5963 = vsel %vm4939, %v331, %v5451
        %v5964 = vsel %vm4940, %v332, %v5452
        %v5965 = vsel %vm4941, %v333, %v5453
        %v5966 = vsel %vm4942, %v334, %v5454
        %v5967 = vsel %vm4943, %v335, %v5455
        %v5968 = vsel %vm4944, %v336, %v5456
        %v5969 = vsel %vm4945, %v337, %v5457
        %v5970 = vsel %vm4946, %v338, %v5458
        %v5971 = vsel %vm4947, %v339, %v5459
        %v5972 = vsel %vm4948, %v340, %v5460
        %v5973 = vsel %vm4949, %v341, %v5461
        %v5974 = vsel %vm4950, %v342, %v5462
        %v5975 = vsel %vm4951, %v343, %v5463
        %v5976 = vsel %vm4952, %v344, %v5464
        %v5977 = vsel %vm4953, %v345, %v5465
        %v5978 = vsel %vm4954, %v346, %v5466
        %v5979 = vsel %vm4955, %v347, %v5467
        %v5980 = vsel %vm4956, %v348, %v5468
        %v5981 = vsel %vm4957, %v349, %v5469
        %v5982 = vsel %vm4958, %v350, %v5470
        %v5983 = vsel %vm4959, %v351, %v5471
        %v5984 = vsel %vm4960, %v352, %v5472
        %v5985 = vsel %vm4961, %v353, %v5473
        %v5986 = vsel %vm4962, %v354, %v5474
        %v5987 = vsel %vm4963, %v355, %v5475
        %v5988 = vsel %vm4964, %v356, %v5476
        %v5989 = vsel %vm4965, %v357, %v5477
        %v5990 = vsel %vm4966, %v358, %v5478
        %v5991 = vsel %vm4967, %v359, %v5479
        %v5992 = vsel %vm4968, %v360, %v5480
        %v5993 = vsel %vm4969, %v361, %v5481
        %v5994 = vsel %vm4970, %v362, %v5482
        %v5995 = vsel %vm4971, %v363, %v5483
        %v5996 = vsel %vm4972, %v364, %v5484
        %v5997 = vsel %vm4973, %v365, %v5485
        %v5998 = vsel %vm4974, %v366, %v5486
        %v5999 = vsel %vm4975, %v367, %v5487
        %v6000 = vsel %vm4976, %v368, %v5488
        %v6001 = vsel %vm4977, %v369, %v5489
        %v6002 = vsel %vm4978, %v370, %v5490
        %v6003 = vsel %vm4979, %v371, %v5491
        %v6004 = vsel %vm4980, %v372, %v5492
        %v6005 = vsel %vm4981, %v373, %v5493
        %v6006 = vsel %vm4982, %v374, %v5494
        %v6007 = vsel %vm4983, %v375, %v5495
        %v6008 = vsel %vm4984, %v376, %v5496
        %v6009 = vsel %vm4985, %v377, %v5497
        %v6010 = vsel %vm4986, %v378, %v5498
        %v6011 = vsel %vm4987, %v379, %v5499
        %v6012 = vsel %vm4988, %v380, %v5500
        %v6013 = vsel %vm4989, %v381, %v5501
        %v6014 = vsel %vm4990, %v382, %v5502
        %v6015 = vsel %vm4991, %v383, %v5503
        %v6016 = vsel %vm4992, %v384, %v5504
        %v6017 = vsel %vm4993, %v385, %v5505
        %v6018 = vsel %vm4994, %v386, %v5506
        %v6019 = vsel %vm4995, %v387, %v5507
        %v6020 = vsel %vm4996, %v388, %v5508
        %v6021 = vsel %vm4997, %v389, %v5509
        %v6022 = vsel %vm4998, %v390, %v5510
        %v6023 = vsel %vm4999, %v391, %v5511
        %v6024 = vsel %vm5000, %v392, %v5512
        %v6025 = vsel %vm5001, %v393, %v5513
        %v6026 = vsel %vm5002, %v394, %v5514
        %v6027 = vsel %vm5003, %v395, %v5515
        %v6028 = vsel %vm5004, %v396, %v5516
        %v6029 = vsel %vm5005, %v397, %v5517
        %v6030 = vsel %vm5006, %v398, %v5518
        %v6031 = vsel %vm5007, %v399, %v5519
        %v6032 = vsel %vm5008, %v400, %v5520
        %v6033 = vsel %vm5009, %v401, %v5521
        %v6034 = vsel %vm5010, %v402, %v5522
        %v6035 = vsel %vm5011, %v403, %v5523
        %v6036 = vsel %vm5012, %v404, %v5524
        %v6037 = vsel %vm5013, %v405, %v5525
        %v6038 = vsel %vm5014, %v406, %v5526
        %v6039 = vsel %vm5015, %v407, %v5527
        %v6040 = vsel %vm5016, %v408, %v5528
        %v6041 = vsel %vm5017, %v409, %v5529
        %v6042 = vsel %vm5018, %v410, %v5530
        %v6043 = vsel %vm5019, %v411, %v5531
        %v6044 = vsel %vm5020, %v412, %v5532
        %v6045 = vsel %vm5021, %v413, %v5533
        %v6046 = vsel %vm5022, %v414, %v5534
        %v6047 = vsel %vm5023, %v415, %v5535
        %v6048 = vsel %vm5024, %v416, %v5536
        %v6049 = vsel %vm5025, %v417, %v5537
        %v6050 = vsel %vm5026, %v418, %v5538
        %v6051 = vsel %vm5027, %v419, %v5539
        %v6052 = vsel %vm5028, %v420, %v5540
        %v6053 = vsel %vm5029, %v421, %v5541
        %v6054 = vsel %vm5030, %v422, %v5542
        %v6055 = vsel %vm5031, %v423, %v5543
        %v6056 = vsel %vm5032, %v424, %v5544
        %v6057 = vsel %vm5033, %v425, %v5545
        %v6058 = vsel %vm5034, %v426, %v5546
        %v6059 = vsel %vm5035, %v427, %v5547
        %v6060 = vsel %vm5036, %v428, %v5548
        %v6061 = vsel %vm5037, %v429, %v5549
        %v6062 = vsel %vm5038, %v430, %v5550
        %v6063 = vsel %vm5039, %v431, %v5551
        %v6064 = vsel %vm5040, %v432, %v5552
        %v6065 = vsel %vm5041, %v433, %v5553
        %v6066 = vsel %vm5042, %v434, %v5554
        %v6067 = vsel %vm5043, %v435, %v5555
        %v6068 = vsel %vm5044, %v436, %v5556
        %v6069 = vsel %vm5045, %v437, %v5557
        %v6070 = vsel %vm5046, %v438, %v5558
        %v6071 = vsel %vm5047, %v439, %v5559
        %v6072 = vsel %vm5048, %v440, %v5560
        %v6073 = vsel %vm5049, %v441, %v5561
        %v6074 = vsel %vm5050, %v442, %v5562
        %v6075 = vsel %vm5051, %v443, %v5563
        %v6076 = vsel %vm5052, %v444, %v5564
        %v6077 = vsel %vm5053, %v445, %v5565
        %v6078 = vsel %vm5054, %v446, %v5566
        %v6079 = vsel %vm5055, %v447, %v5567
        %v6080 = vsel %vm5056, %v448, %v5568
        %v6081 = vsel %vm5057, %v449, %v5569
        %v6082 = vsel %vm5058, %v450, %v5570
        %v6083 = vsel %vm5059, %v451, %v5571
        %v6084 = vsel %vm5060, %v452, %v5572
        %v6085 = vsel %vm5061, %v453, %v5573
        %v6086 = vsel %vm5062, %v454, %v5574
        %v6087 = vsel %vm5063, %v455, %v5575
        %v6088 = vsel %vm5064, %v456, %v5576
        %v6089 = vsel %vm5065, %v457, %v5577
        %v6090 = vsel %vm5066, %v458, %v5578
        %v6091 = vsel %vm5067, %v459, %v5579
        %v6092 = vsel %vm5068, %v460, %v5580
        %v6093 = vsel %vm5069, %v461, %v5581
        %v6094 = vsel %vm5070, %v462, %v5582
        %v6095 = vsel %vm5071, %v463, %v5583
        %v6096 = vsel %vm5072, %v464, %v5584
        %v6097 = vsel %vm5073, %v465, %v5585
        %v6098 = vsel %vm5074, %v466, %v5586
        %v6099 = vsel %vm5075, %v467, %v5587
        %v6100 = vsel %vm5076, %v468, %v5588
        %v6101 = vsel %vm5077, %v469, %v5589
        %v6102 = vsel %vm5078, %v470, %v5590
        %v6103 = vsel %vm5079, %v471, %v5591
        %v6104 = vsel %vm5080, %v472, %v5592
        %v6105 = vsel %vm5081, %v473, %v5593
        %v6106 = vsel %vm5082, %v474, %v5594
        %v6107 = vsel %vm5083, %v475, %v5595
        %v6108 = vsel %vm5084, %v476, %v5596
        %v6109 = vsel %vm5085, %v477, %v5597
        %v6110 = vsel %vm5086, %v478, %v5598
        %v6111 = vsel %vm5087, %v479, %v5599
        %v6112 = vsel %vm5088, %v480, %v5600
        %v6113 = vsel %vm5089, %v481, %v5601
        %v6114 = vsel %vm5090, %v482, %v5602
        %v6115 = vsel %vm5091, %v483, %v5603
        %v6116 = vsel %vm5092, %v484, %v5604
        %v6117 = vsel %vm5093, %v485, %v5605
        %v6118 = vsel %vm5094, %v486, %v5606
        %v6119 = vsel %vm5095, %v487, %v5607
        %v6120 = vsel %vm5096, %v488, %v5608
        %v6121 = vsel %vm5097, %v489, %v5609
        %v6122 = vsel %vm5098, %v490, %v5610
        %v6123 = vsel %vm5099, %v491, %v5611
        %v6124 = vsel %vm5100, %v492, %v5612
        %v6125 = vsel %vm5101, %v493, %v5613
        %v6126 = vsel %vm5102, %v494, %v5614
        %v6127 = vsel %vm5103, %v495, %v5615
        %v6128 = vsel %vm5104, %v496, %v5616
        %v6129 = vsel %vm5105, %v497, %v5617
        %v6130 = vsel %vm5106, %v498, %v5618
        %v6131 = vsel %vm5107, %v499, %v5619
        %v6132 = vsel %vm5108, %v500, %v5620
        %v6133 = vsel %vm5109, %v501, %v5621
        %v6134 = vsel %vm5110, %v502, %v5622
        %v6135 = vsel %vm5111, %v503, %v5623
        %v6136 = vsel %vm5112, %v504, %v5624
        %v6137 = vsel %vm5113, %v505, %v5625
        %v6138 = vsel %vm5114, %v506, %v5626
        %v6139 = vsel %vm5115, %v507, %v5627
        %v6140 = vsel %vm5116, %v508, %v5628
        %v6141 = vsel %vm5117, %v509, %v5629
        %v6142 = vsel %vm5118, %v510, %v5630
        %v6143 = vsel %vm5119, %v511, %v5631
        %v6144 = vsel %vm5120, %v512, %v5632
        %v6145 = vsel %vm5121, %v513, %v5633
        %v6146 = vsel %vm5122, %v514, %v5634
        %v6147 = vsel %vm5123, %v515, %v5635
        %v6148 = vsel %vm5124, %v516, %v5636
        %v6149 = vsel %vm5125, %v517, %v5637
        %v6150 = vsel %vm5126, %v518, %v5638
        %v6151 = vsel %vm5127, %v519, %v5639
        %v6152 = vsel %vm5128, %v520, %v5640
        %v6153 = vsel %vm5129, %v521, %v5641
        %v6154 = vsel %vm5130, %v522, %v5642
        %v6155 = vsel %vm5131, %v523, %v5643
        %v6156 = vsel %vm5132, %v524, %v5644
        %v6157 = vsel %vm5133, %v525, %v5645
        %v6158 = vsel %vm5134, %v526, %v5646
        %v6159 = vsel %vm5135, %v527, %v5647
        %v6160 = vsel %vm5136, %v528, %v5648
        %v6161 = vsel %vm5137, %v529, %v5649
        %v6162 = vsel %vm5138, %v530, %v5650
        %v6163 = vsel %vm5139, %v531, %v5651
        %v6164 = vsel %vm5140, %v532, %v5652
        %v6165 = vsel %vm5141, %v533, %v5653
        %v6166 = vsel %vm5142, %v534, %v5654
        %v6167 = vsel %vm5143, %v535, %v5655
        %v6168 = vsel %vm5144, %v536, %v5656
        %v6169 = vsel %vm5145, %v537, %v5657
        %v6170 = vsel %vm5146, %v538, %v5658
        %v6171 = vsel %vm5147, %v539, %v5659
        %v6172 = vsel %vm5148, %v540, %v5660
        %v6173 = vsel %vm5149, %v541, %v5661
        %v6174 = vsel %vm5150, %v542, %v5662
        %v6175 = vsel %vm5151, %v543, %v5663
        %v6176 = vsel %vm5152, %v544, %v5664
        %v6177 = vsel %vm5153, %v545, %v5665
        %v6178 = vsel %vm5154, %v546, %v5666
        %v6179 = vsel %vm5155, %v547, %v5667
        %v6180 = vsel %vm5156, %v548, %v5668
        %v6181 = vsel %vm5157, %v549, %v5669
        %v6182 = vsel %vm5158, %v550, %v5670
        %v6183 = vsel %vm5159, %v551, %v5671
        %v6184 = vsel %vm5160, %v552, %v5672
        %v6185 = vsel %vm5161, %v553, %v5673
        %v6186 = vsel %vm5162, %v554, %v5674
        %v6187 = vsel %vm5163, %v555, %v5675
        %v6188 = vsel %vm5164, %v556, %v5676
        %v6189 = vsel %vm5165, %v557, %v5677
        %v6190 = vsel %vm5166, %v558, %v5678
        %v6191 = vsel %vm5167, %v559, %v5679
        %v6192 = vsel %vm5168, %v560, %v5680
        %v6193 = vsel %vm5169, %v561, %v5681
        %v6194 = vsel %vm5170, %v562, %v5682
        %v6195 = vsel %vm5171, %v563, %v5683
        %v6196 = vsel %vm5172, %v564, %v5684
        %v6197 = vsel %vm5173, %v565, %v5685
        %v6198 = vsel %vm5174, %v566, %v5686
        %v6199 = vsel %vm5175, %v567, %v5687
        %v6200 = vsel %vm5176, %v568, %v5688
        %v6201 = vsel %vm5177, %v569, %v5689
        %v6202 = vsel %vm5178, %v570, %v5690
        %v6203 = vsel %vm5179, %v571, %v5691
        %v6204 = vsel %vm5180, %v572, %v5692
        %v6205 = vsel %vm5181, %v573, %v5693
        %v6206 = vsel %vm5182, %v574, %v5694
        %v6207 = vsel %vm5183, %v575, %v5695
        %v6208 = vsel %vm5184, %v576, %v5696
        %v6209 = vsel %vm5185, %v577, %v5697
        %v6210 = vsel %vm5186, %v578, %v5698
        %v6211 = vsel %vm5187, %v579, %v5699
        %v6212 = vsel %vm5188, %v580, %v5700
        %v6213 = vsel %vm5189, %v581, %v5701
        %v6214 = vsel %vm5190, %v582, %v5702
        %v6215 = vsel %vm5191, %v583, %v5703
        %v6216 = vsel %vm5192, %v584, %v5704
        %v6217 = vsel %vm5193, %v585, %v5705
        %v6218 = vsel %vm5194, %v586, %v5706
        %v6219 = vsel %vm5195, %v587, %v5707
        %v6220 = vsel %vm5196, %v588, %v5708
        %v6221 = vsel %vm5197, %v589, %v5709
        %v6222 = vsel %vm5198, %v590, %v5710
        %v6223 = vsel %vm5199, %v591, %v5711
        %v6224 = vsel %vm5200, %v592, %v5712
        %v6225 = vsel %vm5201, %v593, %v5713
        %v6226 = vsel %vm5202, %v594, %v5714
        %v6227 = vsel %vm5203, %v595, %v5715
        %v6228 = vsel %vm5204, %v596, %v5716
        %v6229 = vsel %vm5205, %v597, %v5717
        %v6230 = vsel %vm5206, %v598, %v5718
        %v6231 = vsel %vm5207, %v599, %v5719
        %v6232 = vsel %vm5208, %v600, %v5720
        %v6233 = vsel %vm5209, %v601, %v5721
        %v6234 = vsel %vm5210, %v602, %v5722
        %v6235 = vsel %vm5211, %v603, %v5723
        %v6236 = vsel %vm5212, %v604, %v5724
        %v6237 = vsel %vm5213, %v605, %v5725
        %v6238 = vsel %vm5214, %v606, %v5726
        %v6239 = vsel %vm5215, %v607, %v5727
        %v6240 = vsel %vm5216, %v608, %v5728
        %v6241 = vsel %vm5217, %v609, %v5729
        %v6242 = vsel %vm5218, %v610, %v5730
        %v6243 = vsel %vm5219, %v611, %v5731
        %v6244 = vsel %vm5220, %v612, %v5732
        %v6245 = vsel %vm5221, %v613, %v5733
        %v6246 = vsel %vm5222, %v614, %v5734
        %v6247 = vsel %vm5223, %v615, %v5735
        %v6248 = vsel %vm5224, %v616, %v5736
        %v6249 = vsel %vm5225, %v617, %v5737
        %v6250 = vsel %vm5226, %v618, %v5738
        %v6251 = vsel %vm5227, %v619, %v5739
        %v6252 = vsel %vm5228, %v620, %v5740
        %v6253 = vsel %vm5229, %v621, %v5741
        %v6254 = vsel %vm5230, %v622, %v5742
        %v6255 = vsel %vm5231, %v623, %v5743
        %v6256 = vsel %vm5232, %v624, %v5744
        %v6257 = vsel %vm5233, %v625, %v5745
        %v6258 = vsel %vm5234, %v626, %v5746
        %v6259 = vsel %vm5235, %v627, %v5747
        %v6260 = vsel %vm5236, %v628, %v5748
        %v6261 = vsel %vm5237, %v629, %v5749
        %v6262 = vsel %vm5238, %v630, %v5750
        %v6263 = vsel %vm5239, %v631, %v5751
        %v6264 = vsel %vm5240, %v632, %v5752
        %v6265 = vsel %vm5241, %v633, %v5753
        %v6266 = vsel %vm5242, %v634, %v5754
        %v6267 = vsel %vm5243, %v635, %v5755
        %v6268 = vsel %vm5244, %v636, %v5756
        %v6269 = vsel %vm5245, %v637, %v5757
        %v6270 = vsel %vm5246, %v638, %v5758
        %v6271 = vsel %vm5247, %v639, %v5759
        %v6272 = vsel %vm5248, %v640, %v5760
        %v6273 = vsel %vm5249, %v641, %v5761
        %v6274 = vsel %vm5250, %v642, %v5762
        %v6275 = vsel %vm5251, %v643, %v5763
        %v6276 = vsel %vm5252, %v644, %v5764
        %v6277 = vsel %vm5253, %v645, %v5765
        %v6278 = vsel %vm5254, %v646, %v5766
        %v6279 = vsel %vm5255, %v647, %v5767
        %v6280 = vsel %vm5256, %v648, %v5768
        %v6281 = vsel %vm5257, %v649, %v5769
        %6282 = vst [vmem:[%s135] sm:$0xff] %v5770
        %6283 = vst [vmem:[%s135 + $0x8] sm:$0xff] %v5771
        %6284 = vst [vmem:[%s135 + $0x10] sm:$0xff] %v5772
        %6285 = vst [vmem:[%s135 + $0x18] sm:$0xff] %v5773
        %6286 = vst [vmem:[%s135 + $0x20] sm:$0xff] %v5774
        %6287 = vst [vmem:[%s135 + $0x28] sm:$0xff] %v5775
        %6288 = vst [vmem:[%s135 + $0x30] sm:$0xff] %v5776
        %6289 = vst [vmem:[%s135 + $0x38] sm:$0xff] %v5777
        %6290 = vst [vmem:[%s135 + $0x40] sm:$0xff] %v5778
        %6291 = vst [vmem:[%s135 + $0x48] sm:$0xff] %v5779
        %6292 = vst [vmem:[%s135 + $0x50] sm:$0xff] %v5780
        %6293 = vst [vmem:[%s135 + $0x58] sm:$0xff] %v5781
        %6294 = vst [vmem:[%s135 + $0x60] sm:$0xff] %v5782
        %6295 = vst [vmem:[%s135 + $0x68] sm:$0xff] %v5783
        %6296 = vst [vmem:[%s135 + $0x70] sm:$0xff] %v5784
        %6297 = vst [vmem:[%s135 + $0x78] sm:$0xff] %v5785
        %6298 = vst [vmem:[%s135 + $0x80] sm:$0xff] %v5786
        %6299 = vst [vmem:[%s135 + $0x88] sm:$0xff] %v5787
        %6300 = vst [vmem:[%s135 + $0x90] sm:$0xff] %v5788
        %6301 = vst [vmem:[%s135 + $0x98] sm:$0xff] %v5789
        %6302 = vst [vmem:[%s135 + $0xa0] sm:$0xff] %v5790
        %6303 = vst [vmem:[%s135 + $0xa8] sm:$0xff] %v5791
        %6304 = vst [vmem:[%s135 + $0xb0] sm:$0xff] %v5792
        %6305 = vst [vmem:[%s135 + $0xb8] sm:$0xff] %v5793
        %6306 = vst [vmem:[%s135 + $0xc0] sm:$0xff] %v5794
        %6307 = vst [vmem:[%s135 + $0xc8] sm:$0xff] %v5795
        %6308 = vst [vmem:[%s135 + $0xd0] sm:$0xff] %v5796
        %6309 = vst [vmem:[%s135 + $0xd8] sm:$0xff] %v5797
        %6310 = vst [vmem:[%s135 + $0xe0] sm:$0xff] %v5798
        %6311 = vst [vmem:[%s135 + $0xe8] sm:$0xff] %v5799
        %6312 = vst [vmem:[%s135 + $0xf0] sm:$0xff] %v5800
        %6313 = vst [vmem:[%s135 + $0xf8] sm:$0xff] %v5801
        %6314 = vst [vmem:[%s135 + $0x100] sm:$0xff] %v5802
        %6315 = vst [vmem:[%s135 + $0x108] sm:$0xff] %v5803
        %6316 = vst [vmem:[%s135 + $0x110] sm:$0xff] %v5804
        %6317 = vst [vmem:[%s135 + $0x118] sm:$0xff] %v5805
        %6318 = vst [vmem:[%s135 + $0x120] sm:$0xff] %v5806
        %6319 = vst [vmem:[%s135 + $0x128] sm:$0xff] %v5807
        %6320 = vst [vmem:[%s135 + $0x130] sm:$0xff] %v5808
        %6321 = vst [vmem:[%s135 + $0x138] sm:$0xff] %v5809
        %6322 = vst [vmem:[%s135 + $0x140] sm:$0xff] %v5810
        %6323 = vst [vmem:[%s135 + $0x148] sm:$0xff] %v5811
        %6324 = vst [vmem:[%s135 + $0x150] sm:$0xff] %v5812
        %6325 = vst [vmem:[%s135 + $0x158] sm:$0xff] %v5813
        %6326 = vst [vmem:[%s135 + $0x160] sm:$0xff] %v5814
        %6327 = vst [vmem:[%s135 + $0x168] sm:$0xff] %v5815
        %6328 = vst [vmem:[%s135 + $0x170] sm:$0xff] %v5816
        %6329 = vst [vmem:[%s135 + $0x178] sm:$0xff] %v5817
        %6330 = vst [vmem:[%s135 + $0x180] sm:$0xff] %v5818
        %6331 = vst [vmem:[%s135 + $0x188] sm:$0xff] %v5819
        %6332 = vst [vmem:[%s135 + $0x190] sm:$0xff] %v5820
        %6333 = vst [vmem:[%s135 + $0x198] sm:$0xff] %v5821
        %6334 = vst [vmem:[%s135 + $0x1a0] sm:$0xff] %v5822
        %6335 = vst [vmem:[%s135 + $0x1a8] sm:$0xff] %v5823
        %6336 = vst [vmem:[%s135 + $0x1b0] sm:$0xff] %v5824
        %6337 = vst [vmem:[%s135 + $0x1b8] sm:$0xff] %v5825
        %6338 = vst [vmem:[%s135 + $0x1c0] sm:$0xff] %v5826
        %6339 = vst [vmem:[%s135 + $0x1c8] sm:$0xff] %v5827
        %6340 = vst [vmem:[%s135 + $0x1d0] sm:$0xff] %v5828
        %6341 = vst [vmem:[%s135 + $0x1d8] sm:$0xff] %v5829
        %6342 = vst [vmem:[%s135 + $0x1e0] sm:$0xff] %v5830
        %6343 = vst [vmem:[%s135 + $0x1e8] sm:$0xff] %v5831
        %6344 = vst [vmem:[%s135 + $0x1f0] sm:$0xff] %v5832
        %6345 = vst [vmem:[%s135 + $0x1f8] sm:$0xff] %v5833
        %6346 = vst [vmem:[%s135 + $0x200] sm:$0xff] %v5834
        %6347 = vst [vmem:[%s135 + $0x208] sm:$0xff] %v5835
        %6348 = vst [vmem:[%s135 + $0x210] sm:$0xff] %v5836
        %6349 = vst [vmem:[%s135 + $0x218] sm:$0xff] %v5837
        %6350 = vst [vmem:[%s135 + $0x220] sm:$0xff] %v5838
        %6351 = vst [vmem:[%s135 + $0x228] sm:$0xff] %v5839
        %6352 = vst [vmem:[%s135 + $0x230] sm:$0xff] %v5840
        %6353 = vst [vmem:[%s135 + $0x238] sm:$0xff] %v5841
        %6354 = vst [vmem:[%s135 + $0x240] sm:$0xff] %v5842
        %6355 = vst [vmem:[%s135 + $0x248] sm:$0xff] %v5843
        %6356 = vst [vmem:[%s135 + $0x250] sm:$0xff] %v5844
        %6357 = vst [vmem:[%s135 + $0x258] sm:$0xff] %v5845
        %6358 = vst [vmem:[%s135 + $0x260] sm:$0xff] %v5846
        %6359 = vst [vmem:[%s135 + $0x268] sm:$0xff] %v5847
        %6360 = vst [vmem:[%s135 + $0x270] sm:$0xff] %v5848
        %6361 = vst [vmem:[%s135 + $0x278] sm:$0xff] %v5849
        %6362 = vst [vmem:[%s135 + $0x280] sm:$0xff] %v5850
        %6363 = vst [vmem:[%s135 + $0x288] sm:$0xff] %v5851
        %6364 = vst [vmem:[%s135 + $0x290] sm:$0xff] %v5852
        %6365 = vst [vmem:[%s135 + $0x298] sm:$0xff] %v5853
        %6366 = vst [vmem:[%s135 + $0x2a0] sm:$0xff] %v5854
        %6367 = vst [vmem:[%s135 + $0x2a8] sm:$0xff] %v5855
        %6368 = vst [vmem:[%s135 + $0x2b0] sm:$0xff] %v5856
        %6369 = vst [vmem:[%s135 + $0x2b8] sm:$0xff] %v5857
        %6370 = vst [vmem:[%s135 + $0x2c0] sm:$0xff] %v5858
        %6371 = vst [vmem:[%s135 + $0x2c8] sm:$0xff] %v5859
        %6372 = vst [vmem:[%s135 + $0x2d0] sm:$0xff] %v5860
        %6373 = vst [vmem:[%s135 + $0x2d8] sm:$0xff] %v5861
        %6374 = vst [vmem:[%s135 + $0x2e0] sm:$0xff] %v5862
        %6375 = vst [vmem:[%s135 + $0x2e8] sm:$0xff] %v5863
        %6376 = vst [vmem:[%s135 + $0x2f0] sm:$0xff] %v5864
        %6377 = vst [vmem:[%s135 + $0x2f8] sm:$0xff] %v5865
        %6378 = vst [vmem:[%s135 + $0x300] sm:$0xff] %v5866
        %6379 = vst [vmem:[%s135 + $0x308] sm:$0xff] %v5867
        %6380 = vst [vmem:[%s135 + $0x310] sm:$0xff] %v5868
        %6381 = vst [vmem:[%s135 + $0x318] sm:$0xff] %v5869
        %6382 = vst [vmem:[%s135 + $0x320] sm:$0xff] %v5870
        %6383 = vst [vmem:[%s135 + $0x328] sm:$0xff] %v5871
        %6384 = vst [vmem:[%s135 + $0x330] sm:$0xff] %v5872
        %6385 = vst [vmem:[%s135 + $0x338] sm:$0xff] %v5873
        %6386 = vst [vmem:[%s135 + $0x340] sm:$0xff] %v5874
        %6387 = vst [vmem:[%s135 + $0x348] sm:$0xff] %v5875
        %6388 = vst [vmem:[%s135 + $0x350] sm:$0xff] %v5876
        %6389 = vst [vmem:[%s135 + $0x358] sm:$0xff] %v5877
        %6390 = vst [vmem:[%s135 + $0x360] sm:$0xff] %v5878
        %6391 = vst [vmem:[%s135 + $0x368] sm:$0xff] %v5879
        %6392 = vst [vmem:[%s135 + $0x370] sm:$0xff] %v5880
        %6393 = vst [vmem:[%s135 + $0x378] sm:$0xff] %v5881
        %6394 = vst [vmem:[%s135 + $0x380] sm:$0xff] %v5882
        %6395 = vst [vmem:[%s135 + $0x388] sm:$0xff] %v5883
        %6396 = vst [vmem:[%s135 + $0x390] sm:$0xff] %v5884
        %6397 = vst [vmem:[%s135 + $0x398] sm:$0xff] %v5885
        %6398 = vst [vmem:[%s135 + $0x3a0] sm:$0xff] %v5886
        %6399 = vst [vmem:[%s135 + $0x3a8] sm:$0xff] %v5887
        %6400 = vst [vmem:[%s135 + $0x3b0] sm:$0xff] %v5888
        %6401 = vst [vmem:[%s135 + $0x3b8] sm:$0xff] %v5889
        %6402 = vst [vmem:[%s135 + $0x3c0] sm:$0xff] %v5890
        %6403 = vst [vmem:[%s135 + $0x3c8] sm:$0xff] %v5891
        %6404 = vst [vmem:[%s135 + $0x3d0] sm:$0xff] %v5892
        %6405 = vst [vmem:[%s135 + $0x3d8] sm:$0xff] %v5893
        %6406 = vst [vmem:[%s135 + $0x3e0] sm:$0xff] %v5894
        %6407 = vst [vmem:[%s135 + $0x3e8] sm:$0xff] %v5895
        %6408 = vst [vmem:[%s135 + $0x3f0] sm:$0xff] %v5896
        %6409 = vst [vmem:[%s135 + $0x3f8] sm:$0xff] %v5897
        %6410 = vst [vmem:[%s135 + $0x400] sm:$0xff] %v5898
        %6411 = vst [vmem:[%s135 + $0x408] sm:$0xff] %v5899
        %6412 = vst [vmem:[%s135 + $0x410] sm:$0xff] %v5900
        %6413 = vst [vmem:[%s135 + $0x418] sm:$0xff] %v5901
        %6414 = vst [vmem:[%s135 + $0x420] sm:$0xff] %v5902
        %6415 = vst [vmem:[%s135 + $0x428] sm:$0xff] %v5903
        %6416 = vst [vmem:[%s135 + $0x430] sm:$0xff] %v5904
        %6417 = vst [vmem:[%s135 + $0x438] sm:$0xff] %v5905
        %6418 = vst [vmem:[%s135 + $0x440] sm:$0xff] %v5906
        %6419 = vst [vmem:[%s135 + $0x448] sm:$0xff] %v5907
        %6420 = vst [vmem:[%s135 + $0x450] sm:$0xff] %v5908
        %6421 = vst [vmem:[%s135 + $0x458] sm:$0xff] %v5909
        %6422 = vst [vmem:[%s135 + $0x460] sm:$0xff] %v5910
        %6423 = vst [vmem:[%s135 + $0x468] sm:$0xff] %v5911
        %6424 = vst [vmem:[%s135 + $0x470] sm:$0xff] %v5912
        %6425 = vst [vmem:[%s135 + $0x478] sm:$0xff] %v5913
        %6426 = vst [vmem:[%s135 + $0x480] sm:$0xff] %v5914
        %6427 = vst [vmem:[%s135 + $0x488] sm:$0xff] %v5915
        %6428 = vst [vmem:[%s135 + $0x490] sm:$0xff] %v5916
        %6429 = vst [vmem:[%s135 + $0x498] sm:$0xff] %v5917
        %6430 = vst [vmem:[%s135 + $0x4a0] sm:$0xff] %v5918
        %6431 = vst [vmem:[%s135 + $0x4a8] sm:$0xff] %v5919
        %6432 = vst [vmem:[%s135 + $0x4b0] sm:$0xff] %v5920
        %6433 = vst [vmem:[%s135 + $0x4b8] sm:$0xff] %v5921
        %6434 = vst [vmem:[%s135 + $0x4c0] sm:$0xff] %v5922
        %6435 = vst [vmem:[%s135 + $0x4c8] sm:$0xff] %v5923
        %6436 = vst [vmem:[%s135 + $0x4d0] sm:$0xff] %v5924
        %6437 = vst [vmem:[%s135 + $0x4d8] sm:$0xff] %v5925
        %6438 = vst [vmem:[%s135 + $0x4e0] sm:$0xff] %v5926
        %6439 = vst [vmem:[%s135 + $0x4e8] sm:$0xff] %v5927
        %6440 = vst [vmem:[%s135 + $0x4f0] sm:$0xff] %v5928
        %6441 = vst [vmem:[%s135 + $0x4f8] sm:$0xff] %v5929
        %6442 = vst [vmem:[%s135 + $0x500] sm:$0xff] %v5930
        %6443 = vst [vmem:[%s135 + $0x508] sm:$0xff] %v5931
        %6444 = vst [vmem:[%s135 + $0x510] sm:$0xff] %v5932
        %6445 = vst [vmem:[%s135 + $0x518] sm:$0xff] %v5933
        %6446 = vst [vmem:[%s135 + $0x520] sm:$0xff] %v5934
        %6447 = vst [vmem:[%s135 + $0x528] sm:$0xff] %v5935
        %6448 = vst [vmem:[%s135 + $0x530] sm:$0xff] %v5936
        %6449 = vst [vmem:[%s135 + $0x538] sm:$0xff] %v5937
        %6450 = vst [vmem:[%s135 + $0x540] sm:$0xff] %v5938
        %6451 = vst [vmem:[%s135 + $0x548] sm:$0xff] %v5939
        %6452 = vst [vmem:[%s135 + $0x550] sm:$0xff] %v5940
        %6453 = vst [vmem:[%s135 + $0x558] sm:$0xff] %v5941
        %6454 = vst [vmem:[%s135 + $0x560] sm:$0xff] %v5942
        %6455 = vst [vmem:[%s135 + $0x568] sm:$0xff] %v5943
        %6456 = vst [vmem:[%s135 + $0x570] sm:$0xff] %v5944
        %6457 = vst [vmem:[%s135 + $0x578] sm:$0xff] %v5945
        %6458 = vst [vmem:[%s135 + $0x580] sm:$0xff] %v5946
        %6459 = vst [vmem:[%s135 + $0x588] sm:$0xff] %v5947
        %6460 = vst [vmem:[%s135 + $0x590] sm:$0xff] %v5948
        %6461 = vst [vmem:[%s135 + $0x598] sm:$0xff] %v5949
        %6462 = vst [vmem:[%s135 + $0x5a0] sm:$0xff] %v5950
        %6463 = vst [vmem:[%s135 + $0x5a8] sm:$0xff] %v5951
        %6464 = vst [vmem:[%s135 + $0x5b0] sm:$0xff] %v5952
        %6465 = vst [vmem:[%s135 + $0x5b8] sm:$0xff] %v5953
        %6466 = vst [vmem:[%s135 + $0x5c0] sm:$0xff] %v5954
        %6467 = vst [vmem:[%s135 + $0x5c8] sm:$0xff] %v5955
        %6468 = vst [vmem:[%s135 + $0x5d0] sm:$0xff] %v5956
        %6469 = vst [vmem:[%s135 + $0x5d8] sm:$0xff] %v5957
        %6470 = vst [vmem:[%s135 + $0x5e0] sm:$0xff] %v5958
        %6471 = vst [vmem:[%s135 + $0x5e8] sm:$0xff] %v5959
        %6472 = vst [vmem:[%s135 + $0x5f0] sm:$0xff] %v5960
        %6473 = vst [vmem:[%s135 + $0x5f8] sm:$0xff] %v5961
        %6474 = vst [vmem:[%s135 + $0x600] sm:$0xff] %v5962
        %6475 = vst [vmem:[%s135 + $0x608] sm:$0xff] %v5963
        %6476 = vst [vmem:[%s135 + $0x610] sm:$0xff] %v5964
        %6477 = vst [vmem:[%s135 + $0x618] sm:$0xff] %v5965
        %6478 = vst [vmem:[%s135 + $0x620] sm:$0xff] %v5966
        %6479 = vst [vmem:[%s135 + $0x628] sm:$0xff] %v5967
        %6480 = vst [vmem:[%s135 + $0x630] sm:$0xff] %v5968
        %6481 = vst [vmem:[%s135 + $0x638] sm:$0xff] %v5969
        %6482 = vst [vmem:[%s135 + $0x640] sm:$0xff] %v5970
        %6483 = vst [vmem:[%s135 + $0x648] sm:$0xff] %v5971
        %6484 = vst [vmem:[%s135 + $0x650] sm:$0xff] %v5972
        %6485 = vst [vmem:[%s135 + $0x658] sm:$0xff] %v5973
        %6486 = vst [vmem:[%s135 + $0x660] sm:$0xff] %v5974
        %6487 = vst [vmem:[%s135 + $0x668] sm:$0xff] %v5975
        %6488 = vst [vmem:[%s135 + $0x670] sm:$0xff] %v5976
        %6489 = vst [vmem:[%s135 + $0x678] sm:$0xff] %v5977
        %6490 = vst [vmem:[%s135 + $0x680] sm:$0xff] %v5978
        %6491 = vst [vmem:[%s135 + $0x688] sm:$0xff] %v5979
        %6492 = vst [vmem:[%s135 + $0x690] sm:$0xff] %v5980
        %6493 = vst [vmem:[%s135 + $0x698] sm:$0xff] %v5981
        %6494 = vst [vmem:[%s135 + $0x6a0] sm:$0xff] %v5982
        %6495 = vst [vmem:[%s135 + $0x6a8] sm:$0xff] %v5983
        %6496 = vst [vmem:[%s135 + $0x6b0] sm:$0xff] %v5984
        %6497 = vst [vmem:[%s135 + $0x6b8] sm:$0xff] %v5985
        %6498 = vst [vmem:[%s135 + $0x6c0] sm:$0xff] %v5986
        %6499 = vst [vmem:[%s135 + $0x6c8] sm:$0xff] %v5987
        %6500 = vst [vmem:[%s135 + $0x6d0] sm:$0xff] %v5988
        %6501 = vst [vmem:[%s135 + $0x6d8] sm:$0xff] %v5989
        %6502 = vst [vmem:[%s135 + $0x6e0] sm:$0xff] %v5990
        %6503 = vst [vmem:[%s135 + $0x6e8] sm:$0xff] %v5991
        %6504 = vst [vmem:[%s135 + $0x6f0] sm:$0xff] %v5992
        %6505 = vst [vmem:[%s135 + $0x6f8] sm:$0xff] %v5993
        %6506 = vst [vmem:[%s135 + $0x700] sm:$0xff] %v5994
        %6507 = vst [vmem:[%s135 + $0x708] sm:$0xff] %v5995
        %6508 = vst [vmem:[%s135 + $0x710] sm:$0xff] %v5996
        %6509 = vst [vmem:[%s135 + $0x718] sm:$0xff] %v5997
        %6510 = vst [vmem:[%s135 + $0x720] sm:$0xff] %v5998
        %6511 = vst [vmem:[%s135 + $0x728] sm:$0xff] %v5999
        %6512 = vst [vmem:[%s135 + $0x730] sm:$0xff] %v6000
        %6513 = vst [vmem:[%s135 + $0x738] sm:$0xff] %v6001
        %6514 = vst [vmem:[%s135 + $0x740] sm:$0xff] %v6002
        %6515 = vst [vmem:[%s135 + $0x748] sm:$0xff] %v6003
        %6516 = vst [vmem:[%s135 + $0x750] sm:$0xff] %v6004
        %6517 = vst [vmem:[%s135 + $0x758] sm:$0xff] %v6005
        %6518 = vst [vmem:[%s135 + $0x760] sm:$0xff] %v6006
        %6519 = vst [vmem:[%s135 + $0x768] sm:$0xff] %v6007
        %6520 = vst [vmem:[%s135 + $0x770] sm:$0xff] %v6008
        %6521 = vst [vmem:[%s135 + $0x778] sm:$0xff] %v6009
        %6522 = vst [vmem:[%s135 + $0x780] sm:$0xff] %v6010
        %6523 = vst [vmem:[%s135 + $0x788] sm:$0xff] %v6011
        %6524 = vst [vmem:[%s135 + $0x790] sm:$0xff] %v6012
        %6525 = vst [vmem:[%s135 + $0x798] sm:$0xff] %v6013
        %6526 = vst [vmem:[%s135 + $0x7a0] sm:$0xff] %v6014
        %6527 = vst [vmem:[%s135 + $0x7a8] sm:$0xff] %v6015
        %6528 = vst [vmem:[%s135 + $0x7b0] sm:$0xff] %v6016
        %6529 = vst [vmem:[%s135 + $0x7b8] sm:$0xff] %v6017
        %6530 = vst [vmem:[%s135 + $0x7c0] sm:$0xff] %v6018
        %6531 = vst [vmem:[%s135 + $0x7c8] sm:$0xff] %v6019
        %6532 = vst [vmem:[%s135 + $0x7d0] sm:$0xff] %v6020
        %6533 = vst [vmem:[%s135 + $0x7d8] sm:$0xff] %v6021
        %6534 = vst [vmem:[%s135 + $0x7e0] sm:$0xff] %v6022
        %6535 = vst [vmem:[%s135 + $0x7e8] sm:$0xff] %v6023
        %6536 = vst [vmem:[%s135 + $0x7f0] sm:$0xff] %v6024
        %6537 = vst [vmem:[%s135 + $0x7f8] sm:$0xff] %v6025
        %6538 = vst [vmem:[%s135 + $0x800] sm:$0xff] %v6026
        %6539 = vst [vmem:[%s135 + $0x808] sm:$0xff] %v6027
        %6540 = vst [vmem:[%s135 + $0x810] sm:$0xff] %v6028
        %6541 = vst [vmem:[%s135 + $0x818] sm:$0xff] %v6029
        %6542 = vst [vmem:[%s135 + $0x820] sm:$0xff] %v6030
        %6543 = vst [vmem:[%s135 + $0x828] sm:$0xff] %v6031
        %6544 = vst [vmem:[%s135 + $0x830] sm:$0xff] %v6032
        %6545 = vst [vmem:[%s135 + $0x838] sm:$0xff] %v6033
        %6546 = vst [vmem:[%s135 + $0x840] sm:$0xff] %v6034
        %6547 = vst [vmem:[%s135 + $0x848] sm:$0xff] %v6035
        %6548 = vst [vmem:[%s135 + $0x850] sm:$0xff] %v6036
        %6549 = vst [vmem:[%s135 + $0x858] sm:$0xff] %v6037
        %6550 = vst [vmem:[%s135 + $0x860] sm:$0xff] %v6038
        %6551 = vst [vmem:[%s135 + $0x868] sm:$0xff] %v6039
        %6552 = vst [vmem:[%s135 + $0x870] sm:$0xff] %v6040
        %6553 = vst [vmem:[%s135 + $0x878] sm:$0xff] %v6041
        %6554 = vst [vmem:[%s135 + $0x880] sm:$0xff] %v6042
        %6555 = vst [vmem:[%s135 + $0x888] sm:$0xff] %v6043
        %6556 = vst [vmem:[%s135 + $0x890] sm:$0xff] %v6044
        %6557 = vst [vmem:[%s135 + $0x898] sm:$0xff] %v6045
        %6558 = vst [vmem:[%s135 + $0x8a0] sm:$0xff] %v6046
        %6559 = vst [vmem:[%s135 + $0x8a8] sm:$0xff] %v6047
        %6560 = vst [vmem:[%s135 + $0x8b0] sm:$0xff] %v6048
        %6561 = vst [vmem:[%s135 + $0x8b8] sm:$0xff] %v6049
        %6562 = vst [vmem:[%s135 + $0x8c0] sm:$0xff] %v6050
        %6563 = vst [vmem:[%s135 + $0x8c8] sm:$0xff] %v6051
        %6564 = vst [vmem:[%s135 + $0x8d0] sm:$0xff] %v6052
        %6565 = vst [vmem:[%s135 + $0x8d8] sm:$0xff] %v6053
        %6566 = vst [vmem:[%s135 + $0x8e0] sm:$0xff] %v6054
        %6567 = vst [vmem:[%s135 + $0x8e8] sm:$0xff] %v6055
        %6568 = vst [vmem:[%s135 + $0x8f0] sm:$0xff] %v6056
        %6569 = vst [vmem:[%s135 + $0x8f8] sm:$0xff] %v6057
        %6570 = vst [vmem:[%s135 + $0x900] sm:$0xff] %v6058
        %6571 = vst [vmem:[%s135 + $0x908] sm:$0xff] %v6059
        %6572 = vst [vmem:[%s135 + $0x910] sm:$0xff] %v6060
        %6573 = vst [vmem:[%s135 + $0x918] sm:$0xff] %v6061
        %6574 = vst [vmem:[%s135 + $0x920] sm:$0xff] %v6062
        %6575 = vst [vmem:[%s135 + $0x928] sm:$0xff] %v6063
        %6576 = vst [vmem:[%s135 + $0x930] sm:$0xff] %v6064
        %6577 = vst [vmem:[%s135 + $0x938] sm:$0xff] %v6065
        %6578 = vst [vmem:[%s135 + $0x940] sm:$0xff] %v6066
        %6579 = vst [vmem:[%s135 + $0x948] sm:$0xff] %v6067
        %6580 = vst [vmem:[%s135 + $0x950] sm:$0xff] %v6068
        %6581 = vst [vmem:[%s135 + $0x958] sm:$0xff] %v6069
        %6582 = vst [vmem:[%s135 + $0x960] sm:$0xff] %v6070
        %6583 = vst [vmem:[%s135 + $0x968] sm:$0xff] %v6071
        %6584 = vst [vmem:[%s135 + $0x970] sm:$0xff] %v6072
        %6585 = vst [vmem:[%s135 + $0x978] sm:$0xff] %v6073
        %6586 = vst [vmem:[%s135 + $0x980] sm:$0xff] %v6074
        %6587 = vst [vmem:[%s135 + $0x988] sm:$0xff] %v6075
        %6588 = vst [vmem:[%s135 + $0x990] sm:$0xff] %v6076
        %6589 = vst [vmem:[%s135 + $0x998] sm:$0xff] %v6077
        %6590 = vst [vmem:[%s135 + $0x9a0] sm:$0xff] %v6078
        %6591 = vst [vmem:[%s135 + $0x9a8] sm:$0xff] %v6079
        %6592 = vst [vmem:[%s135 + $0x9b0] sm:$0xff] %v6080
        %6593 = vst [vmem:[%s135 + $0x9b8] sm:$0xff] %v6081
        %6594 = vst [vmem:[%s135 + $0x9c0] sm:$0xff] %v6082
        %6595 = vst [vmem:[%s135 + $0x9c8] sm:$0xff] %v6083
        %6596 = vst [vmem:[%s135 + $0x9d0] sm:$0xff] %v6084
        %6597 = vst [vmem:[%s135 + $0x9d8] sm:$0xff] %v6085
        %6598 = vst [vmem:[%s135 + $0x9e0] sm:$0xff] %v6086
        %6599 = vst [vmem:[%s135 + $0x9e8] sm:$0xff] %v6087
        %6600 = vst [vmem:[%s135 + $0x9f0] sm:$0xff] %v6088
        %6601 = vst [vmem:[%s135 + $0x9f8] sm:$0xff] %v6089
        %6602 = vst [vmem:[%s135 + $0xa00] sm:$0xff] %v6090
        %6603 = vst [vmem:[%s135 + $0xa08] sm:$0xff] %v6091
        %6604 = vst [vmem:[%s135 + $0xa10] sm:$0xff] %v6092
        %6605 = vst [vmem:[%s135 + $0xa18] sm:$0xff] %v6093
        %6606 = vst [vmem:[%s135 + $0xa20] sm:$0xff] %v6094
        %6607 = vst [vmem:[%s135 + $0xa28] sm:$0xff] %v6095
        %6608 = vst [vmem:[%s135 + $0xa30] sm:$0xff] %v6096
        %6609 = vst [vmem:[%s135 + $0xa38] sm:$0xff] %v6097
        %6610 = vst [vmem:[%s135 + $0xa40] sm:$0xff] %v6098
        %6611 = vst [vmem:[%s135 + $0xa48] sm:$0xff] %v6099
        %6612 = vst [vmem:[%s135 + $0xa50] sm:$0xff] %v6100
        %6613 = vst [vmem:[%s135 + $0xa58] sm:$0xff] %v6101
        %6614 = vst [vmem:[%s135 + $0xa60] sm:$0xff] %v6102
        %6615 = vst [vmem:[%s135 + $0xa68] sm:$0xff] %v6103
        %6616 = vst [vmem:[%s135 + $0xa70] sm:$0xff] %v6104
        %6617 = vst [vmem:[%s135 + $0xa78] sm:$0xff] %v6105
        %6618 = vst [vmem:[%s135 + $0xa80] sm:$0xff] %v6106
        %6619 = vst [vmem:[%s135 + $0xa88] sm:$0xff] %v6107
        %6620 = vst [vmem:[%s135 + $0xa90] sm:$0xff] %v6108
        %6621 = vst [vmem:[%s135 + $0xa98] sm:$0xff] %v6109
        %6622 = vst [vmem:[%s135 + $0xaa0] sm:$0xff] %v6110
        %6623 = vst [vmem:[%s135 + $0xaa8] sm:$0xff] %v6111
        %6624 = vst [vmem:[%s135 + $0xab0] sm:$0xff] %v6112
        %6625 = vst [vmem:[%s135 + $0xab8] sm:$0xff] %v6113
        %6626 = vst [vmem:[%s135 + $0xac0] sm:$0xff] %v6114
        %6627 = vst [vmem:[%s135 + $0xac8] sm:$0xff] %v6115
        %6628 = vst [vmem:[%s135 + $0xad0] sm:$0xff] %v6116
        %6629 = vst [vmem:[%s135 + $0xad8] sm:$0xff] %v6117
        %6630 = vst [vmem:[%s135 + $0xae0] sm:$0xff] %v6118
        %6631 = vst [vmem:[%s135 + $0xae8] sm:$0xff] %v6119
        %6632 = vst [vmem:[%s135 + $0xaf0] sm:$0xff] %v6120
        %6633 = vst [vmem:[%s135 + $0xaf8] sm:$0xff] %v6121
        %6634 = vst [vmem:[%s135 + $0xb00] sm:$0xff] %v6122
        %6635 = vst [vmem:[%s135 + $0xb08] sm:$0xff] %v6123
        %6636 = vst [vmem:[%s135 + $0xb10] sm:$0xff] %v6124
        %6637 = vst [vmem:[%s135 + $0xb18] sm:$0xff] %v6125
        %6638 = vst [vmem:[%s135 + $0xb20] sm:$0xff] %v6126
        %6639 = vst [vmem:[%s135 + $0xb28] sm:$0xff] %v6127
        %6640 = vst [vmem:[%s135 + $0xb30] sm:$0xff] %v6128
        %6641 = vst [vmem:[%s135 + $0xb38] sm:$0xff] %v6129
        %6642 = vst [vmem:[%s135 + $0xb40] sm:$0xff] %v6130
        %6643 = vst [vmem:[%s135 + $0xb48] sm:$0xff] %v6131
        %6644 = vst [vmem:[%s135 + $0xb50] sm:$0xff] %v6132
        %6645 = vst [vmem:[%s135 + $0xb58] sm:$0xff] %v6133
        %6646 = vst [vmem:[%s135 + $0xb60] sm:$0xff] %v6134
        %6647 = vst [vmem:[%s135 + $0xb68] sm:$0xff] %v6135
        %6648 = vst [vmem:[%s135 + $0xb70] sm:$0xff] %v6136
        %6649 = vst [vmem:[%s135 + $0xb78] sm:$0xff] %v6137
        %6650 = vst [vmem:[%s135 + $0xb80] sm:$0xff] %v6138
        %6651 = vst [vmem:[%s135 + $0xb88] sm:$0xff] %v6139
        %6652 = vst [vmem:[%s135 + $0xb90] sm:$0xff] %v6140
        %6653 = vst [vmem:[%s135 + $0xb98] sm:$0xff] %v6141
        %6654 = vst [vmem:[%s135 + $0xba0] sm:$0xff] %v6142
        %6655 = vst [vmem:[%s135 + $0xba8] sm:$0xff] %v6143
        %6656 = vst [vmem:[%s135 + $0xbb0] sm:$0xff] %v6144
        %6657 = vst [vmem:[%s135 + $0xbb8] sm:$0xff] %v6145
        %6658 = vst [vmem:[%s135 + $0xbc0] sm:$0xff] %v6146
        %6659 = vst [vmem:[%s135 + $0xbc8] sm:$0xff] %v6147
        %6660 = vst [vmem:[%s135 + $0xbd0] sm:$0xff] %v6148
        %6661 = vst [vmem:[%s135 + $0xbd8] sm:$0xff] %v6149
        %6662 = vst [vmem:[%s135 + $0xbe0] sm:$0xff] %v6150
        %6663 = vst [vmem:[%s135 + $0xbe8] sm:$0xff] %v6151
        %6664 = vst [vmem:[%s135 + $0xbf0] sm:$0xff] %v6152
        %6665 = vst [vmem:[%s135 + $0xbf8] sm:$0xff] %v6153
        %6666 = vst [vmem:[%s135 + $0xc00] sm:$0xff] %v6154
        %6667 = vst [vmem:[%s135 + $0xc08] sm:$0xff] %v6155
        %6668 = vst [vmem:[%s135 + $0xc10] sm:$0xff] %v6156
        %6669 = vst [vmem:[%s135 + $0xc18] sm:$0xff] %v6157
        %6670 = vst [vmem:[%s135 + $0xc20] sm:$0xff] %v6158
        %6671 = vst [vmem:[%s135 + $0xc28] sm:$0xff] %v6159
        %6672 = vst [vmem:[%s135 + $0xc30] sm:$0xff] %v6160
        %6673 = vst [vmem:[%s135 + $0xc38] sm:$0xff] %v6161
        %6674 = vst [vmem:[%s135 + $0xc40] sm:$0xff] %v6162
        %6675 = vst [vmem:[%s135 + $0xc48] sm:$0xff] %v6163
        %6676 = vst [vmem:[%s135 + $0xc50] sm:$0xff] %v6164
        %6677 = vst [vmem:[%s135 + $0xc58] sm:$0xff] %v6165
        %6678 = vst [vmem:[%s135 + $0xc60] sm:$0xff] %v6166
        %6679 = vst [vmem:[%s135 + $0xc68] sm:$0xff] %v6167
        %6680 = vst [vmem:[%s135 + $0xc70] sm:$0xff] %v6168
        %6681 = vst [vmem:[%s135 + $0xc78] sm:$0xff] %v6169
        %6682 = vst [vmem:[%s135 + $0xc80] sm:$0xff] %v6170
        %6683 = vst [vmem:[%s135 + $0xc88] sm:$0xff] %v6171
        %6684 = vst [vmem:[%s135 + $0xc90] sm:$0xff] %v6172
        %6685 = vst [vmem:[%s135 + $0xc98] sm:$0xff] %v6173
        %6686 = vst [vmem:[%s135 + $0xca0] sm:$0xff] %v6174
        %6687 = vst [vmem:[%s135 + $0xca8] sm:$0xff] %v6175
        %6688 = vst [vmem:[%s135 + $0xcb0] sm:$0xff] %v6176
        %6689 = vst [vmem:[%s135 + $0xcb8] sm:$0xff] %v6177
        %6690 = vst [vmem:[%s135 + $0xcc0] sm:$0xff] %v6178
        %6691 = vst [vmem:[%s135 + $0xcc8] sm:$0xff] %v6179
        %6692 = vst [vmem:[%s135 + $0xcd0] sm:$0xff] %v6180
        %6693 = vst [vmem:[%s135 + $0xcd8] sm:$0xff] %v6181
        %6694 = vst [vmem:[%s135 + $0xce0] sm:$0xff] %v6182
        %6695 = vst [vmem:[%s135 + $0xce8] sm:$0xff] %v6183
        %6696 = vst [vmem:[%s135 + $0xcf0] sm:$0xff] %v6184
        %6697 = vst [vmem:[%s135 + $0xcf8] sm:$0xff] %v6185
        %6698 = vst [vmem:[%s135 + $0xd00] sm:$0xff] %v6186
        %6699 = vst [vmem:[%s135 + $0xd08] sm:$0xff] %v6187
        %6700 = vst [vmem:[%s135 + $0xd10] sm:$0xff] %v6188
        %6701 = vst [vmem:[%s135 + $0xd18] sm:$0xff] %v6189
        %6702 = vst [vmem:[%s135 + $0xd20] sm:$0xff] %v6190
        %6703 = vst [vmem:[%s135 + $0xd28] sm:$0xff] %v6191
        %6704 = vst [vmem:[%s135 + $0xd30] sm:$0xff] %v6192
        %6705 = vst [vmem:[%s135 + $0xd38] sm:$0xff] %v6193
        %6706 = vst [vmem:[%s135 + $0xd40] sm:$0xff] %v6194
        %6707 = vst [vmem:[%s135 + $0xd48] sm:$0xff] %v6195
        %6708 = vst [vmem:[%s135 + $0xd50] sm:$0xff] %v6196
        %6709 = vst [vmem:[%s135 + $0xd58] sm:$0xff] %v6197
        %6710 = vst [vmem:[%s135 + $0xd60] sm:$0xff] %v6198
        %6711 = vst [vmem:[%s135 + $0xd68] sm:$0xff] %v6199
        %6712 = vst [vmem:[%s135 + $0xd70] sm:$0xff] %v6200
        %6713 = vst [vmem:[%s135 + $0xd78] sm:$0xff] %v6201
        %6714 = vst [vmem:[%s135 + $0xd80] sm:$0xff] %v6202
        %6715 = vst [vmem:[%s135 + $0xd88] sm:$0xff] %v6203
        %6716 = vst [vmem:[%s135 + $0xd90] sm:$0xff] %v6204
        %6717 = vst [vmem:[%s135 + $0xd98] sm:$0xff] %v6205
        %6718 = vst [vmem:[%s135 + $0xda0] sm:$0xff] %v6206
        %6719 = vst [vmem:[%s135 + $0xda8] sm:$0xff] %v6207
        %6720 = vst [vmem:[%s135 + $0xdb0] sm:$0xff] %v6208
        %6721 = vst [vmem:[%s135 + $0xdb8] sm:$0xff] %v6209
        %6722 = vst [vmem:[%s135 + $0xdc0] sm:$0xff] %v6210
        %6723 = vst [vmem:[%s135 + $0xdc8] sm:$0xff] %v6211
        %6724 = vst [vmem:[%s135 + $0xdd0] sm:$0xff] %v6212
        %6725 = vst [vmem:[%s135 + $0xdd8] sm:$0xff] %v6213
        %6726 = vst [vmem:[%s135 + $0xde0] sm:$0xff] %v6214
        %6727 = vst [vmem:[%s135 + $0xde8] sm:$0xff] %v6215
        %6728 = vst [vmem:[%s135 + $0xdf0] sm:$0xff] %v6216
        %6729 = vst [vmem:[%s135 + $0xdf8] sm:$0xff] %v6217
        %6730 = vst [vmem:[%s135 + $0xe00] sm:$0xff] %v6218
        %6731 = vst [vmem:[%s135 + $0xe08] sm:$0xff] %v6219
        %6732 = vst [vmem:[%s135 + $0xe10] sm:$0xff] %v6220
        %6733 = vst [vmem:[%s135 + $0xe18] sm:$0xff] %v6221
        %6734 = vst [vmem:[%s135 + $0xe20] sm:$0xff] %v6222
        %6735 = vst [vmem:[%s135 + $0xe28] sm:$0xff] %v6223
        %6736 = vst [vmem:[%s135 + $0xe30] sm:$0xff] %v6224
        %6737 = vst [vmem:[%s135 + $0xe38] sm:$0xff] %v6225
        %6738 = vst [vmem:[%s135 + $0xe40] sm:$0xff] %v6226
        %6739 = vst [vmem:[%s135 + $0xe48] sm:$0xff] %v6227
        %6740 = vst [vmem:[%s135 + $0xe50] sm:$0xff] %v6228
        %6741 = vst [vmem:[%s135 + $0xe58] sm:$0xff] %v6229
        %6742 = vst [vmem:[%s135 + $0xe60] sm:$0xff] %v6230
        %6743 = vst [vmem:[%s135 + $0xe68] sm:$0xff] %v6231
        %6744 = vst [vmem:[%s135 + $0xe70] sm:$0xff] %v6232
        %6745 = vst [vmem:[%s135 + $0xe78] sm:$0xff] %v6233
        %6746 = vst [vmem:[%s135 + $0xe80] sm:$0xff] %v6234
        %6747 = vst [vmem:[%s135 + $0xe88] sm:$0xff] %v6235
        %6748 = vst [vmem:[%s135 + $0xe90] sm:$0xff] %v6236
        %6749 = vst [vmem:[%s135 + $0xe98] sm:$0xff] %v6237
        %6750 = vst [vmem:[%s135 + $0xea0] sm:$0xff] %v6238
        %6751 = vst [vmem:[%s135 + $0xea8] sm:$0xff] %v6239
        %6752 = vst [vmem:[%s135 + $0xeb0] sm:$0xff] %v6240
        %6753 = vst [vmem:[%s135 + $0xeb8] sm:$0xff] %v6241
        %6754 = vst [vmem:[%s135 + $0xec0] sm:$0xff] %v6242
        %6755 = vst [vmem:[%s135 + $0xec8] sm:$0xff] %v6243
        %6756 = vst [vmem:[%s135 + $0xed0] sm:$0xff] %v6244
        %6757 = vst [vmem:[%s135 + $0xed8] sm:$0xff] %v6245
        %6758 = vst [vmem:[%s135 + $0xee0] sm:$0xff] %v6246
        %6759 = vst [vmem:[%s135 + $0xee8] sm:$0xff] %v6247
        %6760 = vst [vmem:[%s135 + $0xef0] sm:$0xff] %v6248
        %6761 = vst [vmem:[%s135 + $0xef8] sm:$0xff] %v6249
        %6762 = vst [vmem:[%s135 + $0xf00] sm:$0xff] %v6250
        %6763 = vst [vmem:[%s135 + $0xf08] sm:$0xff] %v6251
        %6764 = vst [vmem:[%s135 + $0xf10] sm:$0xff] %v6252
        %6765 = vst [vmem:[%s135 + $0xf18] sm:$0xff] %v6253
        %6766 = vst [vmem:[%s135 + $0xf20] sm:$0xff] %v6254
        %6767 = vst [vmem:[%s135 + $0xf28] sm:$0xff] %v6255
        %6768 = vst [vmem:[%s135 + $0xf30] sm:$0xff] %v6256
        %6769 = vst [vmem:[%s135 + $0xf38] sm:$0xff] %v6257
        %6770 = vst [vmem:[%s135 + $0xf40] sm:$0xff] %v6258
        %6771 = vst [vmem:[%s135 + $0xf48] sm:$0xff] %v6259
        %6772 = vst [vmem:[%s135 + $0xf50] sm:$0xff] %v6260
        %6773 = vst [vmem:[%s135 + $0xf58] sm:$0xff] %v6261
        %6774 = vst [vmem:[%s135 + $0xf60] sm:$0xff] %v6262
        %6775 = vst [vmem:[%s135 + $0xf68] sm:$0xff] %v6263
        %6776 = vst [vmem:[%s135 + $0xf70] sm:$0xff] %v6264
        %6777 = vst [vmem:[%s135 + $0xf78] sm:$0xff] %v6265
        %6778 = vst [vmem:[%s135 + $0xf80] sm:$0xff] %v6266
        %6779 = vst [vmem:[%s135 + $0xf88] sm:$0xff] %v6267
        %6780 = vst [vmem:[%s135 + $0xf90] sm:$0xff] %v6268
        %6781 = vst [vmem:[%s135 + $0xf98] sm:$0xff] %v6269
        %6782 = vst [vmem:[%s135 + $0xfa0] sm:$0xff] %v6270
        %6783 = vst [vmem:[%s135 + $0xfa8] sm:$0xff] %v6271
        %6784 = vst [vmem:[%s135 + $0xfb0] sm:$0xff] %v6272
        %6785 = vst [vmem:[%s135 + $0xfb8] sm:$0xff] %v6273
        %6786 = vst [vmem:[%s135 + $0xfc0] sm:$0xff] %v6274
        %6787 = vst [vmem:[%s135 + $0xfc8] sm:$0xff] %v6275
        %6788 = vst [vmem:[%s135 + $0xfd0] sm:$0xff] %v6276
        %6789 = vst [vmem:[%s135 + $0xfd8] sm:$0xff] %v6277
        %6790 = vst [vmem:[%s135 + $0xfe0] sm:$0xff] %v6278
        %6791 = vst [vmem:[%s135 + $0xfe8] sm:$0xff] %v6279
        %6792 = vst [vmem:[%s135 + $0xff0] sm:$0xff] %v6280
        %6793 = vst [vmem:[%s135 + $0xff8] sm:$0xff] %v6281
        %s6794 = sand.u32 %s52, 1
        %s6795 = scalar_lea.sflag [#allocation4], %s6794
        %s6796 = sand.u32 %s52, 1
        %s6797 = smul.addr %s6796, 4096
        %s6798 = scalar_lea.vmem [#allocation5], %s6797
        // Predicated region
        $region29: #{tpu_custom_call.1} parent=23 // pred_check
          %p6799 = pneg %p62
        $region30: #{tpu_custom_call.1} parent=23 // pred_check_branch
          %6801 = sbr.rel (%p6799) target = $region32
        $region31: #{tpu_custom_call.1} parent=23 // pred_region
          %s6802 = smul.u32 8, %s18
          %s6804 = ssub.s32 65536, 65536
          %6805 = vsyncadd %s6795, %s6804
          %s6806 = smul.addr %s6802, 64
          %s6807 = smul.addr %s6806, 128
          %s6808 = scalar_lea.hbm %s1, %s6807
          %s6809 = sshll.u32 %s6798, 4
          %s6810 = int_to_ptr.vmem [resolvable:$true] %s6809
          %6815 = dma.vmem_to_hbm [thread:$0]  %s6810, 65536, %s6808, %s6795, 8192, 8192, 512
        $region32: #{tpu_custom_call.1} parent=23 // pred_fallthru
          _
      $region24: #{tpu_custom_call.1} parent=5 // pred_fallthru
        _
      %p6816 = scmp.le.s32.totalorder 2, %s13
      // Predicated region
      $region33: #{tpu_custom_call.1} parent=5 // pred_check
        %p6817 = pneg %p6816
      $region34: #{tpu_custom_call.1} parent=5 // pred_check_branch
        %6819 = sbr.rel (%p6817) target = $region36
      $region35: #{tpu_custom_call.1} parent=5 // pred_region
        %s6820 = ssub.s32 %s13, 2
        // Predicated region
        $region37: #{tpu_custom_call.1} parent=35 // pred_check
          %p6821 = pneg %p68
        $region38: #{tpu_custom_call.1} parent=35 // pred_check_branch
          %6823 = sbr.rel (%p6821) target = $region40
        $region39: #{tpu_custom_call.1} parent=35 // pred_region
          %s6824 = sand.u32 %s53, 1
          %s6825 = scalar_lea.sflag [#allocation4], %s6824
          %s6826 = sand.u32 %s53, 1
          %s6827 = smul.addr %s6826, 4096
          %s6828 = scalar_lea.vmem [#allocation5], %s6827
          %6829 = dma.done %s6825, 65536
        $region40: #{tpu_custom_call.1} parent=35 // pred_fallthru
          _
      $region36: #{tpu_custom_call.1} parent=5 // pred_fallthru
        _
    $region6: #{tpu_custom_call.1} parent=1 // loop_footer
      %s17 = sadd.s32 1, %s13
    $region7: #{tpu_custom_call.1} parent=1 // loop_footer_branch
      %12 = sbr.rel target = $region3
    $region8: #{tpu_custom_call.1} parent=1 // loop_exit
      _
    %6830 = vsyncpa [#allocation3], 1
    %s6831 = scalar_lea.sflag [#allocation3], 1
    %6832 = vsyncpa %s6831, 1
    %6833 = vsyncpa [#allocation4], 1
    %s6834 = scalar_lea.sflag [#allocation4], 1
    %6835 = vsyncpa %s6834, 1

</llo_original>
